<compile_context>
chip_gen: v7x
topology: tpu7x:2x2x1
jax: 0.10.0
libtpu: 0.0.40
codegen_flags: <defaults>
</compile_context>

<pallas_src>
import jax
import jax.numpy as jnp
from jax import lax
from jax.experimental import pallas as pl
from jax.experimental.pallas import tpu as pltpu

# ----------------------------- model dims -----------------------------------
IN_FEAT = 197 * 3          # 591
HID = 768                  # ln1 output features
TOKENS = 768               # middle dim implied by 589824 = 768 * 768
FLAT = TOKENS * HID        # 589824
NUM_CLASSES = 10
BATCH = 2

# ----------------------------- kernel tiling ---------------------------------
NH = 2                     # parallel halves of the token axis (-> v7x's 2 TensorCores)
TT = 192                   # tokens per grid step
SPH = TOKENS // (NH * TT)  # reduction steps per half = 2
TC = 32                    # token sub-chunk inside the kernel (keeps VPU temporaries in vregs)

assert TOKENS % (NH * TT) == 0
assert TT % TC == 0


# ----------------------------- fused kernel ----------------------------------
def fused_kernel(x_ref, w1t_ref, b1_ref, w2_ref, out_ref, h_scr, acc_ref):
    # x_ref:   (BATCH, TT, IN_FEAT)           f32
    # w1t_ref: (IN_FEAT, HID)                 bf16  (pre-transposed once at setup)
    # b1_ref:  (1, HID)                       f32
    # w2_ref:  (NUM_CLASSES, TT, HID)         bf16  (native (C, FLAT) viewed as (C, TOKENS, HID))
    # out_ref: (1, NUM_CLASSES, BATCH, HID)   f32   (per-half partials, folded in the wrapper)
    # h_scr:   VMEM (BATCH, TT, HID)          bf16
    # acc_ref: VMEM (NUM_CLASSES, BATCH, HID) f32
    j = pl.program_id(1)

    @pl.when(j == 0)
    def _init():
        acc_ref[...] = jnp.zeros_like(acc_ref)

    w1t = w1t_ref[...]                                   # (IN_FEAT, HID) bf16
    b1 = b1_ref[...]                                     # (1, HID) f32

    # ---- layer 1 on the MXU: h = relu(x @ W1^T + b1) for this token tile ----
    for b in range(BATCH):
        xb = x_ref[b].astype(jnp.bfloat16)                            # (TT, IN_FEAT)
        hb = jnp.dot(xb, w1t, preferred_element_type=jnp.float32)     # (TT, HID) f32
        h_scr[b] = jnp.maximum(hb + b1, 0.0).astype(jnp.bfloat16)

    # ---- layer 2 partial sums on the VPU ----
    # For every class: reduce this token tile to one (1, HID) vector per batch row (HID lane
    # axis kept unreduced), then do a single (BATCH, HID) accumulate into acc_ref.
    zero_row = jnp.zeros((1, HID), jnp.float32)
    n_chunks = TT // TC

    for c in range(NUM_CLASSES):

        def chunk_body(i, carry):
            rows = list(carry)
            t0 = pl.multiple_of(i * TC, TC)
            w_c = w2_ref[c, pl.ds(t0, TC), :]            # (TC, HID) bf16 -- loaded ONCE,
            for b in range(BATCH):                       # reused for every batch row
                h_b = h_scr[b, pl.ds(t0, TC), :]         # (TC, HID) bf16
                rows[b] = rows[b] + jnp.sum(h_b * w_c, axis=0, keepdims=True,
                                            dtype=jnp.float32)
            return tuple(rows)

        rows = lax.fori_loop(0, n_chunks, chunk_body, (zero_row,) * BATCH)
        acc_ref[c] = acc_ref[c] + jnp.concatenate(rows, axis=0)       # (BATCH, HID)

    @pl.when(j == pl.num_programs(1) - 1)
    def _flush():
        out_ref[0] = acc_ref[...]


# ----------------------------- wrapper ----------------------------------------
def prepare_params(w1, b1, w2, b2):
    """One-time parameter prep, OUTSIDE the jitted forward (no per-call HBM transpose pass)."""
    w1t = jnp.asarray(w1.T, dtype=jnp.bfloat16)                                   # (IN_FEAT, HID)
    b1r = jnp.asarray(b1, dtype=jnp.float32).reshape(1, HID)                      # (1, HID)
    w2r = jnp.asarray(w2.reshape(NUM_CLASSES, TOKENS, HID), dtype=jnp.bfloat16)   # (C, T, H)
    b2f = jnp.asarray(b2, dtype=jnp.float32)                                      # (C,)
    return w1t, b1r, w2r, b2f


@jax.jit
def image_classifier_forward(x, w1t, b1, w2r, b2):
    parts = pl.pallas_call(
        fused_kernel,
        out_shape=jax.ShapeDtypeStruct((NH, NUM_CLASSES, BATCH, HID), jnp.float32),
        grid_spec=pltpu.PrefetchScalarGridSpec(
            num_scalar_prefetch=0,
            grid=(NH, SPH),
            in_specs=[
                pl.BlockSpec((BATCH, TT, IN_FEAT), lambda hh, j: (0, hh * SPH + j, 0)),
                pl.BlockSpec((IN_FEAT, HID), lambda hh, j: (0, 0)),
                pl.BlockSpec((1, HID), lambda hh, j: (0, 0)),
                pl.BlockSpec((NUM_CLASSES, TT, HID), lambda hh, j: (0, hh * SPH + j, 0)),
            ],
            out_specs=pl.BlockSpec((1, NUM_CLASSES, BATCH, HID), lambda hh, j: (hh, 0, 0, 0)),
            scratch_shapes=[
                pltpu.VMEM((BATCH, TT, HID), jnp.bfloat16),            # hidden tile (never hits HBM)
                pltpu.VMEM((NUM_CLASSES, BATCH, HID), jnp.float32),    # per-(class,batch) accumulators
            ],
        ),
        compiler_params=pltpu.CompilerParams(
            dimension_semantics=("parallel", "arbitrary"),
            vmem_limit_bytes=32 * 1024 * 1024,
        ),
    )(x, w1t, b1, w2r)
    # Tiny epilogue: combine the two halves, fold the HID axis, add the bias.
    z = parts.sum(axis=(0, 3)).T + b2        # (BATCH, NUM_CLASSES)
    return z


# ---------------------------------- main ---------------------------------------
if __name__ == "__main__":
    key = jax.random.PRNGKey(0)
    kx, k1, k2, k3, k4 = jax.random.split(key, 5)

    x = jax.random.normal(kx, (BATCH, TOKENS, IN_FEAT), dtype=jnp.float32)

    # Deterministic synthetic parameters (nn.Linear shapes / layouts).
    w1 = jax.random.normal(k1, (HID, IN_FEAT), dtype=jnp.float32) * 0.02
    b1 = jax.random.normal(k2, (HID,), dtype=jnp.float32) * 0.02
    w2 = jax.random.normal(k3, (NUM_CLASSES, FLAT), dtype=jnp.float32) * 0.002
    b2 = jax.random.normal(k4, (NUM_CLASSES,), dtype=jnp.float32) * 0.02

    params = prepare_params(w1, b1, w2, b2)
    out = image_classifier_forward(x, *params)
    out = jax.block_until_ready(out)

    # Pure-JAX f32 reference (PyTorch semantics).
    h_ref = jnp.maximum(x @ w1.T + b1, 0.0)
    z_ref = h_ref.reshape(BATCH, -1) @ w2.T + b2

    assert out.shape == (BATCH, NUM_CLASSES)
    max_err = float(jnp.max(jnp.abs(out - z_ref)))
    # Weights/activations streamed in bf16 with f32 accumulation -> relaxed tolerance.
    assert jnp.allclose(out, z_ref, rtol=3e-2, atol=3e-2), (
        f"mismatch vs reference (max abs err {max_err:.4e})")

    print("KERNEL_OK")
</pallas_src>

<mosaic_0001>
module attributes {stable_mosaic.version = 11 : i64} {
  func.func @fused_kernel(%arg0: i32, %arg1: i32, %arg2: memref<2x192x591xf32, #tpu.memory_space<vmem>>, %arg3: memref<591x768xbf16, #tpu.memory_space<vmem>>, %arg4: memref<1x768xf32, #tpu.memory_space<vmem>>, %arg5: memref<10x192x768xbf16, #tpu.memory_space<vmem>>, %arg6: memref<1x10x2x768xf32, #tpu.memory_space<vmem>>, %arg7: memref<2x192x768xbf16, #tpu.memory_space<vmem>>, %arg8: memref<10x2x768xf32, #tpu.memory_space<vmem>>) attributes {dimension_semantics = [#tpu.dimension_semantics<parallel>, #tpu.dimension_semantics<arbitrary>], iteration_bounds = array<i64: 2, 2>, scalar_prefetch = 0 : i64, scratch_operands = 2 : i64, tpu.core_type = #tpu.core_type<tc>, window_params = [{transform_indices = @transform_0, window_bounds = array<i64: 2, 192, 591>}, {pipeline_mode = #tpu.pipeline_mode<synchronous>, transform_indices = @transform_1, window_bounds = array<i64: 591, 768>}, {pipeline_mode = #tpu.pipeline_mode<synchronous>, transform_indices = @transform_2, window_bounds = array<i64: 1, 768>}, {transform_indices = @transform_3, window_bounds = array<i64: 10, 192, 768>}, {transform_indices = @transform_4, window_bounds = array<i64: 1, 10, 2, 768>}]} {
    %c0_i32 = arith.constant 0 : i32
    %0 = arith.cmpi eq, %arg1, %c0_i32 : i32
    %1 = arith.extui %0 : i1 to i32
    %c0_i32_0 = arith.constant 0 : i32
    %2 = arith.cmpi ne, %1, %c0_i32_0 : i32
    scf.if %2 {
      %cst_111 = arith.constant 0.000000e+00 : f32
      %123 = vector.broadcast %cst_111 : f32 to vector<10x2x768xf32>
      %c0_112 = arith.constant 0 : index
      %c0_113 = arith.constant 0 : index
      %c0_114 = arith.constant 0 : index
      %124 = vector.load %arg8[%c0_112, %c0_113, %c0_114] : memref<10x2x768xf32, #tpu.memory_space<vmem>>, vector<10x2x768xf32>
      tpu.vector_store %arg8[%c0_112, %c0_113, %c0_114], %123 {strides = array<i32>} : memref<10x2x768xf32, #tpu.memory_space<vmem>>, vector<10x2x768xf32>,
    } else {
    }
    %c0 = arith.constant 0 : index
    %c0_1 = arith.constant 0 : index
    %3 = vector.load %arg3[%c0, %c0_1] : memref<591x768xbf16, #tpu.memory_space<vmem>>, vector<591x768xbf16>
    %c0_2 = arith.constant 0 : index
    %c0_3 = arith.constant 0 : index
    %4 = vector.load %arg4[%c0_2, %c0_3] : memref<1x768xf32, #tpu.memory_space<vmem>>, vector<1x768xf32>
    %c0_4 = arith.constant 0 : index
    %c0_5 = arith.constant 0 : index
    %c0_6 = arith.constant 0 : index
    %5 = vector.load %arg2[%c0_4, %c0_5, %c0_6] : memref<2x192x591xf32, #tpu.memory_space<vmem>>, vector<1x192x591xf32>
    %6 = vector.shape_cast %5 : vector<1x192x591xf32> to vector<192x591xf32>
    %7 = arith.truncf %6 : vector<192x591xf32> to vector<192x591xbf16>
    %cst = arith.constant dense<0.000000e+00> : vector<192x768xf32>
    %8 = tpu.matmul %7, %3, %cst {dimension_numbers = #tpu.dot_dimension_numbers<[1], [0], [0], [1], [0, 0, 1, 1], [], []>} : vector<192x591xbf16>, vector<591x768xbf16>, vector<192x768xf32> -> vector<192x768xf32>
    %9 = vector.broadcast %4 : vector<1x768xf32> to vector<192x768xf32>
    %10 = arith.addf %8, %9 : vector<192x768xf32>
    %cst_7 = arith.constant 0.000000e+00 : f32
    %11 = vector.broadcast %cst_7 : f32 to vector<192x768xf32>
    %12 = arith.maximumf %10, %11 : vector<192x768xf32>
    %13 = arith.truncf %12 : vector<192x768xf32> to vector<192x768xbf16>
    %c0_8 = arith.constant 0 : index
    %c0_9 = arith.constant 0 : index
    %c0_10 = arith.constant 0 : index
    %14 = vector.load %arg7[%c0_8, %c0_9, %c0_10] : memref<2x192x768xbf16, #tpu.memory_space<vmem>>, vector<1x192x768xbf16>
    %15 = vector.shape_cast %14 : vector<1x192x768xbf16> to vector<192x768xbf16>
    %16 = vector.shape_cast %13 : vector<192x768xbf16> to vector<1x192x768xbf16>
    tpu.vector_store %arg7[%c0_8, %c0_9, %c0_10], %16 {strides = array<i32>} : memref<2x192x768xbf16, #tpu.memory_space<vmem>>, vector<1x192x768xbf16>,
    %c1 = arith.constant 1 : index
    %c0_11 = arith.constant 0 : index
    %c0_12 = arith.constant 0 : index
    %17 = vector.load %arg2[%c1, %c0_11, %c0_12] : memref<2x192x591xf32, #tpu.memory_space<vmem>>, vector<1x192x591xf32>
    %18 = vector.shape_cast %17 : vector<1x192x591xf32> to vector<192x591xf32>
    %19 = arith.truncf %18 : vector<192x591xf32> to vector<192x591xbf16>
    %cst_13 = arith.constant dense<0.000000e+00> : vector<192x768xf32>
    %20 = tpu.matmul %19, %3, %cst_13 {dimension_numbers = #tpu.dot_dimension_numbers<[1], [0], [0], [1], [0, 0, 1, 1], [], []>} : vector<192x591xbf16>, vector<591x768xbf16>, vector<192x768xf32> -> vector<192x768xf32>
    %21 = vector.broadcast %4 : vector<1x768xf32> to vector<192x768xf32>
    %22 = arith.addf %20, %21 : vector<192x768xf32>
    %cst_14 = arith.constant 0.000000e+00 : f32
    %23 = vector.broadcast %cst_14 : f32 to vector<192x768xf32>
    %24 = arith.maximumf %22, %23 : vector<192x768xf32>
    %25 = arith.truncf %24 : vector<192x768xf32> to vector<192x768xbf16>
    %c1_15 = arith.constant 1 : index
    %c0_16 = arith.constant 0 : index
    %c0_17 = arith.constant 0 : index
    %26 = vector.load %arg7[%c1_15, %c0_16, %c0_17] : memref<2x192x768xbf16, #tpu.memory_space<vmem>>, vector<1x192x768xbf16>
    %27 = vector.shape_cast %26 : vector<1x192x768xbf16> to vector<192x768xbf16>
    %28 = vector.shape_cast %25 : vector<192x768xbf16> to vector<1x192x768xbf16>
    tpu.vector_store %arg7[%c1_15, %c0_16, %c0_17], %28 {strides = array<i32>} : memref<2x192x768xbf16, #tpu.memory_space<vmem>>, vector<1x192x768xbf16>,
    %cst_18 = arith.constant 0.000000e+00 : f32
    %29 = vector.broadcast %cst_18 : f32 to vector<1x768xf32>
    %c0_i32_19 = arith.constant 0 : i32
    %c6_i32 = arith.constant 6 : i32
    %30 = arith.addi %c0_i32_19, %c6_i32 : i32
    %c1_i32 = arith.constant 1 : i32
    %31:2 = scf.for %arg9 = %c0_i32_19 to %30 step %c1_i32 iter_args(%arg10 = %29, %arg11 = %29) -> (vector<1x768xf32>, vector<1x768xf32>)  : i32 {
      %c32_i32 = arith.constant 32 : i32
      %123 = arith.muli %arg9, %c32_i32 : i32
      %124 = tpu.assume_multiple %123, 32 : i32
      %c0_111 = arith.constant 0 : index
      %125 = arith.index_cast %124 : i32 to index
      %c0_112 = arith.constant 0 : index
      %126 = vector.load %arg5[%c0_111, %125, %c0_112] : memref<10x192x768xbf16, #tpu.memory_space<vmem>>, vector<1x32x768xbf16>
      %127 = vector.shape_cast %126 : vector<1x32x768xbf16> to vector<32x768xbf16>
      %c0_113 = arith.constant 0 : index
      %128 = arith.index_cast %124 : i32 to index
      %c0_114 = arith.constant 0 : index
      %129 = vector.load %arg7[%c0_113, %128, %c0_114] : memref<2x192x768xbf16, #tpu.memory_space<vmem>>, vector<1x32x768xbf16>
      %130 = vector.shape_cast %129 : vector<1x32x768xbf16> to vector<32x768xbf16>
      %131 = arith.mulf %130, %127 : vector<32x768xbf16>
      %132 = arith.extf %131 : vector<32x768xbf16> to vector<32x768xf32>
      %cst_115 = arith.constant dense<0.000000e+00> : vector<768xf32>
      %133 = vector.multi_reduction <add>, %132, %cst_115 [0] : vector<32x768xf32> to vector<768xf32>
      %134 = vector.shape_cast %133 : vector<768xf32> to vector<1x768xf32>
      %135 = arith.addf %arg10, %134 : vector<1x768xf32>
      %c1_116 = arith.constant 1 : index
      %136 = arith.index_cast %124 : i32 to index
      %c0_117 = arith.constant 0 : index
      %137 = vector.load %arg7[%c1_116, %136, %c0_117] : memref<2x192x768xbf16, #tpu.memory_space<vmem>>, vector<1x32x768xbf16>
      %138 = vector.shape_cast %137 : vector<1x32x768xbf16> to vector<32x768xbf16>
      %139 = arith.mulf %138, %127 : vector<32x768xbf16>
      %140 = arith.extf %139 : vector<32x768xbf16> to vector<32x768xf32>
      %cst_118 = arith.constant dense<0.000000e+00> : vector<768xf32>
      %141 = vector.multi_reduction <add>, %140, %cst_118 [0] : vector<32x768xf32> to vector<768xf32>
      %142 = vector.shape_cast %141 : vector<768xf32> to vector<1x768xf32>
      %143 = arith.addf %arg11, %142 : vector<1x768xf32>
      scf.yield %135, %143 : vector<1x768xf32>, vector<1x768xf32>
    }
    %c6_i32_20 = arith.constant 6 : i32
    %c0_21 = arith.constant 0 : index
    %c0_22 = arith.constant 0 : index
    %c0_23 = arith.constant 0 : index
    %32 = vector.load %arg8[%c0_21, %c0_22, %c0_23] : memref<10x2x768xf32, #tpu.memory_space<vmem>>, vector<1x2x768xf32>
    %33 = vector.shape_cast %32 : vector<1x2x768xf32> to vector<2x768xf32>
    %34 = tpu.concatenate %31#0, %31#1 in 0 : vector<1x768xf32>, vector<1x768xf32> -> vector<2x768xf32>
    %35 = arith.addf %33, %34 : vector<2x768xf32>
    %c0_24 = arith.constant 0 : index
    %c0_25 = arith.constant 0 : index
    %c0_26 = arith.constant 0 : index
    %36 = vector.load %arg8[%c0_24, %c0_25, %c0_26] : memref<10x2x768xf32, #tpu.memory_space<vmem>>, vector<1x2x768xf32>
    %37 = vector.shape_cast %36 : vector<1x2x768xf32> to vector<2x768xf32>
    %38 = vector.shape_cast %35 : vector<2x768xf32> to vector<1x2x768xf32>
    tpu.vector_store %arg8[%c0_24, %c0_25, %c0_26], %38 {strides = array<i32>} : memref<10x2x768xf32, #tpu.memory_space<vmem>>, vector<1x2x768xf32>,
    %c0_i32_27 = arith.constant 0 : i32
    %c6_i32_28 = arith.constant 6 : i32
    %39 = arith.addi %c0_i32_27, %c6_i32_28 : i32
    %c1_i32_29 = arith.constant 1 : i32
    %40:2 = scf.for %arg9 = %c0_i32_27 to %39 step %c1_i32_29 iter_args(%arg10 = %29, %arg11 = %29) -> (vector<1x768xf32>, vector<1x768xf32>)  : i32 {
      %c32_i32 = arith.constant 32 : i32
      %123 = arith.muli %arg9, %c32_i32 : i32
      %124 = tpu.assume_multiple %123, 32 : i32
      %c1_111 = arith.constant 1 : index
      %125 = arith.index_cast %124 : i32 to index
      %c0_112 = arith.constant 0 : index
      %126 = vector.load %arg5[%c1_111, %125, %c0_112] : memref<10x192x768xbf16, #tpu.memory_space<vmem>>, vector<1x32x768xbf16>
      %127 = vector.shape_cast %126 : vector<1x32x768xbf16> to vector<32x768xbf16>
      %c0_113 = arith.constant 0 : index
      %128 = arith.index_cast %124 : i32 to index
      %c0_114 = arith.constant 0 : index
      %129 = vector.load %arg7[%c0_113, %128, %c0_114] : memref<2x192x768xbf16, #tpu.memory_space<vmem>>, vector<1x32x768xbf16>
      %130 = vector.shape_cast %129 : vector<1x32x768xbf16> to vector<32x768xbf16>
      %131 = arith.mulf %130, %127 : vector<32x768xbf16>
      %132 = arith.extf %131 : vector<32x768xbf16> to vector<32x768xf32>
      %cst_115 = arith.constant dense<0.000000e+00> : vector<768xf32>
      %133 = vector.multi_reduction <add>, %132, %cst_115 [0] : vector<32x768xf32> to vector<768xf32>
      %134 = vector.shape_cast %133 : vector<768xf32> to vector<1x768xf32>
      %135 = arith.addf %arg10, %134 : vector<1x768xf32>
      %c1_116 = arith.constant 1 : index
      %136 = arith.index_cast %124 : i32 to index
      %c0_117 = arith.constant 0 : index
      %137 = vector.load %arg7[%c1_116, %136, %c0_117] : memref<2x192x768xbf16, #tpu.memory_space<vmem>>, vector<1x32x768xbf16>
      %138 = vector.shape_cast %137 : vector<1x32x768xbf16> to vector<32x768xbf16>
      %139 = arith.mulf %138, %127 : vector<32x768xbf16>
      %140 = arith.extf %139 : vector<32x768xbf16> to vector<32x768xf32>
      %cst_118 = arith.constant dense<0.000000e+00> : vector<768xf32>
      %141 = vector.multi_reduction <add>, %140, %cst_118 [0] : vector<32x768xf32> to vector<768xf32>
      %142 = vector.shape_cast %141 : vector<768xf32> to vector<1x768xf32>
      %143 = arith.addf %arg11, %142 : vector<1x768xf32>
      scf.yield %135, %143 : vector<1x768xf32>, vector<1x768xf32>
    }
    %c6_i32_30 = arith.constant 6 : i32
    %c1_31 = arith.constant 1 : index
    %c0_32 = arith.constant 0 : index
    %c0_33 = arith.constant 0 : index
    %41 = vector.load %arg8[%c1_31, %c0_32, %c0_33] : memref<10x2x768xf32, #tpu.memory_space<vmem>>, vector<1x2x768xf32>
    %42 = vector.shape_cast %41 : vector<1x2x768xf32> to vector<2x768xf32>
    %43 = tpu.concatenate %40#0, %40#1 in 0 : vector<1x768xf32>, vector<1x768xf32> -> vector<2x768xf32>
    %44 = arith.addf %42, %43 : vector<2x768xf32>
    %c1_34 = arith.constant 1 : index
    %c0_35 = arith.constant 0 : index
    %c0_36 = arith.constant 0 : index
    %45 = vector.load %arg8[%c1_34, %c0_35, %c0_36] : memref<10x2x768xf32, #tpu.memory_space<vmem>>, vector<1x2x768xf32>
    %46 = vector.shape_cast %45 : vector<1x2x768xf32> to vector<2x768xf32>
    %47 = vector.shape_cast %44 : vector<2x768xf32> to vector<1x2x768xf32>
    tpu.vector_store %arg8[%c1_34, %c0_35, %c0_36], %47 {strides = array<i32>} : memref<10x2x768xf32, #tpu.memory_space<vmem>>, vector<1x2x768xf32>,
    %c0_i32_37 = arith.constant 0 : i32
    %c6_i32_38 = arith.constant 6 : i32
    %48 = arith.addi %c0_i32_37, %c6_i32_38 : i32
    %c1_i32_39 = arith.constant 1 : i32
    %49:2 = scf.for %arg9 = %c0_i32_37 to %48 step %c1_i32_39 iter_args(%arg10 = %29, %arg11 = %29) -> (vector<1x768xf32>, vector<1x768xf32>)  : i32 {
      %c32_i32 = arith.constant 32 : i32
      %123 = arith.muli %arg9, %c32_i32 : i32
      %124 = tpu.assume_multiple %123, 32 : i32
      %c2_111 = arith.constant 2 : index
      %125 = arith.index_cast %124 : i32 to index
      %c0_112 = arith.constant 0 : index
      %126 = vector.load %arg5[%c2_111, %125, %c0_112] : memref<10x192x768xbf16, #tpu.memory_space<vmem>>, vector<1x32x768xbf16>
      %127 = vector.shape_cast %126 : vector<1x32x768xbf16> to vector<32x768xbf16>
      %c0_113 = arith.constant 0 : index
      %128 = arith.index_cast %124 : i32 to index
      %c0_114 = arith.constant 0 : index
      %129 = vector.load %arg7[%c0_113, %128, %c0_114] : memref<2x192x768xbf16, #tpu.memory_space<vmem>>, vector<1x32x768xbf16>
      %130 = vector.shape_cast %129 : vector<1x32x768xbf16> to vector<32x768xbf16>
      %131 = arith.mulf %130, %127 : vector<32x768xbf16>
      %132 = arith.extf %131 : vector<32x768xbf16> to vector<32x768xf32>
      %cst_115 = arith.constant dense<0.000000e+00> : vector<768xf32>
      %133 = vector.multi_reduction <add>, %132, %cst_115 [0] : vector<32x768xf32> to vector<768xf32>
      %134 = vector.shape_cast %133 : vector<768xf32> to vector<1x768xf32>
      %135 = arith.addf %arg10, %134 : vector<1x768xf32>
      %c1_116 = arith.constant 1 : index
      %136 = arith.index_cast %124 : i32 to index
      %c0_117 = arith.constant 0 : index
      %137 = vector.load %arg7[%c1_116, %136, %c0_117] : memref<2x192x768xbf16, #tpu.memory_space<vmem>>, vector<1x32x768xbf16>
      %138 = vector.shape_cast %137 : vector<1x32x768xbf16> to vector<32x768xbf16>
      %139 = arith.mulf %138, %127 : vector<32x768xbf16>
      %140 = arith.extf %139 : vector<32x768xbf16> to vector<32x768xf32>
      %cst_118 = arith.constant dense<0.000000e+00> : vector<768xf32>
      %141 = vector.multi_reduction <add>, %140, %cst_118 [0] : vector<32x768xf32> to vector<768xf32>
      %142 = vector.shape_cast %141 : vector<768xf32> to vector<1x768xf32>
      %143 = arith.addf %arg11, %142 : vector<1x768xf32>
      scf.yield %135, %143 : vector<1x768xf32>, vector<1x768xf32>
    }
    %c6_i32_40 = arith.constant 6 : i32
    %c2 = arith.constant 2 : index
    %c0_41 = arith.constant 0 : index
    %c0_42 = arith.constant 0 : index
    %50 = vector.load %arg8[%c2, %c0_41, %c0_42] : memref<10x2x768xf32, #tpu.memory_space<vmem>>, vector<1x2x768xf32>
    %51 = vector.shape_cast %50 : vector<1x2x768xf32> to vector<2x768xf32>
    %52 = tpu.concatenate %49#0, %49#1 in 0 : vector<1x768xf32>, vector<1x768xf32> -> vector<2x768xf32>
    %53 = arith.addf %51, %52 : vector<2x768xf32>
    %c2_43 = arith.constant 2 : index
    %c0_44 = arith.constant 0 : index
    %c0_45 = arith.constant 0 : index
    %54 = vector.load %arg8[%c2_43, %c0_44, %c0_45] : memref<10x2x768xf32, #tpu.memory_space<vmem>>, vector<1x2x768xf32>
    %55 = vector.shape_cast %54 : vector<1x2x768xf32> to vector<2x768xf32>
    %56 = vector.shape_cast %53 : vector<2x768xf32> to vector<1x2x768xf32>
    tpu.vector_store %arg8[%c2_43, %c0_44, %c0_45], %56 {strides = array<i32>} : memref<10x2x768xf32, #tpu.memory_space<vmem>>, vector<1x2x768xf32>,
    %c0_i32_46 = arith.constant 0 : i32
    %c6_i32_47 = arith.constant 6 : i32
    %57 = arith.addi %c0_i32_46, %c6_i32_47 : i32
    %c1_i32_48 = arith.constant 1 : i32
    %58:2 = scf.for %arg9 = %c0_i32_46 to %57 step %c1_i32_48 iter_args(%arg10 = %29, %arg11 = %29) -> (vector<1x768xf32>, vector<1x768xf32>)  : i32 {
      %c32_i32 = arith.constant 32 : i32
      %123 = arith.muli %arg9, %c32_i32 : i32
      %124 = tpu.assume_multiple %123, 32 : i32
      %c3_111 = arith.constant 3 : index
      %125 = arith.index_cast %124 : i32 to index
      %c0_112 = arith.constant 0 : index
      %126 = vector.load %arg5[%c3_111, %125, %c0_112] : memref<10x192x768xbf16, #tpu.memory_space<vmem>>, vector<1x32x768xbf16>
      %127 = vector.shape_cast %126 : vector<1x32x768xbf16> to vector<32x768xbf16>
      %c0_113 = arith.constant 0 : index
      %128 = arith.index_cast %124 : i32 to index
      %c0_114 = arith.constant 0 : index
      %129 = vector.load %arg7[%c0_113, %128, %c0_114] : memref<2x192x768xbf16, #tpu.memory_space<vmem>>, vector<1x32x768xbf16>
      %130 = vector.shape_cast %129 : vector<1x32x768xbf16> to vector<32x768xbf16>
      %131 = arith.mulf %130, %127 : vector<32x768xbf16>
      %132 = arith.extf %131 : vector<32x768xbf16> to vector<32x768xf32>
      %cst_115 = arith.constant dense<0.000000e+00> : vector<768xf32>
      %133 = vector.multi_reduction <add>, %132, %cst_115 [0] : vector<32x768xf32> to vector<768xf32>
      %134 = vector.shape_cast %133 : vector<768xf32> to vector<1x768xf32>
      %135 = arith.addf %arg10, %134 : vector<1x768xf32>
      %c1_116 = arith.constant 1 : index
      %136 = arith.index_cast %124 : i32 to index
      %c0_117 = arith.constant 0 : index
      %137 = vector.load %arg7[%c1_116, %136, %c0_117] : memref<2x192x768xbf16, #tpu.memory_space<vmem>>, vector<1x32x768xbf16>
      %138 = vector.shape_cast %137 : vector<1x32x768xbf16> to vector<32x768xbf16>
      %139 = arith.mulf %138, %127 : vector<32x768xbf16>
      %140 = arith.extf %139 : vector<32x768xbf16> to vector<32x768xf32>
      %cst_118 = arith.constant dense<0.000000e+00> : vector<768xf32>
      %141 = vector.multi_reduction <add>, %140, %cst_118 [0] : vector<32x768xf32> to vector<768xf32>
      %142 = vector.shape_cast %141 : vector<768xf32> to vector<1x768xf32>
      %143 = arith.addf %arg11, %142 : vector<1x768xf32>
      scf.yield %135, %143 : vector<1x768xf32>, vector<1x768xf32>
    }
    %c6_i32_49 = arith.constant 6 : i32
    %c3 = arith.constant 3 : index
    %c0_50 = arith.constant 0 : index
    %c0_51 = arith.constant 0 : index
    %59 = vector.load %arg8[%c3, %c0_50, %c0_51] : memref<10x2x768xf32, #tpu.memory_space<vmem>>, vector<1x2x768xf32>
    %60 = vector.shape_cast %59 : vector<1x2x768xf32> to vector<2x768xf32>
    %61 = tpu.concatenate %58#0, %58#1 in 0 : vector<1x768xf32>, vector<1x768xf32> -> vector<2x768xf32>
    %62 = arith.addf %60, %61 : vector<2x768xf32>
    %c3_52 = arith.constant 3 : index
    %c0_53 = arith.constant 0 : index
    %c0_54 = arith.constant 0 : index
    %63 = vector.load %arg8[%c3_52, %c0_53, %c0_54] : memref<10x2x768xf32, #tpu.memory_space<vmem>>, vector<1x2x768xf32>
    %64 = vector.shape_cast %63 : vector<1x2x768xf32> to vector<2x768xf32>
    %65 = vector.shape_cast %62 : vector<2x768xf32> to vector<1x2x768xf32>
    tpu.vector_store %arg8[%c3_52, %c0_53, %c0_54], %65 {strides = array<i32>} : memref<10x2x768xf32, #tpu.memory_space<vmem>>, vector<1x2x768xf32>,
    %c0_i32_55 = arith.constant 0 : i32
    %c6_i32_56 = arith.constant 6 : i32
    %66 = arith.addi %c0_i32_55, %c6_i32_56 : i32
    %c1_i32_57 = arith.constant 1 : i32
    %67:2 = scf.for %arg9 = %c0_i32_55 to %66 step %c1_i32_57 iter_args(%arg10 = %29, %arg11 = %29) -> (vector<1x768xf32>, vector<1x768xf32>)  : i32 {
      %c32_i32 = arith.constant 32 : i32
      %123 = arith.muli %arg9, %c32_i32 : i32
      %124 = tpu.assume_multiple %123, 32 : i32
      %c4_111 = arith.constant 4 : index
      %125 = arith.index_cast %124 : i32 to index
      %c0_112 = arith.constant 0 : index
      %126 = vector.load %arg5[%c4_111, %125, %c0_112] : memref<10x192x768xbf16, #tpu.memory_space<vmem>>, vector<1x32x768xbf16>
      %127 = vector.shape_cast %126 : vector<1x32x768xbf16> to vector<32x768xbf16>
      %c0_113 = arith.constant 0 : index
      %128 = arith.index_cast %124 : i32 to index
      %c0_114 = arith.constant 0 : index
      %129 = vector.load %arg7[%c0_113, %128, %c0_114] : memref<2x192x768xbf16, #tpu.memory_space<vmem>>, vector<1x32x768xbf16>
      %130 = vector.shape_cast %129 : vector<1x32x768xbf16> to vector<32x768xbf16>
      %131 = arith.mulf %130, %127 : vector<32x768xbf16>
      %132 = arith.extf %131 : vector<32x768xbf16> to vector<32x768xf32>
      %cst_115 = arith.constant dense<0.000000e+00> : vector<768xf32>
      %133 = vector.multi_reduction <add>, %132, %cst_115 [0] : vector<32x768xf32> to vector<768xf32>
      %134 = vector.shape_cast %133 : vector<768xf32> to vector<1x768xf32>
      %135 = arith.addf %arg10, %134 : vector<1x768xf32>
      %c1_116 = arith.constant 1 : index
      %136 = arith.index_cast %124 : i32 to index
      %c0_117 = arith.constant 0 : index
      %137 = vector.load %arg7[%c1_116, %136, %c0_117] : memref<2x192x768xbf16, #tpu.memory_space<vmem>>, vector<1x32x768xbf16>
      %138 = vector.shape_cast %137 : vector<1x32x768xbf16> to vector<32x768xbf16>
      %139 = arith.mulf %138, %127 : vector<32x768xbf16>
      %140 = arith.extf %139 : vector<32x768xbf16> to vector<32x768xf32>
      %cst_118 = arith.constant dense<0.000000e+00> : vector<768xf32>
      %141 = vector.multi_reduction <add>, %140, %cst_118 [0] : vector<32x768xf32> to vector<768xf32>
      %142 = vector.shape_cast %141 : vector<768xf32> to vector<1x768xf32>
      %143 = arith.addf %arg11, %142 : vector<1x768xf32>
      scf.yield %135, %143 : vector<1x768xf32>, vector<1x768xf32>
    }
    %c6_i32_58 = arith.constant 6 : i32
    %c4 = arith.constant 4 : index
    %c0_59 = arith.constant 0 : index
    %c0_60 = arith.constant 0 : index
    %68 = vector.load %arg8[%c4, %c0_59, %c0_60] : memref<10x2x768xf32, #tpu.memory_space<vmem>>, vector<1x2x768xf32>
    %69 = vector.shape_cast %68 : vector<1x2x768xf32> to vector<2x768xf32>
    %70 = tpu.concatenate %67#0, %67#1 in 0 : vector<1x768xf32>, vector<1x768xf32> -> vector<2x768xf32>
    %71 = arith.addf %69, %70 : vector<2x768xf32>
    %c4_61 = arith.constant 4 : index
    %c0_62 = arith.constant 0 : index
    %c0_63 = arith.constant 0 : index
    %72 = vector.load %arg8[%c4_61, %c0_62, %c0_63] : memref<10x2x768xf32, #tpu.memory_space<vmem>>, vector<1x2x768xf32>
    %73 = vector.shape_cast %72 : vector<1x2x768xf32> to vector<2x768xf32>
    %74 = vector.shape_cast %71 : vector<2x768xf32> to vector<1x2x768xf32>
    tpu.vector_store %arg8[%c4_61, %c0_62, %c0_63], %74 {strides = array<i32>} : memref<10x2x768xf32, #tpu.memory_space<vmem>>, vector<1x2x768xf32>,
    %c0_i32_64 = arith.constant 0 : i32
    %c6_i32_65 = arith.constant 6 : i32
    %75 = arith.addi %c0_i32_64, %c6_i32_65 : i32
    %c1_i32_66 = arith.constant 1 : i32
    %76:2 = scf.for %arg9 = %c0_i32_64 to %75 step %c1_i32_66 iter_args(%arg10 = %29, %arg11 = %29) -> (vector<1x768xf32>, vector<1x768xf32>)  : i32 {
      %c32_i32 = arith.constant 32 : i32
      %123 = arith.muli %arg9, %c32_i32 : i32
      %124 = tpu.assume_multiple %123, 32 : i32
      %c5_111 = arith.constant 5 : index
      %125 = arith.index_cast %124 : i32 to index
      %c0_112 = arith.constant 0 : index
      %126 = vector.load %arg5[%c5_111, %125, %c0_112] : memref<10x192x768xbf16, #tpu.memory_space<vmem>>, vector<1x32x768xbf16>
      %127 = vector.shape_cast %126 : vector<1x32x768xbf16> to vector<32x768xbf16>
      %c0_113 = arith.constant 0 : index
      %128 = arith.index_cast %124 : i32 to index
      %c0_114 = arith.constant 0 : index
      %129 = vector.load %arg7[%c0_113, %128, %c0_114] : memref<2x192x768xbf16, #tpu.memory_space<vmem>>, vector<1x32x768xbf16>
      %130 = vector.shape_cast %129 : vector<1x32x768xbf16> to vector<32x768xbf16>
      %131 = arith.mulf %130, %127 : vector<32x768xbf16>
      %132 = arith.extf %131 : vector<32x768xbf16> to vector<32x768xf32>
      %cst_115 = arith.constant dense<0.000000e+00> : vector<768xf32>
      %133 = vector.multi_reduction <add>, %132, %cst_115 [0] : vector<32x768xf32> to vector<768xf32>
      %134 = vector.shape_cast %133 : vector<768xf32> to vector<1x768xf32>
      %135 = arith.addf %arg10, %134 : vector<1x768xf32>
      %c1_116 = arith.constant 1 : index
      %136 = arith.index_cast %124 : i32 to index
      %c0_117 = arith.constant 0 : index
      %137 = vector.load %arg7[%c1_116, %136, %c0_117] : memref<2x192x768xbf16, #tpu.memory_space<vmem>>, vector<1x32x768xbf16>
      %138 = vector.shape_cast %137 : vector<1x32x768xbf16> to vector<32x768xbf16>
      %139 = arith.mulf %138, %127 : vector<32x768xbf16>
      %140 = arith.extf %139 : vector<32x768xbf16> to vector<32x768xf32>
      %cst_118 = arith.constant dense<0.000000e+00> : vector<768xf32>
      %141 = vector.multi_reduction <add>, %140, %cst_118 [0] : vector<32x768xf32> to vector<768xf32>
      %142 = vector.shape_cast %141 : vector<768xf32> to vector<1x768xf32>
      %143 = arith.addf %arg11, %142 : vector<1x768xf32>
      scf.yield %135, %143 : vector<1x768xf32>, vector<1x768xf32>
    }
    %c6_i32_67 = arith.constant 6 : i32
    %c5 = arith.constant 5 : index
    %c0_68 = arith.constant 0 : index
    %c0_69 = arith.constant 0 : index
    %77 = vector.load %arg8[%c5, %c0_68, %c0_69] : memref<10x2x768xf32, #tpu.memory_space<vmem>>, vector<1x2x768xf32>
    %78 = vector.shape_cast %77 : vector<1x2x768xf32> to vector<2x768xf32>
    %79 = tpu.concatenate %76#0, %76#1 in 0 : vector<1x768xf32>, vector<1x768xf32> -> vector<2x768xf32>
    %80 = arith.addf %78, %79 : vector<2x768xf32>
    %c5_70 = arith.constant 5 : index
    %c0_71 = arith.constant 0 : index
    %c0_72 = arith.constant 0 : index
    %81 = vector.load %arg8[%c5_70, %c0_71, %c0_72] : memref<10x2x768xf32, #tpu.memory_space<vmem>>, vector<1x2x768xf32>
    %82 = vector.shape_cast %81 : vector<1x2x768xf32> to vector<2x768xf32>
    %83 = vector.shape_cast %80 : vector<2x768xf32> to vector<1x2x768xf32>
    tpu.vector_store %arg8[%c5_70, %c0_71, %c0_72], %83 {strides = array<i32>} : memref<10x2x768xf32, #tpu.memory_space<vmem>>, vector<1x2x768xf32>,
    %c0_i32_73 = arith.constant 0 : i32
    %c6_i32_74 = arith.constant 6 : i32
    %84 = arith.addi %c0_i32_73, %c6_i32_74 : i32
    %c1_i32_75 = arith.constant 1 : i32
    %85:2 = scf.for %arg9 = %c0_i32_73 to %84 step %c1_i32_75 iter_args(%arg10 = %29, %arg11 = %29) -> (vector<1x768xf32>, vector<1x768xf32>)  : i32 {
      %c32_i32 = arith.constant 32 : i32
      %123 = arith.muli %arg9, %c32_i32 : i32
      %124 = tpu.assume_multiple %123, 32 : i32
      %c6_111 = arith.constant 6 : index
      %125 = arith.index_cast %124 : i32 to index
      %c0_112 = arith.constant 0 : index
      %126 = vector.load %arg5[%c6_111, %125, %c0_112] : memref<10x192x768xbf16, #tpu.memory_space<vmem>>, vector<1x32x768xbf16>
      %127 = vector.shape_cast %126 : vector<1x32x768xbf16> to vector<32x768xbf16>
      %c0_113 = arith.constant 0 : index
      %128 = arith.index_cast %124 : i32 to index
      %c0_114 = arith.constant 0 : index
      %129 = vector.load %arg7[%c0_113, %128, %c0_114] : memref<2x192x768xbf16, #tpu.memory_space<vmem>>, vector<1x32x768xbf16>
      %130 = vector.shape_cast %129 : vector<1x32x768xbf16> to vector<32x768xbf16>
      %131 = arith.mulf %130, %127 : vector<32x768xbf16>
      %132 = arith.extf %131 : vector<32x768xbf16> to vector<32x768xf32>
      %cst_115 = arith.constant dense<0.000000e+00> : vector<768xf32>
      %133 = vector.multi_reduction <add>, %132, %cst_115 [0] : vector<32x768xf32> to vector<768xf32>
      %134 = vector.shape_cast %133 : vector<768xf32> to vector<1x768xf32>
      %135 = arith.addf %arg10, %134 : vector<1x768xf32>
      %c1_116 = arith.constant 1 : index
      %136 = arith.index_cast %124 : i32 to index
      %c0_117 = arith.constant 0 : index
      %137 = vector.load %arg7[%c1_116, %136, %c0_117] : memref<2x192x768xbf16, #tpu.memory_space<vmem>>, vector<1x32x768xbf16>
      %138 = vector.shape_cast %137 : vector<1x32x768xbf16> to vector<32x768xbf16>
      %139 = arith.mulf %138, %127 : vector<32x768xbf16>
      %140 = arith.extf %139 : vector<32x768xbf16> to vector<32x768xf32>
      %cst_118 = arith.constant dense<0.000000e+00> : vector<768xf32>
      %141 = vector.multi_reduction <add>, %140, %cst_118 [0] : vector<32x768xf32> to vector<768xf32>
      %142 = vector.shape_cast %141 : vector<768xf32> to vector<1x768xf32>
      %143 = arith.addf %arg11, %142 : vector<1x768xf32>
      scf.yield %135, %143 : vector<1x768xf32>, vector<1x768xf32>
    }
    %c6_i32_76 = arith.constant 6 : i32
    %c6 = arith.constant 6 : index
    %c0_77 = arith.constant 0 : index
    %c0_78 = arith.constant 0 : index
    %86 = vector.load %arg8[%c6, %c0_77, %c0_78] : memref<10x2x768xf32, #tpu.memory_space<vmem>>, vector<1x2x768xf32>
    %87 = vector.shape_cast %86 : vector<1x2x768xf32> to vector<2x768xf32>
    %88 = tpu.concatenate %85#0, %85#1 in 0 : vector<1x768xf32>, vector<1x768xf32> -> vector<2x768xf32>
    %89 = arith.addf %87, %88 : vector<2x768xf32>
    %c6_79 = arith.constant 6 : index
    %c0_80 = arith.constant 0 : index
    %c0_81 = arith.constant 0 : index
    %90 = vector.load %arg8[%c6_79, %c0_80, %c0_81] : memref<10x2x768xf32, #tpu.memory_space<vmem>>, vector<1x2x768xf32>
    %91 = vector.shape_cast %90 : vector<1x2x768xf32> to vector<2x768xf32>
    %92 = vector.shape_cast %89 : vector<2x768xf32> to vector<1x2x768xf32>
    tpu.vector_store %arg8[%c6_79, %c0_80, %c0_81], %92 {strides = array<i32>} : memref<10x2x768xf32, #tpu.memory_space<vmem>>, vector<1x2x768xf32>,
    %c0_i32_82 = arith.constant 0 : i32
    %c6_i32_83 = arith.constant 6 : i32
    %93 = arith.addi %c0_i32_82, %c6_i32_83 : i32
    %c1_i32_84 = arith.constant 1 : i32
    %94:2 = scf.for %arg9 = %c0_i32_82 to %93 step %c1_i32_84 iter_args(%arg10 = %29, %arg11 = %29) -> (vector<1x768xf32>, vector<1x768xf32>)  : i32 {
      %c32_i32 = arith.constant 32 : i32
      %123 = arith.muli %arg9, %c32_i32 : i32
      %124 = tpu.assume_multiple %123, 32 : i32
      %c7_111 = arith.constant 7 : index
      %125 = arith.index_cast %124 : i32 to index
      %c0_112 = arith.constant 0 : index
      %126 = vector.load %arg5[%c7_111, %125, %c0_112] : memref<10x192x768xbf16, #tpu.memory_space<vmem>>, vector<1x32x768xbf16>
      %127 = vector.shape_cast %126 : vector<1x32x768xbf16> to vector<32x768xbf16>
      %c0_113 = arith.constant 0 : index
      %128 = arith.index_cast %124 : i32 to index
      %c0_114 = arith.constant 0 : index
      %129 = vector.load %arg7[%c0_113, %128, %c0_114] : memref<2x192x768xbf16, #tpu.memory_space<vmem>>, vector<1x32x768xbf16>
      %130 = vector.shape_cast %129 : vector<1x32x768xbf16> to vector<32x768xbf16>
      %131 = arith.mulf %130, %127 : vector<32x768xbf16>
      %132 = arith.extf %131 : vector<32x768xbf16> to vector<32x768xf32>
      %cst_115 = arith.constant dense<0.000000e+00> : vector<768xf32>
      %133 = vector.multi_reduction <add>, %132, %cst_115 [0] : vector<32x768xf32> to vector<768xf32>
      %134 = vector.shape_cast %133 : vector<768xf32> to vector<1x768xf32>
      %135 = arith.addf %arg10, %134 : vector<1x768xf32>
      %c1_116 = arith.constant 1 : index
      %136 = arith.index_cast %124 : i32 to index
      %c0_117 = arith.constant 0 : index
      %137 = vector.load %arg7[%c1_116, %136, %c0_117] : memref<2x192x768xbf16, #tpu.memory_space<vmem>>, vector<1x32x768xbf16>
      %138 = vector.shape_cast %137 : vector<1x32x768xbf16> to vector<32x768xbf16>
      %139 = arith.mulf %138, %127 : vector<32x768xbf16>
      %140 = arith.extf %139 : vector<32x768xbf16> to vector<32x768xf32>
      %cst_118 = arith.constant dense<0.000000e+00> : vector<768xf32>
      %141 = vector.multi_reduction <add>, %140, %cst_118 [0] : vector<32x768xf32> to vector<768xf32>
      %142 = vector.shape_cast %141 : vector<768xf32> to vector<1x768xf32>
      %143 = arith.addf %arg11, %142 : vector<1x768xf32>
      scf.yield %135, %143 : vector<1x768xf32>, vector<1x768xf32>
    }
    %c6_i32_85 = arith.constant 6 : i32
    %c7 = arith.constant 7 : index
    %c0_86 = arith.constant 0 : index
    %c0_87 = arith.constant 0 : index
    %95 = vector.load %arg8[%c7, %c0_86, %c0_87] : memref<10x2x768xf32, #tpu.memory_space<vmem>>, vector<1x2x768xf32>
    %96 = vector.shape_cast %95 : vector<1x2x768xf32> to vector<2x768xf32>
    %97 = tpu.concatenate %94#0, %94#1 in 0 : vector<1x768xf32>, vector<1x768xf32> -> vector<2x768xf32>
    %98 = arith.addf %96, %97 : vector<2x768xf32>
    %c7_88 = arith.constant 7 : index
    %c0_89 = arith.constant 0 : index
    %c0_90 = arith.constant 0 : index
    %99 = vector.load %arg8[%c7_88, %c0_89, %c0_90] : memref<10x2x768xf32, #tpu.memory_space<vmem>>, vector<1x2x768xf32>
    %100 = vector.shape_cast %99 : vector<1x2x768xf32> to vector<2x768xf32>
    %101 = vector.shape_cast %98 : vector<2x768xf32> to vector<1x2x768xf32>
    tpu.vector_store %arg8[%c7_88, %c0_89, %c0_90], %101 {strides = array<i32>} : memref<10x2x768xf32, #tpu.memory_space<vmem>>, vector<1x2x768xf32>,
    %c0_i32_91 = arith.constant 0 : i32
    %c6_i32_92 = arith.constant 6 : i32
    %102 = arith.addi %c0_i32_91, %c6_i32_92 : i32
    %c1_i32_93 = arith.constant 1 : i32
    %103:2 = scf.for %arg9 = %c0_i32_91 to %102 step %c1_i32_93 iter_args(%arg10 = %29, %arg11 = %29) -> (vector<1x768xf32>, vector<1x768xf32>)  : i32 {
      %c32_i32 = arith.constant 32 : i32
      %123 = arith.muli %arg9, %c32_i32 : i32
      %124 = tpu.assume_multiple %123, 32 : i32
      %c8_111 = arith.constant 8 : index
      %125 = arith.index_cast %124 : i32 to index
      %c0_112 = arith.constant 0 : index
      %126 = vector.load %arg5[%c8_111, %125, %c0_112] : memref<10x192x768xbf16, #tpu.memory_space<vmem>>, vector<1x32x768xbf16>
      %127 = vector.shape_cast %126 : vector<1x32x768xbf16> to vector<32x768xbf16>
      %c0_113 = arith.constant 0 : index
      %128 = arith.index_cast %124 : i32 to index
      %c0_114 = arith.constant 0 : index
      %129 = vector.load %arg7[%c0_113, %128, %c0_114] : memref<2x192x768xbf16, #tpu.memory_space<vmem>>, vector<1x32x768xbf16>
      %130 = vector.shape_cast %129 : vector<1x32x768xbf16> to vector<32x768xbf16>
      %131 = arith.mulf %130, %127 : vector<32x768xbf16>
      %132 = arith.extf %131 : vector<32x768xbf16> to vector<32x768xf32>
      %cst_115 = arith.constant dense<0.000000e+00> : vector<768xf32>
      %133 = vector.multi_reduction <add>, %132, %cst_115 [0] : vector<32x768xf32> to vector<768xf32>
      %134 = vector.shape_cast %133 : vector<768xf32> to vector<1x768xf32>
      %135 = arith.addf %arg10, %134 : vector<1x768xf32>
      %c1_116 = arith.constant 1 : index
      %136 = arith.index_cast %124 : i32 to index
      %c0_117 = arith.constant 0 : index
      %137 = vector.load %arg7[%c1_116, %136, %c0_117] : memref<2x192x768xbf16, #tpu.memory_space<vmem>>, vector<1x32x768xbf16>
      %138 = vector.shape_cast %137 : vector<1x32x768xbf16> to vector<32x768xbf16>
      %139 = arith.mulf %138, %127 : vector<32x768xbf16>
      %140 = arith.extf %139 : vector<32x768xbf16> to vector<32x768xf32>
      %cst_118 = arith.constant dense<0.000000e+00> : vector<768xf32>
      %141 = vector.multi_reduction <add>, %140, %cst_118 [0] : vector<32x768xf32> to vector<768xf32>
      %142 = vector.shape_cast %141 : vector<768xf32> to vector<1x768xf32>
      %143 = arith.addf %arg11, %142 : vector<1x768xf32>
      scf.yield %135, %143 : vector<1x768xf32>, vector<1x768xf32>
    }
    %c6_i32_94 = arith.constant 6 : i32
    %c8 = arith.constant 8 : index
    %c0_95 = arith.constant 0 : index
    %c0_96 = arith.constant 0 : index
    %104 = vector.load %arg8[%c8, %c0_95, %c0_96] : memref<10x2x768xf32, #tpu.memory_space<vmem>>, vector<1x2x768xf32>
    %105 = vector.shape_cast %104 : vector<1x2x768xf32> to vector<2x768xf32>
    %106 = tpu.concatenate %103#0, %103#1 in 0 : vector<1x768xf32>, vector<1x768xf32> -> vector<2x768xf32>
    %107 = arith.addf %105, %106 : vector<2x768xf32>
    %c8_97 = arith.constant 8 : index
    %c0_98 = arith.constant 0 : index
    %c0_99 = arith.constant 0 : index
    %108 = vector.load %arg8[%c8_97, %c0_98, %c0_99] : memref<10x2x768xf32, #tpu.memory_space<vmem>>, vector<1x2x768xf32>
    %109 = vector.shape_cast %108 : vector<1x2x768xf32> to vector<2x768xf32>
    %110 = vector.shape_cast %107 : vector<2x768xf32> to vector<1x2x768xf32>
    tpu.vector_store %arg8[%c8_97, %c0_98, %c0_99], %110 {strides = array<i32>} : memref<10x2x768xf32, #tpu.memory_space<vmem>>, vector<1x2x768xf32>,
    %c0_i32_100 = arith.constant 0 : i32
    %c6_i32_101 = arith.constant 6 : i32
    %111 = arith.addi %c0_i32_100, %c6_i32_101 : i32
    %c1_i32_102 = arith.constant 1 : i32
    %112:2 = scf.for %arg9 = %c0_i32_100 to %111 step %c1_i32_102 iter_args(%arg10 = %29, %arg11 = %29) -> (vector<1x768xf32>, vector<1x768xf32>)  : i32 {
      %c32_i32 = arith.constant 32 : i32
      %123 = arith.muli %arg9, %c32_i32 : i32
      %124 = tpu.assume_multiple %123, 32 : i32
      %c9_111 = arith.constant 9 : index
      %125 = arith.index_cast %124 : i32 to index
      %c0_112 = arith.constant 0 : index
      %126 = vector.load %arg5[%c9_111, %125, %c0_112] : memref<10x192x768xbf16, #tpu.memory_space<vmem>>, vector<1x32x768xbf16>
      %127 = vector.shape_cast %126 : vector<1x32x768xbf16> to vector<32x768xbf16>
      %c0_113 = arith.constant 0 : index
      %128 = arith.index_cast %124 : i32 to index
      %c0_114 = arith.constant 0 : index
      %129 = vector.load %arg7[%c0_113, %128, %c0_114] : memref<2x192x768xbf16, #tpu.memory_space<vmem>>, vector<1x32x768xbf16>
      %130 = vector.shape_cast %129 : vector<1x32x768xbf16> to vector<32x768xbf16>
      %131 = arith.mulf %130, %127 : vector<32x768xbf16>
      %132 = arith.extf %131 : vector<32x768xbf16> to vector<32x768xf32>
      %cst_115 = arith.constant dense<0.000000e+00> : vector<768xf32>
      %133 = vector.multi_reduction <add>, %132, %cst_115 [0] : vector<32x768xf32> to vector<768xf32>
      %134 = vector.shape_cast %133 : vector<768xf32> to vector<1x768xf32>
      %135 = arith.addf %arg10, %134 : vector<1x768xf32>
      %c1_116 = arith.constant 1 : index
      %136 = arith.index_cast %124 : i32 to index
      %c0_117 = arith.constant 0 : index
      %137 = vector.load %arg7[%c1_116, %136, %c0_117] : memref<2x192x768xbf16, #tpu.memory_space<vmem>>, vector<1x32x768xbf16>
      %138 = vector.shape_cast %137 : vector<1x32x768xbf16> to vector<32x768xbf16>
      %139 = arith.mulf %138, %127 : vector<32x768xbf16>
      %140 = arith.extf %139 : vector<32x768xbf16> to vector<32x768xf32>
      %cst_118 = arith.constant dense<0.000000e+00> : vector<768xf32>
      %141 = vector.multi_reduction <add>, %140, %cst_118 [0] : vector<32x768xf32> to vector<768xf32>
      %142 = vector.shape_cast %141 : vector<768xf32> to vector<1x768xf32>
      %143 = arith.addf %arg11, %142 : vector<1x768xf32>
      scf.yield %135, %143 : vector<1x768xf32>, vector<1x768xf32>
    }
    %c6_i32_103 = arith.constant 6 : i32
    %c9 = arith.constant 9 : index
    %c0_104 = arith.constant 0 : index
    %c0_105 = arith.constant 0 : index
    %113 = vector.load %arg8[%c9, %c0_104, %c0_105] : memref<10x2x768xf32, #tpu.memory_space<vmem>>, vector<1x2x768xf32>
    %114 = vector.shape_cast %113 : vector<1x2x768xf32> to vector<2x768xf32>
    %115 = tpu.concatenate %112#0, %112#1 in 0 : vector<1x768xf32>, vector<1x768xf32> -> vector<2x768xf32>
    %116 = arith.addf %114, %115 : vector<2x768xf32>
    %c9_106 = arith.constant 9 : index
    %c0_107 = arith.constant 0 : index
    %c0_108 = arith.constant 0 : index
    %117 = vector.load %arg8[%c9_106, %c0_107, %c0_108] : memref<10x2x768xf32, #tpu.memory_space<vmem>>, vector<1x2x768xf32>
    %118 = vector.shape_cast %117 : vector<1x2x768xf32> to vector<2x768xf32>
    %119 = vector.shape_cast %116 : vector<2x768xf32> to vector<1x2x768xf32>
    tpu.vector_store %arg8[%c9_106, %c0_107, %c0_108], %119 {strides = array<i32>} : memref<10x2x768xf32, #tpu.memory_space<vmem>>, vector<1x2x768xf32>,
    %c1_i32_109 = arith.constant 1 : i32
    %120 = arith.cmpi eq, %arg1, %c1_i32_109 : i32
    %121 = arith.extui %120 : i1 to i32
    %c0_i32_110 = arith.constant 0 : i32
    %122 = arith.cmpi ne, %121, %c0_i32_110 : i32
    scf.if %122 {
      %c0_111 = arith.constant 0 : index
      %c0_112 = arith.constant 0 : index
      %c0_113 = arith.constant 0 : index
      %123 = vector.load %arg8[%c0_111, %c0_112, %c0_113] : memref<10x2x768xf32, #tpu.memory_space<vmem>>, vector<10x2x768xf32>
      %c0_114 = arith.constant 0 : index
      %c0_115 = arith.constant 0 : index
      %c0_116 = arith.constant 0 : index
      %c0_117 = arith.constant 0 : index
      %124 = vector.load %arg6[%c0_114, %c0_115, %c0_116, %c0_117] : memref<1x10x2x768xf32, #tpu.memory_space<vmem>>, vector<1x10x2x768xf32>
      %125 = vector.shape_cast %124 : vector<1x10x2x768xf32> to vector<10x2x768xf32>
      %126 = vector.shape_cast %123 : vector<10x2x768xf32> to vector<1x10x2x768xf32>
      tpu.vector_store %arg6[%c0_114, %c0_115, %c0_116, %c0_117], %126 {strides = array<i32>} : memref<1x10x2x768xf32, #tpu.memory_space<vmem>>, vector<1x10x2x768xf32>,
    } else {
    }
    return
  }
  func.func @transform_0(%arg0: i32, %arg1: i32) -> (i32, i32, i32) {
    %c2_i32 = arith.constant 2 : i32
    %0 = arith.muli %arg0, %c2_i32 : i32
    %1 = arith.addi %0, %arg1 : i32
    %c0_i32 = arith.constant 0 : i32
    %c0_i32_0 = arith.constant 0 : i32
    %c0_i32_1 = arith.constant 0 : i32
    return %c0_i32, %1, %c0_i32_0 : i32, i32, i32
  }
  func.func @transform_1(%arg0: i32, %arg1: i32) -> (i32, i32) {
    %c0_i32 = arith.constant 0 : i32
    %c0_i32_0 = arith.constant 0 : i32
    %c0_i32_1 = arith.constant 0 : i32
    return %c0_i32, %c0_i32_0 : i32, i32
  }
  func.func @transform_2(%arg0: i32, %arg1: i32) -> (i32, i32) {
    %c0_i32 = arith.constant 0 : i32
    %c0_i32_0 = arith.constant 0 : i32
    %c0_i32_1 = arith.constant 0 : i32
    return %c0_i32, %c0_i32_0 : i32, i32
  }
  func.func @transform_3(%arg0: i32, %arg1: i32) -> (i32, i32, i32) {
    %c2_i32 = arith.constant 2 : i32
    %0 = arith.muli %arg0, %c2_i32 : i32
    %1 = arith.addi %0, %arg1 : i32
    %c0_i32 = arith.constant 0 : i32
    %c0_i32_0 = arith.constant 0 : i32
    %c0_i32_1 = arith.constant 0 : i32
    return %c0_i32, %1, %c0_i32_0 : i32, i32, i32
  }
  func.func @transform_4(%arg0: i32, %arg1: i32) -> (i32, i32, i32, i32) {
    %c0_i32 = arith.constant 0 : i32
    %c0_i32_0 = arith.constant 0 : i32
    %c0_i32_1 = arith.constant 0 : i32
    %c0_i32_2 = arith.constant 0 : i32
    return %arg0, %c0_i32, %c0_i32_0, %c0_i32_1 : i32, i32, i32, i32
  }
}

</mosaic_0001>

<llo_original>
// kernel: image_classifier_forward.1
$region0: #{image_classifier_forward.1}
  #allocation0 [shape = 'u32[]', space=smem, size = 0x4, offset = 0x4, fixed_abs, tag = 'smem constant byte address 0x4 - core index']
  #allocation1 [shape = 'u32[144,128]{1,0:T(1,128)}', space=vmem, size = 0x12000, scoped, tag = 'internal scratch']
  #allocation2 [shape = 'bf16[2,192,768]{2,1,0:T(16,128)(2,1)}', space=vmem, size = 0x90000, scoped, tag = 'scratch operand']
  #allocation3 [shape = 'f32[10,2,768]{2,1,0:T(2,128)}', space=vmem, size = 0xf000, scoped, tag = 'scratch operand']
  #allocation7 [shape = 's32[]', space=sflag, size = 0x4, offset = 0, fixed_abs, tag = 'sflag constant byte address 0x0 - dummy sync flag']
  %s0 = inlined_call_operand.vmem [shape: f32[2,768,591], index: 0, kind: input, shape index: {}]
  %s1 = inlined_call_operand.vmem [shape: bf16[591,768], index: 1, kind: input, shape index: {}]
  %s2 = inlined_call_operand.vmem [shape: f32[1,768], index: 2, kind: input, shape index: {}]
  %s3 = inlined_call_operand.hbm [shape: bf16[10,768,768], index: 3, kind: input, shape index: {}]
  %s4 = inlined_call_operand.vmem [shape: f32[2,10,2,768], index: 4, kind: output, shape index: {}]
  %s5 = sld [smem:[#allocation0]]
  $region154: #{image_classifier_forward.1} parent=0
    _
  %s7 = ssub.s32 1, %s5
  %s8 = scalar_select 0, %s7, %s5
  $region1: #{image_classifier_forward.1} parent=0
    #allocation4 [shape = 'u8[1966080]{0}', space=vmem, size = 0x1e0000, scoped, tag = 'input window, operand 0']
    #allocation5 [shape = 'u8[5898240]{0}', space=vmem, size = 0x5a0000, scoped, tag = 'input window, operand 3']
    #allocation6 [shape = 's32[2]{0}', space=sflag, size = 0x8, scoped, tag = 'scoped memory for image_classifier_forward.1']
    %9 = vsyncpa [#allocation6], 0
    %s10 = scalar_lea.sflag [#allocation6], 1
    %11 = vsyncpa %s10, 0
    loop: start=0, step=1, limit=6
    $region2: #{image_classifier_forward.1} parent=1 // loop_pre_header
      _
    $region3: #{image_classifier_forward.1} parent=1 // loop_header
      %s13 = sphi 0, %s17
      %p14 = scmp.ge.s32.totalorder %s13, 6
      %s20 = sphi 0, %s32
      %s21 = sphi 0, %s28
      %s22 = sphi 0, %s20
      %s23 = sphi 0, %s21
      %s24 = sphi 0, %s22
      %s25 = sphi 0, %s23
      %s39 = sphi 0, %s41
      %s42 = sphi 0, %s39
      %s43 = sphi 0, %s42
      %s59 = sphi 0, %s43
      %s63 = sphi 0, %s63
      %s65 = sphi 0, %s63
      %s66 = sphi 0, %s65
      %s80 = sphi 0, %s66
      %s84 = sphi 0, %s84
      %s86 = sphi 0, %s84
      %s87 = sphi 0, %s86
      %s101 = sphi 0, %s87
      %s111 = sphi 0, %s113
      %s114 = sphi 0, %s111
      %s115 = sphi 0, %s114
      %s131 = sphi 0, %s115
      %s137 = sphi 0, %s139
      %s140 = sphi 0, %s137
      %s141 = sphi 0, %s140
      %s157 = sphi 0, %s141
    $region4: #{image_classifier_forward.1} parent=1 // loop_header_branch
      %16 = sbr.rel (%p14) target = $region8
    $region5: #{image_classifier_forward.1} parent=1 // loop_body
      %s18 = ssub.s32 %s13, 1
      %s19 = ssub.s32 %s13, 2
      %s26 = sadd.s32 1, %s21
      %p27 = scmp.ge.s32.totalorder %s26, 2
      %s28 = scalar_select %p27, 0, %s26
      %s29 = sadd.s32 1, %s20
      %s30 = scalar_select %p27, %s29, %s20
      %p31 = scmp.ge.s32.totalorder %s30, 2
      %s32 = scalar_select %p31, 0, %s30
      %s33 = smul.u32 %s20, 2
      %s34 = sadd.s32 %s33, %s21
      %s35 = smul.u32 %s32, 2
      %s36 = sadd.s32 %s35, %s28
      %s37 = ssub.s32 %s34, %s36
      %p38 = scmp.eq.s32.totalorder %s37, 0
      %s40 = sadd.s32 %s39, 1
      %s41 = scalar_select %p38, %s39, %s40
      %p44 = pneg %p38
      %p45 = scmp.eq.s32.totalorder %s13, 3
      %p46 = por %p44, %p45
      %p47 = scmp.ne.s32.totalorder %s39, %s42
      %p48 = scmp.eq.s32.totalorder %s13, 0
      %p49 = por %p47, %p48
      %p50 = scmp.ne.s32.totalorder %s39, %s42
      %p51 = scmp.eq.s32.totalorder %s18, 3
      %p52 = por %p50, %p51
      %p53 = scmp.ne.s32.totalorder %s42, %s43
      %p54 = scmp.eq.s32.totalorder %s18, 0
      %p55 = por %p53, %p54
      %p56 = scmp.ne.s32.totalorder %s42, %s43
      %p57 = scmp.eq.s32.totalorder %s19, 3
      %p58 = por %p56, %p57
      %p60 = scmp.ne.s32.totalorder %s43, %s59
      %p61 = scmp.eq.s32.totalorder %s19, 0
      %p62 = por %p60, %p61
      %s64 = sadd.s32 %s63, 1
      %p67 = scmp.eq.s32.totalorder %s13, 3
      %p68 = scmp.ne.s32.totalorder %s63, %s65
      %p69 = scmp.eq.s32.totalorder %s13, 0
      %p70 = por %p68, %p69
      %p71 = scmp.ne.s32.totalorder %s63, %s65
      %p72 = scmp.eq.s32.totalorder %s18, 3
      %p73 = por %p71, %p72
      %p74 = scmp.ne.s32.totalorder %s65, %s66
      %p75 = scmp.eq.s32.totalorder %s18, 0
      %p76 = por %p74, %p75
      %p77 = scmp.ne.s32.totalorder %s65, %s66
      %p78 = scmp.eq.s32.totalorder %s19, 3
      %p79 = por %p77, %p78
      %p81 = scmp.ne.s32.totalorder %s66, %s80
      %p82 = scmp.eq.s32.totalorder %s19, 0
      %p83 = por %p81, %p82
      %s85 = sadd.s32 %s84, 1
      %p88 = scmp.eq.s32.totalorder %s13, 3
      %p89 = scmp.ne.s32.totalorder %s84, %s86
      %p90 = scmp.eq.s32.totalorder %s13, 0
      %p91 = por %p89, %p90
      %p92 = scmp.ne.s32.totalorder %s84, %s86
      %p93 = scmp.eq.s32.totalorder %s18, 3
      %p94 = por %p92, %p93
      %p95 = scmp.ne.s32.totalorder %s86, %s87
      %p96 = scmp.eq.s32.totalorder %s18, 0
      %p97 = por %p95, %p96
      %p98 = scmp.ne.s32.totalorder %s86, %s87
      %p99 = scmp.eq.s32.totalorder %s19, 3
      %p100 = por %p98, %p99
      %p102 = scmp.ne.s32.totalorder %s87, %s101
      %p103 = scmp.eq.s32.totalorder %s19, 0
      %p104 = por %p102, %p103
      %s105 = smul.u32 %s20, 2
      %s106 = sadd.s32 %s105, %s21
      %s107 = smul.u32 %s32, 2
      %s108 = sadd.s32 %s107, %s28
      %s109 = ssub.s32 %s106, %s108
      %p110 = scmp.eq.s32.totalorder %s109, 0
      %s112 = sadd.s32 %s111, 1
      %s113 = scalar_select %p110, %s111, %s112
      %p116 = pneg %p110
      %p117 = scmp.eq.s32.totalorder %s13, 3
      %p118 = por %p116, %p117
      %p119 = scmp.ne.s32.totalorder %s111, %s114
      %p120 = scmp.eq.s32.totalorder %s13, 0
      %p121 = por %p119, %p120
      %p122 = scmp.ne.s32.totalorder %s111, %s114
      %p123 = scmp.eq.s32.totalorder %s18, 3
      %p124 = por %p122, %p123
      %p125 = scmp.ne.s32.totalorder %s114, %s115
      %p126 = scmp.eq.s32.totalorder %s18, 0
      %p127 = por %p125, %p126
      %p128 = scmp.ne.s32.totalorder %s114, %s115
      %p129 = scmp.eq.s32.totalorder %s19, 3
      %p130 = por %p128, %p129
      %p132 = scmp.ne.s32.totalorder %s115, %s131
      %p133 = scmp.eq.s32.totalorder %s19, 0
      %p134 = por %p132, %p133
      %s135 = ssub.s32 %s20, %s32
      %p136 = scmp.eq.s32.totalorder %s135, 0
      %s138 = sadd.s32 %s137, 1
      %s139 = scalar_select %p136, %s137, %s138
      %p142 = pneg %p136
      %p143 = scmp.eq.s32.totalorder %s13, 3
      %p144 = por %p142, %p143
      %p145 = scmp.ne.s32.totalorder %s137, %s140
      %p146 = scmp.eq.s32.totalorder %s13, 0
      %p147 = por %p145, %p146
      %p148 = scmp.ne.s32.totalorder %s137, %s140
      %p149 = scmp.eq.s32.totalorder %s18, 3
      %p150 = por %p148, %p149
      %p151 = scmp.ne.s32.totalorder %s140, %s141
      %p152 = scmp.eq.s32.totalorder %s18, 0
      %p153 = por %p151, %p152
      %p154 = scmp.ne.s32.totalorder %s140, %s141
      %p155 = scmp.eq.s32.totalorder %s19, 3
      %p156 = por %p154, %p155
      %p158 = scmp.ne.s32.totalorder %s141, %s157
      %p159 = scmp.eq.s32.totalorder %s19, 0
      %p160 = por %p158, %p159
      %p161 = scmp.le.s32.totalorder 1, %s13
      %p162 = scmp.lt.s32.totalorder %s13, 5
      %p163 = pnand %p161, %p162
      %p164 = pneg %p163
      // Predicated region
      $region9: #{image_classifier_forward.1} parent=5 // pred_check
        _
      $region10: #{image_classifier_forward.1} parent=5 // pred_check_branch
        %166 = sbr.rel (%p163) target = $region12
      $region11: #{image_classifier_forward.1} parent=5 // pred_region
        %s167 = ssub.s32 %s13, 1
        // Predicated region
        $region13: #{image_classifier_forward.1} parent=11 // pred_check
          %p168 = pneg %p76
        $region14: #{image_classifier_forward.1} parent=11 // pred_check_branch
          %170 = sbr.rel (%p168) target = $region16
        $region15: #{image_classifier_forward.1} parent=11 // pred_region
          _
        $region16: #{image_classifier_forward.1} parent=11 // pred_fallthru
          _
        // Predicated region
        $region17: #{image_classifier_forward.1} parent=11 // pred_check
          %p171 = pneg %p97
        $region18: #{image_classifier_forward.1} parent=11 // pred_check_branch
          %173 = sbr.rel (%p171) target = $region20
        $region19: #{image_classifier_forward.1} parent=11 // pred_region
          _
        $region20: #{image_classifier_forward.1} parent=11 // pred_fallthru
          _
      $region12: #{image_classifier_forward.1} parent=5 // pred_fallthru
        _
      %p174 = scmp.lt.s32.totalorder %s13, 4
      // Predicated region
      $region21: #{image_classifier_forward.1} parent=5 // pred_check
        %p175 = pneg %p174
      $region22: #{image_classifier_forward.1} parent=5 // pred_check_branch
        %177 = sbr.rel (%p175) target = $region24
      $region23: #{image_classifier_forward.1} parent=5 // pred_region
        // Predicated region
        $region25: #{image_classifier_forward.1} parent=23 // pred_check
          %p178 = pneg %p49
        $region26: #{image_classifier_forward.1} parent=23 // pred_check_branch
          %180 = sbr.rel (%p178) target = $region28
        $region27: #{image_classifier_forward.1} parent=23 // pred_region
          %s181 = sand.u32 %s39, 1
          %s182 = sand.u32 %s39, 1
          %s183 = smul.addr %s182, 1920
          %s184 = scalar_lea.vmem [#allocation4], %s183
          %s185 = smul.u32 %s20, 2
          %s186 = sadd.s32 %s185, %s21
          %s187 = smul.u32 24, %s186
          %s188 = smul.addr %s187, 5
          %s189 = smul.addr %s188, 8
          %s190 = scalar_lea.vmem %s0, %s189
          // Predicated region
          $region29: #{image_classifier_forward.1} parent=27 // pred_check
            _
          $region30: #{image_classifier_forward.1} parent=27 // pred_check_branch
            %192 = sbr.rel (0) target = $region32
          $region31: #{image_classifier_forward.1} parent=27 // pred_region
            // Predicated region
            $region33: #{image_classifier_forward.1} parent=31 // pred_check
              _
            $region34: #{image_classifier_forward.1} parent=31 // pred_check_branch
              %194 = sbr.rel (0) target = $region36
            $region35: #{image_classifier_forward.1} parent=31 // pred_region
              loop: start=0, step=1, limit=1
              $region37: #{image_classifier_forward.1} parent=35 // loop_pre_header
                _
              $region38: #{image_classifier_forward.1} parent=35 // loop_header
                %s196 = sphi 0, %s200
                %p197 = scmp.ge.s32.totalorder %s196, 1
                %s201 = sphi %s190, %s190
                %s202 = sphi %s184, %s184
              $region39: #{image_classifier_forward.1} parent=35 // loop_header_branch
                %199 = sbr.rel (%p197) target = $region43
              $region40: #{image_classifier_forward.1} parent=35 // loop_body
                %v203 = vld [vmem:[%s201] sm:$0xff]
                %204 = vst [vmem:[%s202] sm:$0xff] %v203
                %v205 = vld [vmem:[%s201 + $0x8] sm:$0xff]
                %206 = vst [vmem:[%s202 + $0x8] sm:$0xff] %v205
                %v207 = vld [vmem:[%s201 + $0x10] sm:$0xff]
                %208 = vst [vmem:[%s202 + $0x10] sm:$0xff] %v207
                %v209 = vld [vmem:[%s201 + $0x18] sm:$0xff]
                %210 = vst [vmem:[%s202 + $0x18] sm:$0xff] %v209
                %v211 = vld [vmem:[%s201 + $0x20] sm:$0xff]
                %212 = vst [vmem:[%s202 + $0x20] sm:$0xff] %v211
                %v213 = vld [vmem:[%s201 + $0x28] sm:$0xff]
                %214 = vst [vmem:[%s202 + $0x28] sm:$0xff] %v213
                %v215 = vld [vmem:[%s201 + $0x30] sm:$0xff]
                %216 = vst [vmem:[%s202 + $0x30] sm:$0xff] %v215
                %v217 = vld [vmem:[%s201 + $0x38] sm:$0xff]
                %218 = vst [vmem:[%s202 + $0x38] sm:$0xff] %v217
                %v219 = vld [vmem:[%s201 + $0x40] sm:$0xff]
                %220 = vst [vmem:[%s202 + $0x40] sm:$0xff] %v219
                %v221 = vld [vmem:[%s201 + $0x48] sm:$0xff]
                %222 = vst [vmem:[%s202 + $0x48] sm:$0xff] %v221
                %v223 = vld [vmem:[%s201 + $0x50] sm:$0xff]
                %224 = vst [vmem:[%s202 + $0x50] sm:$0xff] %v223
                %v225 = vld [vmem:[%s201 + $0x58] sm:$0xff]
                %226 = vst [vmem:[%s202 + $0x58] sm:$0xff] %v225
                %v227 = vld [vmem:[%s201 + $0x60] sm:$0xff]
                %228 = vst [vmem:[%s202 + $0x60] sm:$0xff] %v227
                %v229 = vld [vmem:[%s201 + $0x68] sm:$0xff]
                %230 = vst [vmem:[%s202 + $0x68] sm:$0xff] %v229
                %v231 = vld [vmem:[%s201 + $0x70] sm:$0xff]
                %232 = vst [vmem:[%s202 + $0x70] sm:$0xff] %v231
                %v233 = vld [vmem:[%s201 + $0x78] sm:$0xff]
                %234 = vst [vmem:[%s202 + $0x78] sm:$0xff] %v233
                %v235 = vld [vmem:[%s201 + $0x80] sm:$0xff]
                %236 = vst [vmem:[%s202 + $0x80] sm:$0xff] %v235
                %v237 = vld [vmem:[%s201 + $0x88] sm:$0xff]
                %238 = vst [vmem:[%s202 + $0x88] sm:$0xff] %v237
                %v239 = vld [vmem:[%s201 + $0x90] sm:$0xff]
                %240 = vst [vmem:[%s202 + $0x90] sm:$0xff] %v239
                %v241 = vld [vmem:[%s201 + $0x98] sm:$0xff]
                %242 = vst [vmem:[%s202 + $0x98] sm:$0xff] %v241
                %v243 = vld [vmem:[%s201 + $0xa0] sm:$0xff]
                %244 = vst [vmem:[%s202 + $0xa0] sm:$0xff] %v243
                %v245 = vld [vmem:[%s201 + $0xa8] sm:$0xff]
                %246 = vst [vmem:[%s202 + $0xa8] sm:$0xff] %v245
                %v247 = vld [vmem:[%s201 + $0xb0] sm:$0xff]
                %248 = vst [vmem:[%s202 + $0xb0] sm:$0xff] %v247
                %v249 = vld [vmem:[%s201 + $0xb8] sm:$0xff]
                %250 = vst [vmem:[%s202 + $0xb8] sm:$0xff] %v249
                %v251 = vld [vmem:[%s201 + $0xc0] sm:$0xff]
                %252 = vst [vmem:[%s202 + $0xc0] sm:$0xff] %v251
                %v253 = vld [vmem:[%s201 + $0xc8] sm:$0xff]
                %254 = vst [vmem:[%s202 + $0xc8] sm:$0xff] %v253
                %v255 = vld [vmem:[%s201 + $0xd0] sm:$0xff]
                %256 = vst [vmem:[%s202 + $0xd0] sm:$0xff] %v255
                %v257 = vld [vmem:[%s201 + $0xd8] sm:$0xff]
                %258 = vst [vmem:[%s202 + $0xd8] sm:$0xff] %v257
                %v259 = vld [vmem:[%s201 + $0xe0] sm:$0xff]
                %260 = vst [vmem:[%s202 + $0xe0] sm:$0xff] %v259
                %v261 = vld [vmem:[%s201 + $0xe8] sm:$0xff]
                %262 = vst [vmem:[%s202 + $0xe8] sm:$0xff] %v261
                %v263 = vld [vmem:[%s201 + $0xf0] sm:$0xff]
                %264 = vst [vmem:[%s202 + $0xf0] sm:$0xff] %v263
                %v265 = vld [vmem:[%s201 + $0xf8] sm:$0xff]
                %266 = vst [vmem:[%s202 + $0xf8] sm:$0xff] %v265
                %v267 = vld [vmem:[%s201 + $0x100] sm:$0xff]
                %268 = vst [vmem:[%s202 + $0x100] sm:$0xff] %v267
                %v269 = vld [vmem:[%s201 + $0x108] sm:$0xff]
                %270 = vst [vmem:[%s202 + $0x108] sm:$0xff] %v269
                %v271 = vld [vmem:[%s201 + $0x110] sm:$0xff]
                %272 = vst [vmem:[%s202 + $0x110] sm:$0xff] %v271
                %v273 = vld [vmem:[%s201 + $0x118] sm:$0xff]
                %274 = vst [vmem:[%s202 + $0x118] sm:$0xff] %v273
                %v275 = vld [vmem:[%s201 + $0x120] sm:$0xff]
                %276 = vst [vmem:[%s202 + $0x120] sm:$0xff] %v275
                %v277 = vld [vmem:[%s201 + $0x128] sm:$0xff]
                %278 = vst [vmem:[%s202 + $0x128] sm:$0xff] %v277
                %v279 = vld [vmem:[%s201 + $0x130] sm:$0xff]
                %280 = vst [vmem:[%s202 + $0x130] sm:$0xff] %v279
                %v281 = vld [vmem:[%s201 + $0x138] sm:$0xff]
                %282 = vst [vmem:[%s202 + $0x138] sm:$0xff] %v281
                %v283 = vld [vmem:[%s201 + $0x140] sm:$0xff]
                %284 = vst [vmem:[%s202 + $0x140] sm:$0xff] %v283
                %v285 = vld [vmem:[%s201 + $0x148] sm:$0xff]
                %286 = vst [vmem:[%s202 + $0x148] sm:$0xff] %v285
                %v287 = vld [vmem:[%s201 + $0x150] sm:$0xff]
                %288 = vst [vmem:[%s202 + $0x150] sm:$0xff] %v287
                %v289 = vld [vmem:[%s201 + $0x158] sm:$0xff]
                %290 = vst [vmem:[%s202 + $0x158] sm:$0xff] %v289
                %v291 = vld [vmem:[%s201 + $0x160] sm:$0xff]
                %292 = vst [vmem:[%s202 + $0x160] sm:$0xff] %v291
                %v293 = vld [vmem:[%s201 + $0x168] sm:$0xff]
                %294 = vst [vmem:[%s202 + $0x168] sm:$0xff] %v293
                %v295 = vld [vmem:[%s201 + $0x170] sm:$0xff]
                %296 = vst [vmem:[%s202 + $0x170] sm:$0xff] %v295
                %v297 = vld [vmem:[%s201 + $0x178] sm:$0xff]
                %298 = vst [vmem:[%s202 + $0x178] sm:$0xff] %v297
                %v299 = vld [vmem:[%s201 + $0x180] sm:$0xff]
                %300 = vst [vmem:[%s202 + $0x180] sm:$0xff] %v299
                %v301 = vld [vmem:[%s201 + $0x188] sm:$0xff]
                %302 = vst [vmem:[%s202 + $0x188] sm:$0xff] %v301
                %v303 = vld [vmem:[%s201 + $0x190] sm:$0xff]
                %304 = vst [vmem:[%s202 + $0x190] sm:$0xff] %v303
                %v305 = vld [vmem:[%s201 + $0x198] sm:$0xff]
                %306 = vst [vmem:[%s202 + $0x198] sm:$0xff] %v305
                %v307 = vld [vmem:[%s201 + $0x1a0] sm:$0xff]
                %308 = vst [vmem:[%s202 + $0x1a0] sm:$0xff] %v307
                %v309 = vld [vmem:[%s201 + $0x1a8] sm:$0xff]
                %310 = vst [vmem:[%s202 + $0x1a8] sm:$0xff] %v309
                %v311 = vld [vmem:[%s201 + $0x1b0] sm:$0xff]
                %312 = vst [vmem:[%s202 + $0x1b0] sm:$0xff] %v311
                %v313 = vld [vmem:[%s201 + $0x1b8] sm:$0xff]
                %314 = vst [vmem:[%s202 + $0x1b8] sm:$0xff] %v313
                %v315 = vld [vmem:[%s201 + $0x1c0] sm:$0xff]
                %316 = vst [vmem:[%s202 + $0x1c0] sm:$0xff] %v315
                %v317 = vld [vmem:[%s201 + $0x1c8] sm:$0xff]
                %318 = vst [vmem:[%s202 + $0x1c8] sm:$0xff] %v317
                %v319 = vld [vmem:[%s201 + $0x1d0] sm:$0xff]
                %320 = vst [vmem:[%s202 + $0x1d0] sm:$0xff] %v319
                %v321 = vld [vmem:[%s201 + $0x1d8] sm:$0xff]
                %322 = vst [vmem:[%s202 + $0x1d8] sm:$0xff] %v321
                %v323 = vld [vmem:[%s201 + $0x1e0] sm:$0xff]
                %324 = vst [vmem:[%s202 + $0x1e0] sm:$0xff] %v323
                %v325 = vld [vmem:[%s201 + $0x1e8] sm:$0xff]
                %326 = vst [vmem:[%s202 + $0x1e8] sm:$0xff] %v325
                %v327 = vld [vmem:[%s201 + $0x1f0] sm:$0xff]
                %328 = vst [vmem:[%s202 + $0x1f0] sm:$0xff] %v327
                %v329 = vld [vmem:[%s201 + $0x1f8] sm:$0xff]
                %330 = vst [vmem:[%s202 + $0x1f8] sm:$0xff] %v329
                %v331 = vld [vmem:[%s201 + $0x200] sm:$0xff]
                %332 = vst [vmem:[%s202 + $0x200] sm:$0xff] %v331
                %v333 = vld [vmem:[%s201 + $0x208] sm:$0xff]
                %334 = vst [vmem:[%s202 + $0x208] sm:$0xff] %v333
                %v335 = vld [vmem:[%s201 + $0x210] sm:$0xff]
                %336 = vst [vmem:[%s202 + $0x210] sm:$0xff] %v335
                %v337 = vld [vmem:[%s201 + $0x218] sm:$0xff]
                %338 = vst [vmem:[%s202 + $0x218] sm:$0xff] %v337
                %v339 = vld [vmem:[%s201 + $0x220] sm:$0xff]
                %340 = vst [vmem:[%s202 + $0x220] sm:$0xff] %v339
                %v341 = vld [vmem:[%s201 + $0x228] sm:$0xff]
                %342 = vst [vmem:[%s202 + $0x228] sm:$0xff] %v341
                %v343 = vld [vmem:[%s201 + $0x230] sm:$0xff]
                %344 = vst [vmem:[%s202 + $0x230] sm:$0xff] %v343
                %v345 = vld [vmem:[%s201 + $0x238] sm:$0xff]
                %346 = vst [vmem:[%s202 + $0x238] sm:$0xff] %v345
                %v347 = vld [vmem:[%s201 + $0x240] sm:$0xff]
                %348 = vst [vmem:[%s202 + $0x240] sm:$0xff] %v347
                %v349 = vld [vmem:[%s201 + $0x248] sm:$0xff]
                %350 = vst [vmem:[%s202 + $0x248] sm:$0xff] %v349
                %v351 = vld [vmem:[%s201 + $0x250] sm:$0xff]
                %352 = vst [vmem:[%s202 + $0x250] sm:$0xff] %v351
                %v353 = vld [vmem:[%s201 + $0x258] sm:$0xff]
                %354 = vst [vmem:[%s202 + $0x258] sm:$0xff] %v353
                %v355 = vld [vmem:[%s201 + $0x260] sm:$0xff]
                %356 = vst [vmem:[%s202 + $0x260] sm:$0xff] %v355
                %v357 = vld [vmem:[%s201 + $0x268] sm:$0xff]
                %358 = vst [vmem:[%s202 + $0x268] sm:$0xff] %v357
                %v359 = vld [vmem:[%s201 + $0x270] sm:$0xff]
                %360 = vst [vmem:[%s202 + $0x270] sm:$0xff] %v359
                %v361 = vld [vmem:[%s201 + $0x278] sm:$0xff]
                %362 = vst [vmem:[%s202 + $0x278] sm:$0xff] %v361
                %v363 = vld [vmem:[%s201 + $0x280] sm:$0xff]
                %364 = vst [vmem:[%s202 + $0x280] sm:$0xff] %v363
                %v365 = vld [vmem:[%s201 + $0x288] sm:$0xff]
                %366 = vst [vmem:[%s202 + $0x288] sm:$0xff] %v365
                %v367 = vld [vmem:[%s201 + $0x290] sm:$0xff]
                %368 = vst [vmem:[%s202 + $0x290] sm:$0xff] %v367
                %v369 = vld [vmem:[%s201 + $0x298] sm:$0xff]
                %370 = vst [vmem:[%s202 + $0x298] sm:$0xff] %v369
                %v371 = vld [vmem:[%s201 + $0x2a0] sm:$0xff]
                %372 = vst [vmem:[%s202 + $0x2a0] sm:$0xff] %v371
                %v373 = vld [vmem:[%s201 + $0x2a8] sm:$0xff]
                %374 = vst [vmem:[%s202 + $0x2a8] sm:$0xff] %v373
                %v375 = vld [vmem:[%s201 + $0x2b0] sm:$0xff]
                %376 = vst [vmem:[%s202 + $0x2b0] sm:$0xff] %v375
                %v377 = vld [vmem:[%s201 + $0x2b8] sm:$0xff]
                %378 = vst [vmem:[%s202 + $0x2b8] sm:$0xff] %v377
                %v379 = vld [vmem:[%s201 + $0x2c0] sm:$0xff]
                %380 = vst [vmem:[%s202 + $0x2c0] sm:$0xff] %v379
                %v381 = vld [vmem:[%s201 + $0x2c8] sm:$0xff]
                %382 = vst [vmem:[%s202 + $0x2c8] sm:$0xff] %v381
                %v383 = vld [vmem:[%s201 + $0x2d0] sm:$0xff]
                %384 = vst [vmem:[%s202 + $0x2d0] sm:$0xff] %v383
                %v385 = vld [vmem:[%s201 + $0x2d8] sm:$0xff]
                %386 = vst [vmem:[%s202 + $0x2d8] sm:$0xff] %v385
                %v387 = vld [vmem:[%s201 + $0x2e0] sm:$0xff]
                %388 = vst [vmem:[%s202 + $0x2e0] sm:$0xff] %v387
                %v389 = vld [vmem:[%s201 + $0x2e8] sm:$0xff]
                %390 = vst [vmem:[%s202 + $0x2e8] sm:$0xff] %v389
                %v391 = vld [vmem:[%s201 + $0x2f0] sm:$0xff]
                %392 = vst [vmem:[%s202 + $0x2f0] sm:$0xff] %v391
                %v393 = vld [vmem:[%s201 + $0x2f8] sm:$0xff]
                %394 = vst [vmem:[%s202 + $0x2f8] sm:$0xff] %v393
                %v395 = vld [vmem:[%s201 + $0x300] sm:$0xff]
                %396 = vst [vmem:[%s202 + $0x300] sm:$0xff] %v395
                %v397 = vld [vmem:[%s201 + $0x308] sm:$0xff]
                %398 = vst [vmem:[%s202 + $0x308] sm:$0xff] %v397
                %v399 = vld [vmem:[%s201 + $0x310] sm:$0xff]
                %400 = vst [vmem:[%s202 + $0x310] sm:$0xff] %v399
                %v401 = vld [vmem:[%s201 + $0x318] sm:$0xff]
                %402 = vst [vmem:[%s202 + $0x318] sm:$0xff] %v401
                %v403 = vld [vmem:[%s201 + $0x320] sm:$0xff]
                %404 = vst [vmem:[%s202 + $0x320] sm:$0xff] %v403
                %v405 = vld [vmem:[%s201 + $0x328] sm:$0xff]
                %406 = vst [vmem:[%s202 + $0x328] sm:$0xff] %v405
                %v407 = vld [vmem:[%s201 + $0x330] sm:$0xff]
                %408 = vst [vmem:[%s202 + $0x330] sm:$0xff] %v407
                %v409 = vld [vmem:[%s201 + $0x338] sm:$0xff]
                %410 = vst [vmem:[%s202 + $0x338] sm:$0xff] %v409
                %v411 = vld [vmem:[%s201 + $0x340] sm:$0xff]
                %412 = vst [vmem:[%s202 + $0x340] sm:$0xff] %v411
                %v413 = vld [vmem:[%s201 + $0x348] sm:$0xff]
                %414 = vst [vmem:[%s202 + $0x348] sm:$0xff] %v413
                %v415 = vld [vmem:[%s201 + $0x350] sm:$0xff]
                %416 = vst [vmem:[%s202 + $0x350] sm:$0xff] %v415
                %v417 = vld [vmem:[%s201 + $0x358] sm:$0xff]
                %418 = vst [vmem:[%s202 + $0x358] sm:$0xff] %v417
                %v419 = vld [vmem:[%s201 + $0x360] sm:$0xff]
                %420 = vst [vmem:[%s202 + $0x360] sm:$0xff] %v419
                %v421 = vld [vmem:[%s201 + $0x368] sm:$0xff]
                %422 = vst [vmem:[%s202 + $0x368] sm:$0xff] %v421
                %v423 = vld [vmem:[%s201 + $0x370] sm:$0xff]
                %424 = vst [vmem:[%s202 + $0x370] sm:$0xff] %v423
                %v425 = vld [vmem:[%s201 + $0x378] sm:$0xff]
                %426 = vst [vmem:[%s202 + $0x378] sm:$0xff] %v425
                %v427 = vld [vmem:[%s201 + $0x380] sm:$0xff]
                %428 = vst [vmem:[%s202 + $0x380] sm:$0xff] %v427
                %v429 = vld [vmem:[%s201 + $0x388] sm:$0xff]
                %430 = vst [vmem:[%s202 + $0x388] sm:$0xff] %v429
                %v431 = vld [vmem:[%s201 + $0x390] sm:$0xff]
                %432 = vst [vmem:[%s202 + $0x390] sm:$0xff] %v431
                %v433 = vld [vmem:[%s201 + $0x398] sm:$0xff]
                %434 = vst [vmem:[%s202 + $0x398] sm:$0xff] %v433
                %v435 = vld [vmem:[%s201 + $0x3a0] sm:$0xff]
                %436 = vst [vmem:[%s202 + $0x3a0] sm:$0xff] %v435
                %v437 = vld [vmem:[%s201 + $0x3a8] sm:$0xff]
                %438 = vst [vmem:[%s202 + $0x3a8] sm:$0xff] %v437
                %v439 = vld [vmem:[%s201 + $0x3b0] sm:$0xff]
                %440 = vst [vmem:[%s202 + $0x3b0] sm:$0xff] %v439
                %v441 = vld [vmem:[%s201 + $0x3b8] sm:$0xff]
                %442 = vst [vmem:[%s202 + $0x3b8] sm:$0xff] %v441
                %v443 = vld [vmem:[%s201 + $0xf00] sm:$0xff]
                %444 = vst [vmem:[%s202 + $0x3c0] sm:$0xff] %v443
                %v445 = vld [vmem:[%s201 + $0xf08] sm:$0xff]
                %446 = vst [vmem:[%s202 + $0x3c8] sm:$0xff] %v445
                %v447 = vld [vmem:[%s201 + $0xf10] sm:$0xff]
                %448 = vst [vmem:[%s202 + $0x3d0] sm:$0xff] %v447
                %v449 = vld [vmem:[%s201 + $0xf18] sm:$0xff]
                %450 = vst [vmem:[%s202 + $0x3d8] sm:$0xff] %v449
                %v451 = vld [vmem:[%s201 + $0xf20] sm:$0xff]
                %452 = vst [vmem:[%s202 + $0x3e0] sm:$0xff] %v451
                %v453 = vld [vmem:[%s201 + $0xf28] sm:$0xff]
                %454 = vst [vmem:[%s202 + $0x3e8] sm:$0xff] %v453
                %v455 = vld [vmem:[%s201 + $0xf30] sm:$0xff]
                %456 = vst [vmem:[%s202 + $0x3f0] sm:$0xff] %v455
                %v457 = vld [vmem:[%s201 + $0xf38] sm:$0xff]
                %458 = vst [vmem:[%s202 + $0x3f8] sm:$0xff] %v457
                %v459 = vld [vmem:[%s201 + $0xf40] sm:$0xff]
                %460 = vst [vmem:[%s202 + $0x400] sm:$0xff] %v459
                %v461 = vld [vmem:[%s201 + $0xf48] sm:$0xff]
                %462 = vst [vmem:[%s202 + $0x408] sm:$0xff] %v461
                %v463 = vld [vmem:[%s201 + $0xf50] sm:$0xff]
                %464 = vst [vmem:[%s202 + $0x410] sm:$0xff] %v463
                %v465 = vld [vmem:[%s201 + $0xf58] sm:$0xff]
                %466 = vst [vmem:[%s202 + $0x418] sm:$0xff] %v465
                %v467 = vld [vmem:[%s201 + $0xf60] sm:$0xff]
                %468 = vst [vmem:[%s202 + $0x420] sm:$0xff] %v467
                %v469 = vld [vmem:[%s201 + $0xf68] sm:$0xff]
                %470 = vst [vmem:[%s202 + $0x428] sm:$0xff] %v469
                %v471 = vld [vmem:[%s201 + $0xf70] sm:$0xff]
                %472 = vst [vmem:[%s202 + $0x430] sm:$0xff] %v471
                %v473 = vld [vmem:[%s201 + $0xf78] sm:$0xff]
                %474 = vst [vmem:[%s202 + $0x438] sm:$0xff] %v473
                %v475 = vld [vmem:[%s201 + $0xf80] sm:$0xff]
                %476 = vst [vmem:[%s202 + $0x440] sm:$0xff] %v475
                %v477 = vld [vmem:[%s201 + $0xf88] sm:$0xff]
                %478 = vst [vmem:[%s202 + $0x448] sm:$0xff] %v477
                %v479 = vld [vmem:[%s201 + $0xf90] sm:$0xff]
                %480 = vst [vmem:[%s202 + $0x450] sm:$0xff] %v479
                %v481 = vld [vmem:[%s201 + $0xf98] sm:$0xff]
                %482 = vst [vmem:[%s202 + $0x458] sm:$0xff] %v481
                %v483 = vld [vmem:[%s201 + $0xfa0] sm:$0xff]
                %484 = vst [vmem:[%s202 + $0x460] sm:$0xff] %v483
                %v485 = vld [vmem:[%s201 + $0xfa8] sm:$0xff]
                %486 = vst [vmem:[%s202 + $0x468] sm:$0xff] %v485
                %v487 = vld [vmem:[%s201 + $0xfb0] sm:$0xff]
                %488 = vst [vmem:[%s202 + $0x470] sm:$0xff] %v487
                %v489 = vld [vmem:[%s201 + $0xfb8] sm:$0xff]
                %490 = vst [vmem:[%s202 + $0x478] sm:$0xff] %v489
                %v491 = vld [vmem:[%s201 + $0xfc0] sm:$0xff]
                %492 = vst [vmem:[%s202 + $0x480] sm:$0xff] %v491
                %v493 = vld [vmem:[%s201 + $0xfc8] sm:$0xff]
                %494 = vst [vmem:[%s202 + $0x488] sm:$0xff] %v493
                %v495 = vld [vmem:[%s201 + $0xfd0] sm:$0xff]
                %496 = vst [vmem:[%s202 + $0x490] sm:$0xff] %v495
                %v497 = vld [vmem:[%s201 + $0xfd8] sm:$0xff]
                %498 = vst [vmem:[%s202 + $0x498] sm:$0xff] %v497
                %v499 = vld [vmem:[%s201 + $0xfe0] sm:$0xff]
                %500 = vst [vmem:[%s202 + $0x4a0] sm:$0xff] %v499
                %v501 = vld [vmem:[%s201 + $0xfe8] sm:$0xff]
                %502 = vst [vmem:[%s202 + $0x4a8] sm:$0xff] %v501
                %v503 = vld [vmem:[%s201 + $0xff0] sm:$0xff]
                %504 = vst [vmem:[%s202 + $0x4b0] sm:$0xff] %v503
                %v505 = vld [vmem:[%s201 + $0xff8] sm:$0xff]
                %506 = vst [vmem:[%s202 + $0x4b8] sm:$0xff] %v505
                %v507 = vld [vmem:[%s201 + $0x1000] sm:$0xff]
                %508 = vst [vmem:[%s202 + $0x4c0] sm:$0xff] %v507
                %v509 = vld [vmem:[%s201 + $0x1008] sm:$0xff]
                %510 = vst [vmem:[%s202 + $0x4c8] sm:$0xff] %v509
                %v511 = vld [vmem:[%s201 + $0x1010] sm:$0xff]
                %512 = vst [vmem:[%s202 + $0x4d0] sm:$0xff] %v511
                %v513 = vld [vmem:[%s201 + $0x1018] sm:$0xff]
                %514 = vst [vmem:[%s202 + $0x4d8] sm:$0xff] %v513
                %v515 = vld [vmem:[%s201 + $0x1020] sm:$0xff]
                %516 = vst [vmem:[%s202 + $0x4e0] sm:$0xff] %v515
                %v517 = vld [vmem:[%s201 + $0x1028] sm:$0xff]
                %518 = vst [vmem:[%s202 + $0x4e8] sm:$0xff] %v517
                %v519 = vld [vmem:[%s201 + $0x1030] sm:$0xff]
                %520 = vst [vmem:[%s202 + $0x4f0] sm:$0xff] %v519
                %v521 = vld [vmem:[%s201 + $0x1038] sm:$0xff]
                %522 = vst [vmem:[%s202 + $0x4f8] sm:$0xff] %v521
                %v523 = vld [vmem:[%s201 + $0x1040] sm:$0xff]
                %524 = vst [vmem:[%s202 + $0x500] sm:$0xff] %v523
                %v525 = vld [vmem:[%s201 + $0x1048] sm:$0xff]
                %526 = vst [vmem:[%s202 + $0x508] sm:$0xff] %v525
                %v527 = vld [vmem:[%s201 + $0x1050] sm:$0xff]
                %528 = vst [vmem:[%s202 + $0x510] sm:$0xff] %v527
                %v529 = vld [vmem:[%s201 + $0x1058] sm:$0xff]
                %530 = vst [vmem:[%s202 + $0x518] sm:$0xff] %v529
                %v531 = vld [vmem:[%s201 + $0x1060] sm:$0xff]
                %532 = vst [vmem:[%s202 + $0x520] sm:$0xff] %v531
                %v533 = vld [vmem:[%s201 + $0x1068] sm:$0xff]
                %534 = vst [vmem:[%s202 + $0x528] sm:$0xff] %v533
                %v535 = vld [vmem:[%s201 + $0x1070] sm:$0xff]
                %536 = vst [vmem:[%s202 + $0x530] sm:$0xff] %v535
                %v537 = vld [vmem:[%s201 + $0x1078] sm:$0xff]
                %538 = vst [vmem:[%s202 + $0x538] sm:$0xff] %v537
                %v539 = vld [vmem:[%s201 + $0x1080] sm:$0xff]
                %540 = vst [vmem:[%s202 + $0x540] sm:$0xff] %v539
                %v541 = vld [vmem:[%s201 + $0x1088] sm:$0xff]
                %542 = vst [vmem:[%s202 + $0x548] sm:$0xff] %v541
                %v543 = vld [vmem:[%s201 + $0x1090] sm:$0xff]
                %544 = vst [vmem:[%s202 + $0x550] sm:$0xff] %v543
                %v545 = vld [vmem:[%s201 + $0x1098] sm:$0xff]
                %546 = vst [vmem:[%s202 + $0x558] sm:$0xff] %v545
                %v547 = vld [vmem:[%s201 + $0x10a0] sm:$0xff]
                %548 = vst [vmem:[%s202 + $0x560] sm:$0xff] %v547
                %v549 = vld [vmem:[%s201 + $0x10a8] sm:$0xff]
                %550 = vst [vmem:[%s202 + $0x568] sm:$0xff] %v549
                %v551 = vld [vmem:[%s201 + $0x10b0] sm:$0xff]
                %552 = vst [vmem:[%s202 + $0x570] sm:$0xff] %v551
                %v553 = vld [vmem:[%s201 + $0x10b8] sm:$0xff]
                %554 = vst [vmem:[%s202 + $0x578] sm:$0xff] %v553
                %v555 = vld [vmem:[%s201 + $0x10c0] sm:$0xff]
                %556 = vst [vmem:[%s202 + $0x580] sm:$0xff] %v555
                %v557 = vld [vmem:[%s201 + $0x10c8] sm:$0xff]
                %558 = vst [vmem:[%s202 + $0x588] sm:$0xff] %v557
                %v559 = vld [vmem:[%s201 + $0x10d0] sm:$0xff]
                %560 = vst [vmem:[%s202 + $0x590] sm:$0xff] %v559
                %v561 = vld [vmem:[%s201 + $0x10d8] sm:$0xff]
                %562 = vst [vmem:[%s202 + $0x598] sm:$0xff] %v561
                %v563 = vld [vmem:[%s201 + $0x10e0] sm:$0xff]
                %564 = vst [vmem:[%s202 + $0x5a0] sm:$0xff] %v563
                %v565 = vld [vmem:[%s201 + $0x10e8] sm:$0xff]
                %566 = vst [vmem:[%s202 + $0x5a8] sm:$0xff] %v565
                %v567 = vld [vmem:[%s201 + $0x10f0] sm:$0xff]
                %568 = vst [vmem:[%s202 + $0x5b0] sm:$0xff] %v567
                %v569 = vld [vmem:[%s201 + $0x10f8] sm:$0xff]
                %570 = vst [vmem:[%s202 + $0x5b8] sm:$0xff] %v569
                %v571 = vld [vmem:[%s201 + $0x1100] sm:$0xff]
                %572 = vst [vmem:[%s202 + $0x5c0] sm:$0xff] %v571
                %v573 = vld [vmem:[%s201 + $0x1108] sm:$0xff]
                %574 = vst [vmem:[%s202 + $0x5c8] sm:$0xff] %v573
                %v575 = vld [vmem:[%s201 + $0x1110] sm:$0xff]
                %576 = vst [vmem:[%s202 + $0x5d0] sm:$0xff] %v575
                %v577 = vld [vmem:[%s201 + $0x1118] sm:$0xff]
                %578 = vst [vmem:[%s202 + $0x5d8] sm:$0xff] %v577
                %v579 = vld [vmem:[%s201 + $0x1120] sm:$0xff]
                %580 = vst [vmem:[%s202 + $0x5e0] sm:$0xff] %v579
                %v581 = vld [vmem:[%s201 + $0x1128] sm:$0xff]
                %582 = vst [vmem:[%s202 + $0x5e8] sm:$0xff] %v581
                %v583 = vld [vmem:[%s201 + $0x1130] sm:$0xff]
                %584 = vst [vmem:[%s202 + $0x5f0] sm:$0xff] %v583
                %v585 = vld [vmem:[%s201 + $0x1138] sm:$0xff]
                %586 = vst [vmem:[%s202 + $0x5f8] sm:$0xff] %v585
                %v587 = vld [vmem:[%s201 + $0x1140] sm:$0xff]
                %588 = vst [vmem:[%s202 + $0x600] sm:$0xff] %v587
                %v589 = vld [vmem:[%s201 + $0x1148] sm:$0xff]
                %590 = vst [vmem:[%s202 + $0x608] sm:$0xff] %v589
                %v591 = vld [vmem:[%s201 + $0x1150] sm:$0xff]
                %592 = vst [vmem:[%s202 + $0x610] sm:$0xff] %v591
                %v593 = vld [vmem:[%s201 + $0x1158] sm:$0xff]
                %594 = vst [vmem:[%s202 + $0x618] sm:$0xff] %v593
                %v595 = vld [vmem:[%s201 + $0x1160] sm:$0xff]
                %596 = vst [vmem:[%s202 + $0x620] sm:$0xff] %v595
                %v597 = vld [vmem:[%s201 + $0x1168] sm:$0xff]
                %598 = vst [vmem:[%s202 + $0x628] sm:$0xff] %v597
                %v599 = vld [vmem:[%s201 + $0x1170] sm:$0xff]
                %600 = vst [vmem:[%s202 + $0x630] sm:$0xff] %v599
                %v601 = vld [vmem:[%s201 + $0x1178] sm:$0xff]
                %602 = vst [vmem:[%s202 + $0x638] sm:$0xff] %v601
                %v603 = vld [vmem:[%s201 + $0x1180] sm:$0xff]
                %604 = vst [vmem:[%s202 + $0x640] sm:$0xff] %v603
                %v605 = vld [vmem:[%s201 + $0x1188] sm:$0xff]
                %606 = vst [vmem:[%s202 + $0x648] sm:$0xff] %v605
                %v607 = vld [vmem:[%s201 + $0x1190] sm:$0xff]
                %608 = vst [vmem:[%s202 + $0x650] sm:$0xff] %v607
                %v609 = vld [vmem:[%s201 + $0x1198] sm:$0xff]
                %610 = vst [vmem:[%s202 + $0x658] sm:$0xff] %v609
                %v611 = vld [vmem:[%s201 + $0x11a0] sm:$0xff]
                %612 = vst [vmem:[%s202 + $0x660] sm:$0xff] %v611
                %v613 = vld [vmem:[%s201 + $0x11a8] sm:$0xff]
                %614 = vst [vmem:[%s202 + $0x668] sm:$0xff] %v613
                %v615 = vld [vmem:[%s201 + $0x11b0] sm:$0xff]
                %616 = vst [vmem:[%s202 + $0x670] sm:$0xff] %v615
                %v617 = vld [vmem:[%s201 + $0x11b8] sm:$0xff]
                %618 = vst [vmem:[%s202 + $0x678] sm:$0xff] %v617
                %v619 = vld [vmem:[%s201 + $0x11c0] sm:$0xff]
                %620 = vst [vmem:[%s202 + $0x680] sm:$0xff] %v619
                %v621 = vld [vmem:[%s201 + $0x11c8] sm:$0xff]
                %622 = vst [vmem:[%s202 + $0x688] sm:$0xff] %v621
                %v623 = vld [vmem:[%s201 + $0x11d0] sm:$0xff]
                %624 = vst [vmem:[%s202 + $0x690] sm:$0xff] %v623
                %v625 = vld [vmem:[%s201 + $0x11d8] sm:$0xff]
                %626 = vst [vmem:[%s202 + $0x698] sm:$0xff] %v625
                %v627 = vld [vmem:[%s201 + $0x11e0] sm:$0xff]
                %628 = vst [vmem:[%s202 + $0x6a0] sm:$0xff] %v627
                %v629 = vld [vmem:[%s201 + $0x11e8] sm:$0xff]
                %630 = vst [vmem:[%s202 + $0x6a8] sm:$0xff] %v629
                %v631 = vld [vmem:[%s201 + $0x11f0] sm:$0xff]
                %632 = vst [vmem:[%s202 + $0x6b0] sm:$0xff] %v631
                %v633 = vld [vmem:[%s201 + $0x11f8] sm:$0xff]
                %634 = vst [vmem:[%s202 + $0x6b8] sm:$0xff] %v633
                %v635 = vld [vmem:[%s201 + $0x1200] sm:$0xff]
                %636 = vst [vmem:[%s202 + $0x6c0] sm:$0xff] %v635
                %v637 = vld [vmem:[%s201 + $0x1208] sm:$0xff]
                %638 = vst [vmem:[%s202 + $0x6c8] sm:$0xff] %v637
                %v639 = vld [vmem:[%s201 + $0x1210] sm:$0xff]
                %640 = vst [vmem:[%s202 + $0x6d0] sm:$0xff] %v639
                %v641 = vld [vmem:[%s201 + $0x1218] sm:$0xff]
                %642 = vst [vmem:[%s202 + $0x6d8] sm:$0xff] %v641
                %v643 = vld [vmem:[%s201 + $0x1220] sm:$0xff]
                %644 = vst [vmem:[%s202 + $0x6e0] sm:$0xff] %v643
                %v645 = vld [vmem:[%s201 + $0x1228] sm:$0xff]
                %646 = vst [vmem:[%s202 + $0x6e8] sm:$0xff] %v645
                %v647 = vld [vmem:[%s201 + $0x1230] sm:$0xff]
                %648 = vst [vmem:[%s202 + $0x6f0] sm:$0xff] %v647
                %v649 = vld [vmem:[%s201 + $0x1238] sm:$0xff]
                %650 = vst [vmem:[%s202 + $0x6f8] sm:$0xff] %v649
                %v651 = vld [vmem:[%s201 + $0x1240] sm:$0xff]
                %652 = vst [vmem:[%s202 + $0x700] sm:$0xff] %v651
                %v653 = vld [vmem:[%s201 + $0x1248] sm:$0xff]
                %654 = vst [vmem:[%s202 + $0x708] sm:$0xff] %v653
                %v655 = vld [vmem:[%s201 + $0x1250] sm:$0xff]
                %656 = vst [vmem:[%s202 + $0x710] sm:$0xff] %v655
                %v657 = vld [vmem:[%s201 + $0x1258] sm:$0xff]
                %658 = vst [vmem:[%s202 + $0x718] sm:$0xff] %v657
                %v659 = vld [vmem:[%s201 + $0x1260] sm:$0xff]
                %660 = vst [vmem:[%s202 + $0x720] sm:$0xff] %v659
                %v661 = vld [vmem:[%s201 + $0x1268] sm:$0xff]
                %662 = vst [vmem:[%s202 + $0x728] sm:$0xff] %v661
                %v663 = vld [vmem:[%s201 + $0x1270] sm:$0xff]
                %664 = vst [vmem:[%s202 + $0x730] sm:$0xff] %v663
                %v665 = vld [vmem:[%s201 + $0x1278] sm:$0xff]
                %666 = vst [vmem:[%s202 + $0x738] sm:$0xff] %v665
                %v667 = vld [vmem:[%s201 + $0x1280] sm:$0xff]
                %668 = vst [vmem:[%s202 + $0x740] sm:$0xff] %v667
                %v669 = vld [vmem:[%s201 + $0x1288] sm:$0xff]
                %670 = vst [vmem:[%s202 + $0x748] sm:$0xff] %v669
                %v671 = vld [vmem:[%s201 + $0x1290] sm:$0xff]
                %672 = vst [vmem:[%s202 + $0x750] sm:$0xff] %v671
                %v673 = vld [vmem:[%s201 + $0x1298] sm:$0xff]
                %674 = vst [vmem:[%s202 + $0x758] sm:$0xff] %v673
                %v675 = vld [vmem:[%s201 + $0x12a0] sm:$0xff]
                %676 = vst [vmem:[%s202 + $0x760] sm:$0xff] %v675
                %v677 = vld [vmem:[%s201 + $0x12a8] sm:$0xff]
                %678 = vst [vmem:[%s202 + $0x768] sm:$0xff] %v677
                %v679 = vld [vmem:[%s201 + $0x12b0] sm:$0xff]
                %680 = vst [vmem:[%s202 + $0x770] sm:$0xff] %v679
                %v681 = vld [vmem:[%s201 + $0x12b8] sm:$0xff]
                %682 = vst [vmem:[%s202 + $0x778] sm:$0xff] %v681
              $region41: #{image_classifier_forward.1} parent=35 // loop_footer
                %s200 = sadd.s32 1, %s196
              $region42: #{image_classifier_forward.1} parent=35 // loop_footer_branch
                %195 = sbr.rel target = $region38
              $region43: #{image_classifier_forward.1} parent=35 // loop_exit
                _
            $region36: #{image_classifier_forward.1} parent=31 // pred_fallthru
              _
            // Predicated region
            $region44: #{image_classifier_forward.1} parent=31 // pred_check
              _
            $region45: #{image_classifier_forward.1} parent=31 // pred_check_branch
              %684 = sbr.rel target = $region47
            $region46: #{image_classifier_forward.1} parent=31 // pred_region
              _
            $region47: #{image_classifier_forward.1} parent=31 // pred_fallthru
              _
          $region32: #{image_classifier_forward.1} parent=27 // pred_fallthru
            _
          %685 = vnop
        $region28: #{image_classifier_forward.1} parent=23 // pred_fallthru
          _
        // Predicated region
        $region48: #{image_classifier_forward.1} parent=23 // pred_check
          %p686 = pneg %p121
        $region49: #{image_classifier_forward.1} parent=23 // pred_check_branch
          %688 = sbr.rel (%p686) target = $region51
        $region50: #{image_classifier_forward.1} parent=23 // pred_region
          #allocation8 [shape = 'u32[6]{0}', space=smem, size = 0x18, scoped, tag = 'DMA stride descriptor']
          %s689 = sand.u32 %s111, 1
          %s690 = scalar_lea.sflag [#allocation6], %s689
          %s691 = sand.u32 %s111, 1
          %s692 = smul.addr %s691, 5760
          %s693 = scalar_lea.vmem [#allocation5], %s692
          %s694 = smul.u32 %s20, 2
          %s695 = sadd.s32 %s694, %s21
          %s696 = smul.u32 24, %s695
          %s698 = ssub.s32 92160, 92160
          %699 = vsyncadd %s690, %s698
          %s700 = smul.addr %s696, 6
          %s701 = smul.addr %s700, 64
          %s702 = scalar_lea.hbm %s3, %s701
          %s704 = sshll.u32 1, 14
          %s705 = sxor.u32 4294967295, %s704
          %s707 = sld [smem:[#allocation0]]
          %s708 = sadd.s32 2, %s707
          %s710 = sshll.u32 7, 26
          %s711 = sxor.u32 4294967295, %s710
          %s712 = sand.u32 0, %s711
          %s713 = sshll.u32 %s708, 26
          %s714 = sor.u32 %s712, %s713
          %s715 = sshll.u32 %s693, 4
          %s716 = int_to_ptr.vmem [resolvable:$true] %s715
          %722 = sst [smem:[#allocation8]] 36864
          %s723 = scalar_lea.smem [#allocation8], 1
          %724 = sst [smem:[%s723]] 9216
          %s725 = scalar_lea.smem [#allocation8], 2
          %726 = sst [smem:[%s725]] 24
          %s727 = scalar_lea.smem [#allocation8], 3
          %728 = sst [smem:[%s727]] 384
          %s729 = scalar_lea.smem [#allocation8], 4
          %730 = sst [smem:[%s729]] 384
          %s731 = scalar_lea.smem [#allocation8], 5
          %732 = sst [smem:[%s731]] 24
          %734 = dma.general %s702, 92160, %s716, %s690, [#allocation7], [#allocation8], %s714, 0
        $region51: #{image_classifier_forward.1} parent=23 // pred_fallthru
          _
      $region24: #{image_classifier_forward.1} parent=5 // pred_fallthru
        _
      %p735 = scmp.le.s32.totalorder 1, %s13
      %p736 = scmp.lt.s32.totalorder %s13, 5
      %p737 = pnand %p735, %p736
      %p738 = pneg %p737
      // Predicated region
      $region52: #{image_classifier_forward.1} parent=5 // pred_check
        _
      $region53: #{image_classifier_forward.1} parent=5 // pred_check_branch
        %740 = sbr.rel (%p737) target = $region55
      $region54: #{image_classifier_forward.1} parent=5 // pred_region
        %s741 = ssub.s32 %s13, 1
        %s742 = sand.u32 %s42, 1
        %s743 = sand.u32 %s42, 1
        %s744 = smul.addr %s743, 1920
        %s745 = scalar_lea.vmem [#allocation4], %s744
        // Predicated region
        $region56: #{image_classifier_forward.1} parent=54 // pred_check
          %p746 = pneg %p55
        $region57: #{image_classifier_forward.1} parent=54 // pred_check_branch
          %748 = sbr.rel (%p746) target = $region59
        $region58: #{image_classifier_forward.1} parent=54 // pred_region
          _
        $region59: #{image_classifier_forward.1} parent=54 // pred_fallthru
          _
        %s749 = sand.u32 %s114, 1
        %s750 = scalar_lea.sflag [#allocation6], %s749
        %s751 = sand.u32 %s114, 1
        %s752 = smul.addr %s751, 5760
        %s753 = scalar_lea.vmem [#allocation5], %s752
        // Predicated region
        $region60: #{image_classifier_forward.1} parent=54 // pred_check
          %p754 = pneg %p127
        $region61: #{image_classifier_forward.1} parent=54 // pred_check_branch
          %756 = sbr.rel (%p754) target = $region63
        $region62: #{image_classifier_forward.1} parent=54 // pred_region
          %757 = dma.done %s750, 92160
        $region63: #{image_classifier_forward.1} parent=54 // pred_fallthru
          _
        %s758 = sand.u32 %s42, 1
        %s759 = sand.u32 %s42, 1
        %s760 = smul.addr %s759, 1920
        %s761 = scalar_lea.vmem [#allocation4], %s760
        %p762 = pneg %p55
        %p763 = pneg %p52
        %p764 = pneg %p76
        %p765 = pneg %p73
        %p766 = pneg %p97
        %p767 = pneg %p94
        %s768 = sand.u32 %s114, 1
        %s769 = scalar_lea.sflag [#allocation6], %s768
        %s770 = sand.u32 %s114, 1
        %s771 = smul.addr %s770, 5760
        %s772 = scalar_lea.vmem [#allocation5], %s771
        %p773 = pneg %p127
        %p774 = pneg %p124
        %p775 = pneg %p153
        %p776 = pneg %p150
        %p777 = scmp.lt.s32.totalorder %s22, 1
        %s778 = scalar_select %p777, %s22, 1
        %s779 = smul.addr %s778, 60
        %s780 = smul.addr %s779, 2
        %s781 = scalar_lea.vmem %s4, %s780
        %s782 = smul.u32 %s22, 2
        %s783 = sadd.s32 %s782, %s23
        %s784 = smul.u32 24, %s783
        %s785 = smul.u32 %s22, 2
        %s786 = sadd.s32 %s785, %s23
        %s787 = smul.u32 24, %s786
        %p788 = scmp.lt.s32.totalorder %s22, 1
        %s789 = scalar_select %p788, %s22, 1
        %s790 = smul.addr %s789, 60
        %s791 = smul.addr %s790, 2
        %s792 = scalar_lea.vmem %s4, %s791
        %p794 = scmp.eq.s32.totalorder %s23, 0
        // Predicated region
        $region64: #{image_classifier_forward.1} parent=54 // pred_check
          %p795 = pneg %p794
        $region65: #{image_classifier_forward.1} parent=54 // pred_check_branch
          %797 = sbr.rel (%p795) target = $region67
        $region66: #{image_classifier_forward.1} parent=54 // pred_region
          %798 = vst [vmem:[#allocation3] sm:$0xff] 0.0
          %799 = vst [vmem:[#allocation3 + $0x8] sm:$0xf] 0.0
          %800 = vst [vmem:[#allocation3 + $0xc] sm:$0xff] 0.0
          %801 = vst [vmem:[#allocation3 + $0x14] sm:$0xf] 0.0
          %802 = vst [vmem:[#allocation3 + $0x18] sm:$0xff] 0.0
          %803 = vst [vmem:[#allocation3 + $0x20] sm:$0xf] 0.0
          %804 = vst [vmem:[#allocation3 + $0x24] sm:$0xff] 0.0
          %805 = vst [vmem:[#allocation3 + $0x2c] sm:$0xf] 0.0
          %806 = vst [vmem:[#allocation3 + $0x30] sm:$0xff] 0.0
          %807 = vst [vmem:[#allocation3 + $0x38] sm:$0xf] 0.0
          %808 = vst [vmem:[#allocation3 + $0x3c] sm:$0xff] 0.0
          %809 = vst [vmem:[#allocation3 + $0x44] sm:$0xf] 0.0
          %810 = vst [vmem:[#allocation3 + $0x48] sm:$0xff] 0.0
          %811 = vst [vmem:[#allocation3 + $0x50] sm:$0xf] 0.0
          %812 = vst [vmem:[#allocation3 + $0x54] sm:$0xff] 0.0
          %813 = vst [vmem:[#allocation3 + $0x5c] sm:$0xf] 0.0
          %814 = vst [vmem:[#allocation3 + $0x60] sm:$0xff] 0.0
          %815 = vst [vmem:[#allocation3 + $0x68] sm:$0xf] 0.0
          %816 = vst [vmem:[#allocation3 + $0x6c] sm:$0xff] 0.0
          %817 = vst [vmem:[#allocation3 + $0x74] sm:$0xf] 0.0
        $region67: #{image_classifier_forward.1} parent=54 // pred_fallthru
          _
        %v818 = vld [vmem:[%s1] sm:$0xff]
        %v819 = vld [vmem:[%s1 + $0x8] sm:$0xff]
        %v820 = vld [vmem:[%s1 + $0x10] sm:$0xff]
        %v821 = vld [vmem:[%s1 + $0x18] sm:$0xff]
        %v822 = vld [vmem:[%s1 + $0x20] sm:$0xff]
        %v823 = vld [vmem:[%s1 + $0x28] sm:$0xff]
        %v824 = vld [vmem:[%s1 + $0x30] sm:$0xff]
        %v825 = vld [vmem:[%s1 + $0x38] sm:$0xff]
        %v826 = vld [vmem:[%s1 + $0x40] sm:$0xff]
        %v827 = vld [vmem:[%s1 + $0x48] sm:$0xff]
        %v828 = vld [vmem:[%s1 + $0x50] sm:$0xff]
        %v829 = vld [vmem:[%s1 + $0x58] sm:$0xff]
        %v830 = vld [vmem:[%s1 + $0x60] sm:$0xff]
        %v831 = vld [vmem:[%s1 + $0x68] sm:$0xff]
        %v832 = vld [vmem:[%s1 + $0x70] sm:$0xff]
        %v833 = vld [vmem:[%s1 + $0x78] sm:$0xff]
        %v834 = vld [vmem:[%s1 + $0x80] sm:$0xff]
        %v835 = vld [vmem:[%s1 + $0x88] sm:$0xff]
        %v836 = vld [vmem:[%s1 + $0x90] sm:$0xff]
        %v837 = vld [vmem:[%s1 + $0x98] sm:$0xff]
        %v838 = vld [vmem:[%s1 + $0xa0] sm:$0xff]
        %v839 = vld [vmem:[%s1 + $0xa8] sm:$0xff]
        %v840 = vld [vmem:[%s1 + $0xb0] sm:$0xff]
        %v841 = vld [vmem:[%s1 + $0xb8] sm:$0xff]
        %v842 = vld [vmem:[%s1 + $0xc0] sm:$0xff]
        %v843 = vld [vmem:[%s1 + $0xc8] sm:$0xff]
        %v844 = vld [vmem:[%s1 + $0xd0] sm:$0xff]
        %v845 = vld [vmem:[%s1 + $0xd8] sm:$0xff]
        %v846 = vld [vmem:[%s1 + $0xe0] sm:$0xff]
        %v847 = vld [vmem:[%s1 + $0xe8] sm:$0xff]
        %v848 = vld [vmem:[%s1 + $0xf0] sm:$0xff]
        %v849 = vld [vmem:[%s1 + $0xf8] sm:$0xff]
        %v850 = vld [vmem:[%s1 + $0x100] sm:$0xff]
        %v851 = vld [vmem:[%s1 + $0x108] sm:$0xff]
        %v852 = vld [vmem:[%s1 + $0x110] sm:$0xff]
        %v853 = vld [vmem:[%s1 + $0x118] sm:$0xff]
        %v854 = vld [vmem:[%s1 + $0x120] sm:$0xff]
        %v855 = vld [vmem:[%s1 + $0x128] sm:$0xff]
        %v856 = vld [vmem:[%s1 + $0x130] sm:$0xff]
        %v857 = vld [vmem:[%s1 + $0x138] sm:$0xff]
        %v858 = vld [vmem:[%s1 + $0x140] sm:$0xff]
        %v859 = vld [vmem:[%s1 + $0x148] sm:$0xff]
        %v860 = vld [vmem:[%s1 + $0x150] sm:$0xff]
        %v861 = vld [vmem:[%s1 + $0x158] sm:$0xff]
        %v862 = vld [vmem:[%s1 + $0x160] sm:$0xff]
        %v863 = vld [vmem:[%s1 + $0x168] sm:$0xff]
        %v864 = vld [vmem:[%s1 + $0x170] sm:$0xff]
        %v865 = vld [vmem:[%s1 + $0x178] sm:$0xff]
        %v866 = vld [vmem:[%s1 + $0x180] sm:$0xff]
        %v867 = vld [vmem:[%s1 + $0x188] sm:$0xff]
        %v868 = vld [vmem:[%s1 + $0x190] sm:$0xff]
        %v869 = vld [vmem:[%s1 + $0x198] sm:$0xff]
        %v870 = vld [vmem:[%s1 + $0x1a0] sm:$0xff]
        %v871 = vld [vmem:[%s1 + $0x1a8] sm:$0xff]
        %v872 = vld [vmem:[%s1 + $0x1b0] sm:$0xff]
        %v873 = vld [vmem:[%s1 + $0x1b8] sm:$0xff]
        %v874 = vld [vmem:[%s1 + $0x1c0] sm:$0xff]
        %v875 = vld [vmem:[%s1 + $0x1c8] sm:$0xff]
        %v876 = vld [vmem:[%s1 + $0x1d0] sm:$0xff]
        %v877 = vld [vmem:[%s1 + $0x1d8] sm:$0xff]
        %v878 = vld [vmem:[%s1 + $0x1e0] sm:$0xff]
        %v879 = vld [vmem:[%s1 + $0x1e8] sm:$0xff]
        %v880 = vld [vmem:[%s1 + $0x1f0] sm:$0xff]
        %v881 = vld [vmem:[%s1 + $0x1f8] sm:$0xff]
        %v882 = vld [vmem:[%s1 + $0x200] sm:$0xff]
        %v883 = vld [vmem:[%s1 + $0x208] sm:$0xff]
        %v884 = vld [vmem:[%s1 + $0x210] sm:$0xff]
        %v885 = vld [vmem:[%s1 + $0x218] sm:$0xff]
        %v886 = vld [vmem:[%s1 + $0x220] sm:$0xff]
        %v887 = vld [vmem:[%s1 + $0x228] sm:$0xff]
        %v888 = vld [vmem:[%s1 + $0x230] sm:$0xff]
        %v889 = vld [vmem:[%s1 + $0x238] sm:$0xff]
        %v890 = vld [vmem:[%s1 + $0x240] sm:$0xff]
        %v891 = vld [vmem:[%s1 + $0x248] sm:$0xff]
        %v892 = vld [vmem:[%s1 + $0x250] sm:$0xff]
        %v893 = vld [vmem:[%s1 + $0x258] sm:$0xff]
        %v894 = vld [vmem:[%s1 + $0x260] sm:$0xff]
        %v895 = vld [vmem:[%s1 + $0x268] sm:$0xff]
        %v896 = vld [vmem:[%s1 + $0x270] sm:$0xff]
        %v897 = vld [vmem:[%s1 + $0x278] sm:$0xff]
        %v898 = vld [vmem:[%s1 + $0x280] sm:$0xff]
        %v899 = vld [vmem:[%s1 + $0x288] sm:$0xff]
        %v900 = vld [vmem:[%s1 + $0x290] sm:$0xff]
        %v901 = vld [vmem:[%s1 + $0x298] sm:$0xff]
        %v902 = vld [vmem:[%s1 + $0x2a0] sm:$0xff]
        %v903 = vld [vmem:[%s1 + $0x2a8] sm:$0xff]
        %v904 = vld [vmem:[%s1 + $0x2b0] sm:$0xff]
        %v905 = vld [vmem:[%s1 + $0x2b8] sm:$0xff]
        %v906 = vld [vmem:[%s1 + $0x2c0] sm:$0xff]
        %v907 = vld [vmem:[%s1 + $0x2c8] sm:$0xff]
        %v908 = vld [vmem:[%s1 + $0x2d0] sm:$0xff]
        %v909 = vld [vmem:[%s1 + $0x2d8] sm:$0xff]
        %v910 = vld [vmem:[%s1 + $0x2e0] sm:$0xff]
        %v911 = vld [vmem:[%s1 + $0x2e8] sm:$0xff]
        %v912 = vld [vmem:[%s1 + $0x2f0] sm:$0xff]
        %v913 = vld [vmem:[%s1 + $0x2f8] sm:$0xff]
        %v914 = vld [vmem:[%s1 + $0x300] sm:$0xff]
        %v915 = vld [vmem:[%s1 + $0x308] sm:$0xff]
        %v916 = vld [vmem:[%s1 + $0x310] sm:$0xff]
        %v917 = vld [vmem:[%s1 + $0x318] sm:$0xff]
        %v918 = vld [vmem:[%s1 + $0x320] sm:$0xff]
        %v919 = vld [vmem:[%s1 + $0x328] sm:$0xff]
        %v920 = vld [vmem:[%s1 + $0x330] sm:$0xff]
        %v921 = vld [vmem:[%s1 + $0x338] sm:$0xff]
        %v922 = vld [vmem:[%s1 + $0x340] sm:$0xff]
        %v923 = vld [vmem:[%s1 + $0x348] sm:$0xff]
        %v924 = vld [vmem:[%s1 + $0x350] sm:$0xff]
        %v925 = vld [vmem:[%s1 + $0x358] sm:$0xff]
        %v926 = vld [vmem:[%s1 + $0x360] sm:$0xff]
        %v927 = vld [vmem:[%s1 + $0x368] sm:$0xff]
        %v928 = vld [vmem:[%s1 + $0x370] sm:$0xff]
        %v929 = vld [vmem:[%s1 + $0x378] sm:$0xff]
        %v930 = vld [vmem:[%s1 + $0x380] sm:$0xff]
        %v931 = vld [vmem:[%s1 + $0x388] sm:$0xff]
        %v932 = vld [vmem:[%s1 + $0x390] sm:$0xff]
        %v933 = vld [vmem:[%s1 + $0x398] sm:$0xff]
        %v934 = vld [vmem:[%s1 + $0x3a0] sm:$0xff]
        %v935 = vld [vmem:[%s1 + $0x3a8] sm:$0xff]
        %v936 = vld [vmem:[%s1 + $0x3b0] sm:$0xff]
        %v937 = vld [vmem:[%s1 + $0x3b8] sm:$0xff]
        %v938 = vld [vmem:[%s1 + $0x3c0] sm:$0xff]
        %v939 = vld [vmem:[%s1 + $0x3c8] sm:$0xff]
        %v940 = vld [vmem:[%s1 + $0x3d0] sm:$0xff]
        %v941 = vld [vmem:[%s1 + $0x3d8] sm:$0xff]
        %v942 = vld [vmem:[%s1 + $0x3e0] sm:$0xff]
        %v943 = vld [vmem:[%s1 + $0x3e8] sm:$0xff]
        %v944 = vld [vmem:[%s1 + $0x3f0] sm:$0xff]
        %v945 = vld [vmem:[%s1 + $0x3f8] sm:$0xff]
        %v946 = vld [vmem:[%s1 + $0x400] sm:$0xff]
        %v947 = vld [vmem:[%s1 + $0x408] sm:$0xff]
        %v948 = vld [vmem:[%s1 + $0x410] sm:$0xff]
        %v949 = vld [vmem:[%s1 + $0x418] sm:$0xff]
        %v950 = vld [vmem:[%s1 + $0x420] sm:$0xff]
        %v951 = vld [vmem:[%s1 + $0x428] sm:$0xff]
        %v952 = vld [vmem:[%s1 + $0x430] sm:$0xff]
        %v953 = vld [vmem:[%s1 + $0x438] sm:$0xff]
        %v954 = vld [vmem:[%s1 + $0x440] sm:$0xff]
        %v955 = vld [vmem:[%s1 + $0x448] sm:$0xff]
        %v956 = vld [vmem:[%s1 + $0x450] sm:$0xff]
        %v957 = vld [vmem:[%s1 + $0x458] sm:$0xff]
        %v958 = vld [vmem:[%s1 + $0x460] sm:$0xff]
        %v959 = vld [vmem:[%s1 + $0x468] sm:$0xff]
        %v960 = vld [vmem:[%s1 + $0x470] sm:$0xff]
        %v961 = vld [vmem:[%s1 + $0x478] sm:$0xff]
        %v962 = vld [vmem:[%s1 + $0x480] sm:$0xff]
        %v963 = vld [vmem:[%s1 + $0x488] sm:$0xff]
        %v964 = vld [vmem:[%s1 + $0x490] sm:$0xff]
        %v965 = vld [vmem:[%s1 + $0x498] sm:$0xff]
        %v966 = vld [vmem:[%s1 + $0x4a0] sm:$0xff]
        %v967 = vld [vmem:[%s1 + $0x4a8] sm:$0xff]
        %v968 = vld [vmem:[%s1 + $0x4b0] sm:$0xff]
        %v969 = vld [vmem:[%s1 + $0x4b8] sm:$0xff]
        %v970 = vld [vmem:[%s1 + $0x4c0] sm:$0xff]
        %v971 = vld [vmem:[%s1 + $0x4c8] sm:$0xff]
        %v972 = vld [vmem:[%s1 + $0x4d0] sm:$0xff]
        %v973 = vld [vmem:[%s1 + $0x4d8] sm:$0xff]
        %v974 = vld [vmem:[%s1 + $0x4e0] sm:$0xff]
        %v975 = vld [vmem:[%s1 + $0x4e8] sm:$0xff]
        %v976 = vld [vmem:[%s1 + $0x4f0] sm:$0xff]
        %v977 = vld [vmem:[%s1 + $0x4f8] sm:$0xff]
        %v978 = vld [vmem:[%s1 + $0x500] sm:$0xff]
        %v979 = vld [vmem:[%s1 + $0x508] sm:$0xff]
        %v980 = vld [vmem:[%s1 + $0x510] sm:$0xff]
        %v981 = vld [vmem:[%s1 + $0x518] sm:$0xff]
        %v982 = vld [vmem:[%s1 + $0x520] sm:$0xff]
        %v983 = vld [vmem:[%s1 + $0x528] sm:$0xff]
        %v984 = vld [vmem:[%s1 + $0x530] sm:$0xff]
        %v985 = vld [vmem:[%s1 + $0x538] sm:$0xff]
        %v986 = vld [vmem:[%s1 + $0x540] sm:$0xff]
        %v987 = vld [vmem:[%s1 + $0x548] sm:$0xff]
        %v988 = vld [vmem:[%s1 + $0x550] sm:$0xff]
        %v989 = vld [vmem:[%s1 + $0x558] sm:$0xff]
        %v990 = vld [vmem:[%s1 + $0x560] sm:$0xff]
        %v991 = vld [vmem:[%s1 + $0x568] sm:$0xff]
        %v992 = vld [vmem:[%s1 + $0x570] sm:$0xff]
        %v993 = vld [vmem:[%s1 + $0x578] sm:$0xff]
        %v994 = vld [vmem:[%s1 + $0x580] sm:$0xff]
        %v995 = vld [vmem:[%s1 + $0x588] sm:$0xff]
        %v996 = vld [vmem:[%s1 + $0x590] sm:$0xff]
        %v997 = vld [vmem:[%s1 + $0x598] sm:$0xff]
        %v998 = vld [vmem:[%s1 + $0x5a0] sm:$0xff]
        %v999 = vld [vmem:[%s1 + $0x5a8] sm:$0xff]
        %v1000 = vld [vmem:[%s1 + $0x5b0] sm:$0xff]
        %v1001 = vld [vmem:[%s1 + $0x5b8] sm:$0xff]
        %v1002 = vld [vmem:[%s1 + $0x5c0] sm:$0xff]
        %v1003 = vld [vmem:[%s1 + $0x5c8] sm:$0xff]
        %v1004 = vld [vmem:[%s1 + $0x5d0] sm:$0xff]
        %v1005 = vld [vmem:[%s1 + $0x5d8] sm:$0xff]
        %v1006 = vld [vmem:[%s1 + $0x5e0] sm:$0xff]
        %v1007 = vld [vmem:[%s1 + $0x5e8] sm:$0xff]
        %v1008 = vld [vmem:[%s1 + $0x5f0] sm:$0xff]
        %v1009 = vld [vmem:[%s1 + $0x5f8] sm:$0xff]
        %v1010 = vld [vmem:[%s1 + $0x600] sm:$0xff]
        %v1011 = vld [vmem:[%s1 + $0x608] sm:$0xff]
        %v1012 = vld [vmem:[%s1 + $0x610] sm:$0xff]
        %v1013 = vld [vmem:[%s1 + $0x618] sm:$0xff]
        %v1014 = vld [vmem:[%s1 + $0x620] sm:$0xff]
        %v1015 = vld [vmem:[%s1 + $0x628] sm:$0xff]
        %v1016 = vld [vmem:[%s1 + $0x630] sm:$0xff]
        %v1017 = vld [vmem:[%s1 + $0x638] sm:$0xff]
        %v1018 = vld [vmem:[%s1 + $0x640] sm:$0xff]
        %v1019 = vld [vmem:[%s1 + $0x648] sm:$0xff]
        %v1020 = vld [vmem:[%s1 + $0x650] sm:$0xff]
        %v1021 = vld [vmem:[%s1 + $0x658] sm:$0xff]
        %v1022 = vld [vmem:[%s1 + $0x660] sm:$0xff]
        %v1023 = vld [vmem:[%s1 + $0x668] sm:$0xff]
        %v1024 = vld [vmem:[%s1 + $0x670] sm:$0xff]
        %v1025 = vld [vmem:[%s1 + $0x678] sm:$0xff]
        %v1026 = vld [vmem:[%s1 + $0x680] sm:$0xff]
        %v1027 = vld [vmem:[%s1 + $0x688] sm:$0xff]
        %v1028 = vld [vmem:[%s1 + $0x690] sm:$0xff]
        %v1029 = vld [vmem:[%s1 + $0x698] sm:$0xff]
        %v1030 = vld [vmem:[%s1 + $0x6a0] sm:$0xff]
        %v1031 = vld [vmem:[%s1 + $0x6a8] sm:$0xff]
        %v1032 = vld [vmem:[%s1 + $0x6b0] sm:$0xff]
        %v1033 = vld [vmem:[%s1 + $0x6b8] sm:$0xff]
        %v1034 = vld [vmem:[%s1 + $0x6c0] sm:$0xff]
        %v1035 = vld [vmem:[%s1 + $0x6c8] sm:$0xff]
        %v1036 = vld [vmem:[%s1 + $0x6d0] sm:$0xff]
        %v1037 = vld [vmem:[%s1 + $0x6d8] sm:$0xff]
        %v1038 = vld [vmem:[%s1 + $0x6e0] sm:$0xff]
        %v1039 = vld [vmem:[%s1 + $0x6e8] sm:$0xff]
        %v1040 = vld [vmem:[%s2] sm:$0x3f]
        %v1041 = vld [vmem:[%s745] sm:$0xff]
        %v1042 = vld [vmem:[%s745 + $0x8] sm:$0xff]
        %v1043 = vld [vmem:[%s745 + $0x10] sm:$0xff]
        %v1044 = vld [vmem:[%s745 + $0x18] sm:$0xff]
        %v1045 = vld [vmem:[%s745 + $0x20] sm:$0xff]
        %v1046 = vld [vmem:[%s745 + $0x28] sm:$0xff]
        %v1047 = vld [vmem:[%s745 + $0x30] sm:$0xff]
        %v1048 = vld [vmem:[%s745 + $0x38] sm:$0xff]
        %v1049 = vld [vmem:[%s745 + $0x40] sm:$0xff]
        %v1050 = vld [vmem:[%s745 + $0x48] sm:$0xff]
        %v1051 = vld [vmem:[%s745 + $0x50] sm:$0xff]
        %v1052 = vld [vmem:[%s745 + $0x58] sm:$0xff]
        %v1053 = vld [vmem:[%s745 + $0x60] sm:$0xff]
        %v1054 = vld [vmem:[%s745 + $0x68] sm:$0xff]
        %v1055 = vld [vmem:[%s745 + $0x70] sm:$0xff]
        %v1056 = vld [vmem:[%s745 + $0x78] sm:$0xff]
        %v1057 = vld [vmem:[%s745 + $0x80] sm:$0xff]
        %v1058 = vld [vmem:[%s745 + $0x88] sm:$0xff]
        %v1059 = vld [vmem:[%s745 + $0x90] sm:$0xff]
        %v1060 = vld [vmem:[%s745 + $0x98] sm:$0xff]
        %v1061 = vld [vmem:[%s745 + $0xa0] sm:$0xff]
        %v1062 = vld [vmem:[%s745 + $0xa8] sm:$0xff]
        %v1063 = vld [vmem:[%s745 + $0xb0] sm:$0xff]
        %v1064 = vld [vmem:[%s745 + $0xb8] sm:$0xff]
        %v1065 = vld [vmem:[%s745 + $0xc0] sm:$0xff]
        %v1066 = vld [vmem:[%s745 + $0xc8] sm:$0xff]
        %v1067 = vld [vmem:[%s745 + $0xd0] sm:$0xff]
        %v1068 = vld [vmem:[%s745 + $0xd8] sm:$0xff]
        %v1069 = vld [vmem:[%s745 + $0xe0] sm:$0xff]
        %v1070 = vld [vmem:[%s745 + $0xe8] sm:$0xff]
        %v1071 = vld [vmem:[%s745 + $0xf0] sm:$0xff]
        %v1072 = vld [vmem:[%s745 + $0xf8] sm:$0xff]
        %v1073 = vld [vmem:[%s745 + $0x100] sm:$0xff]
        %v1074 = vld [vmem:[%s745 + $0x108] sm:$0xff]
        %v1075 = vld [vmem:[%s745 + $0x110] sm:$0xff]
        %v1076 = vld [vmem:[%s745 + $0x118] sm:$0xff]
        %v1077 = vld [vmem:[%s745 + $0x120] sm:$0xff]
        %v1078 = vld [vmem:[%s745 + $0x128] sm:$0xff]
        %v1079 = vld [vmem:[%s745 + $0x130] sm:$0xff]
        %v1080 = vld [vmem:[%s745 + $0x138] sm:$0xff]
        %v1081 = vld [vmem:[%s745 + $0x140] sm:$0xff]
        %v1082 = vld [vmem:[%s745 + $0x148] sm:$0xff]
        %v1083 = vld [vmem:[%s745 + $0x150] sm:$0xff]
        %v1084 = vld [vmem:[%s745 + $0x158] sm:$0xff]
        %v1085 = vld [vmem:[%s745 + $0x160] sm:$0xff]
        %v1086 = vld [vmem:[%s745 + $0x168] sm:$0xff]
        %v1087 = vld [vmem:[%s745 + $0x170] sm:$0xff]
        %v1088 = vld [vmem:[%s745 + $0x178] sm:$0xff]
        %v1089 = vld [vmem:[%s745 + $0x180] sm:$0xff]
        %v1090 = vld [vmem:[%s745 + $0x188] sm:$0xff]
        %v1091 = vld [vmem:[%s745 + $0x190] sm:$0xff]
        %v1092 = vld [vmem:[%s745 + $0x198] sm:$0xff]
        %v1093 = vld [vmem:[%s745 + $0x1a0] sm:$0xff]
        %v1094 = vld [vmem:[%s745 + $0x1a8] sm:$0xff]
        %v1095 = vld [vmem:[%s745 + $0x1b0] sm:$0xff]
        %v1096 = vld [vmem:[%s745 + $0x1b8] sm:$0xff]
        %v1097 = vld [vmem:[%s745 + $0x1c0] sm:$0xff]
        %v1098 = vld [vmem:[%s745 + $0x1c8] sm:$0xff]
        %v1099 = vld [vmem:[%s745 + $0x1d0] sm:$0xff]
        %v1100 = vld [vmem:[%s745 + $0x1d8] sm:$0xff]
        %v1101 = vld [vmem:[%s745 + $0x1e0] sm:$0xff]
        %v1102 = vld [vmem:[%s745 + $0x1e8] sm:$0xff]
        %v1103 = vld [vmem:[%s745 + $0x1f0] sm:$0xff]
        %v1104 = vld [vmem:[%s745 + $0x1f8] sm:$0xff]
        %v1105 = vld [vmem:[%s745 + $0x200] sm:$0xff]
        %v1106 = vld [vmem:[%s745 + $0x208] sm:$0xff]
        %v1107 = vld [vmem:[%s745 + $0x210] sm:$0xff]
        %v1108 = vld [vmem:[%s745 + $0x218] sm:$0xff]
        %v1109 = vld [vmem:[%s745 + $0x220] sm:$0xff]
        %v1110 = vld [vmem:[%s745 + $0x228] sm:$0xff]
        %v1111 = vld [vmem:[%s745 + $0x230] sm:$0xff]
        %v1112 = vld [vmem:[%s745 + $0x238] sm:$0xff]
        %v1113 = vld [vmem:[%s745 + $0x240] sm:$0xff]
        %v1114 = vld [vmem:[%s745 + $0x248] sm:$0xff]
        %v1115 = vld [vmem:[%s745 + $0x250] sm:$0xff]
        %v1116 = vld [vmem:[%s745 + $0x258] sm:$0xff]
        %v1117 = vld [vmem:[%s745 + $0x260] sm:$0xff]
        %v1118 = vld [vmem:[%s745 + $0x268] sm:$0xff]
        %v1119 = vld [vmem:[%s745 + $0x270] sm:$0xff]
        %v1120 = vld [vmem:[%s745 + $0x278] sm:$0xff]
        %v1121 = vld [vmem:[%s745 + $0x280] sm:$0xff]
        %v1122 = vld [vmem:[%s745 + $0x288] sm:$0xff]
        %v1123 = vld [vmem:[%s745 + $0x290] sm:$0xff]
        %v1124 = vld [vmem:[%s745 + $0x298] sm:$0xff]
        %v1125 = vld [vmem:[%s745 + $0x2a0] sm:$0xff]
        %v1126 = vld [vmem:[%s745 + $0x2a8] sm:$0xff]
        %v1127 = vld [vmem:[%s745 + $0x2b0] sm:$0xff]
        %v1128 = vld [vmem:[%s745 + $0x2b8] sm:$0xff]
        %v1129 = vld [vmem:[%s745 + $0x2c0] sm:$0xff]
        %v1130 = vld [vmem:[%s745 + $0x2c8] sm:$0xff]
        %v1131 = vld [vmem:[%s745 + $0x2d0] sm:$0xff]
        %v1132 = vld [vmem:[%s745 + $0x2d8] sm:$0xff]
        %v1133 = vld [vmem:[%s745 + $0x2e0] sm:$0xff]
        %v1134 = vld [vmem:[%s745 + $0x2e8] sm:$0xff]
        %v1135 = vld [vmem:[%s745 + $0x2f0] sm:$0xff]
        %v1136 = vld [vmem:[%s745 + $0x2f8] sm:$0xff]
        %v1137 = vld [vmem:[%s745 + $0x300] sm:$0xff]
        %v1138 = vld [vmem:[%s745 + $0x308] sm:$0xff]
        %v1139 = vld [vmem:[%s745 + $0x310] sm:$0xff]
        %v1140 = vld [vmem:[%s745 + $0x318] sm:$0xff]
        %v1141 = vld [vmem:[%s745 + $0x320] sm:$0xff]
        %v1142 = vld [vmem:[%s745 + $0x328] sm:$0xff]
        %v1143 = vld [vmem:[%s745 + $0x330] sm:$0xff]
        %v1144 = vld [vmem:[%s745 + $0x338] sm:$0xff]
        %v1145 = vld [vmem:[%s745 + $0x340] sm:$0xff]
        %v1146 = vld [vmem:[%s745 + $0x348] sm:$0xff]
        %v1147 = vld [vmem:[%s745 + $0x350] sm:$0xff]
        %v1148 = vld [vmem:[%s745 + $0x358] sm:$0xff]
        %v1149 = vld [vmem:[%s745 + $0x360] sm:$0xff]
        %v1150 = vld [vmem:[%s745 + $0x368] sm:$0xff]
        %v1151 = vld [vmem:[%s745 + $0x370] sm:$0xff]
        %v1152 = vld [vmem:[%s745 + $0x378] sm:$0xff]
        %v1153 = vld [vmem:[%s745 + $0x380] sm:$0xff]
        %v1154 = vld [vmem:[%s745 + $0x388] sm:$0xff]
        %v1155 = vld [vmem:[%s745 + $0x390] sm:$0xff]
        %v1156 = vld [vmem:[%s745 + $0x398] sm:$0xff]
        %v1157 = vld [vmem:[%s745 + $0x3a0] sm:$0xff]
        %v1158 = vld [vmem:[%s745 + $0x3a8] sm:$0xff]
        %v1159 = vld [vmem:[%s745 + $0x3b0] sm:$0xff]
        %v1160 = vld [vmem:[%s745 + $0x3b8] sm:$0xff]
        %v1161 = vpack.c.bf16 %v1046, %v1041
        %v1162 = vpack.c.bf16 %v1047, %v1042
        %v1163 = vpack.c.bf16 %v1048, %v1043
        %v1164 = vpack.c.bf16 %v1049, %v1044
        %v1165 = vpack.c.bf16 %v1050, %v1045
        %v1166 = vpack.c.bf16 %v1056, %v1051
        %v1167 = vpack.c.bf16 %v1057, %v1052
        %v1168 = vpack.c.bf16 %v1058, %v1053
        %v1169 = vpack.c.bf16 %v1059, %v1054
        %v1170 = vpack.c.bf16 %v1060, %v1055
        %v1171 = vpack.c.bf16 %v1066, %v1061
        %v1172 = vpack.c.bf16 %v1067, %v1062
        %v1173 = vpack.c.bf16 %v1068, %v1063
        %v1174 = vpack.c.bf16 %v1069, %v1064
        %v1175 = vpack.c.bf16 %v1070, %v1065
        %v1176 = vpack.c.bf16 %v1076, %v1071
        %v1177 = vpack.c.bf16 %v1077, %v1072
        %v1178 = vpack.c.bf16 %v1078, %v1073
        %v1179 = vpack.c.bf16 %v1079, %v1074
        %v1180 = vpack.c.bf16 %v1080, %v1075
        %v1181 = vpack.c.bf16 %v1086, %v1081
        %v1182 = vpack.c.bf16 %v1087, %v1082
        %v1183 = vpack.c.bf16 %v1088, %v1083
        %v1184 = vpack.c.bf16 %v1089, %v1084
        %v1185 = vpack.c.bf16 %v1090, %v1085
        %v1186 = vpack.c.bf16 %v1096, %v1091
        %v1187 = vpack.c.bf16 %v1097, %v1092
        %v1188 = vpack.c.bf16 %v1098, %v1093
        %v1189 = vpack.c.bf16 %v1099, %v1094
        %v1190 = vpack.c.bf16 %v1100, %v1095
        %v1191 = vpack.c.bf16 %v1106, %v1101
        %v1192 = vpack.c.bf16 %v1107, %v1102
        %v1193 = vpack.c.bf16 %v1108, %v1103
        %v1194 = vpack.c.bf16 %v1109, %v1104
        %v1195 = vpack.c.bf16 %v1110, %v1105
        %v1196 = vpack.c.bf16 %v1116, %v1111
        %v1197 = vpack.c.bf16 %v1117, %v1112
        %v1198 = vpack.c.bf16 %v1118, %v1113
        %v1199 = vpack.c.bf16 %v1119, %v1114
        %v1200 = vpack.c.bf16 %v1120, %v1115
        %v1201 = vpack.c.bf16 %v1126, %v1121
        %v1202 = vpack.c.bf16 %v1127, %v1122
        %v1203 = vpack.c.bf16 %v1128, %v1123
        %v1204 = vpack.c.bf16 %v1129, %v1124
        %v1205 = vpack.c.bf16 %v1130, %v1125
        %v1206 = vpack.c.bf16 %v1136, %v1131
        %v1207 = vpack.c.bf16 %v1137, %v1132
        %v1208 = vpack.c.bf16 %v1138, %v1133
        %v1209 = vpack.c.bf16 %v1139, %v1134
        %v1210 = vpack.c.bf16 %v1140, %v1135
        %v1211 = vpack.c.bf16 %v1146, %v1141
        %v1212 = vpack.c.bf16 %v1147, %v1142
        %v1213 = vpack.c.bf16 %v1148, %v1143
        %v1214 = vpack.c.bf16 %v1149, %v1144
        %v1215 = vpack.c.bf16 %v1150, %v1145
        %v1216 = vpack.c.bf16 %v1156, %v1151
        %v1217 = vpack.c.bf16 %v1157, %v1152
        %v1218 = vpack.c.bf16 %v1158, %v1153
        %v1219 = vpack.c.bf16 %v1159, %v1154
        %v1220 = vpack.c.bf16 %v1160, %v1155
        %v1222 = vlaneseq
        %v1223 = vshrl.u32 %v1222, 7
        %v1224 = vsub.s32 0, %v1223
        %v1225 = vrot.slane %v1040, %v1224
        %v1226 = vlaneseq
        %v1227 = vshrl.u32 %v1226, 7
        %v1228 = vsub.s32 1, %v1227
        %v1229 = vrot.slane %v1040, %v1228
        %v1230 = vlaneseq
        %v1231 = vshrl.u32 %v1230, 7
        %v1232 = vsub.s32 2, %v1231
        %v1233 = vrot.slane %v1040, %v1232
        %v1234 = vlaneseq
        %v1235 = vshrl.u32 %v1234, 7
        %v1236 = vsub.s32 3, %v1235
        %v1237 = vrot.slane %v1040, %v1236
        %v1238 = vlaneseq
        %v1239 = vshrl.u32 %v1238, 7
        %v1240 = vsub.s32 4, %v1239
        %v1241 = vrot.slane %v1040, %v1240
        %v1242 = vlaneseq
        %v1243 = vshrl.u32 %v1242, 7
        %v1244 = vsub.s32 5, %v1243
        %v1245 = vrot.slane %v1040, %v1244
        %v1474 = vunpack.c.l.b16 %v818
        %v1475 = vunpack.c.h.b16 %v818
        %v1476 = vunpack.c.l.b16 %v819
        %v1477 = vunpack.c.h.b16 %v819
        %v1478 = vunpack.c.l.b16 %v820
        %v1479 = vunpack.c.h.b16 %v820
        %v1480 = vunpack.c.l.b16 %v821
        %v1481 = vunpack.c.h.b16 %v821
        %v1482 = vunpack.c.l.b16 %v822
        %v1483 = vunpack.c.h.b16 %v822
        %v1484 = vunpack.c.l.b16 %v823
        %v1485 = vunpack.c.h.b16 %v823
        %v1486 = vunpack.c.l.b16 %v824
        %v1487 = vunpack.c.h.b16 %v824
        %v1488 = vunpack.c.l.b16 %v825
        %v1489 = vunpack.c.h.b16 %v825
        %v1490 = vunpack.c.l.b16 %v826
        %v1491 = vunpack.c.h.b16 %v826
        %v1492 = vunpack.c.l.b16 %v827
        %v1493 = vunpack.c.h.b16 %v827
        %v1494 = vunpack.c.l.b16 %v828
        %v1495 = vunpack.c.h.b16 %v828
        %v1496 = vunpack.c.l.b16 %v829
        %v1497 = vunpack.c.h.b16 %v829
        %v1498 = vunpack.c.l.b16 %v830
        %v1499 = vunpack.c.h.b16 %v830
        %v1500 = vunpack.c.l.b16 %v831
        %v1501 = vunpack.c.h.b16 %v831
        %v1502 = vunpack.c.l.b16 %v832
        %v1503 = vunpack.c.h.b16 %v832
        %v1504 = vunpack.c.l.b16 %v833
        %v1505 = vunpack.c.h.b16 %v833
        %v1506 = vunpack.c.l.b16 %v834
        %v1507 = vunpack.c.h.b16 %v834
        %v1508 = vunpack.c.l.b16 %v835
        %v1509 = vunpack.c.h.b16 %v835
        %v1510 = vunpack.c.l.b16 %v836
        %v1511 = vunpack.c.h.b16 %v836
        %v1512 = vunpack.c.l.b16 %v837
        %v1513 = vunpack.c.h.b16 %v837
        %v1514 = vunpack.c.l.b16 %v838
        %v1515 = vunpack.c.h.b16 %v838
        %v1516 = vunpack.c.l.b16 %v839
        %v1517 = vunpack.c.h.b16 %v839
        %v1518 = vunpack.c.l.b16 %v840
        %v1519 = vunpack.c.h.b16 %v840
        %v1520 = vunpack.c.l.b16 %v841
        %v1521 = vunpack.c.h.b16 %v841
        %v1522 = vunpack.c.l.b16 %v842
        %v1523 = vunpack.c.h.b16 %v842
        %v1524 = vunpack.c.l.b16 %v843
        %v1525 = vunpack.c.h.b16 %v843
        %v1526 = vunpack.c.l.b16 %v844
        %v1527 = vunpack.c.h.b16 %v844
        %v1528 = vunpack.c.l.b16 %v845
        %v1529 = vunpack.c.h.b16 %v845
        %v1530 = vunpack.c.l.b16 %v846
        %v1531 = vunpack.c.h.b16 %v846
        %v1532 = vunpack.c.l.b16 %v847
        %v1533 = vunpack.c.h.b16 %v847
        %v1534 = vunpack.c.l.b16 %v848
        %v1535 = vunpack.c.h.b16 %v848
        %v1536 = vunpack.c.l.b16 %v849
        %v1537 = vunpack.c.h.b16 %v849
        %v1538 = vunpack.c.l.b16 %v850
        %v1539 = vunpack.c.h.b16 %v850
        %v1540 = vunpack.c.l.b16 %v851
        %v1541 = vunpack.c.h.b16 %v851
        %v1542 = vunpack.c.l.b16 %v852
        %v1543 = vunpack.c.h.b16 %v852
        %v1544 = vunpack.c.l.b16 %v853
        %v1545 = vunpack.c.h.b16 %v853
        %v1546 = vunpack.c.l.b16 %v854
        %v1547 = vunpack.c.h.b16 %v854
        %v1548 = vunpack.c.l.b16 %v855
        %v1549 = vunpack.c.h.b16 %v855
        %v1550 = vunpack.c.l.b16 %v856
        %v1551 = vunpack.c.h.b16 %v856
        %v1552 = vunpack.c.l.b16 %v857
        %v1553 = vunpack.c.h.b16 %v857
        %v1554 = vunpack.c.l.b16 %v858
        %v1555 = vunpack.c.h.b16 %v858
        %v1556 = vunpack.c.l.b16 %v859
        %v1557 = vunpack.c.h.b16 %v859
        %v1558 = vunpack.c.l.b16 %v860
        %v1559 = vunpack.c.h.b16 %v860
        %v1560 = vunpack.c.l.b16 %v861
        %v1561 = vunpack.c.h.b16 %v861
        %v1562 = vunpack.c.l.b16 %v862
        %v1563 = vunpack.c.h.b16 %v862
        %v1564 = vunpack.c.l.b16 %v863
        %v1565 = vunpack.c.h.b16 %v863
        %v1566 = vunpack.c.l.b16 %v864
        %v1567 = vunpack.c.h.b16 %v864
        %v1568 = vunpack.c.l.b16 %v865
        %v1569 = vunpack.c.h.b16 %v865
        %v1570 = vunpack.c.l.b16 %v866
        %v1571 = vunpack.c.h.b16 %v866
        %v1572 = vunpack.c.l.b16 %v867
        %v1573 = vunpack.c.h.b16 %v867
        %v1574 = vunpack.c.l.b16 %v868
        %v1575 = vunpack.c.h.b16 %v868
        %v1576 = vunpack.c.l.b16 %v869
        %v1577 = vunpack.c.h.b16 %v869
        %v1578 = vunpack.c.l.b16 %v870
        %v1579 = vunpack.c.h.b16 %v870
        %v1580 = vunpack.c.l.b16 %v871
        %v1581 = vunpack.c.h.b16 %v871
        %v1582 = vunpack.c.l.b16 %v872
        %v1583 = vunpack.c.h.b16 %v872
        %v1584 = vunpack.c.l.b16 %v873
        %v1585 = vunpack.c.h.b16 %v873
        %v1586 = vunpack.c.l.b16 %v874
        %v1587 = vunpack.c.h.b16 %v874
        %v1588 = vunpack.c.l.b16 %v875
        %v1589 = vunpack.c.h.b16 %v875
        %v1590 = vunpack.c.l.b16 %v876
        %v1591 = vunpack.c.h.b16 %v876
        %v1592 = vunpack.c.l.b16 %v877
        %v1593 = vunpack.c.h.b16 %v877
        %v1594 = vunpack.c.l.b16 %v878
        %v1595 = vunpack.c.h.b16 %v878
        %v1596 = vunpack.c.l.b16 %v879
        %v1597 = vunpack.c.h.b16 %v879
        %v1598 = vunpack.c.l.b16 %v880
        %v1599 = vunpack.c.h.b16 %v880
        %v1600 = vunpack.c.l.b16 %v881
        %v1601 = vunpack.c.h.b16 %v881
        %v1602 = vunpack.c.l.b16 %v882
        %v1603 = vunpack.c.h.b16 %v882
        %v1604 = vunpack.c.l.b16 %v883
        %v1605 = vunpack.c.h.b16 %v883
        %v1606 = vunpack.c.l.b16 %v884
        %v1607 = vunpack.c.h.b16 %v884
        %v1608 = vunpack.c.l.b16 %v885
        %v1609 = vunpack.c.h.b16 %v885
        %v1610 = vunpack.c.l.b16 %v886
        %v1611 = vunpack.c.h.b16 %v886
        %v1612 = vunpack.c.l.b16 %v887
        %v1613 = vunpack.c.h.b16 %v887
        %v1614 = vunpack.c.l.b16 %v888
        %v1615 = vunpack.c.h.b16 %v888
        %v1616 = vunpack.c.l.b16 %v889
        %v1617 = vunpack.c.h.b16 %v889
        %v1618 = vunpack.c.l.b16 %v890
        %v1619 = vunpack.c.h.b16 %v890
        %v1620 = vunpack.c.l.b16 %v891
        %v1621 = vunpack.c.h.b16 %v891
        %v1622 = vunpack.c.l.b16 %v892
        %v1623 = vunpack.c.h.b16 %v892
        %v1624 = vunpack.c.l.b16 %v893
        %v1625 = vunpack.c.h.b16 %v893
        %v1626 = vunpack.c.l.b16 %v894
        %v1627 = vunpack.c.h.b16 %v894
        %v1628 = vunpack.c.l.b16 %v895
        %v1629 = vunpack.c.h.b16 %v895
        %v1630 = vunpack.c.l.b16 %v896
        %v1631 = vunpack.c.h.b16 %v896
        %v1632 = vunpack.c.l.b16 %v897
        %v1633 = vunpack.c.h.b16 %v897
        %v1634 = vunpack.c.l.b16 %v898
        %v1635 = vunpack.c.h.b16 %v898
        %v1636 = vunpack.c.l.b16 %v899
        %v1637 = vunpack.c.h.b16 %v899
        %v1638 = vunpack.c.l.b16 %v900
        %v1639 = vunpack.c.h.b16 %v900
        %v1640 = vunpack.c.l.b16 %v901
        %v1641 = vunpack.c.h.b16 %v901
        %v1642 = vunpack.c.l.b16 %v902
        %v1643 = vunpack.c.h.b16 %v902
        %v1644 = vunpack.c.l.b16 %v903
        %v1645 = vunpack.c.h.b16 %v903
        %v1646 = vunpack.c.l.b16 %v904
        %v1647 = vunpack.c.h.b16 %v904
        %v1648 = vunpack.c.l.b16 %v905
        %v1649 = vunpack.c.h.b16 %v905
        %v1650 = vunpack.c.l.b16 %v906
        %v1651 = vunpack.c.h.b16 %v906
        %v1652 = vunpack.c.l.b16 %v907
        %v1653 = vunpack.c.h.b16 %v907
        %v1654 = vunpack.c.l.b16 %v908
        %v1655 = vunpack.c.h.b16 %v908
        %v1656 = vunpack.c.l.b16 %v909
        %v1657 = vunpack.c.h.b16 %v909
        %v1658 = vunpack.c.l.b16 %v910
        %v1659 = vunpack.c.h.b16 %v910
        %v1660 = vunpack.c.l.b16 %v911
        %v1661 = vunpack.c.h.b16 %v911
        %v1662 = vunpack.c.l.b16 %v912
        %v1663 = vunpack.c.h.b16 %v912
        %v1664 = vunpack.c.l.b16 %v913
        %v1665 = vunpack.c.h.b16 %v913
        %v1666 = vunpack.c.l.b16 %v914
        %v1667 = vunpack.c.h.b16 %v914
        %v1668 = vunpack.c.l.b16 %v915
        %v1669 = vunpack.c.h.b16 %v915
        %v1670 = vunpack.c.l.b16 %v916
        %v1671 = vunpack.c.h.b16 %v916
        %v1672 = vunpack.c.l.b16 %v917
        %v1673 = vunpack.c.h.b16 %v917
        %v1674 = vunpack.c.l.b16 %v918
        %v1675 = vunpack.c.h.b16 %v918
        %v1676 = vunpack.c.l.b16 %v919
        %v1677 = vunpack.c.h.b16 %v919
        %v1678 = vunpack.c.l.b16 %v920
        %v1679 = vunpack.c.h.b16 %v920
        %v1680 = vunpack.c.l.b16 %v921
        %v1681 = vunpack.c.h.b16 %v921
        %v1682 = vunpack.c.l.b16 %v922
        %v1683 = vunpack.c.h.b16 %v922
        %v1684 = vunpack.c.l.b16 %v923
        %v1685 = vunpack.c.h.b16 %v923
        %v1686 = vunpack.c.l.b16 %v924
        %v1687 = vunpack.c.h.b16 %v924
        %v1688 = vunpack.c.l.b16 %v925
        %v1689 = vunpack.c.h.b16 %v925
        %v1690 = vunpack.c.l.b16 %v926
        %v1691 = vunpack.c.h.b16 %v926
        %v1692 = vunpack.c.l.b16 %v927
        %v1693 = vunpack.c.h.b16 %v927
        %v1694 = vunpack.c.l.b16 %v928
        %v1695 = vunpack.c.h.b16 %v928
        %v1696 = vunpack.c.l.b16 %v929
        %v1697 = vunpack.c.h.b16 %v929
        %v1698 = vunpack.c.l.b16 %v930
        %v1699 = vunpack.c.h.b16 %v930
        %v1700 = vunpack.c.l.b16 %v931
        %v1701 = vunpack.c.h.b16 %v931
        %v1702 = vunpack.c.l.b16 %v932
        %v1703 = vunpack.c.h.b16 %v932
        %v1704 = vunpack.c.l.b16 %v933
        %v1705 = vunpack.c.h.b16 %v933
        %v1706 = vunpack.c.l.b16 %v934
        %v1707 = vunpack.c.h.b16 %v934
        %v1708 = vunpack.c.l.b16 %v935
        %v1709 = vunpack.c.h.b16 %v935
        %v1710 = vunpack.c.l.b16 %v936
        %v1711 = vunpack.c.h.b16 %v936
        %v1712 = vunpack.c.l.b16 %v937
        %v1713 = vunpack.c.h.b16 %v937
        %v1714 = vunpack.c.l.b16 %v938
        %v1715 = vunpack.c.h.b16 %v938
        %v1716 = vunpack.c.l.b16 %v939
        %v1717 = vunpack.c.h.b16 %v939
        %v1718 = vunpack.c.l.b16 %v940
        %v1719 = vunpack.c.h.b16 %v940
        %v1720 = vunpack.c.l.b16 %v941
        %v1721 = vunpack.c.h.b16 %v941
        %v1722 = vunpack.c.l.b16 %v942
        %v1723 = vunpack.c.h.b16 %v942
        %v1724 = vunpack.c.l.b16 %v943
        %v1725 = vunpack.c.h.b16 %v943
        %v1726 = vunpack.c.l.b16 %v944
        %v1727 = vunpack.c.h.b16 %v944
        %v1728 = vunpack.c.l.b16 %v945
        %v1729 = vunpack.c.h.b16 %v945
        %v1730 = vunpack.c.l.b16 %v946
        %v1731 = vunpack.c.h.b16 %v946
        %v1732 = vunpack.c.l.b16 %v947
        %v1733 = vunpack.c.h.b16 %v947
        %v1734 = vunpack.c.l.b16 %v948
        %v1735 = vunpack.c.h.b16 %v948
        %v1736 = vunpack.c.l.b16 %v949
        %v1737 = vunpack.c.h.b16 %v949
        %v1738 = vunpack.c.l.b16 %v950
        %v1739 = vunpack.c.h.b16 %v950
        %v1740 = vunpack.c.l.b16 %v951
        %v1741 = vunpack.c.h.b16 %v951
        %v1742 = vunpack.c.l.b16 %v952
        %v1743 = vunpack.c.h.b16 %v952
        %v1744 = vunpack.c.l.b16 %v953
        %v1745 = vunpack.c.h.b16 %v953
        %v1746 = vunpack.c.l.b16 %v954
        %v1747 = vunpack.c.h.b16 %v954
        %v1748 = vunpack.c.l.b16 %v955
        %v1749 = vunpack.c.h.b16 %v955
        %v1750 = vunpack.c.l.b16 %v956
        %v1751 = vunpack.c.h.b16 %v956
        %v1752 = vunpack.c.l.b16 %v957
        %v1753 = vunpack.c.h.b16 %v957
        %v1754 = vunpack.c.l.b16 %v958
        %v1755 = vunpack.c.h.b16 %v958
        %v1756 = vunpack.c.l.b16 %v959
        %v1757 = vunpack.c.h.b16 %v959
        %v1758 = vunpack.c.l.b16 %v960
        %v1759 = vunpack.c.h.b16 %v960
        %v1760 = vunpack.c.l.b16 %v961
        %v1761 = vunpack.c.h.b16 %v961
        %v1762 = vunpack.c.l.b16 %v962
        %v1763 = vunpack.c.h.b16 %v962
        %v1764 = vunpack.c.l.b16 %v963
        %v1765 = vunpack.c.h.b16 %v963
        %v1766 = vunpack.c.l.b16 %v964
        %v1767 = vunpack.c.h.b16 %v964
        %v1768 = vunpack.c.l.b16 %v965
        %v1769 = vunpack.c.h.b16 %v965
        %v1770 = vunpack.c.l.b16 %v966
        %v1771 = vunpack.c.h.b16 %v966
        %v1772 = vunpack.c.l.b16 %v967
        %v1773 = vunpack.c.h.b16 %v967
        %v1774 = vunpack.c.l.b16 %v968
        %v1775 = vunpack.c.h.b16 %v968
        %v1776 = vunpack.c.l.b16 %v969
        %v1777 = vunpack.c.h.b16 %v969
        %v1778 = vunpack.c.l.b16 %v970
        %v1779 = vunpack.c.h.b16 %v970
        %v1780 = vunpack.c.l.b16 %v971
        %v1781 = vunpack.c.h.b16 %v971
        %v1782 = vunpack.c.l.b16 %v972
        %v1783 = vunpack.c.h.b16 %v972
        %v1784 = vunpack.c.l.b16 %v973
        %v1785 = vunpack.c.h.b16 %v973
        %v1786 = vunpack.c.l.b16 %v974
        %v1787 = vunpack.c.h.b16 %v974
        %v1788 = vunpack.c.l.b16 %v975
        %v1789 = vunpack.c.h.b16 %v975
        %v1790 = vunpack.c.l.b16 %v976
        %v1791 = vunpack.c.h.b16 %v976
        %v1792 = vunpack.c.l.b16 %v977
        %v1793 = vunpack.c.h.b16 %v977
        %v1794 = vunpack.c.l.b16 %v978
        %v1795 = vunpack.c.h.b16 %v978
        %v1796 = vunpack.c.l.b16 %v979
        %v1797 = vunpack.c.h.b16 %v979
        %v1798 = vunpack.c.l.b16 %v980
        %v1799 = vunpack.c.h.b16 %v980
        %v1800 = vunpack.c.l.b16 %v981
        %v1801 = vunpack.c.h.b16 %v981
        %v1802 = vunpack.c.l.b16 %v982
        %v1803 = vunpack.c.h.b16 %v982
        %v1804 = vunpack.c.l.b16 %v983
        %v1805 = vunpack.c.h.b16 %v983
        %v1806 = vunpack.c.l.b16 %v984
        %v1807 = vunpack.c.h.b16 %v984
        %v1808 = vunpack.c.l.b16 %v985
        %v1809 = vunpack.c.h.b16 %v985
        %v1810 = vunpack.c.l.b16 %v986
        %v1811 = vunpack.c.h.b16 %v986
        %v1812 = vunpack.c.l.b16 %v987
        %v1813 = vunpack.c.h.b16 %v987
        %v1814 = vunpack.c.l.b16 %v988
        %v1815 = vunpack.c.h.b16 %v988
        %v1816 = vunpack.c.l.b16 %v989
        %v1817 = vunpack.c.h.b16 %v989
        %v1818 = vunpack.c.l.b16 %v990
        %v1819 = vunpack.c.h.b16 %v990
        %v1820 = vunpack.c.l.b16 %v991
        %v1821 = vunpack.c.h.b16 %v991
        %v1822 = vunpack.c.l.b16 %v992
        %v1823 = vunpack.c.h.b16 %v992
        %v1824 = vunpack.c.l.b16 %v993
        %v1825 = vunpack.c.h.b16 %v993
        %v1826 = vunpack.c.l.b16 %v994
        %v1827 = vunpack.c.h.b16 %v994
        %v1828 = vunpack.c.l.b16 %v995
        %v1829 = vunpack.c.h.b16 %v995
        %v1830 = vunpack.c.l.b16 %v996
        %v1831 = vunpack.c.h.b16 %v996
        %v1832 = vunpack.c.l.b16 %v997
        %v1833 = vunpack.c.h.b16 %v997
        %v1834 = vunpack.c.l.b16 %v998
        %v1835 = vunpack.c.h.b16 %v998
        %v1836 = vunpack.c.l.b16 %v999
        %v1837 = vunpack.c.h.b16 %v999
        %v1838 = vunpack.c.l.b16 %v1000
        %v1839 = vunpack.c.h.b16 %v1000
        %v1840 = vunpack.c.l.b16 %v1001
        %v1841 = vunpack.c.h.b16 %v1001
        %v1842 = vunpack.c.l.b16 %v1002
        %v1843 = vunpack.c.h.b16 %v1002
        %v1844 = vunpack.c.l.b16 %v1003
        %v1845 = vunpack.c.h.b16 %v1003
        %v1846 = vunpack.c.l.b16 %v1004
        %v1847 = vunpack.c.h.b16 %v1004
        %v1848 = vunpack.c.l.b16 %v1005
        %v1849 = vunpack.c.h.b16 %v1005
        %v1850 = vunpack.c.l.b16 %v1006
        %v1851 = vunpack.c.h.b16 %v1006
        %v1852 = vunpack.c.l.b16 %v1007
        %v1853 = vunpack.c.h.b16 %v1007
        %v1854 = vunpack.c.l.b16 %v1008
        %v1855 = vunpack.c.h.b16 %v1008
        %v1856 = vunpack.c.l.b16 %v1009
        %v1857 = vunpack.c.h.b16 %v1009
        %v1858 = vunpack.c.l.b16 %v1010
        %v1859 = vunpack.c.h.b16 %v1010
        %v1860 = vunpack.c.l.b16 %v1011
        %v1861 = vunpack.c.h.b16 %v1011
        %v1862 = vunpack.c.l.b16 %v1012
        %v1863 = vunpack.c.h.b16 %v1012
        %v1864 = vunpack.c.l.b16 %v1013
        %v1865 = vunpack.c.h.b16 %v1013
        %v1866 = vunpack.c.l.b16 %v1014
        %v1867 = vunpack.c.h.b16 %v1014
        %v1868 = vunpack.c.l.b16 %v1015
        %v1869 = vunpack.c.h.b16 %v1015
        %v1870 = vunpack.c.l.b16 %v1016
        %v1871 = vunpack.c.h.b16 %v1016
        %v1872 = vunpack.c.l.b16 %v1017
        %v1873 = vunpack.c.h.b16 %v1017
        %v1874 = vunpack.c.l.b16 %v1018
        %v1875 = vunpack.c.h.b16 %v1018
        %v1876 = vunpack.c.l.b16 %v1019
        %v1877 = vunpack.c.h.b16 %v1019
        %v1878 = vunpack.c.l.b16 %v1020
        %v1879 = vunpack.c.h.b16 %v1020
        %v1880 = vunpack.c.l.b16 %v1021
        %v1881 = vunpack.c.h.b16 %v1021
        %v1882 = vunpack.c.l.b16 %v1022
        %v1883 = vunpack.c.h.b16 %v1022
        %v1884 = vunpack.c.l.b16 %v1023
        %v1885 = vunpack.c.h.b16 %v1023
        %v1886 = vunpack.c.l.b16 %v1024
        %v1887 = vunpack.c.h.b16 %v1024
        %v1888 = vunpack.c.l.b16 %v1025
        %v1889 = vunpack.c.h.b16 %v1025
        %v1890 = vunpack.c.l.b16 %v1026
        %v1891 = vunpack.c.h.b16 %v1026
        %v1892 = vunpack.c.l.b16 %v1027
        %v1893 = vunpack.c.h.b16 %v1027
        %v1894 = vunpack.c.l.b16 %v1028
        %v1895 = vunpack.c.h.b16 %v1028
        %v1896 = vunpack.c.l.b16 %v1029
        %v1897 = vunpack.c.h.b16 %v1029
        %v1898 = vunpack.c.l.b16 %v1030
        %v1899 = vunpack.c.h.b16 %v1030
        %v1900 = vunpack.c.l.b16 %v1031
        %v1901 = vunpack.c.h.b16 %v1031
        %v1902 = vunpack.c.l.b16 %v1032
        %v1903 = vunpack.c.h.b16 %v1032
        %v1904 = vunpack.c.l.b16 %v1033
        %v1905 = vunpack.c.h.b16 %v1033
        %v1906 = vunpack.c.l.b16 %v1034
        %v1907 = vunpack.c.h.b16 %v1034
        %v1908 = vunpack.c.l.b16 %v1035
        %v1909 = vunpack.c.h.b16 %v1035
        %v1910 = vunpack.c.l.b16 %v1036
        %v1911 = vunpack.c.h.b16 %v1036
        %v1912 = vunpack.c.l.b16 %v1037
        %v1913 = vunpack.c.h.b16 %v1037
        %v1914 = vunpack.c.l.b16 %v1038
        %v1915 = vunpack.c.h.b16 %v1038
        %v1916 = vunpack.c.l.b16 %v1039
        %v1917 = vunpack.c.h.b16 %v1039
        %v1918 = vpack.c.b16 %v1480, %v1474
        %v1919 = vpack.c.b16 %v1481, %v1475
        %v1920 = vpack.c.b16 %v1482, %v1476
        %v1921 = vpack.c.b16 %v1483, %v1477
        %v1922 = vpack.c.b16 %v1484, %v1478
        %v1923 = vpack.c.b16 %v1485, %v1479
        %v1924 = vpack.c.b16 %v1492, %v1486
        %v1925 = vpack.c.b16 %v1493, %v1487
        %v1926 = vpack.c.b16 %v1494, %v1488
        %v1927 = vpack.c.b16 %v1495, %v1489
        %v1928 = vpack.c.b16 %v1496, %v1490
        %v1929 = vpack.c.b16 %v1497, %v1491
        %v1930 = vpack.c.b16 %v1504, %v1498
        %v1931 = vpack.c.b16 %v1505, %v1499
        %v1932 = vpack.c.b16 %v1506, %v1500
        %v1933 = vpack.c.b16 %v1507, %v1501
        %v1934 = vpack.c.b16 %v1508, %v1502
        %v1935 = vpack.c.b16 %v1509, %v1503
        %v1936 = vpack.c.b16 %v1516, %v1510
        %v1937 = vpack.c.b16 %v1517, %v1511
        %v1938 = vpack.c.b16 %v1518, %v1512
        %v1939 = vpack.c.b16 %v1519, %v1513
        %v1940 = vpack.c.b16 %v1520, %v1514
        %v1941 = vpack.c.b16 %v1521, %v1515
        %v1942 = vpack.c.b16 %v1528, %v1522
        %v1943 = vpack.c.b16 %v1529, %v1523
        %v1944 = vpack.c.b16 %v1530, %v1524
        %v1945 = vpack.c.b16 %v1531, %v1525
        %v1946 = vpack.c.b16 %v1532, %v1526
        %v1947 = vpack.c.b16 %v1533, %v1527
        %v1948 = vpack.c.b16 %v1540, %v1534
        %v1949 = vpack.c.b16 %v1541, %v1535
        %v1950 = vpack.c.b16 %v1542, %v1536
        %v1951 = vpack.c.b16 %v1543, %v1537
        %v1952 = vpack.c.b16 %v1544, %v1538
        %v1953 = vpack.c.b16 %v1545, %v1539
        %v1954 = vpack.c.b16 %v1552, %v1546
        %v1955 = vpack.c.b16 %v1553, %v1547
        %v1956 = vpack.c.b16 %v1554, %v1548
        %v1957 = vpack.c.b16 %v1555, %v1549
        %v1958 = vpack.c.b16 %v1556, %v1550
        %v1959 = vpack.c.b16 %v1557, %v1551
        %v1960 = vpack.c.b16 %v1564, %v1558
        %v1961 = vpack.c.b16 %v1565, %v1559
        %v1962 = vpack.c.b16 %v1566, %v1560
        %v1963 = vpack.c.b16 %v1567, %v1561
        %v1964 = vpack.c.b16 %v1568, %v1562
        %v1965 = vpack.c.b16 %v1569, %v1563
        %v1966 = vpack.c.b16 %v1576, %v1570
        %v1967 = vpack.c.b16 %v1577, %v1571
        %v1968 = vpack.c.b16 %v1578, %v1572
        %v1969 = vpack.c.b16 %v1579, %v1573
        %v1970 = vpack.c.b16 %v1580, %v1574
        %v1971 = vpack.c.b16 %v1581, %v1575
        %v1972 = vpack.c.b16 %v1588, %v1582
        %v1973 = vpack.c.b16 %v1589, %v1583
        %v1974 = vpack.c.b16 %v1590, %v1584
        %v1975 = vpack.c.b16 %v1591, %v1585
        %v1976 = vpack.c.b16 %v1592, %v1586
        %v1977 = vpack.c.b16 %v1593, %v1587
        %v1978 = vpack.c.b16 %v1600, %v1594
        %v1979 = vpack.c.b16 %v1601, %v1595
        %v1980 = vpack.c.b16 %v1602, %v1596
        %v1981 = vpack.c.b16 %v1603, %v1597
        %v1982 = vpack.c.b16 %v1604, %v1598
        %v1983 = vpack.c.b16 %v1605, %v1599
        %v1984 = vpack.c.b16 %v1612, %v1606
        %v1985 = vpack.c.b16 %v1613, %v1607
        %v1986 = vpack.c.b16 %v1614, %v1608
        %v1987 = vpack.c.b16 %v1615, %v1609
        %v1988 = vpack.c.b16 %v1616, %v1610
        %v1989 = vpack.c.b16 %v1617, %v1611
        %v1990 = vpack.c.b16 %v1624, %v1618
        %v1991 = vpack.c.b16 %v1625, %v1619
        %v1992 = vpack.c.b16 %v1626, %v1620
        %v1993 = vpack.c.b16 %v1627, %v1621
        %v1994 = vpack.c.b16 %v1628, %v1622
        %v1995 = vpack.c.b16 %v1629, %v1623
        %v1996 = vpack.c.b16 %v1636, %v1630
        %v1997 = vpack.c.b16 %v1637, %v1631
        %v1998 = vpack.c.b16 %v1638, %v1632
        %v1999 = vpack.c.b16 %v1639, %v1633
        %v2000 = vpack.c.b16 %v1640, %v1634
        %v2001 = vpack.c.b16 %v1641, %v1635
        %v2002 = vpack.c.b16 %v1648, %v1642
        %v2003 = vpack.c.b16 %v1649, %v1643
        %v2004 = vpack.c.b16 %v1650, %v1644
        %v2005 = vpack.c.b16 %v1651, %v1645
        %v2006 = vpack.c.b16 %v1652, %v1646
        %v2007 = vpack.c.b16 %v1653, %v1647
        %v2008 = vpack.c.b16 %v1660, %v1654
        %v2009 = vpack.c.b16 %v1661, %v1655
        %v2010 = vpack.c.b16 %v1662, %v1656
        %v2011 = vpack.c.b16 %v1663, %v1657
        %v2012 = vpack.c.b16 %v1664, %v1658
        %v2013 = vpack.c.b16 %v1665, %v1659
        %v2014 = vpack.c.b16 %v1672, %v1666
        %v2015 = vpack.c.b16 %v1673, %v1667
        %v2016 = vpack.c.b16 %v1674, %v1668
        %v2017 = vpack.c.b16 %v1675, %v1669
        %v2018 = vpack.c.b16 %v1676, %v1670
        %v2019 = vpack.c.b16 %v1677, %v1671
        %v2020 = vpack.c.b16 %v1684, %v1678
        %v2021 = vpack.c.b16 %v1685, %v1679
        %v2022 = vpack.c.b16 %v1686, %v1680
        %v2023 = vpack.c.b16 %v1687, %v1681
        %v2024 = vpack.c.b16 %v1688, %v1682
        %v2025 = vpack.c.b16 %v1689, %v1683
        %v2026 = vpack.c.b16 %v1696, %v1690
        %v2027 = vpack.c.b16 %v1697, %v1691
        %v2028 = vpack.c.b16 %v1698, %v1692
        %v2029 = vpack.c.b16 %v1699, %v1693
        %v2030 = vpack.c.b16 %v1700, %v1694
        %v2031 = vpack.c.b16 %v1701, %v1695
        %v2032 = vpack.c.b16 %v1708, %v1702
        %v2033 = vpack.c.b16 %v1709, %v1703
        %v2034 = vpack.c.b16 %v1710, %v1704
        %v2035 = vpack.c.b16 %v1711, %v1705
        %v2036 = vpack.c.b16 %v1712, %v1706
        %v2037 = vpack.c.b16 %v1713, %v1707
        %v2038 = vpack.c.b16 %v1720, %v1714
        %v2039 = vpack.c.b16 %v1721, %v1715
        %v2040 = vpack.c.b16 %v1722, %v1716
        %v2041 = vpack.c.b16 %v1723, %v1717
        %v2042 = vpack.c.b16 %v1724, %v1718
        %v2043 = vpack.c.b16 %v1725, %v1719
        %v2044 = vpack.c.b16 %v1732, %v1726
        %v2045 = vpack.c.b16 %v1733, %v1727
        %v2046 = vpack.c.b16 %v1734, %v1728
        %v2047 = vpack.c.b16 %v1735, %v1729
        %v2048 = vpack.c.b16 %v1736, %v1730
        %v2049 = vpack.c.b16 %v1737, %v1731
        %v2050 = vpack.c.b16 %v1744, %v1738
        %v2051 = vpack.c.b16 %v1745, %v1739
        %v2052 = vpack.c.b16 %v1746, %v1740
        %v2053 = vpack.c.b16 %v1747, %v1741
        %v2054 = vpack.c.b16 %v1748, %v1742
        %v2055 = vpack.c.b16 %v1749, %v1743
        %v2056 = vpack.c.b16 %v1756, %v1750
        %v2057 = vpack.c.b16 %v1757, %v1751
        %v2058 = vpack.c.b16 %v1758, %v1752
        %v2059 = vpack.c.b16 %v1759, %v1753
        %v2060 = vpack.c.b16 %v1760, %v1754
        %v2061 = vpack.c.b16 %v1761, %v1755
        %v2062 = vpack.c.b16 %v1768, %v1762
        %v2063 = vpack.c.b16 %v1769, %v1763
        %v2064 = vpack.c.b16 %v1770, %v1764
        %v2065 = vpack.c.b16 %v1771, %v1765
        %v2066 = vpack.c.b16 %v1772, %v1766
        %v2067 = vpack.c.b16 %v1773, %v1767
        %v2068 = vpack.c.b16 %v1780, %v1774
        %v2069 = vpack.c.b16 %v1781, %v1775
        %v2070 = vpack.c.b16 %v1782, %v1776
        %v2071 = vpack.c.b16 %v1783, %v1777
        %v2072 = vpack.c.b16 %v1784, %v1778
        %v2073 = vpack.c.b16 %v1785, %v1779
        %v2074 = vpack.c.b16 %v1792, %v1786
        %v2075 = vpack.c.b16 %v1793, %v1787
        %v2076 = vpack.c.b16 %v1794, %v1788
        %v2077 = vpack.c.b16 %v1795, %v1789
        %v2078 = vpack.c.b16 %v1796, %v1790
        %v2079 = vpack.c.b16 %v1797, %v1791
        %v2080 = vpack.c.b16 %v1804, %v1798
        %v2081 = vpack.c.b16 %v1805, %v1799
        %v2082 = vpack.c.b16 %v1806, %v1800
        %v2083 = vpack.c.b16 %v1807, %v1801
        %v2084 = vpack.c.b16 %v1808, %v1802
        %v2085 = vpack.c.b16 %v1809, %v1803
        %v2086 = vpack.c.b16 %v1816, %v1810
        %v2087 = vpack.c.b16 %v1817, %v1811
        %v2088 = vpack.c.b16 %v1818, %v1812
        %v2089 = vpack.c.b16 %v1819, %v1813
        %v2090 = vpack.c.b16 %v1820, %v1814
        %v2091 = vpack.c.b16 %v1821, %v1815
        %v2092 = vpack.c.b16 %v1828, %v1822
        %v2093 = vpack.c.b16 %v1829, %v1823
        %v2094 = vpack.c.b16 %v1830, %v1824
        %v2095 = vpack.c.b16 %v1831, %v1825
        %v2096 = vpack.c.b16 %v1832, %v1826
        %v2097 = vpack.c.b16 %v1833, %v1827
        %v2098 = vpack.c.b16 %v1840, %v1834
        %v2099 = vpack.c.b16 %v1841, %v1835
        %v2100 = vpack.c.b16 %v1842, %v1836
        %v2101 = vpack.c.b16 %v1843, %v1837
        %v2102 = vpack.c.b16 %v1844, %v1838
        %v2103 = vpack.c.b16 %v1845, %v1839
        %v2104 = vpack.c.b16 %v1852, %v1846
        %v2105 = vpack.c.b16 %v1853, %v1847
        %v2106 = vpack.c.b16 %v1854, %v1848
        %v2107 = vpack.c.b16 %v1855, %v1849
        %v2108 = vpack.c.b16 %v1856, %v1850
        %v2109 = vpack.c.b16 %v1857, %v1851
        %v2110 = vpack.c.b16 %v1864, %v1858
        %v2111 = vpack.c.b16 %v1865, %v1859
        %v2112 = vpack.c.b16 %v1866, %v1860
        %v2113 = vpack.c.b16 %v1867, %v1861
        %v2114 = vpack.c.b16 %v1868, %v1862
        %v2115 = vpack.c.b16 %v1869, %v1863
        %v2116 = vpack.c.b16 %v1876, %v1870
        %v2117 = vpack.c.b16 %v1877, %v1871
        %v2118 = vpack.c.b16 %v1878, %v1872
        %v2119 = vpack.c.b16 %v1879, %v1873
        %v2120 = vpack.c.b16 %v1880, %v1874
        %v2121 = vpack.c.b16 %v1881, %v1875
        %v2122 = vpack.c.b16 %v1888, %v1882
        %v2123 = vpack.c.b16 %v1889, %v1883
        %v2124 = vpack.c.b16 %v1890, %v1884
        %v2125 = vpack.c.b16 %v1891, %v1885
        %v2126 = vpack.c.b16 %v1892, %v1886
        %v2127 = vpack.c.b16 %v1893, %v1887
        %v2128 = vpack.c.b16 %v1900, %v1894
        %v2129 = vpack.c.b16 %v1901, %v1895
        %v2130 = vpack.c.b16 %v1902, %v1896
        %v2131 = vpack.c.b16 %v1903, %v1897
        %v2132 = vpack.c.b16 %v1904, %v1898
        %v2133 = vpack.c.b16 %v1905, %v1899
        %v2134 = vpack.c.b16 %v1912, %v1906
        %v2135 = vpack.c.b16 %v1913, %v1907
        %v2136 = vpack.c.b16 %v1914, %v1908
        %v2137 = vpack.c.b16 %v1915, %v1909
        %v2138 = vpack.c.b16 %v1916, %v1910
        %v2139 = vpack.c.b16 %v1917, %v1911
        %vm2356 = vcmask 646144
        %v2358 = vsel %vm2356, %v1165, 0
        %v2361 = vsel %vm2356, %v1170, 0
        %v2364 = vsel %vm2356, %v1175, 0
        %v2367 = vsel %vm2356, %v1180, 0
        %v2370 = vsel %vm2356, %v1185, 0
        %v2373 = vsel %vm2356, %v1190, 0
        %v2376 = vsel %vm2356, %v1195, 0
        %v2379 = vsel %vm2356, %v1200, 0
        %v2382 = vsel %vm2356, %v1205, 0
        %v2385 = vsel %vm2356, %v1210, 0
        %v2388 = vsel %vm2356, %v1215, 0
        %v2391 = vsel %vm2356, %v1220, 0
        %vm2393 = vcmask 1046528
        %vm2394 = vcmask 1047552
        %v2395 = vsel %vm2393, 4294967295, 65535
        %v2396 = vsel %vm2394, %v2395, 0
        %v2398 = vand.u32 %v2134, %v2396
        %v2401 = vand.u32 %v2135, %v2396
        %v2404 = vand.u32 %v2136, %v2396
        %v2407 = vand.u32 %v2137, %v2396
        %v2410 = vand.u32 %v2138, %v2396
        %v2413 = vand.u32 %v2139, %v2396
        %2415 = vmatprep.subr.bf16.mxu0 %v1919
        %2416 = vmatpush1.bf16.msra.mxu0 %v1918
        %2417 = vmatprep.subr.bf16.mxu0 %v1925
        %2418 = vmatpush1.bf16.msra.mxu0 %v1924
        %2419 = vmatprep.subr.bf16.mxu0 %v1931
        %2420 = vmatpush1.bf16.msra.mxu0 %v1930
        %2421 = vmatprep.subr.bf16.mxu0 %v1937
        %2422 = vmatpush1.bf16.msra.mxu0 %v1936
        %2423 = vmatprep.subr.bf16.mxu0 %v1943
        %2424 = vmatpush1.bf16.msra.mxu0 %v1942
        %2425 = vmatprep.subr.bf16.mxu0 %v1949
        %2426 = vmatpush1.bf16.msra.mxu0 %v1948
        %2427 = vmatprep.subr.bf16.mxu0 %v1955
        %2428 = vmatpush1.bf16.msra.mxu0 %v1954
        %2429 = vmatprep.subr.bf16.mxu0 %v1961
        %2430 = vmatpush1.bf16.msra.mxu0 %v1960
        %2431 = vmatprep.subr.bf16.mxu0 %v1967
        %2432 = vmatpush1.bf16.msra.mxu0 %v1966
        %2433 = vmatprep.subr.bf16.mxu0 %v1973
        %2434 = vmatpush1.bf16.msra.mxu0 %v1972
        %2435 = vmatprep.subr.bf16.mxu0 %v1979
        %2436 = vmatpush1.bf16.msra.mxu0 %v1978
        %2437 = vmatprep.subr.bf16.mxu0 %v1985
        %2438 = vmatpush1.bf16.msra.mxu0 %v1984
        %2439 = vmatprep.subr.bf16.mxu0 %v1991
        %2440 = vmatpush1.bf16.msra.mxu0 %v1990
        %2441 = vmatprep.subr.bf16.mxu0 %v1997
        %2442 = vmatpush1.bf16.msra.mxu0 %v1996
        %2443 = vmatprep.subr.bf16.mxu0 %v2003
        %2444 = vmatpush1.bf16.msra.mxu0 %v2002
        %2445 = vmatprep.subr.bf16.mxu0 %v2009
        %2446 = vmatpush1.bf16.msra.mxu0 %v2008
        %2447 = vmatprep.mubr.bf16.mxu0 %v1162
        %2448 = vmatmul.mubr.bf16.gmra.mrb[0].mxu0 %v1161
        %v2449 = vpop.f32.mrb[0].mxu0
        %v2450 = vadd.f32 %v1225, %v2449
        %v2451 = vpop.f32.mrb[0].mxu0
        %v2452 = vadd.f32 %v1229, %v2451
        %v2453 = vpop.f32.mrb[0].mxu0
        %v2454 = vadd.f32 %v1225, %v2453
        %v2455 = vpop.f32.mrb[0].mxu0
        %v2456 = vadd.f32 %v1229, %v2455
        %2457 = vmatprep.mubr.bf16.mxu0 %v1167
        %2458 = vmatmul.mubr.bf16.gmra.mrb[0].mxu0 %v1166
        %v2459 = vpop.f32.mrb[0].mxu0
        %v2460 = vadd.f32 %v1225, %v2459
        %v2461 = vpop.f32.mrb[0].mxu0
        %v2462 = vadd.f32 %v1229, %v2461
        %v2463 = vpop.f32.mrb[0].mxu0
        %v2464 = vadd.f32 %v1225, %v2463
        %v2465 = vpop.f32.mrb[0].mxu0
        %v2466 = vadd.f32 %v1229, %v2465
        %2467 = vmatprep.mubr.bf16.mxu0 %v1172
        %2468 = vmatmul.mubr.bf16.gmra.mrb[0].mxu0 %v1171
        %v2469 = vpop.f32.mrb[0].mxu0
        %v2470 = vadd.f32 %v1225, %v2469
        %v2471 = vpop.f32.mrb[0].mxu0
        %v2472 = vadd.f32 %v1229, %v2471
        %v2473 = vpop.f32.mrb[0].mxu0
        %v2474 = vadd.f32 %v1225, %v2473
        %v2475 = vpop.f32.mrb[0].mxu0
        %v2476 = vadd.f32 %v1229, %v2475
        %2477 = vmatprep.mubr.bf16.mxu0 %v1177
        %2478 = vmatmul.mubr.bf16.gmra.mrb[0].mxu0 %v1176
        %v2479 = vpop.f32.mrb[0].mxu0
        %v2480 = vadd.f32 %v1225, %v2479
        %v2481 = vpop.f32.mrb[0].mxu0
        %v2482 = vadd.f32 %v1229, %v2481
        %v2483 = vpop.f32.mrb[0].mxu0
        %v2484 = vadd.f32 %v1225, %v2483
        %v2485 = vpop.f32.mrb[0].mxu0
        %v2486 = vadd.f32 %v1229, %v2485
        %2487 = vmatprep.mubr.bf16.mxu0 %v1182
        %2488 = vmatmul.mubr.bf16.gmra.mrb[0].mxu0 %v1181
        %v2489 = vpop.f32.mrb[0].mxu0
        %v2490 = vadd.f32 %v1225, %v2489
        %v2491 = vpop.f32.mrb[0].mxu0
        %v2492 = vadd.f32 %v1229, %v2491
        %v2493 = vpop.f32.mrb[0].mxu0
        %v2494 = vadd.f32 %v1225, %v2493
        %v2495 = vpop.f32.mrb[0].mxu0
        %v2496 = vadd.f32 %v1229, %v2495
        %2497 = vmatprep.mubr.bf16.mxu0 %v1187
        %2498 = vmatmul.mubr.bf16.gmra.mrb[0].mxu0 %v1186
        %v2499 = vpop.f32.mrb[0].mxu0
        %v2500 = vadd.f32 %v1225, %v2499
        %v2501 = vpop.f32.mrb[0].mxu0
        %v2502 = vadd.f32 %v1229, %v2501
        %v2503 = vpop.f32.mrb[0].mxu0
        %v2504 = vadd.f32 %v1225, %v2503
        %v2505 = vpop.f32.mrb[0].mxu0
        %v2506 = vadd.f32 %v1229, %v2505
        %2507 = vmatprep.mubr.bf16.mxu0 %v1192
        %2508 = vmatmul.mubr.bf16.gmra.mrb[0].mxu0 %v1191
        %v2509 = vpop.f32.mrb[0].mxu0
        %v2510 = vadd.f32 %v1225, %v2509
        %v2511 = vpop.f32.mrb[0].mxu0
        %v2512 = vadd.f32 %v1229, %v2511
        %v2513 = vpop.f32.mrb[0].mxu0
        %v2514 = vadd.f32 %v1225, %v2513
        %v2515 = vpop.f32.mrb[0].mxu0
        %v2516 = vadd.f32 %v1229, %v2515
        %2517 = vmatprep.mubr.bf16.mxu0 %v1197
        %2518 = vmatmul.mubr.bf16.gmra.mrb[0].mxu0 %v1196
        %v2519 = vpop.f32.mrb[0].mxu0
        %v2520 = vadd.f32 %v1225, %v2519
        %v2521 = vpop.f32.mrb[0].mxu0
        %v2522 = vadd.f32 %v1229, %v2521
        %v2523 = vpop.f32.mrb[0].mxu0
        %v2524 = vadd.f32 %v1225, %v2523
        %v2525 = vpop.f32.mrb[0].mxu0
        %v2526 = vadd.f32 %v1229, %v2525
        %2527 = vmatprep.mubr.bf16.mxu0 %v1202
        %2528 = vmatmul.mubr.bf16.gmra.mrb[0].mxu0 %v1201
        %v2529 = vpop.f32.mrb[0].mxu0
        %v2530 = vadd.f32 %v1225, %v2529
        %v2531 = vpop.f32.mrb[0].mxu0
        %v2532 = vadd.f32 %v1229, %v2531
        %v2533 = vpop.f32.mrb[0].mxu0
        %v2534 = vadd.f32 %v1225, %v2533
        %v2535 = vpop.f32.mrb[0].mxu0
        %v2536 = vadd.f32 %v1229, %v2535
        %2537 = vmatprep.mubr.bf16.mxu0 %v1207
        %2538 = vmatmul.mubr.bf16.gmra.mrb[0].mxu0 %v1206
        %v2539 = vpop.f32.mrb[0].mxu0
        %v2540 = vadd.f32 %v1225, %v2539
        %v2541 = vpop.f32.mrb[0].mxu0
        %v2542 = vadd.f32 %v1229, %v2541
        %v2543 = vpop.f32.mrb[0].mxu0
        %v2544 = vadd.f32 %v1225, %v2543
        %v2545 = vpop.f32.mrb[0].mxu0
        %v2546 = vadd.f32 %v1229, %v2545
        %2547 = vmatprep.mubr.bf16.mxu0 %v1212
        %2548 = vmatmul.mubr.bf16.gmra.mrb[0].mxu0 %v1211
        %v2549 = vpop.f32.mrb[0].mxu0
        %v2550 = vadd.f32 %v1225, %v2549
        %v2551 = vpop.f32.mrb[0].mxu0
        %v2552 = vadd.f32 %v1229, %v2551
        %v2553 = vpop.f32.mrb[0].mxu0
        %v2554 = vadd.f32 %v1225, %v2553
        %v2555 = vpop.f32.mrb[0].mxu0
        %v2556 = vadd.f32 %v1229, %v2555
        %2557 = vmatprep.mubr.bf16.mxu0 %v1217
        %2558 = vmatmul.mubr.bf16.gmra.mrb[0].mxu0 %v1216
        %v2559 = vpop.f32.mrb[0].mxu0
        %v2560 = vadd.f32 %v1225, %v2559
        %v2561 = vpop.f32.mrb[0].mxu0
        %v2562 = vadd.f32 %v1229, %v2561
        %v2563 = vpop.f32.mrb[0].mxu0
        %v2564 = vadd.f32 %v1225, %v2563
        %v2565 = vpop.f32.mrb[0].mxu0
        %v2566 = vadd.f32 %v1229, %v2565
        %2567 = vdwg.mxu0
        %2568 = vmatprep.subr.bf16.mxu0 %v2015
        %2569 = vmatpush1.bf16.msra.mxu0 %v2014
        %2570 = vmatprep.subr.bf16.mxu0 %v2021
        %2571 = vmatpush1.bf16.msra.mxu0 %v2020
        %2572 = vmatprep.subr.bf16.mxu0 %v2027
        %2573 = vmatpush1.bf16.msra.mxu0 %v2026
        %2574 = vmatprep.subr.bf16.mxu0 %v2033
        %2575 = vmatpush1.bf16.msra.mxu0 %v2032
        %2576 = vmatprep.subr.bf16.mxu0 %v2039
        %2577 = vmatpush1.bf16.msra.mxu0 %v2038
        %2578 = vmatprep.subr.bf16.mxu0 %v2045
        %2579 = vmatpush1.bf16.msra.mxu0 %v2044
        %2580 = vmatprep.subr.bf16.mxu0 %v2051
        %2581 = vmatpush1.bf16.msra.mxu0 %v2050
        %2582 = vmatprep.subr.bf16.mxu0 %v2057
        %2583 = vmatpush1.bf16.msra.mxu0 %v2056
        %2584 = vmatprep.subr.bf16.mxu0 %v2063
        %2585 = vmatpush1.bf16.msra.mxu0 %v2062
        %2586 = vmatprep.subr.bf16.mxu0 %v2069
        %2587 = vmatpush1.bf16.msra.mxu0 %v2068
        %2588 = vmatprep.subr.bf16.mxu0 %v2075
        %2589 = vmatpush1.bf16.msra.mxu0 %v2074
        %2590 = vmatprep.subr.bf16.mxu0 %v2081
        %2591 = vmatpush1.bf16.msra.mxu0 %v2080
        %2592 = vmatprep.subr.bf16.mxu0 %v2087
        %2593 = vmatpush1.bf16.msra.mxu0 %v2086
        %2594 = vmatprep.subr.bf16.mxu0 %v2093
        %2595 = vmatpush1.bf16.msra.mxu0 %v2092
        %2596 = vmatprep.subr.bf16.mxu0 %v2099
        %2597 = vmatpush1.bf16.msra.mxu0 %v2098
        %2598 = vmatprep.subr.bf16.mxu0 %v2105
        %2599 = vmatpush1.bf16.msra.mxu0 %v2104
        %2600 = vmatprep.mubr.bf16.mxu0 %v1164
        %2601 = vmatmul.mubr.bf16.gmra.mrb[0].mxu0 %v1163
        %v2602 = vpop.f32.mrb[0].mxu0
        %v2603 = vadd.f32 %v2450, %v2602
        %v2604 = vpop.f32.mrb[0].mxu0
        %v2605 = vadd.f32 %v2452, %v2604
        %v2606 = vpop.f32.mrb[0].mxu0
        %v2607 = vadd.f32 %v2454, %v2606
        %v2608 = vpop.f32.mrb[0].mxu0
        %v2609 = vadd.f32 %v2456, %v2608
        %2610 = vmatprep.mubr.bf16.mxu0 %v1169
        %2611 = vmatmul.mubr.bf16.gmra.mrb[0].mxu0 %v1168
        %v2612 = vpop.f32.mrb[0].mxu0
        %v2613 = vadd.f32 %v2460, %v2612
        %v2614 = vpop.f32.mrb[0].mxu0
        %v2615 = vadd.f32 %v2462, %v2614
        %v2616 = vpop.f32.mrb[0].mxu0
        %v2617 = vadd.f32 %v2464, %v2616
        %v2618 = vpop.f32.mrb[0].mxu0
        %v2619 = vadd.f32 %v2466, %v2618
        %2620 = vmatprep.mubr.bf16.mxu0 %v1174
        %2621 = vmatmul.mubr.bf16.gmra.mrb[0].mxu0 %v1173
        %v2622 = vpop.f32.mrb[0].mxu0
        %v2623 = vadd.f32 %v2470, %v2622
        %v2624 = vpop.f32.mrb[0].mxu0
        %v2625 = vadd.f32 %v2472, %v2624
        %v2626 = vpop.f32.mrb[0].mxu0
        %v2627 = vadd.f32 %v2474, %v2626
        %v2628 = vpop.f32.mrb[0].mxu0
        %v2629 = vadd.f32 %v2476, %v2628
        %2630 = vmatprep.mubr.bf16.mxu0 %v1179
        %2631 = vmatmul.mubr.bf16.gmra.mrb[0].mxu0 %v1178
        %v2632 = vpop.f32.mrb[0].mxu0
        %v2633 = vadd.f32 %v2480, %v2632
        %v2634 = vpop.f32.mrb[0].mxu0
        %v2635 = vadd.f32 %v2482, %v2634
        %v2636 = vpop.f32.mrb[0].mxu0
        %v2637 = vadd.f32 %v2484, %v2636
        %v2638 = vpop.f32.mrb[0].mxu0
        %v2639 = vadd.f32 %v2486, %v2638
        %2640 = vmatprep.mubr.bf16.mxu0 %v1184
        %2641 = vmatmul.mubr.bf16.gmra.mrb[0].mxu0 %v1183
        %v2642 = vpop.f32.mrb[0].mxu0
        %v2643 = vadd.f32 %v2490, %v2642
        %v2644 = vpop.f32.mrb[0].mxu0
        %v2645 = vadd.f32 %v2492, %v2644
        %v2646 = vpop.f32.mrb[0].mxu0
        %v2647 = vadd.f32 %v2494, %v2646
        %v2648 = vpop.f32.mrb[0].mxu0
        %v2649 = vadd.f32 %v2496, %v2648
        %2650 = vmatprep.mubr.bf16.mxu0 %v1189
        %2651 = vmatmul.mubr.bf16.gmra.mrb[0].mxu0 %v1188
        %v2652 = vpop.f32.mrb[0].mxu0
        %v2653 = vadd.f32 %v2500, %v2652
        %v2654 = vpop.f32.mrb[0].mxu0
        %v2655 = vadd.f32 %v2502, %v2654
        %v2656 = vpop.f32.mrb[0].mxu0
        %v2657 = vadd.f32 %v2504, %v2656
        %v2658 = vpop.f32.mrb[0].mxu0
        %v2659 = vadd.f32 %v2506, %v2658
        %2660 = vmatprep.mubr.bf16.mxu0 %v1194
        %2661 = vmatmul.mubr.bf16.gmra.mrb[0].mxu0 %v1193
        %v2662 = vpop.f32.mrb[0].mxu0
        %v2663 = vadd.f32 %v2510, %v2662
        %v2664 = vpop.f32.mrb[0].mxu0
        %v2665 = vadd.f32 %v2512, %v2664
        %v2666 = vpop.f32.mrb[0].mxu0
        %v2667 = vadd.f32 %v2514, %v2666
        %v2668 = vpop.f32.mrb[0].mxu0
        %v2669 = vadd.f32 %v2516, %v2668
        %2670 = vmatprep.mubr.bf16.mxu0 %v1199
        %2671 = vmatmul.mubr.bf16.gmra.mrb[0].mxu0 %v1198
        %v2672 = vpop.f32.mrb[0].mxu0
        %v2673 = vadd.f32 %v2520, %v2672
        %v2674 = vpop.f32.mrb[0].mxu0
        %v2675 = vadd.f32 %v2522, %v2674
        %v2676 = vpop.f32.mrb[0].mxu0
        %v2677 = vadd.f32 %v2524, %v2676
        %v2678 = vpop.f32.mrb[0].mxu0
        %v2679 = vadd.f32 %v2526, %v2678
        %2680 = vmatprep.mubr.bf16.mxu0 %v1204
        %2681 = vmatmul.mubr.bf16.gmra.mrb[0].mxu0 %v1203
        %v2682 = vpop.f32.mrb[0].mxu0
        %v2683 = vadd.f32 %v2530, %v2682
        %v2684 = vpop.f32.mrb[0].mxu0
        %v2685 = vadd.f32 %v2532, %v2684
        %v2686 = vpop.f32.mrb[0].mxu0
        %v2687 = vadd.f32 %v2534, %v2686
        %v2688 = vpop.f32.mrb[0].mxu0
        %v2689 = vadd.f32 %v2536, %v2688
        %2690 = vmatprep.mubr.bf16.mxu0 %v1209
        %2691 = vmatmul.mubr.bf16.gmra.mrb[0].mxu0 %v1208
        %v2692 = vpop.f32.mrb[0].mxu0
        %v2693 = vadd.f32 %v2540, %v2692
        %v2694 = vpop.f32.mrb[0].mxu0
        %v2695 = vadd.f32 %v2542, %v2694
        %v2696 = vpop.f32.mrb[0].mxu0
        %v2697 = vadd.f32 %v2544, %v2696
        %v2698 = vpop.f32.mrb[0].mxu0
        %v2699 = vadd.f32 %v2546, %v2698
        %2700 = vmatprep.mubr.bf16.mxu0 %v1214
        %2701 = vmatmul.mubr.bf16.gmra.mrb[0].mxu0 %v1213
        %v2702 = vpop.f32.mrb[0].mxu0
        %v2703 = vadd.f32 %v2550, %v2702
        %v2704 = vpop.f32.mrb[0].mxu0
        %v2705 = vadd.f32 %v2552, %v2704
        %v2706 = vpop.f32.mrb[0].mxu0
        %v2707 = vadd.f32 %v2554, %v2706
        %v2708 = vpop.f32.mrb[0].mxu0
        %v2709 = vadd.f32 %v2556, %v2708
        %2710 = vmatprep.mubr.bf16.mxu0 %v1219
        %2711 = vmatmul.mubr.bf16.gmra.mrb[0].mxu0 %v1218
        %v2712 = vpop.f32.mrb[0].mxu0
        %v2713 = vadd.f32 %v2560, %v2712
        %v2714 = vpop.f32.mrb[0].mxu0
        %v2715 = vadd.f32 %v2562, %v2714
        %v2716 = vpop.f32.mrb[0].mxu0
        %v2717 = vadd.f32 %v2564, %v2716
        %v2718 = vpop.f32.mrb[0].mxu0
        %v2719 = vadd.f32 %v2566, %v2718
        %2720 = vdwg.mxu0
        %2721 = vmatprep.subr.bf16.mxu0 %v2111
        %2722 = vmatpush1.bf16.msra.mxu0 %v2110
        %2723 = vmatprep.subr.bf16.mxu0 %v2117
        %2724 = vmatpush1.bf16.msra.mxu0 %v2116
        %2725 = vmatprep.subr.bf16.mxu0 %v2123
        %2726 = vmatpush1.bf16.msra.mxu0 %v2122
        %2727 = vmatprep.subr.bf16.mxu0 %v2129
        %2728 = vmatpush1.bf16.msra.mxu0 %v2128
        %2729 = vmatprep.subr.bf16.mxu0 %v2401
        %2730 = vmatpush1.bf16.msra.mxu0 %v2398
        %2731 = vmatprep.subr.bf16.mxu0 0
        %2732 = vmatpush1.bf16.msra.mxu0 0
        %2733 = vmatprep.subr.bf16.mxu0 0
        %2734 = vmatpush1.bf16.msra.mxu0 0
        %2735 = vmatprep.subr.bf16.mxu0 0
        %2736 = vmatpush1.bf16.msra.mxu0 0
        %2737 = vmatprep.subr.bf16.mxu0 0
        %2738 = vmatpush1.bf16.msra.mxu0 0
        %2739 = vmatprep.subr.bf16.mxu0 0
        %2740 = vmatpush1.bf16.msra.mxu0 0
        %2741 = vmatprep.subr.bf16.mxu0 0
        %2742 = vmatpush1.bf16.msra.mxu0 0
        %2743 = vmatprep.subr.bf16.mxu0 0
        %2744 = vmatpush1.bf16.msra.mxu0 0
        %2745 = vmatprep.subr.bf16.mxu0 0
        %2746 = vmatpush1.bf16.msra.mxu0 0
        %2747 = vmatprep.subr.bf16.mxu0 0
        %2748 = vmatpush1.bf16.msra.mxu0 0
        %2749 = vmatprep.subr.bf16.mxu0 0
        %2750 = vmatpush1.bf16.msra.mxu0 0
        %2751 = vmatprep.subr.bf16.mxu0 0
        %2752 = vmatpush1.bf16.msra.mxu0 0
        %2753 = vmatprep.mubr.bf16.mxu0 0
        %2754 = vmatmul.mubr.bf16.gmra.mrb[0].mxu0 %v2358
        %v2755 = vpop.f32.mrb[0].mxu0
        %v2756 = vadd.f32 %v2603, %v2755
        %v2757 = vpop.f32.mrb[0].mxu0
        %v2758 = vadd.f32 %v2605, %v2757
        %v2759 = vpop.f32.mrb[0].mxu0
        %v2760 = vadd.f32 %v2607, %v2759
        %v2761 = vpop.f32.mrb[0].mxu0
        %v2762 = vadd.f32 %v2609, %v2761
        %2763 = vmatprep.mubr.bf16.mxu0 0
        %2764 = vmatmul.mubr.bf16.gmra.mrb[0].mxu0 %v2361
        %v2765 = vpop.f32.mrb[0].mxu0
        %v2766 = vadd.f32 %v2613, %v2765
        %v2767 = vpop.f32.mrb[0].mxu0
        %v2768 = vadd.f32 %v2615, %v2767
        %v2769 = vpop.f32.mrb[0].mxu0
        %v2770 = vadd.f32 %v2617, %v2769
        %v2771 = vpop.f32.mrb[0].mxu0
        %v2772 = vadd.f32 %v2619, %v2771
        %2773 = vmatprep.mubr.bf16.mxu0 0
        %2774 = vmatmul.mubr.bf16.gmra.mrb[0].mxu0 %v2364
        %v2775 = vpop.f32.mrb[0].mxu0
        %v2776 = vadd.f32 %v2623, %v2775
        %v2777 = vpop.f32.mrb[0].mxu0
        %v2778 = vadd.f32 %v2625, %v2777
        %v2779 = vpop.f32.mrb[0].mxu0
        %v2780 = vadd.f32 %v2627, %v2779
        %v2781 = vpop.f32.mrb[0].mxu0
        %v2782 = vadd.f32 %v2629, %v2781
        %2783 = vmatprep.mubr.bf16.mxu0 0
        %2784 = vmatmul.mubr.bf16.gmra.mrb[0].mxu0 %v2367
        %v2785 = vpop.f32.mrb[0].mxu0
        %v2786 = vadd.f32 %v2633, %v2785
        %v2787 = vpop.f32.mrb[0].mxu0
        %v2788 = vadd.f32 %v2635, %v2787
        %v2789 = vpop.f32.mrb[0].mxu0
        %v2790 = vadd.f32 %v2637, %v2789
        %v2791 = vpop.f32.mrb[0].mxu0
        %v2792 = vadd.f32 %v2639, %v2791
        %2793 = vmatprep.mubr.bf16.mxu0 0
        %2794 = vmatmul.mubr.bf16.gmra.mrb[0].mxu0 %v2370
        %v2795 = vpop.f32.mrb[0].mxu0
        %v2796 = vadd.f32 %v2643, %v2795
        %v2797 = vpop.f32.mrb[0].mxu0
        %v2798 = vadd.f32 %v2645, %v2797
        %v2799 = vpop.f32.mrb[0].mxu0
        %v2800 = vadd.f32 %v2647, %v2799
        %v2801 = vpop.f32.mrb[0].mxu0
        %v2802 = vadd.f32 %v2649, %v2801
        %2803 = vmatprep.mubr.bf16.mxu0 0
        %2804 = vmatmul.mubr.bf16.gmra.mrb[0].mxu0 %v2373
        %v2805 = vpop.f32.mrb[0].mxu0
        %v2806 = vadd.f32 %v2653, %v2805
        %v2807 = vpop.f32.mrb[0].mxu0
        %v2808 = vadd.f32 %v2655, %v2807
        %v2809 = vpop.f32.mrb[0].mxu0
        %v2810 = vadd.f32 %v2657, %v2809
        %v2811 = vpop.f32.mrb[0].mxu0
        %v2812 = vadd.f32 %v2659, %v2811
        %2813 = vmatprep.mubr.bf16.mxu0 0
        %2814 = vmatmul.mubr.bf16.gmra.mrb[0].mxu0 %v2376
        %v2815 = vpop.f32.mrb[0].mxu0
        %v2816 = vadd.f32 %v2663, %v2815
        %v2817 = vpop.f32.mrb[0].mxu0
        %v2818 = vadd.f32 %v2665, %v2817
        %v2819 = vpop.f32.mrb[0].mxu0
        %v2820 = vadd.f32 %v2667, %v2819
        %v2821 = vpop.f32.mrb[0].mxu0
        %v2822 = vadd.f32 %v2669, %v2821
        %2823 = vmatprep.mubr.bf16.mxu0 0
        %2824 = vmatmul.mubr.bf16.gmra.mrb[0].mxu0 %v2379
        %v2825 = vpop.f32.mrb[0].mxu0
        %v2826 = vadd.f32 %v2673, %v2825
        %v2827 = vpop.f32.mrb[0].mxu0
        %v2828 = vadd.f32 %v2675, %v2827
        %v2829 = vpop.f32.mrb[0].mxu0
        %v2830 = vadd.f32 %v2677, %v2829
        %v2831 = vpop.f32.mrb[0].mxu0
        %v2832 = vadd.f32 %v2679, %v2831
        %2833 = vmatprep.mubr.bf16.mxu0 0
        %2834 = vmatmul.mubr.bf16.gmra.mrb[0].mxu0 %v2382
        %v2835 = vpop.f32.mrb[0].mxu0
        %v2836 = vadd.f32 %v2683, %v2835
        %v2837 = vpop.f32.mrb[0].mxu0
        %v2838 = vadd.f32 %v2685, %v2837
        %v2839 = vpop.f32.mrb[0].mxu0
        %v2840 = vadd.f32 %v2687, %v2839
        %v2841 = vpop.f32.mrb[0].mxu0
        %v2842 = vadd.f32 %v2689, %v2841
        %2843 = vmatprep.mubr.bf16.mxu0 0
        %2844 = vmatmul.mubr.bf16.gmra.mrb[0].mxu0 %v2385
        %v2845 = vpop.f32.mrb[0].mxu0
        %v2846 = vadd.f32 %v2693, %v2845
        %v2847 = vpop.f32.mrb[0].mxu0
        %v2848 = vadd.f32 %v2695, %v2847
        %v2849 = vpop.f32.mrb[0].mxu0
        %v2850 = vadd.f32 %v2697, %v2849
        %v2851 = vpop.f32.mrb[0].mxu0
        %v2852 = vadd.f32 %v2699, %v2851
        %2853 = vmatprep.mubr.bf16.mxu0 0
        %2854 = vmatmul.mubr.bf16.gmra.mrb[0].mxu0 %v2388
        %v2855 = vpop.f32.mrb[0].mxu0
        %v2856 = vadd.f32 %v2703, %v2855
        %v2857 = vpop.f32.mrb[0].mxu0
        %v2858 = vadd.f32 %v2705, %v2857
        %v2859 = vpop.f32.mrb[0].mxu0
        %v2860 = vadd.f32 %v2707, %v2859
        %v2861 = vpop.f32.mrb[0].mxu0
        %v2862 = vadd.f32 %v2709, %v2861
        %2863 = vmatprep.mubr.bf16.mxu0 0
        %2864 = vmatmul.mubr.bf16.gmra.mrb[0].mxu0 %v2391
        %v2865 = vpop.f32.mrb[0].mxu0
        %v2866 = vadd.f32 %v2713, %v2865
        %v2867 = vpop.f32.mrb[0].mxu0
        %v2868 = vadd.f32 %v2715, %v2867
        %v2869 = vpop.f32.mrb[0].mxu0
        %v2870 = vadd.f32 %v2717, %v2869
        %v2871 = vpop.f32.mrb[0].mxu0
        %v2872 = vadd.f32 %v2719, %v2871
        %2873 = vdwg.mxu0
        %2874 = vmatprep.subr.bf16.mxu0 %v1921
        %2875 = vmatpush1.bf16.msra.mxu0 %v1920
        %2876 = vmatprep.subr.bf16.mxu0 %v1927
        %2877 = vmatpush1.bf16.msra.mxu0 %v1926
        %2878 = vmatprep.subr.bf16.mxu0 %v1933
        %2879 = vmatpush1.bf16.msra.mxu0 %v1932
        %2880 = vmatprep.subr.bf16.mxu0 %v1939
        %2881 = vmatpush1.bf16.msra.mxu0 %v1938
        %2882 = vmatprep.subr.bf16.mxu0 %v1945
        %2883 = vmatpush1.bf16.msra.mxu0 %v1944
        %2884 = vmatprep.subr.bf16.mxu0 %v1951
        %2885 = vmatpush1.bf16.msra.mxu0 %v1950
        %2886 = vmatprep.subr.bf16.mxu0 %v1957
        %2887 = vmatpush1.bf16.msra.mxu0 %v1956
        %2888 = vmatprep.subr.bf16.mxu0 %v1963
        %2889 = vmatpush1.bf16.msra.mxu0 %v1962
        %2890 = vmatprep.subr.bf16.mxu0 %v1969
        %2891 = vmatpush1.bf16.msra.mxu0 %v1968
        %2892 = vmatprep.subr.bf16.mxu0 %v1975
        %2893 = vmatpush1.bf16.msra.mxu0 %v1974
        %2894 = vmatprep.subr.bf16.mxu0 %v1981
        %2895 = vmatpush1.bf16.msra.mxu0 %v1980
        %2896 = vmatprep.subr.bf16.mxu0 %v1987
        %2897 = vmatpush1.bf16.msra.mxu0 %v1986
        %2898 = vmatprep.subr.bf16.mxu0 %v1993
        %2899 = vmatpush1.bf16.msra.mxu0 %v1992
        %2900 = vmatprep.subr.bf16.mxu0 %v1999
        %2901 = vmatpush1.bf16.msra.mxu0 %v1998
        %2902 = vmatprep.subr.bf16.mxu0 %v2005
        %2903 = vmatpush1.bf16.msra.mxu0 %v2004
        %2904 = vmatprep.subr.bf16.mxu0 %v2011
        %2905 = vmatpush1.bf16.msra.mxu0 %v2010
        %2906 = vmatprep.mubr.bf16.mxu0 %v1162
        %2907 = vmatmul.mubr.bf16.gmra.mrb[0].mxu0 %v1161
        %v2908 = vpop.f32.mrb[0].mxu0
        %v2909 = vadd.f32 %v1233, %v2908
        %v2910 = vpop.f32.mrb[0].mxu0
        %v2911 = vadd.f32 %v1237, %v2910
        %v2912 = vpop.f32.mrb[0].mxu0
        %v2913 = vadd.f32 %v1233, %v2912
        %v2914 = vpop.f32.mrb[0].mxu0
        %v2915 = vadd.f32 %v1237, %v2914
        %2916 = vmatprep.mubr.bf16.mxu0 %v1167
        %2917 = vmatmul.mubr.bf16.gmra.mrb[0].mxu0 %v1166
        %v2918 = vpop.f32.mrb[0].mxu0
        %v2919 = vadd.f32 %v1233, %v2918
        %v2920 = vpop.f32.mrb[0].mxu0
        %v2921 = vadd.f32 %v1237, %v2920
        %v2922 = vpop.f32.mrb[0].mxu0
        %v2923 = vadd.f32 %v1233, %v2922
        %v2924 = vpop.f32.mrb[0].mxu0
        %v2925 = vadd.f32 %v1237, %v2924
        %2926 = vmatprep.mubr.bf16.mxu0 %v1172
        %2927 = vmatmul.mubr.bf16.gmra.mrb[0].mxu0 %v1171
        %v2928 = vpop.f32.mrb[0].mxu0
        %v2929 = vadd.f32 %v1233, %v2928
        %v2930 = vpop.f32.mrb[0].mxu0
        %v2931 = vadd.f32 %v1237, %v2930
        %v2932 = vpop.f32.mrb[0].mxu0
        %v2933 = vadd.f32 %v1233, %v2932
        %v2934 = vpop.f32.mrb[0].mxu0
        %v2935 = vadd.f32 %v1237, %v2934
        %2936 = vmatprep.mubr.bf16.mxu0 %v1177
        %2937 = vmatmul.mubr.bf16.gmra.mrb[0].mxu0 %v1176
        %v2938 = vpop.f32.mrb[0].mxu0
        %v2939 = vadd.f32 %v1233, %v2938
        %v2940 = vpop.f32.mrb[0].mxu0
        %v2941 = vadd.f32 %v1237, %v2940
        %v2942 = vpop.f32.mrb[0].mxu0
        %v2943 = vadd.f32 %v1233, %v2942
        %v2944 = vpop.f32.mrb[0].mxu0
        %v2945 = vadd.f32 %v1237, %v2944
        %2946 = vmatprep.mubr.bf16.mxu0 %v1182
        %2947 = vmatmul.mubr.bf16.gmra.mrb[0].mxu0 %v1181
        %v2948 = vpop.f32.mrb[0].mxu0
        %v2949 = vadd.f32 %v1233, %v2948
        %v2950 = vpop.f32.mrb[0].mxu0
        %v2951 = vadd.f32 %v1237, %v2950
        %v2952 = vpop.f32.mrb[0].mxu0
        %v2953 = vadd.f32 %v1233, %v2952
        %v2954 = vpop.f32.mrb[0].mxu0
        %v2955 = vadd.f32 %v1237, %v2954
        %2956 = vmatprep.mubr.bf16.mxu0 %v1187
        %2957 = vmatmul.mubr.bf16.gmra.mrb[0].mxu0 %v1186
        %v2958 = vpop.f32.mrb[0].mxu0
        %v2959 = vadd.f32 %v1233, %v2958
        %v2960 = vpop.f32.mrb[0].mxu0
        %v2961 = vadd.f32 %v1237, %v2960
        %v2962 = vpop.f32.mrb[0].mxu0
        %v2963 = vadd.f32 %v1233, %v2962
        %v2964 = vpop.f32.mrb[0].mxu0
        %v2965 = vadd.f32 %v1237, %v2964
        %2966 = vmatprep.mubr.bf16.mxu0 %v1192
        %2967 = vmatmul.mubr.bf16.gmra.mrb[0].mxu0 %v1191
        %v2968 = vpop.f32.mrb[0].mxu0
        %v2969 = vadd.f32 %v1233, %v2968
        %v2970 = vpop.f32.mrb[0].mxu0
        %v2971 = vadd.f32 %v1237, %v2970
        %v2972 = vpop.f32.mrb[0].mxu0
        %v2973 = vadd.f32 %v1233, %v2972
        %v2974 = vpop.f32.mrb[0].mxu0
        %v2975 = vadd.f32 %v1237, %v2974
        %2976 = vmatprep.mubr.bf16.mxu0 %v1197
        %2977 = vmatmul.mubr.bf16.gmra.mrb[0].mxu0 %v1196
        %v2978 = vpop.f32.mrb[0].mxu0
        %v2979 = vadd.f32 %v1233, %v2978
        %v2980 = vpop.f32.mrb[0].mxu0
        %v2981 = vadd.f32 %v1237, %v2980
        %v2982 = vpop.f32.mrb[0].mxu0
        %v2983 = vadd.f32 %v1233, %v2982
        %v2984 = vpop.f32.mrb[0].mxu0
        %v2985 = vadd.f32 %v1237, %v2984
        %2986 = vmatprep.mubr.bf16.mxu0 %v1202
        %2987 = vmatmul.mubr.bf16.gmra.mrb[0].mxu0 %v1201
        %v2988 = vpop.f32.mrb[0].mxu0
        %v2989 = vadd.f32 %v1233, %v2988
        %v2990 = vpop.f32.mrb[0].mxu0
        %v2991 = vadd.f32 %v1237, %v2990
        %v2992 = vpop.f32.mrb[0].mxu0
        %v2993 = vadd.f32 %v1233, %v2992
        %v2994 = vpop.f32.mrb[0].mxu0
        %v2995 = vadd.f32 %v1237, %v2994
        %2996 = vmatprep.mubr.bf16.mxu0 %v1207
        %2997 = vmatmul.mubr.bf16.gmra.mrb[0].mxu0 %v1206
        %v2998 = vpop.f32.mrb[0].mxu0
        %v2999 = vadd.f32 %v1233, %v2998
        %v3000 = vpop.f32.mrb[0].mxu0
        %v3001 = vadd.f32 %v1237, %v3000
        %v3002 = vpop.f32.mrb[0].mxu0
        %v3003 = vadd.f32 %v1233, %v3002
        %v3004 = vpop.f32.mrb[0].mxu0
        %v3005 = vadd.f32 %v1237, %v3004
        %3006 = vmatprep.mubr.bf16.mxu0 %v1212
        %3007 = vmatmul.mubr.bf16.gmra.mrb[0].mxu0 %v1211
        %v3008 = vpop.f32.mrb[0].mxu0
        %v3009 = vadd.f32 %v1233, %v3008
        %v3010 = vpop.f32.mrb[0].mxu0
        %v3011 = vadd.f32 %v1237, %v3010
        %v3012 = vpop.f32.mrb[0].mxu0
        %v3013 = vadd.f32 %v1233, %v3012
        %v3014 = vpop.f32.mrb[0].mxu0
        %v3015 = vadd.f32 %v1237, %v3014
        %3016 = vmatprep.mubr.bf16.mxu0 %v1217
        %3017 = vmatmul.mubr.bf16.gmra.mrb[0].mxu0 %v1216
        %v3018 = vpop.f32.mrb[0].mxu0
        %v3019 = vadd.f32 %v1233, %v3018
        %v3020 = vpop.f32.mrb[0].mxu0
        %v3021 = vadd.f32 %v1237, %v3020
        %v3022 = vpop.f32.mrb[0].mxu0
        %v3023 = vadd.f32 %v1233, %v3022
        %v3024 = vpop.f32.mrb[0].mxu0
        %v3025 = vadd.f32 %v1237, %v3024
        %3026 = vdwg.mxu0
        %3027 = vmatprep.subr.bf16.mxu0 %v2017
        %3028 = vmatpush1.bf16.msra.mxu0 %v2016
        %3029 = vmatprep.subr.bf16.mxu0 %v2023
        %3030 = vmatpush1.bf16.msra.mxu0 %v2022
        %3031 = vmatprep.subr.bf16.mxu0 %v2029
        %3032 = vmatpush1.bf16.msra.mxu0 %v2028
        %3033 = vmatprep.subr.bf16.mxu0 %v2035
        %3034 = vmatpush1.bf16.msra.mxu0 %v2034
        %3035 = vmatprep.subr.bf16.mxu0 %v2041
        %3036 = vmatpush1.bf16.msra.mxu0 %v2040
        %3037 = vmatprep.subr.bf16.mxu0 %v2047
        %3038 = vmatpush1.bf16.msra.mxu0 %v2046
        %3039 = vmatprep.subr.bf16.mxu0 %v2053
        %3040 = vmatpush1.bf16.msra.mxu0 %v2052
        %3041 = vmatprep.subr.bf16.mxu0 %v2059
        %3042 = vmatpush1.bf16.msra.mxu0 %v2058
        %3043 = vmatprep.subr.bf16.mxu0 %v2065
        %3044 = vmatpush1.bf16.msra.mxu0 %v2064
        %3045 = vmatprep.subr.bf16.mxu0 %v2071
        %3046 = vmatpush1.bf16.msra.mxu0 %v2070
        %3047 = vmatprep.subr.bf16.mxu0 %v2077
        %3048 = vmatpush1.bf16.msra.mxu0 %v2076
        %3049 = vmatprep.subr.bf16.mxu0 %v2083
        %3050 = vmatpush1.bf16.msra.mxu0 %v2082
        %3051 = vmatprep.subr.bf16.mxu0 %v2089
        %3052 = vmatpush1.bf16.msra.mxu0 %v2088
        %3053 = vmatprep.subr.bf16.mxu0 %v2095
        %3054 = vmatpush1.bf16.msra.mxu0 %v2094
        %3055 = vmatprep.subr.bf16.mxu0 %v2101
        %3056 = vmatpush1.bf16.msra.mxu0 %v2100
        %3057 = vmatprep.subr.bf16.mxu0 %v2107
        %3058 = vmatpush1.bf16.msra.mxu0 %v2106
        %3059 = vmatprep.mubr.bf16.mxu0 %v1164
        %3060 = vmatmul.mubr.bf16.gmra.mrb[0].mxu0 %v1163
        %v3061 = vpop.f32.mrb[0].mxu0
        %v3062 = vadd.f32 %v2909, %v3061
        %v3063 = vpop.f32.mrb[0].mxu0
        %v3064 = vadd.f32 %v2911, %v3063
        %v3065 = vpop.f32.mrb[0].mxu0
        %v3066 = vadd.f32 %v2913, %v3065
        %v3067 = vpop.f32.mrb[0].mxu0
        %v3068 = vadd.f32 %v2915, %v3067
        %3069 = vmatprep.mubr.bf16.mxu0 %v1169
        %3070 = vmatmul.mubr.bf16.gmra.mrb[0].mxu0 %v1168
        %v3071 = vpop.f32.mrb[0].mxu0
        %v3072 = vadd.f32 %v2919, %v3071
        %v3073 = vpop.f32.mrb[0].mxu0
        %v3074 = vadd.f32 %v2921, %v3073
        %v3075 = vpop.f32.mrb[0].mxu0
        %v3076 = vadd.f32 %v2923, %v3075
        %v3077 = vpop.f32.mrb[0].mxu0
        %v3078 = vadd.f32 %v2925, %v3077
        %3079 = vmatprep.mubr.bf16.mxu0 %v1174
        %3080 = vmatmul.mubr.bf16.gmra.mrb[0].mxu0 %v1173
        %v3081 = vpop.f32.mrb[0].mxu0
        %v3082 = vadd.f32 %v2929, %v3081
        %v3083 = vpop.f32.mrb[0].mxu0
        %v3084 = vadd.f32 %v2931, %v3083
        %v3085 = vpop.f32.mrb[0].mxu0
        %v3086 = vadd.f32 %v2933, %v3085
        %v3087 = vpop.f32.mrb[0].mxu0
        %v3088 = vadd.f32 %v2935, %v3087
        %3089 = vmatprep.mubr.bf16.mxu0 %v1179
        %3090 = vmatmul.mubr.bf16.gmra.mrb[0].mxu0 %v1178
        %v3091 = vpop.f32.mrb[0].mxu0
        %v3092 = vadd.f32 %v2939, %v3091
        %v3093 = vpop.f32.mrb[0].mxu0
        %v3094 = vadd.f32 %v2941, %v3093
        %v3095 = vpop.f32.mrb[0].mxu0
        %v3096 = vadd.f32 %v2943, %v3095
        %v3097 = vpop.f32.mrb[0].mxu0
        %v3098 = vadd.f32 %v2945, %v3097
        %3099 = vmatprep.mubr.bf16.mxu0 %v1184
        %3100 = vmatmul.mubr.bf16.gmra.mrb[0].mxu0 %v1183
        %v3101 = vpop.f32.mrb[0].mxu0
        %v3102 = vadd.f32 %v2949, %v3101
        %v3103 = vpop.f32.mrb[0].mxu0
        %v3104 = vadd.f32 %v2951, %v3103
        %v3105 = vpop.f32.mrb[0].mxu0
        %v3106 = vadd.f32 %v2953, %v3105
        %v3107 = vpop.f32.mrb[0].mxu0
        %v3108 = vadd.f32 %v2955, %v3107
        %3109 = vmatprep.mubr.bf16.mxu0 %v1189
        %3110 = vmatmul.mubr.bf16.gmra.mrb[0].mxu0 %v1188
        %v3111 = vpop.f32.mrb[0].mxu0
        %v3112 = vadd.f32 %v2959, %v3111
        %v3113 = vpop.f32.mrb[0].mxu0
        %v3114 = vadd.f32 %v2961, %v3113
        %v3115 = vpop.f32.mrb[0].mxu0
        %v3116 = vadd.f32 %v2963, %v3115
        %v3117 = vpop.f32.mrb[0].mxu0
        %v3118 = vadd.f32 %v2965, %v3117
        %3119 = vmatprep.mubr.bf16.mxu0 %v1194
        %3120 = vmatmul.mubr.bf16.gmra.mrb[0].mxu0 %v1193
        %v3121 = vpop.f32.mrb[0].mxu0
        %v3122 = vadd.f32 %v2969, %v3121
        %v3123 = vpop.f32.mrb[0].mxu0
        %v3124 = vadd.f32 %v2971, %v3123
        %v3125 = vpop.f32.mrb[0].mxu0
        %v3126 = vadd.f32 %v2973, %v3125
        %v3127 = vpop.f32.mrb[0].mxu0
        %v3128 = vadd.f32 %v2975, %v3127
        %3129 = vmatprep.mubr.bf16.mxu0 %v1199
        %3130 = vmatmul.mubr.bf16.gmra.mrb[0].mxu0 %v1198
        %v3131 = vpop.f32.mrb[0].mxu0
        %v3132 = vadd.f32 %v2979, %v3131
        %v3133 = vpop.f32.mrb[0].mxu0
        %v3134 = vadd.f32 %v2981, %v3133
        %v3135 = vpop.f32.mrb[0].mxu0
        %v3136 = vadd.f32 %v2983, %v3135
        %v3137 = vpop.f32.mrb[0].mxu0
        %v3138 = vadd.f32 %v2985, %v3137
        %3139 = vmatprep.mubr.bf16.mxu0 %v1204
        %3140 = vmatmul.mubr.bf16.gmra.mrb[0].mxu0 %v1203
        %v3141 = vpop.f32.mrb[0].mxu0
        %v3142 = vadd.f32 %v2989, %v3141
        %v3143 = vpop.f32.mrb[0].mxu0
        %v3144 = vadd.f32 %v2991, %v3143
        %v3145 = vpop.f32.mrb[0].mxu0
        %v3146 = vadd.f32 %v2993, %v3145
        %v3147 = vpop.f32.mrb[0].mxu0
        %v3148 = vadd.f32 %v2995, %v3147
        %3149 = vmatprep.mubr.bf16.mxu0 %v1209
        %3150 = vmatmul.mubr.bf16.gmra.mrb[0].mxu0 %v1208
        %v3151 = vpop.f32.mrb[0].mxu0
        %v3152 = vadd.f32 %v2999, %v3151
        %v3153 = vpop.f32.mrb[0].mxu0
        %v3154 = vadd.f32 %v3001, %v3153
        %v3155 = vpop.f32.mrb[0].mxu0
        %v3156 = vadd.f32 %v3003, %v3155
        %v3157 = vpop.f32.mrb[0].mxu0
        %v3158 = vadd.f32 %v3005, %v3157
        %3159 = vmatprep.mubr.bf16.mxu0 %v1214
        %3160 = vmatmul.mubr.bf16.gmra.mrb[0].mxu0 %v1213
        %v3161 = vpop.f32.mrb[0].mxu0
        %v3162 = vadd.f32 %v3009, %v3161
        %v3163 = vpop.f32.mrb[0].mxu0
        %v3164 = vadd.f32 %v3011, %v3163
        %v3165 = vpop.f32.mrb[0].mxu0
        %v3166 = vadd.f32 %v3013, %v3165
        %v3167 = vpop.f32.mrb[0].mxu0
        %v3168 = vadd.f32 %v3015, %v3167
        %3169 = vmatprep.mubr.bf16.mxu0 %v1219
        %3170 = vmatmul.mubr.bf16.gmra.mrb[0].mxu0 %v1218
        %v3171 = vpop.f32.mrb[0].mxu0
        %v3172 = vadd.f32 %v3019, %v3171
        %v3173 = vpop.f32.mrb[0].mxu0
        %v3174 = vadd.f32 %v3021, %v3173
        %v3175 = vpop.f32.mrb[0].mxu0
        %v3176 = vadd.f32 %v3023, %v3175
        %v3177 = vpop.f32.mrb[0].mxu0
        %v3178 = vadd.f32 %v3025, %v3177
        %3179 = vdwg.mxu0
        %3180 = vmatprep.subr.bf16.mxu0 %v2113
        %3181 = vmatpush1.bf16.msra.mxu0 %v2112
        %3182 = vmatprep.subr.bf16.mxu0 %v2119
        %3183 = vmatpush1.bf16.msra.mxu0 %v2118
        %3184 = vmatprep.subr.bf16.mxu0 %v2125
        %3185 = vmatpush1.bf16.msra.mxu0 %v2124
        %3186 = vmatprep.subr.bf16.mxu0 %v2131
        %3187 = vmatpush1.bf16.msra.mxu0 %v2130
        %3188 = vmatprep.subr.bf16.mxu0 %v2407
        %3189 = vmatpush1.bf16.msra.mxu0 %v2404
        %3190 = vmatprep.subr.bf16.mxu0 0
        %3191 = vmatpush1.bf16.msra.mxu0 0
        %3192 = vmatprep.subr.bf16.mxu0 0
        %3193 = vmatpush1.bf16.msra.mxu0 0
        %3194 = vmatprep.subr.bf16.mxu0 0
        %3195 = vmatpush1.bf16.msra.mxu0 0
        %3196 = vmatprep.subr.bf16.mxu0 0
        %3197 = vmatpush1.bf16.msra.mxu0 0
        %3198 = vmatprep.subr.bf16.mxu0 0
        %3199 = vmatpush1.bf16.msra.mxu0 0
        %3200 = vmatprep.subr.bf16.mxu0 0
        %3201 = vmatpush1.bf16.msra.mxu0 0
        %3202 = vmatprep.subr.bf16.mxu0 0
        %3203 = vmatpush1.bf16.msra.mxu0 0
        %3204 = vmatprep.subr.bf16.mxu0 0
        %3205 = vmatpush1.bf16.msra.mxu0 0
        %3206 = vmatprep.subr.bf16.mxu0 0
        %3207 = vmatpush1.bf16.msra.mxu0 0
        %3208 = vmatprep.subr.bf16.mxu0 0
        %3209 = vmatpush1.bf16.msra.mxu0 0
        %3210 = vmatprep.subr.bf16.mxu0 0
        %3211 = vmatpush1.bf16.msra.mxu0 0
        %3212 = vmatprep.mubr.bf16.mxu0 0
        %3213 = vmatmul.mubr.bf16.gmra.mrb[0].mxu0 %v2358
        %v3214 = vpop.f32.mrb[0].mxu0
        %v3215 = vadd.f32 %v3062, %v3214
        %v3216 = vpop.f32.mrb[0].mxu0
        %v3217 = vadd.f32 %v3064, %v3216
        %v3218 = vpop.f32.mrb[0].mxu0
        %v3219 = vadd.f32 %v3066, %v3218
        %v3220 = vpop.f32.mrb[0].mxu0
        %v3221 = vadd.f32 %v3068, %v3220
        %3222 = vmatprep.mubr.bf16.mxu0 0
        %3223 = vmatmul.mubr.bf16.gmra.mrb[0].mxu0 %v2361
        %v3224 = vpop.f32.mrb[0].mxu0
        %v3225 = vadd.f32 %v3072, %v3224
        %v3226 = vpop.f32.mrb[0].mxu0
        %v3227 = vadd.f32 %v3074, %v3226
        %v3228 = vpop.f32.mrb[0].mxu0
        %v3229 = vadd.f32 %v3076, %v3228
        %v3230 = vpop.f32.mrb[0].mxu0
        %v3231 = vadd.f32 %v3078, %v3230
        %3232 = vmatprep.mubr.bf16.mxu0 0
        %3233 = vmatmul.mubr.bf16.gmra.mrb[0].mxu0 %v2364
        %v3234 = vpop.f32.mrb[0].mxu0
        %v3235 = vadd.f32 %v3082, %v3234
        %v3236 = vpop.f32.mrb[0].mxu0
        %v3237 = vadd.f32 %v3084, %v3236
        %v3238 = vpop.f32.mrb[0].mxu0
        %v3239 = vadd.f32 %v3086, %v3238
        %v3240 = vpop.f32.mrb[0].mxu0
        %v3241 = vadd.f32 %v3088, %v3240
        %3242 = vmatprep.mubr.bf16.mxu0 0
        %3243 = vmatmul.mubr.bf16.gmra.mrb[0].mxu0 %v2367
        %v3244 = vpop.f32.mrb[0].mxu0
        %v3245 = vadd.f32 %v3092, %v3244
        %v3246 = vpop.f32.mrb[0].mxu0
        %v3247 = vadd.f32 %v3094, %v3246
        %v3248 = vpop.f32.mrb[0].mxu0
        %v3249 = vadd.f32 %v3096, %v3248
        %v3250 = vpop.f32.mrb[0].mxu0
        %v3251 = vadd.f32 %v3098, %v3250
        %3252 = vmatprep.mubr.bf16.mxu0 0
        %3253 = vmatmul.mubr.bf16.gmra.mrb[0].mxu0 %v2370
        %v3254 = vpop.f32.mrb[0].mxu0
        %v3255 = vadd.f32 %v3102, %v3254
        %v3256 = vpop.f32.mrb[0].mxu0
        %v3257 = vadd.f32 %v3104, %v3256
        %v3258 = vpop.f32.mrb[0].mxu0
        %v3259 = vadd.f32 %v3106, %v3258
        %v3260 = vpop.f32.mrb[0].mxu0
        %v3261 = vadd.f32 %v3108, %v3260
        %3262 = vmatprep.mubr.bf16.mxu0 0
        %3263 = vmatmul.mubr.bf16.gmra.mrb[0].mxu0 %v2373
        %v3264 = vpop.f32.mrb[0].mxu0
        %v3265 = vadd.f32 %v3112, %v3264
        %v3266 = vpop.f32.mrb[0].mxu0
        %v3267 = vadd.f32 %v3114, %v3266
        %v3268 = vpop.f32.mrb[0].mxu0
        %v3269 = vadd.f32 %v3116, %v3268
        %v3270 = vpop.f32.mrb[0].mxu0
        %v3271 = vadd.f32 %v3118, %v3270
        %3272 = vmatprep.mubr.bf16.mxu0 0
        %3273 = vmatmul.mubr.bf16.gmra.mrb[0].mxu0 %v2376
        %v3274 = vpop.f32.mrb[0].mxu0
        %v3275 = vadd.f32 %v3122, %v3274
        %v3276 = vpop.f32.mrb[0].mxu0
        %v3277 = vadd.f32 %v3124, %v3276
        %v3278 = vpop.f32.mrb[0].mxu0
        %v3279 = vadd.f32 %v3126, %v3278
        %v3280 = vpop.f32.mrb[0].mxu0
        %v3281 = vadd.f32 %v3128, %v3280
        %3282 = vmatprep.mubr.bf16.mxu0 0
        %3283 = vmatmul.mubr.bf16.gmra.mrb[0].mxu0 %v2379
        %v3284 = vpop.f32.mrb[0].mxu0
        %v3285 = vadd.f32 %v3132, %v3284
        %v3286 = vpop.f32.mrb[0].mxu0
        %v3287 = vadd.f32 %v3134, %v3286
        %v3288 = vpop.f32.mrb[0].mxu0
        %v3289 = vadd.f32 %v3136, %v3288
        %v3290 = vpop.f32.mrb[0].mxu0
        %v3291 = vadd.f32 %v3138, %v3290
        %3292 = vmatprep.mubr.bf16.mxu0 0
        %3293 = vmatmul.mubr.bf16.gmra.mrb[0].mxu0 %v2382
        %v3294 = vpop.f32.mrb[0].mxu0
        %v3295 = vadd.f32 %v3142, %v3294
        %v3296 = vpop.f32.mrb[0].mxu0
        %v3297 = vadd.f32 %v3144, %v3296
        %v3298 = vpop.f32.mrb[0].mxu0
        %v3299 = vadd.f32 %v3146, %v3298
        %v3300 = vpop.f32.mrb[0].mxu0
        %v3301 = vadd.f32 %v3148, %v3300
        %3302 = vmatprep.mubr.bf16.mxu0 0
        %3303 = vmatmul.mubr.bf16.gmra.mrb[0].mxu0 %v2385
        %v3304 = vpop.f32.mrb[0].mxu0
        %v3305 = vadd.f32 %v3152, %v3304
        %v3306 = vpop.f32.mrb[0].mxu0
        %v3307 = vadd.f32 %v3154, %v3306
        %v3308 = vpop.f32.mrb[0].mxu0
        %v3309 = vadd.f32 %v3156, %v3308
        %v3310 = vpop.f32.mrb[0].mxu0
        %v3311 = vadd.f32 %v3158, %v3310
        %3312 = vmatprep.mubr.bf16.mxu0 0
        %3313 = vmatmul.mubr.bf16.gmra.mrb[0].mxu0 %v2388
        %v3314 = vpop.f32.mrb[0].mxu0
        %v3315 = vadd.f32 %v3162, %v3314
        %v3316 = vpop.f32.mrb[0].mxu0
        %v3317 = vadd.f32 %v3164, %v3316
        %v3318 = vpop.f32.mrb[0].mxu0
        %v3319 = vadd.f32 %v3166, %v3318
        %v3320 = vpop.f32.mrb[0].mxu0
        %v3321 = vadd.f32 %v3168, %v3320
        %3322 = vmatprep.mubr.bf16.mxu0 0
        %3323 = vmatmul.mubr.bf16.gmra.mrb[0].mxu0 %v2391
        %v3324 = vpop.f32.mrb[0].mxu0
        %v3325 = vadd.f32 %v3172, %v3324
        %v3326 = vpop.f32.mrb[0].mxu0
        %v3327 = vadd.f32 %v3174, %v3326
        %v3328 = vpop.f32.mrb[0].mxu0
        %v3329 = vadd.f32 %v3176, %v3328
        %v3330 = vpop.f32.mrb[0].mxu0
        %v3331 = vadd.f32 %v3178, %v3330
        %3332 = vdwg.mxu0
        %3333 = vmatprep.subr.bf16.mxu0 %v1923
        %3334 = vmatpush1.bf16.msra.mxu0 %v1922
        %3335 = vmatprep.subr.bf16.mxu0 %v1929
        %3336 = vmatpush1.bf16.msra.mxu0 %v1928
        %3337 = vmatprep.subr.bf16.mxu0 %v1935
        %3338 = vmatpush1.bf16.msra.mxu0 %v1934
        %3339 = vmatprep.subr.bf16.mxu0 %v1941
        %3340 = vmatpush1.bf16.msra.mxu0 %v1940
        %3341 = vmatprep.subr.bf16.mxu0 %v1947
        %3342 = vmatpush1.bf16.msra.mxu0 %v1946
        %3343 = vmatprep.subr.bf16.mxu0 %v1953
        %3344 = vmatpush1.bf16.msra.mxu0 %v1952
        %3345 = vmatprep.subr.bf16.mxu0 %v1959
        %3346 = vmatpush1.bf16.msra.mxu0 %v1958
        %3347 = vmatprep.subr.bf16.mxu0 %v1965
        %3348 = vmatpush1.bf16.msra.mxu0 %v1964
        %3349 = vmatprep.subr.bf16.mxu0 %v1971
        %3350 = vmatpush1.bf16.msra.mxu0 %v1970
        %3351 = vmatprep.subr.bf16.mxu0 %v1977
        %3352 = vmatpush1.bf16.msra.mxu0 %v1976
        %3353 = vmatprep.subr.bf16.mxu0 %v1983
        %3354 = vmatpush1.bf16.msra.mxu0 %v1982
        %3355 = vmatprep.subr.bf16.mxu0 %v1989
        %3356 = vmatpush1.bf16.msra.mxu0 %v1988
        %3357 = vmatprep.subr.bf16.mxu0 %v1995
        %3358 = vmatpush1.bf16.msra.mxu0 %v1994
        %3359 = vmatprep.subr.bf16.mxu0 %v2001
        %3360 = vmatpush1.bf16.msra.mxu0 %v2000
        %3361 = vmatprep.subr.bf16.mxu0 %v2007
        %3362 = vmatpush1.bf16.msra.mxu0 %v2006
        %3363 = vmatprep.subr.bf16.mxu0 %v2013
        %3364 = vmatpush1.bf16.msra.mxu0 %v2012
        %3365 = vmatprep.mubr.bf16.mxu0 %v1162
        %3366 = vmatmul.mubr.bf16.gmra.mrb[0].mxu0 %v1161
        %v3367 = vpop.f32.mrb[0].mxu0
        %v3368 = vadd.f32 %v1241, %v3367
        %v3369 = vpop.f32.mrb[0].mxu0
        %v3370 = vadd.f32 %v1245, %v3369
        %v3371 = vpop.f32.mrb[0].mxu0
        %v3372 = vadd.f32 %v1241, %v3371
        %v3373 = vpop.f32.mrb[0].mxu0
        %v3374 = vadd.f32 %v1245, %v3373
        %3375 = vmatprep.mubr.bf16.mxu0 %v1167
        %3376 = vmatmul.mubr.bf16.gmra.mrb[0].mxu0 %v1166
        %v3377 = vpop.f32.mrb[0].mxu0
        %v3378 = vadd.f32 %v1241, %v3377
        %v3379 = vpop.f32.mrb[0].mxu0
        %v3380 = vadd.f32 %v1245, %v3379
        %v3381 = vpop.f32.mrb[0].mxu0
        %v3382 = vadd.f32 %v1241, %v3381
        %v3383 = vpop.f32.mrb[0].mxu0
        %v3384 = vadd.f32 %v1245, %v3383
        %3385 = vmatprep.mubr.bf16.mxu0 %v1172
        %3386 = vmatmul.mubr.bf16.gmra.mrb[0].mxu0 %v1171
        %v3387 = vpop.f32.mrb[0].mxu0
        %v3388 = vadd.f32 %v1241, %v3387
        %v3389 = vpop.f32.mrb[0].mxu0
        %v3390 = vadd.f32 %v1245, %v3389
        %v3391 = vpop.f32.mrb[0].mxu0
        %v3392 = vadd.f32 %v1241, %v3391
        %v3393 = vpop.f32.mrb[0].mxu0
        %v3394 = vadd.f32 %v1245, %v3393
        %3395 = vmatprep.mubr.bf16.mxu0 %v1177
        %3396 = vmatmul.mubr.bf16.gmra.mrb[0].mxu0 %v1176
        %v3397 = vpop.f32.mrb[0].mxu0
        %v3398 = vadd.f32 %v1241, %v3397
        %v3399 = vpop.f32.mrb[0].mxu0
        %v3400 = vadd.f32 %v1245, %v3399
        %v3401 = vpop.f32.mrb[0].mxu0
        %v3402 = vadd.f32 %v1241, %v3401
        %v3403 = vpop.f32.mrb[0].mxu0
        %v3404 = vadd.f32 %v1245, %v3403
        %3405 = vmatprep.mubr.bf16.mxu0 %v1182
        %3406 = vmatmul.mubr.bf16.gmra.mrb[0].mxu0 %v1181
        %v3407 = vpop.f32.mrb[0].mxu0
        %v3408 = vadd.f32 %v1241, %v3407
        %v3409 = vpop.f32.mrb[0].mxu0
        %v3410 = vadd.f32 %v1245, %v3409
        %v3411 = vpop.f32.mrb[0].mxu0
        %v3412 = vadd.f32 %v1241, %v3411
        %v3413 = vpop.f32.mrb[0].mxu0
        %v3414 = vadd.f32 %v1245, %v3413
        %3415 = vmatprep.mubr.bf16.mxu0 %v1187
        %3416 = vmatmul.mubr.bf16.gmra.mrb[0].mxu0 %v1186
        %v3417 = vpop.f32.mrb[0].mxu0
        %v3418 = vadd.f32 %v1241, %v3417
        %v3419 = vpop.f32.mrb[0].mxu0
        %v3420 = vadd.f32 %v1245, %v3419
        %v3421 = vpop.f32.mrb[0].mxu0
        %v3422 = vadd.f32 %v1241, %v3421
        %v3423 = vpop.f32.mrb[0].mxu0
        %v3424 = vadd.f32 %v1245, %v3423
        %3425 = vmatprep.mubr.bf16.mxu0 %v1192
        %3426 = vmatmul.mubr.bf16.gmra.mrb[0].mxu0 %v1191
        %v3427 = vpop.f32.mrb[0].mxu0
        %v3428 = vadd.f32 %v1241, %v3427
        %v3429 = vpop.f32.mrb[0].mxu0
        %v3430 = vadd.f32 %v1245, %v3429
        %v3431 = vpop.f32.mrb[0].mxu0
        %v3432 = vadd.f32 %v1241, %v3431
        %v3433 = vpop.f32.mrb[0].mxu0
        %v3434 = vadd.f32 %v1245, %v3433
        %3435 = vmatprep.mubr.bf16.mxu0 %v1197
        %3436 = vmatmul.mubr.bf16.gmra.mrb[0].mxu0 %v1196
        %v3437 = vpop.f32.mrb[0].mxu0
        %v3438 = vadd.f32 %v1241, %v3437
        %v3439 = vpop.f32.mrb[0].mxu0
        %v3440 = vadd.f32 %v1245, %v3439
        %v3441 = vpop.f32.mrb[0].mxu0
        %v3442 = vadd.f32 %v1241, %v3441
        %v3443 = vpop.f32.mrb[0].mxu0
        %v3444 = vadd.f32 %v1245, %v3443
        %3445 = vmatprep.mubr.bf16.mxu0 %v1202
        %3446 = vmatmul.mubr.bf16.gmra.mrb[0].mxu0 %v1201
        %v3447 = vpop.f32.mrb[0].mxu0
        %v3448 = vadd.f32 %v1241, %v3447
        %v3449 = vpop.f32.mrb[0].mxu0
        %v3450 = vadd.f32 %v1245, %v3449
        %v3451 = vpop.f32.mrb[0].mxu0
        %v3452 = vadd.f32 %v1241, %v3451
        %v3453 = vpop.f32.mrb[0].mxu0
        %v3454 = vadd.f32 %v1245, %v3453
        %3455 = vmatprep.mubr.bf16.mxu0 %v1207
        %3456 = vmatmul.mubr.bf16.gmra.mrb[0].mxu0 %v1206
        %v3457 = vpop.f32.mrb[0].mxu0
        %v3458 = vadd.f32 %v1241, %v3457
        %v3459 = vpop.f32.mrb[0].mxu0
        %v3460 = vadd.f32 %v1245, %v3459
        %v3461 = vpop.f32.mrb[0].mxu0
        %v3462 = vadd.f32 %v1241, %v3461
        %v3463 = vpop.f32.mrb[0].mxu0
        %v3464 = vadd.f32 %v1245, %v3463
        %3465 = vmatprep.mubr.bf16.mxu0 %v1212
        %3466 = vmatmul.mubr.bf16.gmra.mrb[0].mxu0 %v1211
        %v3467 = vpop.f32.mrb[0].mxu0
        %v3468 = vadd.f32 %v1241, %v3467
        %v3469 = vpop.f32.mrb[0].mxu0
        %v3470 = vadd.f32 %v1245, %v3469
        %v3471 = vpop.f32.mrb[0].mxu0
        %v3472 = vadd.f32 %v1241, %v3471
        %v3473 = vpop.f32.mrb[0].mxu0
        %v3474 = vadd.f32 %v1245, %v3473
        %3475 = vmatprep.mubr.bf16.mxu0 %v1217
        %3476 = vmatmul.mubr.bf16.gmra.mrb[0].mxu0 %v1216
        %v3477 = vpop.f32.mrb[0].mxu0
        %v3478 = vadd.f32 %v1241, %v3477
        %v3479 = vpop.f32.mrb[0].mxu0
        %v3480 = vadd.f32 %v1245, %v3479
        %v3481 = vpop.f32.mrb[0].mxu0
        %v3482 = vadd.f32 %v1241, %v3481
        %v3483 = vpop.f32.mrb[0].mxu0
        %v3484 = vadd.f32 %v1245, %v3483
        %3485 = vdwg.mxu0
        %3486 = vmatprep.subr.bf16.mxu0 %v2019
        %3487 = vmatpush1.bf16.msra.mxu0 %v2018
        %3488 = vmatprep.subr.bf16.mxu0 %v2025
        %3489 = vmatpush1.bf16.msra.mxu0 %v2024
        %3490 = vmatprep.subr.bf16.mxu0 %v2031
        %3491 = vmatpush1.bf16.msra.mxu0 %v2030
        %3492 = vmatprep.subr.bf16.mxu0 %v2037
        %3493 = vmatpush1.bf16.msra.mxu0 %v2036
        %3494 = vmatprep.subr.bf16.mxu0 %v2043
        %3495 = vmatpush1.bf16.msra.mxu0 %v2042
        %3496 = vmatprep.subr.bf16.mxu0 %v2049
        %3497 = vmatpush1.bf16.msra.mxu0 %v2048
        %3498 = vmatprep.subr.bf16.mxu0 %v2055
        %3499 = vmatpush1.bf16.msra.mxu0 %v2054
        %3500 = vmatprep.subr.bf16.mxu0 %v2061
        %3501 = vmatpush1.bf16.msra.mxu0 %v2060
        %3502 = vmatprep.subr.bf16.mxu0 %v2067
        %3503 = vmatpush1.bf16.msra.mxu0 %v2066
        %3504 = vmatprep.subr.bf16.mxu0 %v2073
        %3505 = vmatpush1.bf16.msra.mxu0 %v2072
        %3506 = vmatprep.subr.bf16.mxu0 %v2079
        %3507 = vmatpush1.bf16.msra.mxu0 %v2078
        %3508 = vmatprep.subr.bf16.mxu0 %v2085
        %3509 = vmatpush1.bf16.msra.mxu0 %v2084
        %3510 = vmatprep.subr.bf16.mxu0 %v2091
        %3511 = vmatpush1.bf16.msra.mxu0 %v2090
        %3512 = vmatprep.subr.bf16.mxu0 %v2097
        %3513 = vmatpush1.bf16.msra.mxu0 %v2096
        %3514 = vmatprep.subr.bf16.mxu0 %v2103
        %3515 = vmatpush1.bf16.msra.mxu0 %v2102
        %3516 = vmatprep.subr.bf16.mxu0 %v2109
        %3517 = vmatpush1.bf16.msra.mxu0 %v2108
        %3518 = vmatprep.mubr.bf16.mxu0 %v1164
        %3519 = vmatmul.mubr.bf16.gmra.mrb[0].mxu0 %v1163
        %v3520 = vpop.f32.mrb[0].mxu0
        %v3521 = vadd.f32 %v3368, %v3520
        %v3522 = vpop.f32.mrb[0].mxu0
        %v3523 = vadd.f32 %v3370, %v3522
        %v3524 = vpop.f32.mrb[0].mxu0
        %v3525 = vadd.f32 %v3372, %v3524
        %v3526 = vpop.f32.mrb[0].mxu0
        %v3527 = vadd.f32 %v3374, %v3526
        %3528 = vmatprep.mubr.bf16.mxu0 %v1169
        %3529 = vmatmul.mubr.bf16.gmra.mrb[0].mxu0 %v1168
        %v3530 = vpop.f32.mrb[0].mxu0
        %v3531 = vadd.f32 %v3378, %v3530
        %v3532 = vpop.f32.mrb[0].mxu0
        %v3533 = vadd.f32 %v3380, %v3532
        %v3534 = vpop.f32.mrb[0].mxu0
        %v3535 = vadd.f32 %v3382, %v3534
        %v3536 = vpop.f32.mrb[0].mxu0
        %v3537 = vadd.f32 %v3384, %v3536
        %3538 = vmatprep.mubr.bf16.mxu0 %v1174
        %3539 = vmatmul.mubr.bf16.gmra.mrb[0].mxu0 %v1173
        %v3540 = vpop.f32.mrb[0].mxu0
        %v3541 = vadd.f32 %v3388, %v3540
        %v3542 = vpop.f32.mrb[0].mxu0
        %v3543 = vadd.f32 %v3390, %v3542
        %v3544 = vpop.f32.mrb[0].mxu0
        %v3545 = vadd.f32 %v3392, %v3544
        %v3546 = vpop.f32.mrb[0].mxu0
        %v3547 = vadd.f32 %v3394, %v3546
        %3548 = vmatprep.mubr.bf16.mxu0 %v1179
        %3549 = vmatmul.mubr.bf16.gmra.mrb[0].mxu0 %v1178
        %v3550 = vpop.f32.mrb[0].mxu0
        %v3551 = vadd.f32 %v3398, %v3550
        %v3552 = vpop.f32.mrb[0].mxu0
        %v3553 = vadd.f32 %v3400, %v3552
        %v3554 = vpop.f32.mrb[0].mxu0
        %v3555 = vadd.f32 %v3402, %v3554
        %v3556 = vpop.f32.mrb[0].mxu0
        %v3557 = vadd.f32 %v3404, %v3556
        %3558 = vmatprep.mubr.bf16.mxu0 %v1184
        %3559 = vmatmul.mubr.bf16.gmra.mrb[0].mxu0 %v1183
        %v3560 = vpop.f32.mrb[0].mxu0
        %v3561 = vadd.f32 %v3408, %v3560
        %v3562 = vpop.f32.mrb[0].mxu0
        %v3563 = vadd.f32 %v3410, %v3562
        %v3564 = vpop.f32.mrb[0].mxu0
        %v3565 = vadd.f32 %v3412, %v3564
        %v3566 = vpop.f32.mrb[0].mxu0
        %v3567 = vadd.f32 %v3414, %v3566
        %3568 = vmatprep.mubr.bf16.mxu0 %v1189
        %3569 = vmatmul.mubr.bf16.gmra.mrb[0].mxu0 %v1188
        %v3570 = vpop.f32.mrb[0].mxu0
        %v3571 = vadd.f32 %v3418, %v3570
        %v3572 = vpop.f32.mrb[0].mxu0
        %v3573 = vadd.f32 %v3420, %v3572
        %v3574 = vpop.f32.mrb[0].mxu0
        %v3575 = vadd.f32 %v3422, %v3574
        %v3576 = vpop.f32.mrb[0].mxu0
        %v3577 = vadd.f32 %v3424, %v3576
        %3578 = vmatprep.mubr.bf16.mxu0 %v1194
        %3579 = vmatmul.mubr.bf16.gmra.mrb[0].mxu0 %v1193
        %v3580 = vpop.f32.mrb[0].mxu0
        %v3581 = vadd.f32 %v3428, %v3580
        %v3582 = vpop.f32.mrb[0].mxu0
        %v3583 = vadd.f32 %v3430, %v3582
        %v3584 = vpop.f32.mrb[0].mxu0
        %v3585 = vadd.f32 %v3432, %v3584
        %v3586 = vpop.f32.mrb[0].mxu0
        %v3587 = vadd.f32 %v3434, %v3586
        %3588 = vmatprep.mubr.bf16.mxu0 %v1199
        %3589 = vmatmul.mubr.bf16.gmra.mrb[0].mxu0 %v1198
        %v3590 = vpop.f32.mrb[0].mxu0
        %v3591 = vadd.f32 %v3438, %v3590
        %v3592 = vpop.f32.mrb[0].mxu0
        %v3593 = vadd.f32 %v3440, %v3592
        %v3594 = vpop.f32.mrb[0].mxu0
        %v3595 = vadd.f32 %v3442, %v3594
        %v3596 = vpop.f32.mrb[0].mxu0
        %v3597 = vadd.f32 %v3444, %v3596
        %3598 = vmatprep.mubr.bf16.mxu0 %v1204
        %3599 = vmatmul.mubr.bf16.gmra.mrb[0].mxu0 %v1203
        %v3600 = vpop.f32.mrb[0].mxu0
        %v3601 = vadd.f32 %v3448, %v3600
        %v3602 = vpop.f32.mrb[0].mxu0
        %v3603 = vadd.f32 %v3450, %v3602
        %v3604 = vpop.f32.mrb[0].mxu0
        %v3605 = vadd.f32 %v3452, %v3604
        %v3606 = vpop.f32.mrb[0].mxu0
        %v3607 = vadd.f32 %v3454, %v3606
        %3608 = vmatprep.mubr.bf16.mxu0 %v1209
        %3609 = vmatmul.mubr.bf16.gmra.mrb[0].mxu0 %v1208
        %v3610 = vpop.f32.mrb[0].mxu0
        %v3611 = vadd.f32 %v3458, %v3610
        %v3612 = vpop.f32.mrb[0].mxu0
        %v3613 = vadd.f32 %v3460, %v3612
        %v3614 = vpop.f32.mrb[0].mxu0
        %v3615 = vadd.f32 %v3462, %v3614
        %v3616 = vpop.f32.mrb[0].mxu0
        %v3617 = vadd.f32 %v3464, %v3616
        %3618 = vmatprep.mubr.bf16.mxu0 %v1214
        %3619 = vmatmul.mubr.bf16.gmra.mrb[0].mxu0 %v1213
        %v3620 = vpop.f32.mrb[0].mxu0
        %v3621 = vadd.f32 %v3468, %v3620
        %v3622 = vpop.f32.mrb[0].mxu0
        %v3623 = vadd.f32 %v3470, %v3622
        %v3624 = vpop.f32.mrb[0].mxu0
        %v3625 = vadd.f32 %v3472, %v3624
        %v3626 = vpop.f32.mrb[0].mxu0
        %v3627 = vadd.f32 %v3474, %v3626
        %3628 = vmatprep.mubr.bf16.mxu0 %v1219
        %3629 = vmatmul.mubr.bf16.gmra.mrb[0].mxu0 %v1218
        %v3630 = vpop.f32.mrb[0].mxu0
        %v3631 = vadd.f32 %v3478, %v3630
        %v3632 = vpop.f32.mrb[0].mxu0
        %v3633 = vadd.f32 %v3480, %v3632
        %v3634 = vpop.f32.mrb[0].mxu0
        %v3635 = vadd.f32 %v3482, %v3634
        %v3636 = vpop.f32.mrb[0].mxu0
        %v3637 = vadd.f32 %v3484, %v3636
        %3638 = vdwg.mxu0
        %3639 = vmatprep.subr.bf16.mxu0 %v2115
        %3640 = vmatpush1.bf16.msra.mxu0 %v2114
        %3641 = vmatprep.subr.bf16.mxu0 %v2121
        %3642 = vmatpush1.bf16.msra.mxu0 %v2120
        %3643 = vmatprep.subr.bf16.mxu0 %v2127
        %3644 = vmatpush1.bf16.msra.mxu0 %v2126
        %3645 = vmatprep.subr.bf16.mxu0 %v2133
        %3646 = vmatpush1.bf16.msra.mxu0 %v2132
        %3647 = vmatprep.subr.bf16.mxu0 %v2413
        %3648 = vmatpush1.bf16.msra.mxu0 %v2410
        %3649 = vmatprep.subr.bf16.mxu0 0
        %3650 = vmatpush1.bf16.msra.mxu0 0
        %3651 = vmatprep.subr.bf16.mxu0 0
        %3652 = vmatpush1.bf16.msra.mxu0 0
        %3653 = vmatprep.subr.bf16.mxu0 0
        %3654 = vmatpush1.bf16.msra.mxu0 0
        %3655 = vmatprep.subr.bf16.mxu0 0
        %3656 = vmatpush1.bf16.msra.mxu0 0
        %3657 = vmatprep.subr.bf16.mxu0 0
        %3658 = vmatpush1.bf16.msra.mxu0 0
        %3659 = vmatprep.subr.bf16.mxu0 0
        %3660 = vmatpush1.bf16.msra.mxu0 0
        %3661 = vmatprep.subr.bf16.mxu0 0
        %3662 = vmatpush1.bf16.msra.mxu0 0
        %3663 = vmatprep.subr.bf16.mxu0 0
        %3664 = vmatpush1.bf16.msra.mxu0 0
        %3665 = vmatprep.subr.bf16.mxu0 0
        %3666 = vmatpush1.bf16.msra.mxu0 0
        %3667 = vmatprep.subr.bf16.mxu0 0
        %3668 = vmatpush1.bf16.msra.mxu0 0
        %3669 = vmatprep.subr.bf16.mxu0 0
        %3670 = vmatpush1.bf16.msra.mxu0 0
        %3671 = vmatprep.mubr.bf16.mxu0 0
        %3672 = vmatmul.mubr.bf16.gmra.mrb[0].mxu0 %v2358
        %v3673 = vpop.f32.mrb[0].mxu0
        %v3674 = vadd.f32 %v3521, %v3673
        %v3675 = vpop.f32.mrb[0].mxu0
        %v3676 = vadd.f32 %v3523, %v3675
        %v3677 = vpop.f32.mrb[0].mxu0
        %v3678 = vadd.f32 %v3525, %v3677
        %v3679 = vpop.f32.mrb[0].mxu0
        %v3680 = vadd.f32 %v3527, %v3679
        %3681 = vmatprep.mubr.bf16.mxu0 0
        %3682 = vmatmul.mubr.bf16.gmra.mrb[0].mxu0 %v2361
        %v3683 = vpop.f32.mrb[0].mxu0
        %v3684 = vadd.f32 %v3531, %v3683
        %v3685 = vpop.f32.mrb[0].mxu0
        %v3686 = vadd.f32 %v3533, %v3685
        %v3687 = vpop.f32.mrb[0].mxu0
        %v3688 = vadd.f32 %v3535, %v3687
        %v3689 = vpop.f32.mrb[0].mxu0
        %v3690 = vadd.f32 %v3537, %v3689
        %3691 = vmatprep.mubr.bf16.mxu0 0
        %3692 = vmatmul.mubr.bf16.gmra.mrb[0].mxu0 %v2364
        %v3693 = vpop.f32.mrb[0].mxu0
        %v3694 = vadd.f32 %v3541, %v3693
        %v3695 = vpop.f32.mrb[0].mxu0
        %v3696 = vadd.f32 %v3543, %v3695
        %v3697 = vpop.f32.mrb[0].mxu0
        %v3698 = vadd.f32 %v3545, %v3697
        %v3699 = vpop.f32.mrb[0].mxu0
        %v3700 = vadd.f32 %v3547, %v3699
        %3701 = vmatprep.mubr.bf16.mxu0 0
        %3702 = vmatmul.mubr.bf16.gmra.mrb[0].mxu0 %v2367
        %v3703 = vpop.f32.mrb[0].mxu0
        %v3704 = vadd.f32 %v3551, %v3703
        %v3705 = vpop.f32.mrb[0].mxu0
        %v3706 = vadd.f32 %v3553, %v3705
        %v3707 = vpop.f32.mrb[0].mxu0
        %v3708 = vadd.f32 %v3555, %v3707
        %v3709 = vpop.f32.mrb[0].mxu0
        %v3710 = vadd.f32 %v3557, %v3709
        %3711 = vmatprep.mubr.bf16.mxu0 0
        %3712 = vmatmul.mubr.bf16.gmra.mrb[0].mxu0 %v2370
        %v3713 = vpop.f32.mrb[0].mxu0
        %v3714 = vadd.f32 %v3561, %v3713
        %v3715 = vpop.f32.mrb[0].mxu0
        %v3716 = vadd.f32 %v3563, %v3715
        %v3717 = vpop.f32.mrb[0].mxu0
        %v3718 = vadd.f32 %v3565, %v3717
        %v3719 = vpop.f32.mrb[0].mxu0
        %v3720 = vadd.f32 %v3567, %v3719
        %3721 = vmatprep.mubr.bf16.mxu0 0
        %3722 = vmatmul.mubr.bf16.gmra.mrb[0].mxu0 %v2373
        %v3723 = vpop.f32.mrb[0].mxu0
        %v3724 = vadd.f32 %v3571, %v3723
        %v3725 = vpop.f32.mrb[0].mxu0
        %v3726 = vadd.f32 %v3573, %v3725
        %v3727 = vpop.f32.mrb[0].mxu0
        %v3728 = vadd.f32 %v3575, %v3727
        %v3729 = vpop.f32.mrb[0].mxu0
        %v3730 = vadd.f32 %v3577, %v3729
        %3731 = vmatprep.mubr.bf16.mxu0 0
        %3732 = vmatmul.mubr.bf16.gmra.mrb[0].mxu0 %v2376
        %v3733 = vpop.f32.mrb[0].mxu0
        %v3734 = vadd.f32 %v3581, %v3733
        %v3735 = vpop.f32.mrb[0].mxu0
        %v3736 = vadd.f32 %v3583, %v3735
        %v3737 = vpop.f32.mrb[0].mxu0
        %v3738 = vadd.f32 %v3585, %v3737
        %v3739 = vpop.f32.mrb[0].mxu0
        %v3740 = vadd.f32 %v3587, %v3739
        %3741 = vmatprep.mubr.bf16.mxu0 0
        %3742 = vmatmul.mubr.bf16.gmra.mrb[0].mxu0 %v2379
        %v3743 = vpop.f32.mrb[0].mxu0
        %v3744 = vadd.f32 %v3591, %v3743
        %v3745 = vpop.f32.mrb[0].mxu0
        %v3746 = vadd.f32 %v3593, %v3745
        %v3747 = vpop.f32.mrb[0].mxu0
        %v3748 = vadd.f32 %v3595, %v3747
        %v3749 = vpop.f32.mrb[0].mxu0
        %v3750 = vadd.f32 %v3597, %v3749
        %3751 = vmatprep.mubr.bf16.mxu0 0
        %3752 = vmatmul.mubr.bf16.gmra.mrb[0].mxu0 %v2382
        %v3753 = vpop.f32.mrb[0].mxu0
        %v3754 = vadd.f32 %v3601, %v3753
        %v3755 = vpop.f32.mrb[0].mxu0
        %v3756 = vadd.f32 %v3603, %v3755
        %v3757 = vpop.f32.mrb[0].mxu0
        %v3758 = vadd.f32 %v3605, %v3757
        %v3759 = vpop.f32.mrb[0].mxu0
        %v3760 = vadd.f32 %v3607, %v3759
        %3761 = vmatprep.mubr.bf16.mxu0 0
        %3762 = vmatmul.mubr.bf16.gmra.mrb[0].mxu0 %v2385
        %v3763 = vpop.f32.mrb[0].mxu0
        %v3764 = vadd.f32 %v3611, %v3763
        %v3765 = vpop.f32.mrb[0].mxu0
        %v3766 = vadd.f32 %v3613, %v3765
        %v3767 = vpop.f32.mrb[0].mxu0
        %v3768 = vadd.f32 %v3615, %v3767
        %v3769 = vpop.f32.mrb[0].mxu0
        %v3770 = vadd.f32 %v3617, %v3769
        %3771 = vmatprep.mubr.bf16.mxu0 0
        %3772 = vmatmul.mubr.bf16.gmra.mrb[0].mxu0 %v2388
        %v3773 = vpop.f32.mrb[0].mxu0
        %v3774 = vadd.f32 %v3621, %v3773
        %v3775 = vpop.f32.mrb[0].mxu0
        %v3776 = vadd.f32 %v3623, %v3775
        %v3777 = vpop.f32.mrb[0].mxu0
        %v3778 = vadd.f32 %v3625, %v3777
        %v3779 = vpop.f32.mrb[0].mxu0
        %v3780 = vadd.f32 %v3627, %v3779
        %3781 = vmatprep.mubr.bf16.mxu0 0
        %3782 = vmatmul.mubr.bf16.gmra.mrb[0].mxu0 %v2391
        %v3783 = vpop.f32.mrb[0].mxu0
        %v3784 = vadd.f32 %v3631, %v3783
        %v3785 = vpop.f32.mrb[0].mxu0
        %v3786 = vadd.f32 %v3633, %v3785
        %v3787 = vpop.f32.mrb[0].mxu0
        %v3788 = vadd.f32 %v3635, %v3787
        %v3789 = vpop.f32.mrb[0].mxu0
        %v3790 = vadd.f32 %v3637, %v3789
        %3791 = vdwg.mxu0
        %v3792 = vmax.f32 %v2756, 0.0
        %v3793 = vmax.f32 %v2758, 0.0
        %v3794 = vmax.f32 %v3215, 0.0
        %v3795 = vmax.f32 %v3217, 0.0
        %v3796 = vmax.f32 %v3674, 0.0
        %v3797 = vmax.f32 %v3676, 0.0
        %v3798 = vmax.f32 %v2760, 0.0
        %v3799 = vmax.f32 %v2762, 0.0
        %v3800 = vmax.f32 %v3219, 0.0
        %v3801 = vmax.f32 %v3221, 0.0
        %v3802 = vmax.f32 %v3678, 0.0
        %v3803 = vmax.f32 %v3680, 0.0
        %v3804 = vmax.f32 %v2766, 0.0
        %v3805 = vmax.f32 %v2768, 0.0
        %v3806 = vmax.f32 %v3225, 0.0
        %v3807 = vmax.f32 %v3227, 0.0
        %v3808 = vmax.f32 %v3684, 0.0
        %v3809 = vmax.f32 %v3686, 0.0
        %v3810 = vmax.f32 %v2770, 0.0
        %v3811 = vmax.f32 %v2772, 0.0
        %v3812 = vmax.f32 %v3229, 0.0
        %v3813 = vmax.f32 %v3231, 0.0
        %v3814 = vmax.f32 %v3688, 0.0
        %v3815 = vmax.f32 %v3690, 0.0
        %v3816 = vmax.f32 %v2776, 0.0
        %v3817 = vmax.f32 %v2778, 0.0
        %v3818 = vmax.f32 %v3235, 0.0
        %v3819 = vmax.f32 %v3237, 0.0
        %v3820 = vmax.f32 %v3694, 0.0
        %v3821 = vmax.f32 %v3696, 0.0
        %v3822 = vmax.f32 %v2780, 0.0
        %v3823 = vmax.f32 %v2782, 0.0
        %v3824 = vmax.f32 %v3239, 0.0
        %v3825 = vmax.f32 %v3241, 0.0
        %v3826 = vmax.f32 %v3698, 0.0
        %v3827 = vmax.f32 %v3700, 0.0
        %v3828 = vmax.f32 %v2786, 0.0
        %v3829 = vmax.f32 %v2788, 0.0
        %v3830 = vmax.f32 %v3245, 0.0
        %v3831 = vmax.f32 %v3247, 0.0
        %v3832 = vmax.f32 %v3704, 0.0
        %v3833 = vmax.f32 %v3706, 0.0
        %v3834 = vmax.f32 %v2790, 0.0
        %v3835 = vmax.f32 %v2792, 0.0
        %v3836 = vmax.f32 %v3249, 0.0
        %v3837 = vmax.f32 %v3251, 0.0
        %v3838 = vmax.f32 %v3708, 0.0
        %v3839 = vmax.f32 %v3710, 0.0
        %v3840 = vmax.f32 %v2796, 0.0
        %v3841 = vmax.f32 %v2798, 0.0
        %v3842 = vmax.f32 %v3255, 0.0
        %v3843 = vmax.f32 %v3257, 0.0
        %v3844 = vmax.f32 %v3714, 0.0
        %v3845 = vmax.f32 %v3716, 0.0
        %v3846 = vmax.f32 %v2800, 0.0
        %v3847 = vmax.f32 %v2802, 0.0
        %v3848 = vmax.f32 %v3259, 0.0
        %v3849 = vmax.f32 %v3261, 0.0
        %v3850 = vmax.f32 %v3718, 0.0
        %v3851 = vmax.f32 %v3720, 0.0
        %v3852 = vmax.f32 %v2806, 0.0
        %v3853 = vmax.f32 %v2808, 0.0
        %v3854 = vmax.f32 %v3265, 0.0
        %v3855 = vmax.f32 %v3267, 0.0
        %v3856 = vmax.f32 %v3724, 0.0
        %v3857 = vmax.f32 %v3726, 0.0
        %v3858 = vmax.f32 %v2810, 0.0
        %v3859 = vmax.f32 %v2812, 0.0
        %v3860 = vmax.f32 %v3269, 0.0
        %v3861 = vmax.f32 %v3271, 0.0
        %v3862 = vmax.f32 %v3728, 0.0
        %v3863 = vmax.f32 %v3730, 0.0
        %v3864 = vmax.f32 %v2816, 0.0
        %v3865 = vmax.f32 %v2818, 0.0
        %v3866 = vmax.f32 %v3275, 0.0
        %v3867 = vmax.f32 %v3277, 0.0
        %v3868 = vmax.f32 %v3734, 0.0
        %v3869 = vmax.f32 %v3736, 0.0
        %v3870 = vmax.f32 %v2820, 0.0
        %v3871 = vmax.f32 %v2822, 0.0
        %v3872 = vmax.f32 %v3279, 0.0
        %v3873 = vmax.f32 %v3281, 0.0
        %v3874 = vmax.f32 %v3738, 0.0
        %v3875 = vmax.f32 %v3740, 0.0
        %v3876 = vmax.f32 %v2826, 0.0
        %v3877 = vmax.f32 %v2828, 0.0
        %v3878 = vmax.f32 %v3285, 0.0
        %v3879 = vmax.f32 %v3287, 0.0
        %v3880 = vmax.f32 %v3744, 0.0
        %v3881 = vmax.f32 %v3746, 0.0
        %v3882 = vmax.f32 %v2830, 0.0
        %v3883 = vmax.f32 %v2832, 0.0
        %v3884 = vmax.f32 %v3289, 0.0
        %v3885 = vmax.f32 %v3291, 0.0
        %v3886 = vmax.f32 %v3748, 0.0
        %v3887 = vmax.f32 %v3750, 0.0
        %v3888 = vmax.f32 %v2836, 0.0
        %v3889 = vmax.f32 %v2838, 0.0
        %v3890 = vmax.f32 %v3295, 0.0
        %v3891 = vmax.f32 %v3297, 0.0
        %v3892 = vmax.f32 %v3754, 0.0
        %v3893 = vmax.f32 %v3756, 0.0
        %v3894 = vmax.f32 %v2840, 0.0
        %v3895 = vmax.f32 %v2842, 0.0
        %v3896 = vmax.f32 %v3299, 0.0
        %v3897 = vmax.f32 %v3301, 0.0
        %v3898 = vmax.f32 %v3758, 0.0
        %v3899 = vmax.f32 %v3760, 0.0
        %v3900 = vmax.f32 %v2846, 0.0
        %v3901 = vmax.f32 %v2848, 0.0
        %v3902 = vmax.f32 %v3305, 0.0
        %v3903 = vmax.f32 %v3307, 0.0
        %v3904 = vmax.f32 %v3764, 0.0
        %v3905 = vmax.f32 %v3766, 0.0
        %v3906 = vmax.f32 %v2850, 0.0
        %v3907 = vmax.f32 %v2852, 0.0
        %v3908 = vmax.f32 %v3309, 0.0
        %v3909 = vmax.f32 %v3311, 0.0
        %v3910 = vmax.f32 %v3768, 0.0
        %v3911 = vmax.f32 %v3770, 0.0
        %v3912 = vmax.f32 %v2856, 0.0
        %v3913 = vmax.f32 %v2858, 0.0
        %v3914 = vmax.f32 %v3315, 0.0
        %v3915 = vmax.f32 %v3317, 0.0
        %v3916 = vmax.f32 %v3774, 0.0
        %v3917 = vmax.f32 %v3776, 0.0
        %v3918 = vmax.f32 %v2860, 0.0
        %v3919 = vmax.f32 %v2862, 0.0
        %v3920 = vmax.f32 %v3319, 0.0
        %v3921 = vmax.f32 %v3321, 0.0
        %v3922 = vmax.f32 %v3778, 0.0
        %v3923 = vmax.f32 %v3780, 0.0
        %v3924 = vmax.f32 %v2866, 0.0
        %v3925 = vmax.f32 %v2868, 0.0
        %v3926 = vmax.f32 %v3325, 0.0
        %v3927 = vmax.f32 %v3327, 0.0
        %v3928 = vmax.f32 %v3784, 0.0
        %v3929 = vmax.f32 %v3786, 0.0
        %v3930 = vmax.f32 %v2870, 0.0
        %v3931 = vmax.f32 %v2872, 0.0
        %v3932 = vmax.f32 %v3329, 0.0
        %v3933 = vmax.f32 %v3331, 0.0
        %v3934 = vmax.f32 %v3788, 0.0
        %v3935 = vmax.f32 %v3790, 0.0
        %v3936 = vpack.c.bf16 %v3798, %v3792
        %v3937 = vpack.c.bf16 %v3799, %v3793
        %v3938 = vpack.c.bf16 %v3800, %v3794
        %v3939 = vpack.c.bf16 %v3801, %v3795
        %v3940 = vpack.c.bf16 %v3802, %v3796
        %v3941 = vpack.c.bf16 %v3803, %v3797
        %v3942 = vpack.c.bf16 %v3810, %v3804
        %v3943 = vpack.c.bf16 %v3811, %v3805
        %v3944 = vpack.c.bf16 %v3812, %v3806
        %v3945 = vpack.c.bf16 %v3813, %v3807
        %v3946 = vpack.c.bf16 %v3814, %v3808
        %v3947 = vpack.c.bf16 %v3815, %v3809
        %v3948 = vpack.c.bf16 %v3822, %v3816
        %v3949 = vpack.c.bf16 %v3823, %v3817
        %v3950 = vpack.c.bf16 %v3824, %v3818
        %v3951 = vpack.c.bf16 %v3825, %v3819
        %v3952 = vpack.c.bf16 %v3826, %v3820
        %v3953 = vpack.c.bf16 %v3827, %v3821
        %v3954 = vpack.c.bf16 %v3834, %v3828
        %v3955 = vpack.c.bf16 %v3835, %v3829
        %v3956 = vpack.c.bf16 %v3836, %v3830
        %v3957 = vpack.c.bf16 %v3837, %v3831
        %v3958 = vpack.c.bf16 %v3838, %v3832
        %v3959 = vpack.c.bf16 %v3839, %v3833
        %v3960 = vpack.c.bf16 %v3846, %v3840
        %v3961 = vpack.c.bf16 %v3847, %v3841
        %v3962 = vpack.c.bf16 %v3848, %v3842
        %v3963 = vpack.c.bf16 %v3849, %v3843
        %v3964 = vpack.c.bf16 %v3850, %v3844
        %v3965 = vpack.c.bf16 %v3851, %v3845
        %v3966 = vpack.c.bf16 %v3858, %v3852
        %v3967 = vpack.c.bf16 %v3859, %v3853
        %v3968 = vpack.c.bf16 %v3860, %v3854
        %v3969 = vpack.c.bf16 %v3861, %v3855
        %v3970 = vpack.c.bf16 %v3862, %v3856
        %v3971 = vpack.c.bf16 %v3863, %v3857
        %v3972 = vpack.c.bf16 %v3870, %v3864
        %v3973 = vpack.c.bf16 %v3871, %v3865
        %v3974 = vpack.c.bf16 %v3872, %v3866
        %v3975 = vpack.c.bf16 %v3873, %v3867
        %v3976 = vpack.c.bf16 %v3874, %v3868
        %v3977 = vpack.c.bf16 %v3875, %v3869
        %v3978 = vpack.c.bf16 %v3882, %v3876
        %v3979 = vpack.c.bf16 %v3883, %v3877
        %v3980 = vpack.c.bf16 %v3884, %v3878
        %v3981 = vpack.c.bf16 %v3885, %v3879
        %v3982 = vpack.c.bf16 %v3886, %v3880
        %v3983 = vpack.c.bf16 %v3887, %v3881
        %v3984 = vpack.c.bf16 %v3894, %v3888
        %v3985 = vpack.c.bf16 %v3895, %v3889
        %v3986 = vpack.c.bf16 %v3896, %v3890
        %v3987 = vpack.c.bf16 %v3897, %v3891
        %v3988 = vpack.c.bf16 %v3898, %v3892
        %v3989 = vpack.c.bf16 %v3899, %v3893
        %v3990 = vpack.c.bf16 %v3906, %v3900
        %v3991 = vpack.c.bf16 %v3907, %v3901
        %v3992 = vpack.c.bf16 %v3908, %v3902
        %v3993 = vpack.c.bf16 %v3909, %v3903
        %v3994 = vpack.c.bf16 %v3910, %v3904
        %v3995 = vpack.c.bf16 %v3911, %v3905
        %v3996 = vpack.c.bf16 %v3918, %v3912
        %v3997 = vpack.c.bf16 %v3919, %v3913
        %v3998 = vpack.c.bf16 %v3920, %v3914
        %v3999 = vpack.c.bf16 %v3921, %v3915
        %v4000 = vpack.c.bf16 %v3922, %v3916
        %v4001 = vpack.c.bf16 %v3923, %v3917
        %v4002 = vpack.c.bf16 %v3930, %v3924
        %v4003 = vpack.c.bf16 %v3931, %v3925
        %v4004 = vpack.c.bf16 %v3932, %v3926
        %v4005 = vpack.c.bf16 %v3933, %v3927
        %v4006 = vpack.c.bf16 %v3934, %v3928
        %v4007 = vpack.c.bf16 %v3935, %v3929
        %4008 = vst [vmem:[#allocation2] sm:$0xff] %v3936
        %4009 = vst [vmem:[#allocation2 + $0x8] sm:$0xff] %v3937
        %4010 = vst [vmem:[#allocation2 + $0x10] sm:$0xff] %v3938
        %4011 = vst [vmem:[#allocation2 + $0x18] sm:$0xff] %v3939
        %4012 = vst [vmem:[#allocation2 + $0x20] sm:$0xff] %v3940
        %4013 = vst [vmem:[#allocation2 + $0x28] sm:$0xff] %v3941
        %4014 = vst [vmem:[#allocation2 + $0x30] sm:$0xff] %v3942
        %4015 = vst [vmem:[#allocation2 + $0x38] sm:$0xff] %v3943
        %4016 = vst [vmem:[#allocation2 + $0x40] sm:$0xff] %v3944
        %4017 = vst [vmem:[#allocation2 + $0x48] sm:$0xff] %v3945
        %4018 = vst [vmem:[#allocation2 + $0x50] sm:$0xff] %v3946
        %4019 = vst [vmem:[#allocation2 + $0x58] sm:$0xff] %v3947
        %4020 = vst [vmem:[#allocation2 + $0x60] sm:$0xff] %v3948
        %4021 = vst [vmem:[#allocation2 + $0x68] sm:$0xff] %v3949
        %4022 = vst [vmem:[#allocation2 + $0x70] sm:$0xff] %v3950
        %4023 = vst [vmem:[#allocation2 + $0x78] sm:$0xff] %v3951
        %4024 = vst [vmem:[#allocation2 + $0x80] sm:$0xff] %v3952
        %4025 = vst [vmem:[#allocation2 + $0x88] sm:$0xff] %v3953
        %4026 = vst [vmem:[#allocation2 + $0x90] sm:$0xff] %v3954
        %4027 = vst [vmem:[#allocation2 + $0x98] sm:$0xff] %v3955
        %4028 = vst [vmem:[#allocation2 + $0xa0] sm:$0xff] %v3956
        %4029 = vst [vmem:[#allocation2 + $0xa8] sm:$0xff] %v3957
        %4030 = vst [vmem:[#allocation2 + $0xb0] sm:$0xff] %v3958
        %4031 = vst [vmem:[#allocation2 + $0xb8] sm:$0xff] %v3959
        %4032 = vst [vmem:[#allocation2 + $0xc0] sm:$0xff] %v3960
        %4033 = vst [vmem:[#allocation2 + $0xc8] sm:$0xff] %v3961
        %4034 = vst [vmem:[#allocation2 + $0xd0] sm:$0xff] %v3962
        %4035 = vst [vmem:[#allocation2 + $0xd8] sm:$0xff] %v3963
        %4036 = vst [vmem:[#allocation2 + $0xe0] sm:$0xff] %v3964
        %4037 = vst [vmem:[#allocation2 + $0xe8] sm:$0xff] %v3965
        %4038 = vst [vmem:[#allocation2 + $0xf0] sm:$0xff] %v3966
        %4039 = vst [vmem:[#allocation2 + $0xf8] sm:$0xff] %v3967
        %4040 = vst [vmem:[#allocation2 + $0x100] sm:$0xff] %v3968
        %4041 = vst [vmem:[#allocation2 + $0x108] sm:$0xff] %v3969
        %4042 = vst [vmem:[#allocation2 + $0x110] sm:$0xff] %v3970
        %4043 = vst [vmem:[#allocation2 + $0x118] sm:$0xff] %v3971
        %4044 = vst [vmem:[#allocation2 + $0x120] sm:$0xff] %v3972
        %4045 = vst [vmem:[#allocation2 + $0x128] sm:$0xff] %v3973
        %4046 = vst [vmem:[#allocation2 + $0x130] sm:$0xff] %v3974
        %4047 = vst [vmem:[#allocation2 + $0x138] sm:$0xff] %v3975
        %4048 = vst [vmem:[#allocation2 + $0x140] sm:$0xff] %v3976
        %4049 = vst [vmem:[#allocation2 + $0x148] sm:$0xff] %v3977
        %4050 = vst [vmem:[#allocation2 + $0x150] sm:$0xff] %v3978
        %4051 = vst [vmem:[#allocation2 + $0x158] sm:$0xff] %v3979
        %4052 = vst [vmem:[#allocation2 + $0x160] sm:$0xff] %v3980
        %4053 = vst [vmem:[#allocation2 + $0x168] sm:$0xff] %v3981
        %4054 = vst [vmem:[#allocation2 + $0x170] sm:$0xff] %v3982
        %4055 = vst [vmem:[#allocation2 + $0x178] sm:$0xff] %v3983
        %4056 = vst [vmem:[#allocation2 + $0x180] sm:$0xff] %v3984
        %4057 = vst [vmem:[#allocation2 + $0x188] sm:$0xff] %v3985
        %4058 = vst [vmem:[#allocation2 + $0x190] sm:$0xff] %v3986
        %4059 = vst [vmem:[#allocation2 + $0x198] sm:$0xff] %v3987
        %4060 = vst [vmem:[#allocation2 + $0x1a0] sm:$0xff] %v3988
        %4061 = vst [vmem:[#allocation2 + $0x1a8] sm:$0xff] %v3989
        %4062 = vst [vmem:[#allocation2 + $0x1b0] sm:$0xff] %v3990
        %4063 = vst [vmem:[#allocation2 + $0x1b8] sm:$0xff] %v3991
        %4064 = vst [vmem:[#allocation2 + $0x1c0] sm:$0xff] %v3992
        %4065 = vst [vmem:[#allocation2 + $0x1c8] sm:$0xff] %v3993
        %4066 = vst [vmem:[#allocation2 + $0x1d0] sm:$0xff] %v3994
        %4067 = vst [vmem:[#allocation2 + $0x1d8] sm:$0xff] %v3995
        %4068 = vst [vmem:[#allocation2 + $0x1e0] sm:$0xff] %v3996
        %4069 = vst [vmem:[#allocation2 + $0x1e8] sm:$0xff] %v3997
        %4070 = vst [vmem:[#allocation2 + $0x1f0] sm:$0xff] %v3998
        %4071 = vst [vmem:[#allocation2 + $0x1f8] sm:$0xff] %v3999
        %4072 = vst [vmem:[#allocation2 + $0x200] sm:$0xff] %v4000
        %4073 = vst [vmem:[#allocation2 + $0x208] sm:$0xff] %v4001
        %4074 = vst [vmem:[#allocation2 + $0x210] sm:$0xff] %v4002
        %4075 = vst [vmem:[#allocation2 + $0x218] sm:$0xff] %v4003
        %4076 = vst [vmem:[#allocation2 + $0x220] sm:$0xff] %v4004
        %4077 = vst [vmem:[#allocation2 + $0x228] sm:$0xff] %v4005
        %4078 = vst [vmem:[#allocation2 + $0x230] sm:$0xff] %v4006
        %4079 = vst [vmem:[#allocation2 + $0x238] sm:$0xff] %v4007
        %s4080 = scalar_lea.vmem %s745, 960 [#allocation4]
        %v4081 = vld [vmem:[%s4080] sm:$0xff]
        %v4082 = vld [vmem:[%s4080 + $0x8] sm:$0xff]
        %v4083 = vld [vmem:[%s4080 + $0x10] sm:$0xff]
        %v4084 = vld [vmem:[%s4080 + $0x18] sm:$0xff]
        %v4085 = vld [vmem:[%s4080 + $0x20] sm:$0xff]
        %v4086 = vld [vmem:[%s4080 + $0x28] sm:$0xff]
        %v4087 = vld [vmem:[%s4080 + $0x30] sm:$0xff]
        %v4088 = vld [vmem:[%s4080 + $0x38] sm:$0xff]
        %v4089 = vld [vmem:[%s4080 + $0x40] sm:$0xff]
        %v4090 = vld [vmem:[%s4080 + $0x48] sm:$0xff]
        %v4091 = vld [vmem:[%s4080 + $0x50] sm:$0xff]
        %v4092 = vld [vmem:[%s4080 + $0x58] sm:$0xff]
        %v4093 = vld [vmem:[%s4080 + $0x60] sm:$0xff]
        %v4094 = vld [vmem:[%s4080 + $0x68] sm:$0xff]
        %v4095 = vld [vmem:[%s4080 + $0x70] sm:$0xff]
        %v4096 = vld [vmem:[%s4080 + $0x78] sm:$0xff]
        %v4097 = vld [vmem:[%s4080 + $0x80] sm:$0xff]
        %v4098 = vld [vmem:[%s4080 + $0x88] sm:$0xff]
        %v4099 = vld [vmem:[%s4080 + $0x90] sm:$0xff]
        %v4100 = vld [vmem:[%s4080 + $0x98] sm:$0xff]
        %v4101 = vld [vmem:[%s4080 + $0xa0] sm:$0xff]
        %v4102 = vld [vmem:[%s4080 + $0xa8] sm:$0xff]
        %v4103 = vld [vmem:[%s4080 + $0xb0] sm:$0xff]
        %v4104 = vld [vmem:[%s4080 + $0xb8] sm:$0xff]
        %v4105 = vld [vmem:[%s4080 + $0xc0] sm:$0xff]
        %v4106 = vld [vmem:[%s4080 + $0xc8] sm:$0xff]
        %v4107 = vld [vmem:[%s4080 + $0xd0] sm:$0xff]
        %v4108 = vld [vmem:[%s4080 + $0xd8] sm:$0xff]
        %v4109 = vld [vmem:[%s4080 + $0xe0] sm:$0xff]
        %v4110 = vld [vmem:[%s4080 + $0xe8] sm:$0xff]
        %v4111 = vld [vmem:[%s4080 + $0xf0] sm:$0xff]
        %v4112 = vld [vmem:[%s4080 + $0xf8] sm:$0xff]
        %v4113 = vld [vmem:[%s4080 + $0x100] sm:$0xff]
        %v4114 = vld [vmem:[%s4080 + $0x108] sm:$0xff]
        %v4115 = vld [vmem:[%s4080 + $0x110] sm:$0xff]
        %v4116 = vld [vmem:[%s4080 + $0x118] sm:$0xff]
        %v4117 = vld [vmem:[%s4080 + $0x120] sm:$0xff]
        %v4118 = vld [vmem:[%s4080 + $0x128] sm:$0xff]
        %v4119 = vld [vmem:[%s4080 + $0x130] sm:$0xff]
        %v4120 = vld [vmem:[%s4080 + $0x138] sm:$0xff]
        %v4121 = vld [vmem:[%s4080 + $0x140] sm:$0xff]
        %v4122 = vld [vmem:[%s4080 + $0x148] sm:$0xff]
        %v4123 = vld [vmem:[%s4080 + $0x150] sm:$0xff]
        %v4124 = vld [vmem:[%s4080 + $0x158] sm:$0xff]
        %v4125 = vld [vmem:[%s4080 + $0x160] sm:$0xff]
        %v4126 = vld [vmem:[%s4080 + $0x168] sm:$0xff]
        %v4127 = vld [vmem:[%s4080 + $0x170] sm:$0xff]
        %v4128 = vld [vmem:[%s4080 + $0x178] sm:$0xff]
        %v4129 = vld [vmem:[%s4080 + $0x180] sm:$0xff]
        %v4130 = vld [vmem:[%s4080 + $0x188] sm:$0xff]
        %v4131 = vld [vmem:[%s4080 + $0x190] sm:$0xff]
        %v4132 = vld [vmem:[%s4080 + $0x198] sm:$0xff]
        %v4133 = vld [vmem:[%s4080 + $0x1a0] sm:$0xff]
        %v4134 = vld [vmem:[%s4080 + $0x1a8] sm:$0xff]
        %v4135 = vld [vmem:[%s4080 + $0x1b0] sm:$0xff]
        %v4136 = vld [vmem:[%s4080 + $0x1b8] sm:$0xff]
        %v4137 = vld [vmem:[%s4080 + $0x1c0] sm:$0xff]
        %v4138 = vld [vmem:[%s4080 + $0x1c8] sm:$0xff]
        %v4139 = vld [vmem:[%s4080 + $0x1d0] sm:$0xff]
        %v4140 = vld [vmem:[%s4080 + $0x1d8] sm:$0xff]
        %v4141 = vld [vmem:[%s4080 + $0x1e0] sm:$0xff]
        %v4142 = vld [vmem:[%s4080 + $0x1e8] sm:$0xff]
        %v4143 = vld [vmem:[%s4080 + $0x1f0] sm:$0xff]
        %v4144 = vld [vmem:[%s4080 + $0x1f8] sm:$0xff]
        %v4145 = vld [vmem:[%s4080 + $0x200] sm:$0xff]
        %v4146 = vld [vmem:[%s4080 + $0x208] sm:$0xff]
        %v4147 = vld [vmem:[%s4080 + $0x210] sm:$0xff]
        %v4148 = vld [vmem:[%s4080 + $0x218] sm:$0xff]
        %v4149 = vld [vmem:[%s4080 + $0x220] sm:$0xff]
        %v4150 = vld [vmem:[%s4080 + $0x228] sm:$0xff]
        %v4151 = vld [vmem:[%s4080 + $0x230] sm:$0xff]
        %v4152 = vld [vmem:[%s4080 + $0x238] sm:$0xff]
        %v4153 = vld [vmem:[%s4080 + $0x240] sm:$0xff]
        %v4154 = vld [vmem:[%s4080 + $0x248] sm:$0xff]
        %v4155 = vld [vmem:[%s4080 + $0x250] sm:$0xff]
        %v4156 = vld [vmem:[%s4080 + $0x258] sm:$0xff]
        %v4157 = vld [vmem:[%s4080 + $0x260] sm:$0xff]
        %v4158 = vld [vmem:[%s4080 + $0x268] sm:$0xff]
        %v4159 = vld [vmem:[%s4080 + $0x270] sm:$0xff]
        %v4160 = vld [vmem:[%s4080 + $0x278] sm:$0xff]
        %v4161 = vld [vmem:[%s4080 + $0x280] sm:$0xff]
        %v4162 = vld [vmem:[%s4080 + $0x288] sm:$0xff]
        %v4163 = vld [vmem:[%s4080 + $0x290] sm:$0xff]
        %v4164 = vld [vmem:[%s4080 + $0x298] sm:$0xff]
        %v4165 = vld [vmem:[%s4080 + $0x2a0] sm:$0xff]
        %v4166 = vld [vmem:[%s4080 + $0x2a8] sm:$0xff]
        %v4167 = vld [vmem:[%s4080 + $0x2b0] sm:$0xff]
        %v4168 = vld [vmem:[%s4080 + $0x2b8] sm:$0xff]
        %v4169 = vld [vmem:[%s4080 + $0x2c0] sm:$0xff]
        %v4170 = vld [vmem:[%s4080 + $0x2c8] sm:$0xff]
        %v4171 = vld [vmem:[%s4080 + $0x2d0] sm:$0xff]
        %v4172 = vld [vmem:[%s4080 + $0x2d8] sm:$0xff]
        %v4173 = vld [vmem:[%s4080 + $0x2e0] sm:$0xff]
        %v4174 = vld [vmem:[%s4080 + $0x2e8] sm:$0xff]
        %v4175 = vld [vmem:[%s4080 + $0x2f0] sm:$0xff]
        %v4176 = vld [vmem:[%s4080 + $0x2f8] sm:$0xff]
        %v4177 = vld [vmem:[%s4080 + $0x300] sm:$0xff]
        %v4178 = vld [vmem:[%s4080 + $0x308] sm:$0xff]
        %v4179 = vld [vmem:[%s4080 + $0x310] sm:$0xff]
        %v4180 = vld [vmem:[%s4080 + $0x318] sm:$0xff]
        %v4181 = vld [vmem:[%s4080 + $0x320] sm:$0xff]
        %v4182 = vld [vmem:[%s4080 + $0x328] sm:$0xff]
        %v4183 = vld [vmem:[%s4080 + $0x330] sm:$0xff]
        %v4184 = vld [vmem:[%s4080 + $0x338] sm:$0xff]
        %v4185 = vld [vmem:[%s4080 + $0x340] sm:$0xff]
        %v4186 = vld [vmem:[%s4080 + $0x348] sm:$0xff]
        %v4187 = vld [vmem:[%s4080 + $0x350] sm:$0xff]
        %v4188 = vld [vmem:[%s4080 + $0x358] sm:$0xff]
        %v4189 = vld [vmem:[%s4080 + $0x360] sm:$0xff]
        %v4190 = vld [vmem:[%s4080 + $0x368] sm:$0xff]
        %v4191 = vld [vmem:[%s4080 + $0x370] sm:$0xff]
        %v4192 = vld [vmem:[%s4080 + $0x378] sm:$0xff]
        %v4193 = vld [vmem:[%s4080 + $0x380] sm:$0xff]
        %v4194 = vld [vmem:[%s4080 + $0x388] sm:$0xff]
        %v4195 = vld [vmem:[%s4080 + $0x390] sm:$0xff]
        %v4196 = vld [vmem:[%s4080 + $0x398] sm:$0xff]
        %v4197 = vld [vmem:[%s4080 + $0x3a0] sm:$0xff]
        %v4198 = vld [vmem:[%s4080 + $0x3a8] sm:$0xff]
        %v4199 = vld [vmem:[%s4080 + $0x3b0] sm:$0xff]
        %v4200 = vld [vmem:[%s4080 + $0x3b8] sm:$0xff]
        %v4201 = vpack.c.bf16 %v4086, %v4081
        %v4202 = vpack.c.bf16 %v4087, %v4082
        %v4203 = vpack.c.bf16 %v4088, %v4083
        %v4204 = vpack.c.bf16 %v4089, %v4084
        %v4205 = vpack.c.bf16 %v4090, %v4085
        %v4206 = vpack.c.bf16 %v4096, %v4091
        %v4207 = vpack.c.bf16 %v4097, %v4092
        %v4208 = vpack.c.bf16 %v4098, %v4093
        %v4209 = vpack.c.bf16 %v4099, %v4094
        %v4210 = vpack.c.bf16 %v4100, %v4095
        %v4211 = vpack.c.bf16 %v4106, %v4101
        %v4212 = vpack.c.bf16 %v4107, %v4102
        %v4213 = vpack.c.bf16 %v4108, %v4103
        %v4214 = vpack.c.bf16 %v4109, %v4104
        %v4215 = vpack.c.bf16 %v4110, %v4105
        %v4216 = vpack.c.bf16 %v4116, %v4111
        %v4217 = vpack.c.bf16 %v4117, %v4112
        %v4218 = vpack.c.bf16 %v4118, %v4113
        %v4219 = vpack.c.bf16 %v4119, %v4114
        %v4220 = vpack.c.bf16 %v4120, %v4115
        %v4221 = vpack.c.bf16 %v4126, %v4121
        %v4222 = vpack.c.bf16 %v4127, %v4122
        %v4223 = vpack.c.bf16 %v4128, %v4123
        %v4224 = vpack.c.bf16 %v4129, %v4124
        %v4225 = vpack.c.bf16 %v4130, %v4125
        %v4226 = vpack.c.bf16 %v4136, %v4131
        %v4227 = vpack.c.bf16 %v4137, %v4132
        %v4228 = vpack.c.bf16 %v4138, %v4133
        %v4229 = vpack.c.bf16 %v4139, %v4134
        %v4230 = vpack.c.bf16 %v4140, %v4135
        %v4231 = vpack.c.bf16 %v4146, %v4141
        %v4232 = vpack.c.bf16 %v4147, %v4142
        %v4233 = vpack.c.bf16 %v4148, %v4143
        %v4234 = vpack.c.bf16 %v4149, %v4144
        %v4235 = vpack.c.bf16 %v4150, %v4145
        %v4236 = vpack.c.bf16 %v4156, %v4151
        %v4237 = vpack.c.bf16 %v4157, %v4152
        %v4238 = vpack.c.bf16 %v4158, %v4153
        %v4239 = vpack.c.bf16 %v4159, %v4154
        %v4240 = vpack.c.bf16 %v4160, %v4155
        %v4241 = vpack.c.bf16 %v4166, %v4161
        %v4242 = vpack.c.bf16 %v4167, %v4162
        %v4243 = vpack.c.bf16 %v4168, %v4163
        %v4244 = vpack.c.bf16 %v4169, %v4164
        %v4245 = vpack.c.bf16 %v4170, %v4165
        %v4246 = vpack.c.bf16 %v4176, %v4171
        %v4247 = vpack.c.bf16 %v4177, %v4172
        %v4248 = vpack.c.bf16 %v4178, %v4173
        %v4249 = vpack.c.bf16 %v4179, %v4174
        %v4250 = vpack.c.bf16 %v4180, %v4175
        %v4251 = vpack.c.bf16 %v4186, %v4181
        %v4252 = vpack.c.bf16 %v4187, %v4182
        %v4253 = vpack.c.bf16 %v4188, %v4183
        %v4254 = vpack.c.bf16 %v4189, %v4184
        %v4255 = vpack.c.bf16 %v4190, %v4185
        %v4256 = vpack.c.bf16 %v4196, %v4191
        %v4257 = vpack.c.bf16 %v4197, %v4192
        %v4258 = vpack.c.bf16 %v4198, %v4193
        %v4259 = vpack.c.bf16 %v4199, %v4194
        %v4260 = vpack.c.bf16 %v4200, %v4195
        %v4262 = vsel %vm2356, %v4205, 0
        %v4265 = vsel %vm2356, %v4210, 0
        %v4268 = vsel %vm2356, %v4215, 0
        %v4271 = vsel %vm2356, %v4220, 0
        %v4274 = vsel %vm2356, %v4225, 0
        %v4277 = vsel %vm2356, %v4230, 0
        %v4280 = vsel %vm2356, %v4235, 0
        %v4283 = vsel %vm2356, %v4240, 0
        %v4286 = vsel %vm2356, %v4245, 0
        %v4289 = vsel %vm2356, %v4250, 0
        %v4292 = vsel %vm2356, %v4255, 0
        %v4295 = vsel %vm2356, %v4260, 0
        %4297 = vmatprep.subr.bf16.mxu0 %v1919
        %4298 = vmatpush1.bf16.msra.mxu0 %v1918
        %4299 = vmatprep.subr.bf16.mxu0 %v1925
        %4300 = vmatpush1.bf16.msra.mxu0 %v1924
        %4301 = vmatprep.subr.bf16.mxu0 %v1931
        %4302 = vmatpush1.bf16.msra.mxu0 %v1930
        %4303 = vmatprep.subr.bf16.mxu0 %v1937
        %4304 = vmatpush1.bf16.msra.mxu0 %v1936
        %4305 = vmatprep.subr.bf16.mxu0 %v1943
        %4306 = vmatpush1.bf16.msra.mxu0 %v1942
        %4307 = vmatprep.subr.bf16.mxu0 %v1949
        %4308 = vmatpush1.bf16.msra.mxu0 %v1948
        %4309 = vmatprep.subr.bf16.mxu0 %v1955
        %4310 = vmatpush1.bf16.msra.mxu0 %v1954
        %4311 = vmatprep.subr.bf16.mxu0 %v1961
        %4312 = vmatpush1.bf16.msra.mxu0 %v1960
        %4313 = vmatprep.subr.bf16.mxu0 %v1967
        %4314 = vmatpush1.bf16.msra.mxu0 %v1966
        %4315 = vmatprep.subr.bf16.mxu0 %v1973
        %4316 = vmatpush1.bf16.msra.mxu0 %v1972
        %4317 = vmatprep.subr.bf16.mxu0 %v1979
        %4318 = vmatpush1.bf16.msra.mxu0 %v1978
        %4319 = vmatprep.subr.bf16.mxu0 %v1985
        %4320 = vmatpush1.bf16.msra.mxu0 %v1984
        %4321 = vmatprep.subr.bf16.mxu0 %v1991
        %4322 = vmatpush1.bf16.msra.mxu0 %v1990
        %4323 = vmatprep.subr.bf16.mxu0 %v1997
        %4324 = vmatpush1.bf16.msra.mxu0 %v1996
        %4325 = vmatprep.subr.bf16.mxu0 %v2003
        %4326 = vmatpush1.bf16.msra.mxu0 %v2002
        %4327 = vmatprep.subr.bf16.mxu0 %v2009
        %4328 = vmatpush1.bf16.msra.mxu0 %v2008
        %4329 = vmatprep.mubr.bf16.mxu0 %v4202
        %4330 = vmatmul.mubr.bf16.gmra.mrb[0].mxu0 %v4201
        %v4331 = vpop.f32.mrb[0].mxu0
        %v4332 = vadd.f32 %v1225, %v4331
        %v4333 = vpop.f32.mrb[0].mxu0
        %v4334 = vadd.f32 %v1229, %v4333
        %v4335 = vpop.f32.mrb[0].mxu0
        %v4336 = vadd.f32 %v1225, %v4335
        %v4337 = vpop.f32.mrb[0].mxu0
        %v4338 = vadd.f32 %v1229, %v4337
        %4339 = vmatprep.mubr.bf16.mxu0 %v4207
        %4340 = vmatmul.mubr.bf16.gmra.mrb[0].mxu0 %v4206
        %v4341 = vpop.f32.mrb[0].mxu0
        %v4342 = vadd.f32 %v1225, %v4341
        %v4343 = vpop.f32.mrb[0].mxu0
        %v4344 = vadd.f32 %v1229, %v4343
        %v4345 = vpop.f32.mrb[0].mxu0
        %v4346 = vadd.f32 %v1225, %v4345
        %v4347 = vpop.f32.mrb[0].mxu0
        %v4348 = vadd.f32 %v1229, %v4347
        %4349 = vmatprep.mubr.bf16.mxu0 %v4212
        %4350 = vmatmul.mubr.bf16.gmra.mrb[0].mxu0 %v4211
        %v4351 = vpop.f32.mrb[0].mxu0
        %v4352 = vadd.f32 %v1225, %v4351
        %v4353 = vpop.f32.mrb[0].mxu0
        %v4354 = vadd.f32 %v1229, %v4353
        %v4355 = vpop.f32.mrb[0].mxu0
        %v4356 = vadd.f32 %v1225, %v4355
        %v4357 = vpop.f32.mrb[0].mxu0
        %v4358 = vadd.f32 %v1229, %v4357
        %4359 = vmatprep.mubr.bf16.mxu0 %v4217
        %4360 = vmatmul.mubr.bf16.gmra.mrb[0].mxu0 %v4216
        %v4361 = vpop.f32.mrb[0].mxu0
        %v4362 = vadd.f32 %v1225, %v4361
        %v4363 = vpop.f32.mrb[0].mxu0
        %v4364 = vadd.f32 %v1229, %v4363
        %v4365 = vpop.f32.mrb[0].mxu0
        %v4366 = vadd.f32 %v1225, %v4365
        %v4367 = vpop.f32.mrb[0].mxu0
        %v4368 = vadd.f32 %v1229, %v4367
        %4369 = vmatprep.mubr.bf16.mxu0 %v4222
        %4370 = vmatmul.mubr.bf16.gmra.mrb[0].mxu0 %v4221
        %v4371 = vpop.f32.mrb[0].mxu0
        %v4372 = vadd.f32 %v1225, %v4371
        %v4373 = vpop.f32.mrb[0].mxu0
        %v4374 = vadd.f32 %v1229, %v4373
        %v4375 = vpop.f32.mrb[0].mxu0
        %v4376 = vadd.f32 %v1225, %v4375
        %v4377 = vpop.f32.mrb[0].mxu0
        %v4378 = vadd.f32 %v1229, %v4377
        %4379 = vmatprep.mubr.bf16.mxu0 %v4227
        %4380 = vmatmul.mubr.bf16.gmra.mrb[0].mxu0 %v4226
        %v4381 = vpop.f32.mrb[0].mxu0
        %v4382 = vadd.f32 %v1225, %v4381
        %v4383 = vpop.f32.mrb[0].mxu0
        %v4384 = vadd.f32 %v1229, %v4383
        %v4385 = vpop.f32.mrb[0].mxu0
        %v4386 = vadd.f32 %v1225, %v4385
        %v4387 = vpop.f32.mrb[0].mxu0
        %v4388 = vadd.f32 %v1229, %v4387
        %4389 = vmatprep.mubr.bf16.mxu0 %v4232
        %4390 = vmatmul.mubr.bf16.gmra.mrb[0].mxu0 %v4231
        %v4391 = vpop.f32.mrb[0].mxu0
        %v4392 = vadd.f32 %v1225, %v4391
        %v4393 = vpop.f32.mrb[0].mxu0
        %v4394 = vadd.f32 %v1229, %v4393
        %v4395 = vpop.f32.mrb[0].mxu0
        %v4396 = vadd.f32 %v1225, %v4395
        %v4397 = vpop.f32.mrb[0].mxu0
        %v4398 = vadd.f32 %v1229, %v4397
        %4399 = vmatprep.mubr.bf16.mxu0 %v4237
        %4400 = vmatmul.mubr.bf16.gmra.mrb[0].mxu0 %v4236
        %v4401 = vpop.f32.mrb[0].mxu0
        %v4402 = vadd.f32 %v1225, %v4401
        %v4403 = vpop.f32.mrb[0].mxu0
        %v4404 = vadd.f32 %v1229, %v4403
        %v4405 = vpop.f32.mrb[0].mxu0
        %v4406 = vadd.f32 %v1225, %v4405
        %v4407 = vpop.f32.mrb[0].mxu0
        %v4408 = vadd.f32 %v1229, %v4407
        %4409 = vmatprep.mubr.bf16.mxu0 %v4242
        %4410 = vmatmul.mubr.bf16.gmra.mrb[0].mxu0 %v4241
        %v4411 = vpop.f32.mrb[0].mxu0
        %v4412 = vadd.f32 %v1225, %v4411
        %v4413 = vpop.f32.mrb[0].mxu0
        %v4414 = vadd.f32 %v1229, %v4413
        %v4415 = vpop.f32.mrb[0].mxu0
        %v4416 = vadd.f32 %v1225, %v4415
        %v4417 = vpop.f32.mrb[0].mxu0
        %v4418 = vadd.f32 %v1229, %v4417
        %4419 = vmatprep.mubr.bf16.mxu0 %v4247
        %4420 = vmatmul.mubr.bf16.gmra.mrb[0].mxu0 %v4246
        %v4421 = vpop.f32.mrb[0].mxu0
        %v4422 = vadd.f32 %v1225, %v4421
        %v4423 = vpop.f32.mrb[0].mxu0
        %v4424 = vadd.f32 %v1229, %v4423
        %v4425 = vpop.f32.mrb[0].mxu0
        %v4426 = vadd.f32 %v1225, %v4425
        %v4427 = vpop.f32.mrb[0].mxu0
        %v4428 = vadd.f32 %v1229, %v4427
        %4429 = vmatprep.mubr.bf16.mxu0 %v4252
        %4430 = vmatmul.mubr.bf16.gmra.mrb[0].mxu0 %v4251
        %v4431 = vpop.f32.mrb[0].mxu0
        %v4432 = vadd.f32 %v1225, %v4431
        %v4433 = vpop.f32.mrb[0].mxu0
        %v4434 = vadd.f32 %v1229, %v4433
        %v4435 = vpop.f32.mrb[0].mxu0
        %v4436 = vadd.f32 %v1225, %v4435
        %v4437 = vpop.f32.mrb[0].mxu0
        %v4438 = vadd.f32 %v1229, %v4437
        %4439 = vmatprep.mubr.bf16.mxu0 %v4257
        %4440 = vmatmul.mubr.bf16.gmra.mrb[0].mxu0 %v4256
        %v4441 = vpop.f32.mrb[0].mxu0
        %v4442 = vadd.f32 %v1225, %v4441
        %v4443 = vpop.f32.mrb[0].mxu0
        %v4444 = vadd.f32 %v1229, %v4443
        %v4445 = vpop.f32.mrb[0].mxu0
        %v4446 = vadd.f32 %v1225, %v4445
        %v4447 = vpop.f32.mrb[0].mxu0
        %v4448 = vadd.f32 %v1229, %v4447
        %4449 = vdwg.mxu0
        %4450 = vmatprep.subr.bf16.mxu0 %v2015
        %4451 = vmatpush1.bf16.msra.mxu0 %v2014
        %4452 = vmatprep.subr.bf16.mxu0 %v2021
        %4453 = vmatpush1.bf16.msra.mxu0 %v2020
        %4454 = vmatprep.subr.bf16.mxu0 %v2027
        %4455 = vmatpush1.bf16.msra.mxu0 %v2026
        %4456 = vmatprep.subr.bf16.mxu0 %v2033
        %4457 = vmatpush1.bf16.msra.mxu0 %v2032
        %4458 = vmatprep.subr.bf16.mxu0 %v2039
        %4459 = vmatpush1.bf16.msra.mxu0 %v2038
        %4460 = vmatprep.subr.bf16.mxu0 %v2045
        %4461 = vmatpush1.bf16.msra.mxu0 %v2044
        %4462 = vmatprep.subr.bf16.mxu0 %v2051
        %4463 = vmatpush1.bf16.msra.mxu0 %v2050
        %4464 = vmatprep.subr.bf16.mxu0 %v2057
        %4465 = vmatpush1.bf16.msra.mxu0 %v2056
        %4466 = vmatprep.subr.bf16.mxu0 %v2063
        %4467 = vmatpush1.bf16.msra.mxu0 %v2062
        %4468 = vmatprep.subr.bf16.mxu0 %v2069
        %4469 = vmatpush1.bf16.msra.mxu0 %v2068
        %4470 = vmatprep.subr.bf16.mxu0 %v2075
        %4471 = vmatpush1.bf16.msra.mxu0 %v2074
        %4472 = vmatprep.subr.bf16.mxu0 %v2081
        %4473 = vmatpush1.bf16.msra.mxu0 %v2080
        %4474 = vmatprep.subr.bf16.mxu0 %v2087
        %4475 = vmatpush1.bf16.msra.mxu0 %v2086
        %4476 = vmatprep.subr.bf16.mxu0 %v2093
        %4477 = vmatpush1.bf16.msra.mxu0 %v2092
        %4478 = vmatprep.subr.bf16.mxu0 %v2099
        %4479 = vmatpush1.bf16.msra.mxu0 %v2098
        %4480 = vmatprep.subr.bf16.mxu0 %v2105
        %4481 = vmatpush1.bf16.msra.mxu0 %v2104
        %4482 = vmatprep.mubr.bf16.mxu0 %v4204
        %4483 = vmatmul.mubr.bf16.gmra.mrb[0].mxu0 %v4203
        %v4484 = vpop.f32.mrb[0].mxu0
        %v4485 = vadd.f32 %v4332, %v4484
        %v4486 = vpop.f32.mrb[0].mxu0
        %v4487 = vadd.f32 %v4334, %v4486
        %v4488 = vpop.f32.mrb[0].mxu0
        %v4489 = vadd.f32 %v4336, %v4488
        %v4490 = vpop.f32.mrb[0].mxu0
        %v4491 = vadd.f32 %v4338, %v4490
        %4492 = vmatprep.mubr.bf16.mxu0 %v4209
        %4493 = vmatmul.mubr.bf16.gmra.mrb[0].mxu0 %v4208
        %v4494 = vpop.f32.mrb[0].mxu0
        %v4495 = vadd.f32 %v4342, %v4494
        %v4496 = vpop.f32.mrb[0].mxu0
        %v4497 = vadd.f32 %v4344, %v4496
        %v4498 = vpop.f32.mrb[0].mxu0
        %v4499 = vadd.f32 %v4346, %v4498
        %v4500 = vpop.f32.mrb[0].mxu0
        %v4501 = vadd.f32 %v4348, %v4500
        %4502 = vmatprep.mubr.bf16.mxu0 %v4214
        %4503 = vmatmul.mubr.bf16.gmra.mrb[0].mxu0 %v4213
        %v4504 = vpop.f32.mrb[0].mxu0
        %v4505 = vadd.f32 %v4352, %v4504
        %v4506 = vpop.f32.mrb[0].mxu0
        %v4507 = vadd.f32 %v4354, %v4506
        %v4508 = vpop.f32.mrb[0].mxu0
        %v4509 = vadd.f32 %v4356, %v4508
        %v4510 = vpop.f32.mrb[0].mxu0
        %v4511 = vadd.f32 %v4358, %v4510
        %4512 = vmatprep.mubr.bf16.mxu0 %v4219
        %4513 = vmatmul.mubr.bf16.gmra.mrb[0].mxu0 %v4218
        %v4514 = vpop.f32.mrb[0].mxu0
        %v4515 = vadd.f32 %v4362, %v4514
        %v4516 = vpop.f32.mrb[0].mxu0
        %v4517 = vadd.f32 %v4364, %v4516
        %v4518 = vpop.f32.mrb[0].mxu0
        %v4519 = vadd.f32 %v4366, %v4518
        %v4520 = vpop.f32.mrb[0].mxu0
        %v4521 = vadd.f32 %v4368, %v4520
        %4522 = vmatprep.mubr.bf16.mxu0 %v4224
        %4523 = vmatmul.mubr.bf16.gmra.mrb[0].mxu0 %v4223
        %v4524 = vpop.f32.mrb[0].mxu0
        %v4525 = vadd.f32 %v4372, %v4524
        %v4526 = vpop.f32.mrb[0].mxu0
        %v4527 = vadd.f32 %v4374, %v4526
        %v4528 = vpop.f32.mrb[0].mxu0
        %v4529 = vadd.f32 %v4376, %v4528
        %v4530 = vpop.f32.mrb[0].mxu0
        %v4531 = vadd.f32 %v4378, %v4530
        %4532 = vmatprep.mubr.bf16.mxu0 %v4229
        %4533 = vmatmul.mubr.bf16.gmra.mrb[0].mxu0 %v4228
        %v4534 = vpop.f32.mrb[0].mxu0
        %v4535 = vadd.f32 %v4382, %v4534
        %v4536 = vpop.f32.mrb[0].mxu0
        %v4537 = vadd.f32 %v4384, %v4536
        %v4538 = vpop.f32.mrb[0].mxu0
        %v4539 = vadd.f32 %v4386, %v4538
        %v4540 = vpop.f32.mrb[0].mxu0
        %v4541 = vadd.f32 %v4388, %v4540
        %4542 = vmatprep.mubr.bf16.mxu0 %v4234
        %4543 = vmatmul.mubr.bf16.gmra.mrb[0].mxu0 %v4233
        %v4544 = vpop.f32.mrb[0].mxu0
        %v4545 = vadd.f32 %v4392, %v4544
        %v4546 = vpop.f32.mrb[0].mxu0
        %v4547 = vadd.f32 %v4394, %v4546
        %v4548 = vpop.f32.mrb[0].mxu0
        %v4549 = vadd.f32 %v4396, %v4548
        %v4550 = vpop.f32.mrb[0].mxu0
        %v4551 = vadd.f32 %v4398, %v4550
        %4552 = vmatprep.mubr.bf16.mxu0 %v4239
        %4553 = vmatmul.mubr.bf16.gmra.mrb[0].mxu0 %v4238
        %v4554 = vpop.f32.mrb[0].mxu0
        %v4555 = vadd.f32 %v4402, %v4554
        %v4556 = vpop.f32.mrb[0].mxu0
        %v4557 = vadd.f32 %v4404, %v4556
        %v4558 = vpop.f32.mrb[0].mxu0
        %v4559 = vadd.f32 %v4406, %v4558
        %v4560 = vpop.f32.mrb[0].mxu0
        %v4561 = vadd.f32 %v4408, %v4560
        %4562 = vmatprep.mubr.bf16.mxu0 %v4244
        %4563 = vmatmul.mubr.bf16.gmra.mrb[0].mxu0 %v4243
        %v4564 = vpop.f32.mrb[0].mxu0
        %v4565 = vadd.f32 %v4412, %v4564
        %v4566 = vpop.f32.mrb[0].mxu0
        %v4567 = vadd.f32 %v4414, %v4566
        %v4568 = vpop.f32.mrb[0].mxu0
        %v4569 = vadd.f32 %v4416, %v4568
        %v4570 = vpop.f32.mrb[0].mxu0
        %v4571 = vadd.f32 %v4418, %v4570
        %4572 = vmatprep.mubr.bf16.mxu0 %v4249
        %4573 = vmatmul.mubr.bf16.gmra.mrb[0].mxu0 %v4248
        %v4574 = vpop.f32.mrb[0].mxu0
        %v4575 = vadd.f32 %v4422, %v4574
        %v4576 = vpop.f32.mrb[0].mxu0
        %v4577 = vadd.f32 %v4424, %v4576
        %v4578 = vpop.f32.mrb[0].mxu0
        %v4579 = vadd.f32 %v4426, %v4578
        %v4580 = vpop.f32.mrb[0].mxu0
        %v4581 = vadd.f32 %v4428, %v4580
        %4582 = vmatprep.mubr.bf16.mxu0 %v4254
        %4583 = vmatmul.mubr.bf16.gmra.mrb[0].mxu0 %v4253
        %v4584 = vpop.f32.mrb[0].mxu0
        %v4585 = vadd.f32 %v4432, %v4584
        %v4586 = vpop.f32.mrb[0].mxu0
        %v4587 = vadd.f32 %v4434, %v4586
        %v4588 = vpop.f32.mrb[0].mxu0
        %v4589 = vadd.f32 %v4436, %v4588
        %v4590 = vpop.f32.mrb[0].mxu0
        %v4591 = vadd.f32 %v4438, %v4590
        %4592 = vmatprep.mubr.bf16.mxu0 %v4259
        %4593 = vmatmul.mubr.bf16.gmra.mrb[0].mxu0 %v4258
        %v4594 = vpop.f32.mrb[0].mxu0
        %v4595 = vadd.f32 %v4442, %v4594
        %v4596 = vpop.f32.mrb[0].mxu0
        %v4597 = vadd.f32 %v4444, %v4596
        %v4598 = vpop.f32.mrb[0].mxu0
        %v4599 = vadd.f32 %v4446, %v4598
        %v4600 = vpop.f32.mrb[0].mxu0
        %v4601 = vadd.f32 %v4448, %v4600
        %4602 = vdwg.mxu0
        %4603 = vmatprep.subr.bf16.mxu0 %v2111
        %4604 = vmatpush1.bf16.msra.mxu0 %v2110
        %4605 = vmatprep.subr.bf16.mxu0 %v2117
        %4606 = vmatpush1.bf16.msra.mxu0 %v2116
        %4607 = vmatprep.subr.bf16.mxu0 %v2123
        %4608 = vmatpush1.bf16.msra.mxu0 %v2122
        %4609 = vmatprep.subr.bf16.mxu0 %v2129
        %4610 = vmatpush1.bf16.msra.mxu0 %v2128
        %4611 = vmatprep.subr.bf16.mxu0 %v2401
        %4612 = vmatpush1.bf16.msra.mxu0 %v2398
        %4613 = vmatprep.subr.bf16.mxu0 0
        %4614 = vmatpush1.bf16.msra.mxu0 0
        %4615 = vmatprep.subr.bf16.mxu0 0
        %4616 = vmatpush1.bf16.msra.mxu0 0
        %4617 = vmatprep.subr.bf16.mxu0 0
        %4618 = vmatpush1.bf16.msra.mxu0 0
        %4619 = vmatprep.subr.bf16.mxu0 0
        %4620 = vmatpush1.bf16.msra.mxu0 0
        %4621 = vmatprep.subr.bf16.mxu0 0
        %4622 = vmatpush1.bf16.msra.mxu0 0
        %4623 = vmatprep.subr.bf16.mxu0 0
        %4624 = vmatpush1.bf16.msra.mxu0 0
        %4625 = vmatprep.subr.bf16.mxu0 0
        %4626 = vmatpush1.bf16.msra.mxu0 0
        %4627 = vmatprep.subr.bf16.mxu0 0
        %4628 = vmatpush1.bf16.msra.mxu0 0
        %4629 = vmatprep.subr.bf16.mxu0 0
        %4630 = vmatpush1.bf16.msra.mxu0 0
        %4631 = vmatprep.subr.bf16.mxu0 0
        %4632 = vmatpush1.bf16.msra.mxu0 0
        %4633 = vmatprep.subr.bf16.mxu0 0
        %4634 = vmatpush1.bf16.msra.mxu0 0
        %4635 = vmatprep.mubr.bf16.mxu0 0
        %4636 = vmatmul.mubr.bf16.gmra.mrb[0].mxu0 %v4262
        %v4637 = vpop.f32.mrb[0].mxu0
        %v4638 = vadd.f32 %v4485, %v4637
        %v4639 = vpop.f32.mrb[0].mxu0
        %v4640 = vadd.f32 %v4487, %v4639
        %v4641 = vpop.f32.mrb[0].mxu0
        %v4642 = vadd.f32 %v4489, %v4641
        %v4643 = vpop.f32.mrb[0].mxu0
        %v4644 = vadd.f32 %v4491, %v4643
        %4645 = vmatprep.mubr.bf16.mxu0 0
        %4646 = vmatmul.mubr.bf16.gmra.mrb[0].mxu0 %v4265
        %v4647 = vpop.f32.mrb[0].mxu0
        %v4648 = vadd.f32 %v4495, %v4647
        %v4649 = vpop.f32.mrb[0].mxu0
        %v4650 = vadd.f32 %v4497, %v4649
        %v4651 = vpop.f32.mrb[0].mxu0
        %v4652 = vadd.f32 %v4499, %v4651
        %v4653 = vpop.f32.mrb[0].mxu0
        %v4654 = vadd.f32 %v4501, %v4653
        %4655 = vmatprep.mubr.bf16.mxu0 0
        %4656 = vmatmul.mubr.bf16.gmra.mrb[0].mxu0 %v4268
        %v4657 = vpop.f32.mrb[0].mxu0
        %v4658 = vadd.f32 %v4505, %v4657
        %v4659 = vpop.f32.mrb[0].mxu0
        %v4660 = vadd.f32 %v4507, %v4659
        %v4661 = vpop.f32.mrb[0].mxu0
        %v4662 = vadd.f32 %v4509, %v4661
        %v4663 = vpop.f32.mrb[0].mxu0
        %v4664 = vadd.f32 %v4511, %v4663
        %4665 = vmatprep.mubr.bf16.mxu0 0
        %4666 = vmatmul.mubr.bf16.gmra.mrb[0].mxu0 %v4271
        %v4667 = vpop.f32.mrb[0].mxu0
        %v4668 = vadd.f32 %v4515, %v4667
        %v4669 = vpop.f32.mrb[0].mxu0
        %v4670 = vadd.f32 %v4517, %v4669
        %v4671 = vpop.f32.mrb[0].mxu0
        %v4672 = vadd.f32 %v4519, %v4671
        %v4673 = vpop.f32.mrb[0].mxu0
        %v4674 = vadd.f32 %v4521, %v4673
        %4675 = vmatprep.mubr.bf16.mxu0 0
        %4676 = vmatmul.mubr.bf16.gmra.mrb[0].mxu0 %v4274
        %v4677 = vpop.f32.mrb[0].mxu0
        %v4678 = vadd.f32 %v4525, %v4677
        %v4679 = vpop.f32.mrb[0].mxu0
        %v4680 = vadd.f32 %v4527, %v4679
        %v4681 = vpop.f32.mrb[0].mxu0
        %v4682 = vadd.f32 %v4529, %v4681
        %v4683 = vpop.f32.mrb[0].mxu0
        %v4684 = vadd.f32 %v4531, %v4683
        %4685 = vmatprep.mubr.bf16.mxu0 0
        %4686 = vmatmul.mubr.bf16.gmra.mrb[0].mxu0 %v4277
        %v4687 = vpop.f32.mrb[0].mxu0
        %v4688 = vadd.f32 %v4535, %v4687
        %v4689 = vpop.f32.mrb[0].mxu0
        %v4690 = vadd.f32 %v4537, %v4689
        %v4691 = vpop.f32.mrb[0].mxu0
        %v4692 = vadd.f32 %v4539, %v4691
        %v4693 = vpop.f32.mrb[0].mxu0
        %v4694 = vadd.f32 %v4541, %v4693
        %4695 = vmatprep.mubr.bf16.mxu0 0
        %4696 = vmatmul.mubr.bf16.gmra.mrb[0].mxu0 %v4280
        %v4697 = vpop.f32.mrb[0].mxu0
        %v4698 = vadd.f32 %v4545, %v4697
        %v4699 = vpop.f32.mrb[0].mxu0
        %v4700 = vadd.f32 %v4547, %v4699
        %v4701 = vpop.f32.mrb[0].mxu0
        %v4702 = vadd.f32 %v4549, %v4701
        %v4703 = vpop.f32.mrb[0].mxu0
        %v4704 = vadd.f32 %v4551, %v4703
        %4705 = vmatprep.mubr.bf16.mxu0 0
        %4706 = vmatmul.mubr.bf16.gmra.mrb[0].mxu0 %v4283
        %v4707 = vpop.f32.mrb[0].mxu0
        %v4708 = vadd.f32 %v4555, %v4707
        %v4709 = vpop.f32.mrb[0].mxu0
        %v4710 = vadd.f32 %v4557, %v4709
        %v4711 = vpop.f32.mrb[0].mxu0
        %v4712 = vadd.f32 %v4559, %v4711
        %v4713 = vpop.f32.mrb[0].mxu0
        %v4714 = vadd.f32 %v4561, %v4713
        %4715 = vmatprep.mubr.bf16.mxu0 0
        %4716 = vmatmul.mubr.bf16.gmra.mrb[0].mxu0 %v4286
        %v4717 = vpop.f32.mrb[0].mxu0
        %v4718 = vadd.f32 %v4565, %v4717
        %v4719 = vpop.f32.mrb[0].mxu0
        %v4720 = vadd.f32 %v4567, %v4719
        %v4721 = vpop.f32.mrb[0].mxu0
        %v4722 = vadd.f32 %v4569, %v4721
        %v4723 = vpop.f32.mrb[0].mxu0
        %v4724 = vadd.f32 %v4571, %v4723
        %4725 = vmatprep.mubr.bf16.mxu0 0
        %4726 = vmatmul.mubr.bf16.gmra.mrb[0].mxu0 %v4289
        %v4727 = vpop.f32.mrb[0].mxu0
        %v4728 = vadd.f32 %v4575, %v4727
        %v4729 = vpop.f32.mrb[0].mxu0
        %v4730 = vadd.f32 %v4577, %v4729
        %v4731 = vpop.f32.mrb[0].mxu0
        %v4732 = vadd.f32 %v4579, %v4731
        %v4733 = vpop.f32.mrb[0].mxu0
        %v4734 = vadd.f32 %v4581, %v4733
        %4735 = vmatprep.mubr.bf16.mxu0 0
        %4736 = vmatmul.mubr.bf16.gmra.mrb[0].mxu0 %v4292
        %v4737 = vpop.f32.mrb[0].mxu0
        %v4738 = vadd.f32 %v4585, %v4737
        %v4739 = vpop.f32.mrb[0].mxu0
        %v4740 = vadd.f32 %v4587, %v4739
        %v4741 = vpop.f32.mrb[0].mxu0
        %v4742 = vadd.f32 %v4589, %v4741
        %v4743 = vpop.f32.mrb[0].mxu0
        %v4744 = vadd.f32 %v4591, %v4743
        %4745 = vmatprep.mubr.bf16.mxu0 0
        %4746 = vmatmul.mubr.bf16.gmra.mrb[0].mxu0 %v4295
        %v4747 = vpop.f32.mrb[0].mxu0
        %v4748 = vadd.f32 %v4595, %v4747
        %v4749 = vpop.f32.mrb[0].mxu0
        %v4750 = vadd.f32 %v4597, %v4749
        %v4751 = vpop.f32.mrb[0].mxu0
        %v4752 = vadd.f32 %v4599, %v4751
        %v4753 = vpop.f32.mrb[0].mxu0
        %v4754 = vadd.f32 %v4601, %v4753
        %4755 = vdwg.mxu0
        %4756 = vmatprep.subr.bf16.mxu0 %v1921
        %4757 = vmatpush1.bf16.msra.mxu0 %v1920
        %4758 = vmatprep.subr.bf16.mxu0 %v1927
        %4759 = vmatpush1.bf16.msra.mxu0 %v1926
        %4760 = vmatprep.subr.bf16.mxu0 %v1933
        %4761 = vmatpush1.bf16.msra.mxu0 %v1932
        %4762 = vmatprep.subr.bf16.mxu0 %v1939
        %4763 = vmatpush1.bf16.msra.mxu0 %v1938
        %4764 = vmatprep.subr.bf16.mxu0 %v1945
        %4765 = vmatpush1.bf16.msra.mxu0 %v1944
        %4766 = vmatprep.subr.bf16.mxu0 %v1951
        %4767 = vmatpush1.bf16.msra.mxu0 %v1950
        %4768 = vmatprep.subr.bf16.mxu0 %v1957
        %4769 = vmatpush1.bf16.msra.mxu0 %v1956
        %4770 = vmatprep.subr.bf16.mxu0 %v1963
        %4771 = vmatpush1.bf16.msra.mxu0 %v1962
        %4772 = vmatprep.subr.bf16.mxu0 %v1969
        %4773 = vmatpush1.bf16.msra.mxu0 %v1968
        %4774 = vmatprep.subr.bf16.mxu0 %v1975
        %4775 = vmatpush1.bf16.msra.mxu0 %v1974
        %4776 = vmatprep.subr.bf16.mxu0 %v1981
        %4777 = vmatpush1.bf16.msra.mxu0 %v1980
        %4778 = vmatprep.subr.bf16.mxu0 %v1987
        %4779 = vmatpush1.bf16.msra.mxu0 %v1986
        %4780 = vmatprep.subr.bf16.mxu0 %v1993
        %4781 = vmatpush1.bf16.msra.mxu0 %v1992
        %4782 = vmatprep.subr.bf16.mxu0 %v1999
        %4783 = vmatpush1.bf16.msra.mxu0 %v1998
        %4784 = vmatprep.subr.bf16.mxu0 %v2005
        %4785 = vmatpush1.bf16.msra.mxu0 %v2004
        %4786 = vmatprep.subr.bf16.mxu0 %v2011
        %4787 = vmatpush1.bf16.msra.mxu0 %v2010
        %4788 = vmatprep.mubr.bf16.mxu0 %v4202
        %4789 = vmatmul.mubr.bf16.gmra.mrb[0].mxu0 %v4201
        %v4790 = vpop.f32.mrb[0].mxu0
        %v4791 = vadd.f32 %v1233, %v4790
        %v4792 = vpop.f32.mrb[0].mxu0
        %v4793 = vadd.f32 %v1237, %v4792
        %v4794 = vpop.f32.mrb[0].mxu0
        %v4795 = vadd.f32 %v1233, %v4794
        %v4796 = vpop.f32.mrb[0].mxu0
        %v4797 = vadd.f32 %v1237, %v4796
        %4798 = vmatprep.mubr.bf16.mxu0 %v4207
        %4799 = vmatmul.mubr.bf16.gmra.mrb[0].mxu0 %v4206
        %v4800 = vpop.f32.mrb[0].mxu0
        %v4801 = vadd.f32 %v1233, %v4800
        %v4802 = vpop.f32.mrb[0].mxu0
        %v4803 = vadd.f32 %v1237, %v4802
        %v4804 = vpop.f32.mrb[0].mxu0
        %v4805 = vadd.f32 %v1233, %v4804
        %v4806 = vpop.f32.mrb[0].mxu0
        %v4807 = vadd.f32 %v1237, %v4806
        %4808 = vmatprep.mubr.bf16.mxu0 %v4212
        %4809 = vmatmul.mubr.bf16.gmra.mrb[0].mxu0 %v4211
        %v4810 = vpop.f32.mrb[0].mxu0
        %v4811 = vadd.f32 %v1233, %v4810
        %v4812 = vpop.f32.mrb[0].mxu0
        %v4813 = vadd.f32 %v1237, %v4812
        %v4814 = vpop.f32.mrb[0].mxu0
        %v4815 = vadd.f32 %v1233, %v4814
        %v4816 = vpop.f32.mrb[0].mxu0
        %v4817 = vadd.f32 %v1237, %v4816
        %4818 = vmatprep.mubr.bf16.mxu0 %v4217
        %4819 = vmatmul.mubr.bf16.gmra.mrb[0].mxu0 %v4216
        %v4820 = vpop.f32.mrb[0].mxu0
        %v4821 = vadd.f32 %v1233, %v4820
        %v4822 = vpop.f32.mrb[0].mxu0
        %v4823 = vadd.f32 %v1237, %v4822
        %v4824 = vpop.f32.mrb[0].mxu0
        %v4825 = vadd.f32 %v1233, %v4824
        %v4826 = vpop.f32.mrb[0].mxu0
        %v4827 = vadd.f32 %v1237, %v4826
        %4828 = vmatprep.mubr.bf16.mxu0 %v4222
        %4829 = vmatmul.mubr.bf16.gmra.mrb[0].mxu0 %v4221
        %v4830 = vpop.f32.mrb[0].mxu0
        %v4831 = vadd.f32 %v1233, %v4830
        %v4832 = vpop.f32.mrb[0].mxu0
        %v4833 = vadd.f32 %v1237, %v4832
        %v4834 = vpop.f32.mrb[0].mxu0
        %v4835 = vadd.f32 %v1233, %v4834
        %v4836 = vpop.f32.mrb[0].mxu0
        %v4837 = vadd.f32 %v1237, %v4836
        %4838 = vmatprep.mubr.bf16.mxu0 %v4227
        %4839 = vmatmul.mubr.bf16.gmra.mrb[0].mxu0 %v4226
        %v4840 = vpop.f32.mrb[0].mxu0
        %v4841 = vadd.f32 %v1233, %v4840
        %v4842 = vpop.f32.mrb[0].mxu0
        %v4843 = vadd.f32 %v1237, %v4842
        %v4844 = vpop.f32.mrb[0].mxu0
        %v4845 = vadd.f32 %v1233, %v4844
        %v4846 = vpop.f32.mrb[0].mxu0
        %v4847 = vadd.f32 %v1237, %v4846
        %4848 = vmatprep.mubr.bf16.mxu0 %v4232
        %4849 = vmatmul.mubr.bf16.gmra.mrb[0].mxu0 %v4231
        %v4850 = vpop.f32.mrb[0].mxu0
        %v4851 = vadd.f32 %v1233, %v4850
        %v4852 = vpop.f32.mrb[0].mxu0
        %v4853 = vadd.f32 %v1237, %v4852
        %v4854 = vpop.f32.mrb[0].mxu0
        %v4855 = vadd.f32 %v1233, %v4854
        %v4856 = vpop.f32.mrb[0].mxu0
        %v4857 = vadd.f32 %v1237, %v4856
        %4858 = vmatprep.mubr.bf16.mxu0 %v4237
        %4859 = vmatmul.mubr.bf16.gmra.mrb[0].mxu0 %v4236
        %v4860 = vpop.f32.mrb[0].mxu0
        %v4861 = vadd.f32 %v1233, %v4860
        %v4862 = vpop.f32.mrb[0].mxu0
        %v4863 = vadd.f32 %v1237, %v4862
        %v4864 = vpop.f32.mrb[0].mxu0
        %v4865 = vadd.f32 %v1233, %v4864
        %v4866 = vpop.f32.mrb[0].mxu0
        %v4867 = vadd.f32 %v1237, %v4866
        %4868 = vmatprep.mubr.bf16.mxu0 %v4242
        %4869 = vmatmul.mubr.bf16.gmra.mrb[0].mxu0 %v4241
        %v4870 = vpop.f32.mrb[0].mxu0
        %v4871 = vadd.f32 %v1233, %v4870
        %v4872 = vpop.f32.mrb[0].mxu0
        %v4873 = vadd.f32 %v1237, %v4872
        %v4874 = vpop.f32.mrb[0].mxu0
        %v4875 = vadd.f32 %v1233, %v4874
        %v4876 = vpop.f32.mrb[0].mxu0
        %v4877 = vadd.f32 %v1237, %v4876
        %4878 = vmatprep.mubr.bf16.mxu0 %v4247
        %4879 = vmatmul.mubr.bf16.gmra.mrb[0].mxu0 %v4246
        %v4880 = vpop.f32.mrb[0].mxu0
        %v4881 = vadd.f32 %v1233, %v4880
        %v4882 = vpop.f32.mrb[0].mxu0
        %v4883 = vadd.f32 %v1237, %v4882
        %v4884 = vpop.f32.mrb[0].mxu0
        %v4885 = vadd.f32 %v1233, %v4884
        %v4886 = vpop.f32.mrb[0].mxu0
        %v4887 = vadd.f32 %v1237, %v4886
        %4888 = vmatprep.mubr.bf16.mxu0 %v4252
        %4889 = vmatmul.mubr.bf16.gmra.mrb[0].mxu0 %v4251
        %v4890 = vpop.f32.mrb[0].mxu0
        %v4891 = vadd.f32 %v1233, %v4890
        %v4892 = vpop.f32.mrb[0].mxu0
        %v4893 = vadd.f32 %v1237, %v4892
        %v4894 = vpop.f32.mrb[0].mxu0
        %v4895 = vadd.f32 %v1233, %v4894
        %v4896 = vpop.f32.mrb[0].mxu0
        %v4897 = vadd.f32 %v1237, %v4896
        %4898 = vmatprep.mubr.bf16.mxu0 %v4257
        %4899 = vmatmul.mubr.bf16.gmra.mrb[0].mxu0 %v4256
        %v4900 = vpop.f32.mrb[0].mxu0
        %v4901 = vadd.f32 %v1233, %v4900
        %v4902 = vpop.f32.mrb[0].mxu0
        %v4903 = vadd.f32 %v1237, %v4902
        %v4904 = vpop.f32.mrb[0].mxu0
        %v4905 = vadd.f32 %v1233, %v4904
        %v4906 = vpop.f32.mrb[0].mxu0
        %v4907 = vadd.f32 %v1237, %v4906
        %4908 = vdwg.mxu0
        %4909 = vmatprep.subr.bf16.mxu0 %v2017
        %4910 = vmatpush1.bf16.msra.mxu0 %v2016
        %4911 = vmatprep.subr.bf16.mxu0 %v2023
        %4912 = vmatpush1.bf16.msra.mxu0 %v2022
        %4913 = vmatprep.subr.bf16.mxu0 %v2029
        %4914 = vmatpush1.bf16.msra.mxu0 %v2028
        %4915 = vmatprep.subr.bf16.mxu0 %v2035
        %4916 = vmatpush1.bf16.msra.mxu0 %v2034
        %4917 = vmatprep.subr.bf16.mxu0 %v2041
        %4918 = vmatpush1.bf16.msra.mxu0 %v2040
        %4919 = vmatprep.subr.bf16.mxu0 %v2047
        %4920 = vmatpush1.bf16.msra.mxu0 %v2046
        %4921 = vmatprep.subr.bf16.mxu0 %v2053
        %4922 = vmatpush1.bf16.msra.mxu0 %v2052
        %4923 = vmatprep.subr.bf16.mxu0 %v2059
        %4924 = vmatpush1.bf16.msra.mxu0 %v2058
        %4925 = vmatprep.subr.bf16.mxu0 %v2065
        %4926 = vmatpush1.bf16.msra.mxu0 %v2064
        %4927 = vmatprep.subr.bf16.mxu0 %v2071
        %4928 = vmatpush1.bf16.msra.mxu0 %v2070
        %4929 = vmatprep.subr.bf16.mxu0 %v2077
        %4930 = vmatpush1.bf16.msra.mxu0 %v2076
        %4931 = vmatprep.subr.bf16.mxu0 %v2083
        %4932 = vmatpush1.bf16.msra.mxu0 %v2082
        %4933 = vmatprep.subr.bf16.mxu0 %v2089
        %4934 = vmatpush1.bf16.msra.mxu0 %v2088
        %4935 = vmatprep.subr.bf16.mxu0 %v2095
        %4936 = vmatpush1.bf16.msra.mxu0 %v2094
        %4937 = vmatprep.subr.bf16.mxu0 %v2101
        %4938 = vmatpush1.bf16.msra.mxu0 %v2100
        %4939 = vmatprep.subr.bf16.mxu0 %v2107
        %4940 = vmatpush1.bf16.msra.mxu0 %v2106
        %4941 = vmatprep.mubr.bf16.mxu0 %v4204
        %4942 = vmatmul.mubr.bf16.gmra.mrb[0].mxu0 %v4203
        %v4943 = vpop.f32.mrb[0].mxu0
        %v4944 = vadd.f32 %v4791, %v4943
        %v4945 = vpop.f32.mrb[0].mxu0
        %v4946 = vadd.f32 %v4793, %v4945
        %v4947 = vpop.f32.mrb[0].mxu0
        %v4948 = vadd.f32 %v4795, %v4947
        %v4949 = vpop.f32.mrb[0].mxu0
        %v4950 = vadd.f32 %v4797, %v4949
        %4951 = vmatprep.mubr.bf16.mxu0 %v4209
        %4952 = vmatmul.mubr.bf16.gmra.mrb[0].mxu0 %v4208
        %v4953 = vpop.f32.mrb[0].mxu0
        %v4954 = vadd.f32 %v4801, %v4953
        %v4955 = vpop.f32.mrb[0].mxu0
        %v4956 = vadd.f32 %v4803, %v4955
        %v4957 = vpop.f32.mrb[0].mxu0
        %v4958 = vadd.f32 %v4805, %v4957
        %v4959 = vpop.f32.mrb[0].mxu0
        %v4960 = vadd.f32 %v4807, %v4959
        %4961 = vmatprep.mubr.bf16.mxu0 %v4214
        %4962 = vmatmul.mubr.bf16.gmra.mrb[0].mxu0 %v4213
        %v4963 = vpop.f32.mrb[0].mxu0
        %v4964 = vadd.f32 %v4811, %v4963
        %v4965 = vpop.f32.mrb[0].mxu0
        %v4966 = vadd.f32 %v4813, %v4965
        %v4967 = vpop.f32.mrb[0].mxu0
        %v4968 = vadd.f32 %v4815, %v4967
        %v4969 = vpop.f32.mrb[0].mxu0
        %v4970 = vadd.f32 %v4817, %v4969
        %4971 = vmatprep.mubr.bf16.mxu0 %v4219
        %4972 = vmatmul.mubr.bf16.gmra.mrb[0].mxu0 %v4218
        %v4973 = vpop.f32.mrb[0].mxu0
        %v4974 = vadd.f32 %v4821, %v4973
        %v4975 = vpop.f32.mrb[0].mxu0
        %v4976 = vadd.f32 %v4823, %v4975
        %v4977 = vpop.f32.mrb[0].mxu0
        %v4978 = vadd.f32 %v4825, %v4977
        %v4979 = vpop.f32.mrb[0].mxu0
        %v4980 = vadd.f32 %v4827, %v4979
        %4981 = vmatprep.mubr.bf16.mxu0 %v4224
        %4982 = vmatmul.mubr.bf16.gmra.mrb[0].mxu0 %v4223
        %v4983 = vpop.f32.mrb[0].mxu0
        %v4984 = vadd.f32 %v4831, %v4983
        %v4985 = vpop.f32.mrb[0].mxu0
        %v4986 = vadd.f32 %v4833, %v4985
        %v4987 = vpop.f32.mrb[0].mxu0
        %v4988 = vadd.f32 %v4835, %v4987
        %v4989 = vpop.f32.mrb[0].mxu0
        %v4990 = vadd.f32 %v4837, %v4989
        %4991 = vmatprep.mubr.bf16.mxu0 %v4229
        %4992 = vmatmul.mubr.bf16.gmra.mrb[0].mxu0 %v4228
        %v4993 = vpop.f32.mrb[0].mxu0
        %v4994 = vadd.f32 %v4841, %v4993
        %v4995 = vpop.f32.mrb[0].mxu0
        %v4996 = vadd.f32 %v4843, %v4995
        %v4997 = vpop.f32.mrb[0].mxu0
        %v4998 = vadd.f32 %v4845, %v4997
        %v4999 = vpop.f32.mrb[0].mxu0
        %v5000 = vadd.f32 %v4847, %v4999
        %5001 = vmatprep.mubr.bf16.mxu0 %v4234
        %5002 = vmatmul.mubr.bf16.gmra.mrb[0].mxu0 %v4233
        %v5003 = vpop.f32.mrb[0].mxu0
        %v5004 = vadd.f32 %v4851, %v5003
        %v5005 = vpop.f32.mrb[0].mxu0
        %v5006 = vadd.f32 %v4853, %v5005
        %v5007 = vpop.f32.mrb[0].mxu0
        %v5008 = vadd.f32 %v4855, %v5007
        %v5009 = vpop.f32.mrb[0].mxu0
        %v5010 = vadd.f32 %v4857, %v5009
        %5011 = vmatprep.mubr.bf16.mxu0 %v4239
        %5012 = vmatmul.mubr.bf16.gmra.mrb[0].mxu0 %v4238
        %v5013 = vpop.f32.mrb[0].mxu0
        %v5014 = vadd.f32 %v4861, %v5013
        %v5015 = vpop.f32.mrb[0].mxu0
        %v5016 = vadd.f32 %v4863, %v5015
        %v5017 = vpop.f32.mrb[0].mxu0
        %v5018 = vadd.f32 %v4865, %v5017
        %v5019 = vpop.f32.mrb[0].mxu0
        %v5020 = vadd.f32 %v4867, %v5019
        %5021 = vmatprep.mubr.bf16.mxu0 %v4244
        %5022 = vmatmul.mubr.bf16.gmra.mrb[0].mxu0 %v4243
        %v5023 = vpop.f32.mrb[0].mxu0
        %v5024 = vadd.f32 %v4871, %v5023
        %v5025 = vpop.f32.mrb[0].mxu0
        %v5026 = vadd.f32 %v4873, %v5025
        %v5027 = vpop.f32.mrb[0].mxu0
        %v5028 = vadd.f32 %v4875, %v5027
        %v5029 = vpop.f32.mrb[0].mxu0
        %v5030 = vadd.f32 %v4877, %v5029
        %5031 = vmatprep.mubr.bf16.mxu0 %v4249
        %5032 = vmatmul.mubr.bf16.gmra.mrb[0].mxu0 %v4248
        %v5033 = vpop.f32.mrb[0].mxu0
        %v5034 = vadd.f32 %v4881, %v5033
        %v5035 = vpop.f32.mrb[0].mxu0
        %v5036 = vadd.f32 %v4883, %v5035
        %v5037 = vpop.f32.mrb[0].mxu0
        %v5038 = vadd.f32 %v4885, %v5037
        %v5039 = vpop.f32.mrb[0].mxu0
        %v5040 = vadd.f32 %v4887, %v5039
        %5041 = vmatprep.mubr.bf16.mxu0 %v4254
        %5042 = vmatmul.mubr.bf16.gmra.mrb[0].mxu0 %v4253
        %v5043 = vpop.f32.mrb[0].mxu0
        %v5044 = vadd.f32 %v4891, %v5043
        %v5045 = vpop.f32.mrb[0].mxu0
        %v5046 = vadd.f32 %v4893, %v5045
        %v5047 = vpop.f32.mrb[0].mxu0
        %v5048 = vadd.f32 %v4895, %v5047
        %v5049 = vpop.f32.mrb[0].mxu0
        %v5050 = vadd.f32 %v4897, %v5049
        %5051 = vmatprep.mubr.bf16.mxu0 %v4259
        %5052 = vmatmul.mubr.bf16.gmra.mrb[0].mxu0 %v4258
        %v5053 = vpop.f32.mrb[0].mxu0
        %v5054 = vadd.f32 %v4901, %v5053
        %v5055 = vpop.f32.mrb[0].mxu0
        %v5056 = vadd.f32 %v4903, %v5055
        %v5057 = vpop.f32.mrb[0].mxu0
        %v5058 = vadd.f32 %v4905, %v5057
        %v5059 = vpop.f32.mrb[0].mxu0
        %v5060 = vadd.f32 %v4907, %v5059
        %5061 = vdwg.mxu0
        %5062 = vmatprep.subr.bf16.mxu0 %v2113
        %5063 = vmatpush1.bf16.msra.mxu0 %v2112
        %5064 = vmatprep.subr.bf16.mxu0 %v2119
        %5065 = vmatpush1.bf16.msra.mxu0 %v2118
        %5066 = vmatprep.subr.bf16.mxu0 %v2125
        %5067 = vmatpush1.bf16.msra.mxu0 %v2124
        %5068 = vmatprep.subr.bf16.mxu0 %v2131
        %5069 = vmatpush1.bf16.msra.mxu0 %v2130
        %5070 = vmatprep.subr.bf16.mxu0 %v2407
        %5071 = vmatpush1.bf16.msra.mxu0 %v2404
        %5072 = vmatprep.subr.bf16.mxu0 0
        %5073 = vmatpush1.bf16.msra.mxu0 0
        %5074 = vmatprep.subr.bf16.mxu0 0
        %5075 = vmatpush1.bf16.msra.mxu0 0
        %5076 = vmatprep.subr.bf16.mxu0 0
        %5077 = vmatpush1.bf16.msra.mxu0 0
        %5078 = vmatprep.subr.bf16.mxu0 0
        %5079 = vmatpush1.bf16.msra.mxu0 0
        %5080 = vmatprep.subr.bf16.mxu0 0
        %5081 = vmatpush1.bf16.msra.mxu0 0
        %5082 = vmatprep.subr.bf16.mxu0 0
        %5083 = vmatpush1.bf16.msra.mxu0 0
        %5084 = vmatprep.subr.bf16.mxu0 0
        %5085 = vmatpush1.bf16.msra.mxu0 0
        %5086 = vmatprep.subr.bf16.mxu0 0
        %5087 = vmatpush1.bf16.msra.mxu0 0
        %5088 = vmatprep.subr.bf16.mxu0 0
        %5089 = vmatpush1.bf16.msra.mxu0 0
        %5090 = vmatprep.subr.bf16.mxu0 0
        %5091 = vmatpush1.bf16.msra.mxu0 0
        %5092 = vmatprep.subr.bf16.mxu0 0
        %5093 = vmatpush1.bf16.msra.mxu0 0
        %5094 = vmatprep.mubr.bf16.mxu0 0
        %5095 = vmatmul.mubr.bf16.gmra.mrb[0].mxu0 %v4262
        %v5096 = vpop.f32.mrb[0].mxu0
        %v5097 = vadd.f32 %v4944, %v5096
        %v5098 = vpop.f32.mrb[0].mxu0
        %v5099 = vadd.f32 %v4946, %v5098
        %v5100 = vpop.f32.mrb[0].mxu0
        %v5101 = vadd.f32 %v4948, %v5100
        %v5102 = vpop.f32.mrb[0].mxu0
        %v5103 = vadd.f32 %v4950, %v5102
        %5104 = vmatprep.mubr.bf16.mxu0 0
        %5105 = vmatmul.mubr.bf16.gmra.mrb[0].mxu0 %v4265
        %v5106 = vpop.f32.mrb[0].mxu0
        %v5107 = vadd.f32 %v4954, %v5106
        %v5108 = vpop.f32.mrb[0].mxu0
        %v5109 = vadd.f32 %v4956, %v5108
        %v5110 = vpop.f32.mrb[0].mxu0
        %v5111 = vadd.f32 %v4958, %v5110
        %v5112 = vpop.f32.mrb[0].mxu0
        %v5113 = vadd.f32 %v4960, %v5112
        %5114 = vmatprep.mubr.bf16.mxu0 0
        %5115 = vmatmul.mubr.bf16.gmra.mrb[0].mxu0 %v4268
        %v5116 = vpop.f32.mrb[0].mxu0
        %v5117 = vadd.f32 %v4964, %v5116
        %v5118 = vpop.f32.mrb[0].mxu0
        %v5119 = vadd.f32 %v4966, %v5118
        %v5120 = vpop.f32.mrb[0].mxu0
        %v5121 = vadd.f32 %v4968, %v5120
        %v5122 = vpop.f32.mrb[0].mxu0
        %v5123 = vadd.f32 %v4970, %v5122
        %5124 = vmatprep.mubr.bf16.mxu0 0
        %5125 = vmatmul.mubr.bf16.gmra.mrb[0].mxu0 %v4271
        %v5126 = vpop.f32.mrb[0].mxu0
        %v5127 = vadd.f32 %v4974, %v5126
        %v5128 = vpop.f32.mrb[0].mxu0
        %v5129 = vadd.f32 %v4976, %v5128
        %v5130 = vpop.f32.mrb[0].mxu0
        %v5131 = vadd.f32 %v4978, %v5130
        %v5132 = vpop.f32.mrb[0].mxu0
        %v5133 = vadd.f32 %v4980, %v5132
        %5134 = vmatprep.mubr.bf16.mxu0 0
        %5135 = vmatmul.mubr.bf16.gmra.mrb[0].mxu0 %v4274
        %v5136 = vpop.f32.mrb[0].mxu0
        %v5137 = vadd.f32 %v4984, %v5136
        %v5138 = vpop.f32.mrb[0].mxu0
        %v5139 = vadd.f32 %v4986, %v5138
        %v5140 = vpop.f32.mrb[0].mxu0
        %v5141 = vadd.f32 %v4988, %v5140
        %v5142 = vpop.f32.mrb[0].mxu0
        %v5143 = vadd.f32 %v4990, %v5142
        %5144 = vmatprep.mubr.bf16.mxu0 0
        %5145 = vmatmul.mubr.bf16.gmra.mrb[0].mxu0 %v4277
        %v5146 = vpop.f32.mrb[0].mxu0
        %v5147 = vadd.f32 %v4994, %v5146
        %v5148 = vpop.f32.mrb[0].mxu0
        %v5149 = vadd.f32 %v4996, %v5148
        %v5150 = vpop.f32.mrb[0].mxu0
        %v5151 = vadd.f32 %v4998, %v5150
        %v5152 = vpop.f32.mrb[0].mxu0
        %v5153 = vadd.f32 %v5000, %v5152
        %5154 = vmatprep.mubr.bf16.mxu0 0
        %5155 = vmatmul.mubr.bf16.gmra.mrb[0].mxu0 %v4280
        %v5156 = vpop.f32.mrb[0].mxu0
        %v5157 = vadd.f32 %v5004, %v5156
        %v5158 = vpop.f32.mrb[0].mxu0
        %v5159 = vadd.f32 %v5006, %v5158
        %v5160 = vpop.f32.mrb[0].mxu0
        %v5161 = vadd.f32 %v5008, %v5160
        %v5162 = vpop.f32.mrb[0].mxu0
        %v5163 = vadd.f32 %v5010, %v5162
        %5164 = vmatprep.mubr.bf16.mxu0 0
        %5165 = vmatmul.mubr.bf16.gmra.mrb[0].mxu0 %v4283
        %v5166 = vpop.f32.mrb[0].mxu0
        %v5167 = vadd.f32 %v5014, %v5166
        %v5168 = vpop.f32.mrb[0].mxu0
        %v5169 = vadd.f32 %v5016, %v5168
        %v5170 = vpop.f32.mrb[0].mxu0
        %v5171 = vadd.f32 %v5018, %v5170
        %v5172 = vpop.f32.mrb[0].mxu0
        %v5173 = vadd.f32 %v5020, %v5172
        %5174 = vmatprep.mubr.bf16.mxu0 0
        %5175 = vmatmul.mubr.bf16.gmra.mrb[0].mxu0 %v4286
        %v5176 = vpop.f32.mrb[0].mxu0
        %v5177 = vadd.f32 %v5024, %v5176
        %v5178 = vpop.f32.mrb[0].mxu0
        %v5179 = vadd.f32 %v5026, %v5178
        %v5180 = vpop.f32.mrb[0].mxu0
        %v5181 = vadd.f32 %v5028, %v5180
        %v5182 = vpop.f32.mrb[0].mxu0
        %v5183 = vadd.f32 %v5030, %v5182
        %5184 = vmatprep.mubr.bf16.mxu0 0
        %5185 = vmatmul.mubr.bf16.gmra.mrb[0].mxu0 %v4289
        %v5186 = vpop.f32.mrb[0].mxu0
        %v5187 = vadd.f32 %v5034, %v5186
        %v5188 = vpop.f32.mrb[0].mxu0
        %v5189 = vadd.f32 %v5036, %v5188
        %v5190 = vpop.f32.mrb[0].mxu0
        %v5191 = vadd.f32 %v5038, %v5190
        %v5192 = vpop.f32.mrb[0].mxu0
        %v5193 = vadd.f32 %v5040, %v5192
        %5194 = vmatprep.mubr.bf16.mxu0 0
        %5195 = vmatmul.mubr.bf16.gmra.mrb[0].mxu0 %v4292
        %v5196 = vpop.f32.mrb[0].mxu0
        %v5197 = vadd.f32 %v5044, %v5196
        %v5198 = vpop.f32.mrb[0].mxu0
        %v5199 = vadd.f32 %v5046, %v5198
        %v5200 = vpop.f32.mrb[0].mxu0
        %v5201 = vadd.f32 %v5048, %v5200
        %v5202 = vpop.f32.mrb[0].mxu0
        %v5203 = vadd.f32 %v5050, %v5202
        %5204 = vmatprep.mubr.bf16.mxu0 0
        %5205 = vmatmul.mubr.bf16.gmra.mrb[0].mxu0 %v4295
        %v5206 = vpop.f32.mrb[0].mxu0
        %v5207 = vadd.f32 %v5054, %v5206
        %v5208 = vpop.f32.mrb[0].mxu0
        %v5209 = vadd.f32 %v5056, %v5208
        %v5210 = vpop.f32.mrb[0].mxu0
        %v5211 = vadd.f32 %v5058, %v5210
        %v5212 = vpop.f32.mrb[0].mxu0
        %v5213 = vadd.f32 %v5060, %v5212
        %5214 = vdwg.mxu0
        %5215 = vmatprep.subr.bf16.mxu0 %v1923
        %5216 = vmatpush1.bf16.msra.mxu0 %v1922
        %5217 = vmatprep.subr.bf16.mxu0 %v1929
        %5218 = vmatpush1.bf16.msra.mxu0 %v1928
        %5219 = vmatprep.subr.bf16.mxu0 %v1935
        %5220 = vmatpush1.bf16.msra.mxu0 %v1934
        %5221 = vmatprep.subr.bf16.mxu0 %v1941
        %5222 = vmatpush1.bf16.msra.mxu0 %v1940
        %5223 = vmatprep.subr.bf16.mxu0 %v1947
        %5224 = vmatpush1.bf16.msra.mxu0 %v1946
        %5225 = vmatprep.subr.bf16.mxu0 %v1953
        %5226 = vmatpush1.bf16.msra.mxu0 %v1952
        %5227 = vmatprep.subr.bf16.mxu0 %v1959
        %5228 = vmatpush1.bf16.msra.mxu0 %v1958
        %5229 = vmatprep.subr.bf16.mxu0 %v1965
        %5230 = vmatpush1.bf16.msra.mxu0 %v1964
        %5231 = vmatprep.subr.bf16.mxu0 %v1971
        %5232 = vmatpush1.bf16.msra.mxu0 %v1970
        %5233 = vmatprep.subr.bf16.mxu0 %v1977
        %5234 = vmatpush1.bf16.msra.mxu0 %v1976
        %5235 = vmatprep.subr.bf16.mxu0 %v1983
        %5236 = vmatpush1.bf16.msra.mxu0 %v1982
        %5237 = vmatprep.subr.bf16.mxu0 %v1989
        %5238 = vmatpush1.bf16.msra.mxu0 %v1988
        %5239 = vmatprep.subr.bf16.mxu0 %v1995
        %5240 = vmatpush1.bf16.msra.mxu0 %v1994
        %5241 = vmatprep.subr.bf16.mxu0 %v2001
        %5242 = vmatpush1.bf16.msra.mxu0 %v2000
        %5243 = vmatprep.subr.bf16.mxu0 %v2007
        %5244 = vmatpush1.bf16.msra.mxu0 %v2006
        %5245 = vmatprep.subr.bf16.mxu0 %v2013
        %5246 = vmatpush1.bf16.msra.mxu0 %v2012
        %5247 = vmatprep.mubr.bf16.mxu0 %v4202
        %5248 = vmatmul.mubr.bf16.gmra.mrb[0].mxu0 %v4201
        %v5249 = vpop.f32.mrb[0].mxu0
        %v5250 = vadd.f32 %v1241, %v5249
        %v5251 = vpop.f32.mrb[0].mxu0
        %v5252 = vadd.f32 %v1245, %v5251
        %v5253 = vpop.f32.mrb[0].mxu0
        %v5254 = vadd.f32 %v1241, %v5253
        %v5255 = vpop.f32.mrb[0].mxu0
        %v5256 = vadd.f32 %v1245, %v5255
        %5257 = vmatprep.mubr.bf16.mxu0 %v4207
        %5258 = vmatmul.mubr.bf16.gmra.mrb[0].mxu0 %v4206
        %v5259 = vpop.f32.mrb[0].mxu0
        %v5260 = vadd.f32 %v1241, %v5259
        %v5261 = vpop.f32.mrb[0].mxu0
        %v5262 = vadd.f32 %v1245, %v5261
        %v5263 = vpop.f32.mrb[0].mxu0
        %v5264 = vadd.f32 %v1241, %v5263
        %v5265 = vpop.f32.mrb[0].mxu0
        %v5266 = vadd.f32 %v1245, %v5265
        %5267 = vmatprep.mubr.bf16.mxu0 %v4212
        %5268 = vmatmul.mubr.bf16.gmra.mrb[0].mxu0 %v4211
        %v5269 = vpop.f32.mrb[0].mxu0
        %v5270 = vadd.f32 %v1241, %v5269
        %v5271 = vpop.f32.mrb[0].mxu0
        %v5272 = vadd.f32 %v1245, %v5271
        %v5273 = vpop.f32.mrb[0].mxu0
        %v5274 = vadd.f32 %v1241, %v5273
        %v5275 = vpop.f32.mrb[0].mxu0
        %v5276 = vadd.f32 %v1245, %v5275
        %5277 = vmatprep.mubr.bf16.mxu0 %v4217
        %5278 = vmatmul.mubr.bf16.gmra.mrb[0].mxu0 %v4216
        %v5279 = vpop.f32.mrb[0].mxu0
        %v5280 = vadd.f32 %v1241, %v5279
        %v5281 = vpop.f32.mrb[0].mxu0
        %v5282 = vadd.f32 %v1245, %v5281
        %v5283 = vpop.f32.mrb[0].mxu0
        %v5284 = vadd.f32 %v1241, %v5283
        %v5285 = vpop.f32.mrb[0].mxu0
        %v5286 = vadd.f32 %v1245, %v5285
        %5287 = vmatprep.mubr.bf16.mxu0 %v4222
        %5288 = vmatmul.mubr.bf16.gmra.mrb[0].mxu0 %v4221
        %v5289 = vpop.f32.mrb[0].mxu0
        %v5290 = vadd.f32 %v1241, %v5289
        %v5291 = vpop.f32.mrb[0].mxu0
        %v5292 = vadd.f32 %v1245, %v5291
        %v5293 = vpop.f32.mrb[0].mxu0
        %v5294 = vadd.f32 %v1241, %v5293
        %v5295 = vpop.f32.mrb[0].mxu0
        %v5296 = vadd.f32 %v1245, %v5295
        %5297 = vmatprep.mubr.bf16.mxu0 %v4227
        %5298 = vmatmul.mubr.bf16.gmra.mrb[0].mxu0 %v4226
        %v5299 = vpop.f32.mrb[0].mxu0
        %v5300 = vadd.f32 %v1241, %v5299
        %v5301 = vpop.f32.mrb[0].mxu0
        %v5302 = vadd.f32 %v1245, %v5301
        %v5303 = vpop.f32.mrb[0].mxu0
        %v5304 = vadd.f32 %v1241, %v5303
        %v5305 = vpop.f32.mrb[0].mxu0
        %v5306 = vadd.f32 %v1245, %v5305
        %5307 = vmatprep.mubr.bf16.mxu0 %v4232
        %5308 = vmatmul.mubr.bf16.gmra.mrb[0].mxu0 %v4231
        %v5309 = vpop.f32.mrb[0].mxu0
        %v5310 = vadd.f32 %v1241, %v5309
        %v5311 = vpop.f32.mrb[0].mxu0
        %v5312 = vadd.f32 %v1245, %v5311
        %v5313 = vpop.f32.mrb[0].mxu0
        %v5314 = vadd.f32 %v1241, %v5313
        %v5315 = vpop.f32.mrb[0].mxu0
        %v5316 = vadd.f32 %v1245, %v5315
        %5317 = vmatprep.mubr.bf16.mxu0 %v4237
        %5318 = vmatmul.mubr.bf16.gmra.mrb[0].mxu0 %v4236
        %v5319 = vpop.f32.mrb[0].mxu0
        %v5320 = vadd.f32 %v1241, %v5319
        %v5321 = vpop.f32.mrb[0].mxu0
        %v5322 = vadd.f32 %v1245, %v5321
        %v5323 = vpop.f32.mrb[0].mxu0
        %v5324 = vadd.f32 %v1241, %v5323
        %v5325 = vpop.f32.mrb[0].mxu0
        %v5326 = vadd.f32 %v1245, %v5325
        %5327 = vmatprep.mubr.bf16.mxu0 %v4242
        %5328 = vmatmul.mubr.bf16.gmra.mrb[0].mxu0 %v4241
        %v5329 = vpop.f32.mrb[0].mxu0
        %v5330 = vadd.f32 %v1241, %v5329
        %v5331 = vpop.f32.mrb[0].mxu0
        %v5332 = vadd.f32 %v1245, %v5331
        %v5333 = vpop.f32.mrb[0].mxu0
        %v5334 = vadd.f32 %v1241, %v5333
        %v5335 = vpop.f32.mrb[0].mxu0
        %v5336 = vadd.f32 %v1245, %v5335
        %5337 = vmatprep.mubr.bf16.mxu0 %v4247
        %5338 = vmatmul.mubr.bf16.gmra.mrb[0].mxu0 %v4246
        %v5339 = vpop.f32.mrb[0].mxu0
        %v5340 = vadd.f32 %v1241, %v5339
        %v5341 = vpop.f32.mrb[0].mxu0
        %v5342 = vadd.f32 %v1245, %v5341
        %v5343 = vpop.f32.mrb[0].mxu0
        %v5344 = vadd.f32 %v1241, %v5343
        %v5345 = vpop.f32.mrb[0].mxu0
        %v5346 = vadd.f32 %v1245, %v5345
        %5347 = vmatprep.mubr.bf16.mxu0 %v4252
        %5348 = vmatmul.mubr.bf16.gmra.mrb[0].mxu0 %v4251
        %v5349 = vpop.f32.mrb[0].mxu0
        %v5350 = vadd.f32 %v1241, %v5349
        %v5351 = vpop.f32.mrb[0].mxu0
        %v5352 = vadd.f32 %v1245, %v5351
        %v5353 = vpop.f32.mrb[0].mxu0
        %v5354 = vadd.f32 %v1241, %v5353
        %v5355 = vpop.f32.mrb[0].mxu0
        %v5356 = vadd.f32 %v1245, %v5355
        %5357 = vmatprep.mubr.bf16.mxu0 %v4257
        %5358 = vmatmul.mubr.bf16.gmra.mrb[0].mxu0 %v4256
        %v5359 = vpop.f32.mrb[0].mxu0
        %v5360 = vadd.f32 %v1241, %v5359
        %v5361 = vpop.f32.mrb[0].mxu0
        %v5362 = vadd.f32 %v1245, %v5361
        %v5363 = vpop.f32.mrb[0].mxu0
        %v5364 = vadd.f32 %v1241, %v5363
        %v5365 = vpop.f32.mrb[0].mxu0
        %v5366 = vadd.f32 %v1245, %v5365
        %5367 = vdwg.mxu0
        %5368 = vmatprep.subr.bf16.mxu0 %v2019
        %5369 = vmatpush1.bf16.msra.mxu0 %v2018
        %5370 = vmatprep.subr.bf16.mxu0 %v2025
        %5371 = vmatpush1.bf16.msra.mxu0 %v2024
        %5372 = vmatprep.subr.bf16.mxu0 %v2031
        %5373 = vmatpush1.bf16.msra.mxu0 %v2030
        %5374 = vmatprep.subr.bf16.mxu0 %v2037
        %5375 = vmatpush1.bf16.msra.mxu0 %v2036
        %5376 = vmatprep.subr.bf16.mxu0 %v2043
        %5377 = vmatpush1.bf16.msra.mxu0 %v2042
        %5378 = vmatprep.subr.bf16.mxu0 %v2049
        %5379 = vmatpush1.bf16.msra.mxu0 %v2048
        %5380 = vmatprep.subr.bf16.mxu0 %v2055
        %5381 = vmatpush1.bf16.msra.mxu0 %v2054
        %5382 = vmatprep.subr.bf16.mxu0 %v2061
        %5383 = vmatpush1.bf16.msra.mxu0 %v2060
        %5384 = vmatprep.subr.bf16.mxu0 %v2067
        %5385 = vmatpush1.bf16.msra.mxu0 %v2066
        %5386 = vmatprep.subr.bf16.mxu0 %v2073
        %5387 = vmatpush1.bf16.msra.mxu0 %v2072
        %5388 = vmatprep.subr.bf16.mxu0 %v2079
        %5389 = vmatpush1.bf16.msra.mxu0 %v2078
        %5390 = vmatprep.subr.bf16.mxu0 %v2085
        %5391 = vmatpush1.bf16.msra.mxu0 %v2084
        %5392 = vmatprep.subr.bf16.mxu0 %v2091
        %5393 = vmatpush1.bf16.msra.mxu0 %v2090
        %5394 = vmatprep.subr.bf16.mxu0 %v2097
        %5395 = vmatpush1.bf16.msra.mxu0 %v2096
        %5396 = vmatprep.subr.bf16.mxu0 %v2103
        %5397 = vmatpush1.bf16.msra.mxu0 %v2102
        %5398 = vmatprep.subr.bf16.mxu0 %v2109
        %5399 = vmatpush1.bf16.msra.mxu0 %v2108
        %5400 = vmatprep.mubr.bf16.mxu0 %v4204
        %5401 = vmatmul.mubr.bf16.gmra.mrb[0].mxu0 %v4203
        %v5402 = vpop.f32.mrb[0].mxu0
        %v5403 = vadd.f32 %v5250, %v5402
        %v5404 = vpop.f32.mrb[0].mxu0
        %v5405 = vadd.f32 %v5252, %v5404
        %v5406 = vpop.f32.mrb[0].mxu0
        %v5407 = vadd.f32 %v5254, %v5406
        %v5408 = vpop.f32.mrb[0].mxu0
        %v5409 = vadd.f32 %v5256, %v5408
        %5410 = vmatprep.mubr.bf16.mxu0 %v4209
        %5411 = vmatmul.mubr.bf16.gmra.mrb[0].mxu0 %v4208
        %v5412 = vpop.f32.mrb[0].mxu0
        %v5413 = vadd.f32 %v5260, %v5412
        %v5414 = vpop.f32.mrb[0].mxu0
        %v5415 = vadd.f32 %v5262, %v5414
        %v5416 = vpop.f32.mrb[0].mxu0
        %v5417 = vadd.f32 %v5264, %v5416
        %v5418 = vpop.f32.mrb[0].mxu0
        %v5419 = vadd.f32 %v5266, %v5418
        %5420 = vmatprep.mubr.bf16.mxu0 %v4214
        %5421 = vmatmul.mubr.bf16.gmra.mrb[0].mxu0 %v4213
        %v5422 = vpop.f32.mrb[0].mxu0
        %v5423 = vadd.f32 %v5270, %v5422
        %v5424 = vpop.f32.mrb[0].mxu0
        %v5425 = vadd.f32 %v5272, %v5424
        %v5426 = vpop.f32.mrb[0].mxu0
        %v5427 = vadd.f32 %v5274, %v5426
        %v5428 = vpop.f32.mrb[0].mxu0
        %v5429 = vadd.f32 %v5276, %v5428
        %5430 = vmatprep.mubr.bf16.mxu0 %v4219
        %5431 = vmatmul.mubr.bf16.gmra.mrb[0].mxu0 %v4218
        %v5432 = vpop.f32.mrb[0].mxu0
        %v5433 = vadd.f32 %v5280, %v5432
        %v5434 = vpop.f32.mrb[0].mxu0
        %v5435 = vadd.f32 %v5282, %v5434
        %v5436 = vpop.f32.mrb[0].mxu0
        %v5437 = vadd.f32 %v5284, %v5436
        %v5438 = vpop.f32.mrb[0].mxu0
        %v5439 = vadd.f32 %v5286, %v5438
        %5440 = vmatprep.mubr.bf16.mxu0 %v4224
        %5441 = vmatmul.mubr.bf16.gmra.mrb[0].mxu0 %v4223
        %v5442 = vpop.f32.mrb[0].mxu0
        %v5443 = vadd.f32 %v5290, %v5442
        %v5444 = vpop.f32.mrb[0].mxu0
        %v5445 = vadd.f32 %v5292, %v5444
        %v5446 = vpop.f32.mrb[0].mxu0
        %v5447 = vadd.f32 %v5294, %v5446
        %v5448 = vpop.f32.mrb[0].mxu0
        %v5449 = vadd.f32 %v5296, %v5448
        %5450 = vmatprep.mubr.bf16.mxu0 %v4229
        %5451 = vmatmul.mubr.bf16.gmra.mrb[0].mxu0 %v4228
        %v5452 = vpop.f32.mrb[0].mxu0
        %v5453 = vadd.f32 %v5300, %v5452
        %v5454 = vpop.f32.mrb[0].mxu0
        %v5455 = vadd.f32 %v5302, %v5454
        %v5456 = vpop.f32.mrb[0].mxu0
        %v5457 = vadd.f32 %v5304, %v5456
        %v5458 = vpop.f32.mrb[0].mxu0
        %v5459 = vadd.f32 %v5306, %v5458
        %5460 = vmatprep.mubr.bf16.mxu0 %v4234
        %5461 = vmatmul.mubr.bf16.gmra.mrb[0].mxu0 %v4233
        %v5462 = vpop.f32.mrb[0].mxu0
        %v5463 = vadd.f32 %v5310, %v5462
        %v5464 = vpop.f32.mrb[0].mxu0
        %v5465 = vadd.f32 %v5312, %v5464
        %v5466 = vpop.f32.mrb[0].mxu0
        %v5467 = vadd.f32 %v5314, %v5466
        %v5468 = vpop.f32.mrb[0].mxu0
        %v5469 = vadd.f32 %v5316, %v5468
        %5470 = vmatprep.mubr.bf16.mxu0 %v4239
        %5471 = vmatmul.mubr.bf16.gmra.mrb[0].mxu0 %v4238
        %v5472 = vpop.f32.mrb[0].mxu0
        %v5473 = vadd.f32 %v5320, %v5472
        %v5474 = vpop.f32.mrb[0].mxu0
        %v5475 = vadd.f32 %v5322, %v5474
        %v5476 = vpop.f32.mrb[0].mxu0
        %v5477 = vadd.f32 %v5324, %v5476
        %v5478 = vpop.f32.mrb[0].mxu0
        %v5479 = vadd.f32 %v5326, %v5478
        %5480 = vmatprep.mubr.bf16.mxu0 %v4244
        %5481 = vmatmul.mubr.bf16.gmra.mrb[0].mxu0 %v4243
        %v5482 = vpop.f32.mrb[0].mxu0
        %v5483 = vadd.f32 %v5330, %v5482
        %v5484 = vpop.f32.mrb[0].mxu0
        %v5485 = vadd.f32 %v5332, %v5484
        %v5486 = vpop.f32.mrb[0].mxu0
        %v5487 = vadd.f32 %v5334, %v5486
        %v5488 = vpop.f32.mrb[0].mxu0
        %v5489 = vadd.f32 %v5336, %v5488
        %5490 = vmatprep.mubr.bf16.mxu0 %v4249
        %5491 = vmatmul.mubr.bf16.gmra.mrb[0].mxu0 %v4248
        %v5492 = vpop.f32.mrb[0].mxu0
        %v5493 = vadd.f32 %v5340, %v5492
        %v5494 = vpop.f32.mrb[0].mxu0
        %v5495 = vadd.f32 %v5342, %v5494
        %v5496 = vpop.f32.mrb[0].mxu0
        %v5497 = vadd.f32 %v5344, %v5496
        %v5498 = vpop.f32.mrb[0].mxu0
        %v5499 = vadd.f32 %v5346, %v5498
        %5500 = vmatprep.mubr.bf16.mxu0 %v4254
        %5501 = vmatmul.mubr.bf16.gmra.mrb[0].mxu0 %v4253
        %v5502 = vpop.f32.mrb[0].mxu0
        %v5503 = vadd.f32 %v5350, %v5502
        %v5504 = vpop.f32.mrb[0].mxu0
        %v5505 = vadd.f32 %v5352, %v5504
        %v5506 = vpop.f32.mrb[0].mxu0
        %v5507 = vadd.f32 %v5354, %v5506
        %v5508 = vpop.f32.mrb[0].mxu0
        %v5509 = vadd.f32 %v5356, %v5508
        %5510 = vmatprep.mubr.bf16.mxu0 %v4259
        %5511 = vmatmul.mubr.bf16.gmra.mrb[0].mxu0 %v4258
        %v5512 = vpop.f32.mrb[0].mxu0
        %v5513 = vadd.f32 %v5360, %v5512
        %v5514 = vpop.f32.mrb[0].mxu0
        %v5515 = vadd.f32 %v5362, %v5514
        %v5516 = vpop.f32.mrb[0].mxu0
        %v5517 = vadd.f32 %v5364, %v5516
        %v5518 = vpop.f32.mrb[0].mxu0
        %v5519 = vadd.f32 %v5366, %v5518
        %5520 = vdwg.mxu0
        %5521 = vmatprep.subr.bf16.mxu0 %v2115
        %5522 = vmatpush1.bf16.msra.mxu0 %v2114
        %5523 = vmatprep.subr.bf16.mxu0 %v2121
        %5524 = vmatpush1.bf16.msra.mxu0 %v2120
        %5525 = vmatprep.subr.bf16.mxu0 %v2127
        %5526 = vmatpush1.bf16.msra.mxu0 %v2126
        %5527 = vmatprep.subr.bf16.mxu0 %v2133
        %5528 = vmatpush1.bf16.msra.mxu0 %v2132
        %5529 = vmatprep.subr.bf16.mxu0 %v2413
        %5530 = vmatpush1.bf16.msra.mxu0 %v2410
        %5531 = vmatprep.subr.bf16.mxu0 0
        %5532 = vmatpush1.bf16.msra.mxu0 0
        %5533 = vmatprep.subr.bf16.mxu0 0
        %5534 = vmatpush1.bf16.msra.mxu0 0
        %5535 = vmatprep.subr.bf16.mxu0 0
        %5536 = vmatpush1.bf16.msra.mxu0 0
        %5537 = vmatprep.subr.bf16.mxu0 0
        %5538 = vmatpush1.bf16.msra.mxu0 0
        %5539 = vmatprep.subr.bf16.mxu0 0
        %5540 = vmatpush1.bf16.msra.mxu0 0
        %5541 = vmatprep.subr.bf16.mxu0 0
        %5542 = vmatpush1.bf16.msra.mxu0 0
        %5543 = vmatprep.subr.bf16.mxu0 0
        %5544 = vmatpush1.bf16.msra.mxu0 0
        %5545 = vmatprep.subr.bf16.mxu0 0
        %5546 = vmatpush1.bf16.msra.mxu0 0
        %5547 = vmatprep.subr.bf16.mxu0 0
        %5548 = vmatpush1.bf16.msra.mxu0 0
        %5549 = vmatprep.subr.bf16.mxu0 0
        %5550 = vmatpush1.bf16.msra.mxu0 0
        %5551 = vmatprep.subr.bf16.mxu0 0
        %5552 = vmatpush1.bf16.msra.mxu0 0
        %5553 = vmatprep.mubr.bf16.mxu0 0
        %5554 = vmatmul.mubr.bf16.gmra.mrb[0].mxu0 %v4262
        %v5555 = vpop.f32.mrb[0].mxu0
        %v5556 = vadd.f32 %v5403, %v5555
        %v5557 = vpop.f32.mrb[0].mxu0
        %v5558 = vadd.f32 %v5405, %v5557
        %v5559 = vpop.f32.mrb[0].mxu0
        %v5560 = vadd.f32 %v5407, %v5559
        %v5561 = vpop.f32.mrb[0].mxu0
        %v5562 = vadd.f32 %v5409, %v5561
        %5563 = vmatprep.mubr.bf16.mxu0 0
        %5564 = vmatmul.mubr.bf16.gmra.mrb[0].mxu0 %v4265
        %v5565 = vpop.f32.mrb[0].mxu0
        %v5566 = vadd.f32 %v5413, %v5565
        %v5567 = vpop.f32.mrb[0].mxu0
        %v5568 = vadd.f32 %v5415, %v5567
        %v5569 = vpop.f32.mrb[0].mxu0
        %v5570 = vadd.f32 %v5417, %v5569
        %v5571 = vpop.f32.mrb[0].mxu0
        %v5572 = vadd.f32 %v5419, %v5571
        %5573 = vmatprep.mubr.bf16.mxu0 0
        %5574 = vmatmul.mubr.bf16.gmra.mrb[0].mxu0 %v4268
        %v5575 = vpop.f32.mrb[0].mxu0
        %v5576 = vadd.f32 %v5423, %v5575
        %v5577 = vpop.f32.mrb[0].mxu0
        %v5578 = vadd.f32 %v5425, %v5577
        %v5579 = vpop.f32.mrb[0].mxu0
        %v5580 = vadd.f32 %v5427, %v5579
        %v5581 = vpop.f32.mrb[0].mxu0
        %v5582 = vadd.f32 %v5429, %v5581
        %5583 = vmatprep.mubr.bf16.mxu0 0
        %5584 = vmatmul.mubr.bf16.gmra.mrb[0].mxu0 %v4271
        %v5585 = vpop.f32.mrb[0].mxu0
        %v5586 = vadd.f32 %v5433, %v5585
        %v5587 = vpop.f32.mrb[0].mxu0
        %v5588 = vadd.f32 %v5435, %v5587
        %v5589 = vpop.f32.mrb[0].mxu0
        %v5590 = vadd.f32 %v5437, %v5589
        %v5591 = vpop.f32.mrb[0].mxu0
        %v5592 = vadd.f32 %v5439, %v5591
        %5593 = vmatprep.mubr.bf16.mxu0 0
        %5594 = vmatmul.mubr.bf16.gmra.mrb[0].mxu0 %v4274
        %v5595 = vpop.f32.mrb[0].mxu0
        %v5596 = vadd.f32 %v5443, %v5595
        %v5597 = vpop.f32.mrb[0].mxu0
        %v5598 = vadd.f32 %v5445, %v5597
        %v5599 = vpop.f32.mrb[0].mxu0
        %v5600 = vadd.f32 %v5447, %v5599
        %v5601 = vpop.f32.mrb[0].mxu0
        %v5602 = vadd.f32 %v5449, %v5601
        %5603 = vmatprep.mubr.bf16.mxu0 0
        %5604 = vmatmul.mubr.bf16.gmra.mrb[0].mxu0 %v4277
        %v5605 = vpop.f32.mrb[0].mxu0
        %v5606 = vadd.f32 %v5453, %v5605
        %v5607 = vpop.f32.mrb[0].mxu0
        %v5608 = vadd.f32 %v5455, %v5607
        %v5609 = vpop.f32.mrb[0].mxu0
        %v5610 = vadd.f32 %v5457, %v5609
        %v5611 = vpop.f32.mrb[0].mxu0
        %v5612 = vadd.f32 %v5459, %v5611
        %5613 = vmatprep.mubr.bf16.mxu0 0
        %5614 = vmatmul.mubr.bf16.gmra.mrb[0].mxu0 %v4280
        %v5615 = vpop.f32.mrb[0].mxu0
        %v5616 = vadd.f32 %v5463, %v5615
        %v5617 = vpop.f32.mrb[0].mxu0
        %v5618 = vadd.f32 %v5465, %v5617
        %v5619 = vpop.f32.mrb[0].mxu0
        %v5620 = vadd.f32 %v5467, %v5619
        %v5621 = vpop.f32.mrb[0].mxu0
        %v5622 = vadd.f32 %v5469, %v5621
        %5623 = vmatprep.mubr.bf16.mxu0 0
        %5624 = vmatmul.mubr.bf16.gmra.mrb[0].mxu0 %v4283
        %v5625 = vpop.f32.mrb[0].mxu0
        %v5626 = vadd.f32 %v5473, %v5625
        %v5627 = vpop.f32.mrb[0].mxu0
        %v5628 = vadd.f32 %v5475, %v5627
        %v5629 = vpop.f32.mrb[0].mxu0
        %v5630 = vadd.f32 %v5477, %v5629
        %v5631 = vpop.f32.mrb[0].mxu0
        %v5632 = vadd.f32 %v5479, %v5631
        %5633 = vmatprep.mubr.bf16.mxu0 0
        %5634 = vmatmul.mubr.bf16.gmra.mrb[0].mxu0 %v4286
        %v5635 = vpop.f32.mrb[0].mxu0
        %v5636 = vadd.f32 %v5483, %v5635
        %v5637 = vpop.f32.mrb[0].mxu0
        %v5638 = vadd.f32 %v5485, %v5637
        %v5639 = vpop.f32.mrb[0].mxu0
        %v5640 = vadd.f32 %v5487, %v5639
        %v5641 = vpop.f32.mrb[0].mxu0
        %v5642 = vadd.f32 %v5489, %v5641
        %5643 = vmatprep.mubr.bf16.mxu0 0
        %5644 = vmatmul.mubr.bf16.gmra.mrb[0].mxu0 %v4289
        %v5645 = vpop.f32.mrb[0].mxu0
        %v5646 = vadd.f32 %v5493, %v5645
        %v5647 = vpop.f32.mrb[0].mxu0
        %v5648 = vadd.f32 %v5495, %v5647
        %v5649 = vpop.f32.mrb[0].mxu0
        %v5650 = vadd.f32 %v5497, %v5649
        %v5651 = vpop.f32.mrb[0].mxu0
        %v5652 = vadd.f32 %v5499, %v5651
        %5653 = vmatprep.mubr.bf16.mxu0 0
        %5654 = vmatmul.mubr.bf16.gmra.mrb[0].mxu0 %v4292
        %v5655 = vpop.f32.mrb[0].mxu0
        %v5656 = vadd.f32 %v5503, %v5655
        %v5657 = vpop.f32.mrb[0].mxu0
        %v5658 = vadd.f32 %v5505, %v5657
        %v5659 = vpop.f32.mrb[0].mxu0
        %v5660 = vadd.f32 %v5507, %v5659
        %v5661 = vpop.f32.mrb[0].mxu0
        %v5662 = vadd.f32 %v5509, %v5661
        %5663 = vmatprep.mubr.bf16.mxu0 0
        %5664 = vmatmul.mubr.bf16.gmra.mrb[0].mxu0 %v4295
        %v5665 = vpop.f32.mrb[0].mxu0
        %v5666 = vadd.f32 %v5513, %v5665
        %v5667 = vpop.f32.mrb[0].mxu0
        %v5668 = vadd.f32 %v5515, %v5667
        %v5669 = vpop.f32.mrb[0].mxu0
        %v5670 = vadd.f32 %v5517, %v5669
        %v5671 = vpop.f32.mrb[0].mxu0
        %v5672 = vadd.f32 %v5519, %v5671
        %5673 = vdwg.mxu0
        %v5674 = vmax.f32 %v4638, 0.0
        %v5675 = vmax.f32 %v4640, 0.0
        %v5676 = vmax.f32 %v5097, 0.0
        %v5677 = vmax.f32 %v5099, 0.0
        %v5678 = vmax.f32 %v5556, 0.0
        %v5679 = vmax.f32 %v5558, 0.0
        %v5680 = vmax.f32 %v4642, 0.0
        %v5681 = vmax.f32 %v4644, 0.0
        %v5682 = vmax.f32 %v5101, 0.0
        %v5683 = vmax.f32 %v5103, 0.0
        %v5684 = vmax.f32 %v5560, 0.0
        %v5685 = vmax.f32 %v5562, 0.0
        %v5686 = vmax.f32 %v4648, 0.0
        %v5687 = vmax.f32 %v4650, 0.0
        %v5688 = vmax.f32 %v5107, 0.0
        %v5689 = vmax.f32 %v5109, 0.0
        %v5690 = vmax.f32 %v5566, 0.0
        %v5691 = vmax.f32 %v5568, 0.0
        %v5692 = vmax.f32 %v4652, 0.0
        %v5693 = vmax.f32 %v4654, 0.0
        %v5694 = vmax.f32 %v5111, 0.0
        %v5695 = vmax.f32 %v5113, 0.0
        %v5696 = vmax.f32 %v5570, 0.0
        %v5697 = vmax.f32 %v5572, 0.0
        %v5698 = vmax.f32 %v4658, 0.0
        %v5699 = vmax.f32 %v4660, 0.0
        %v5700 = vmax.f32 %v5117, 0.0
        %v5701 = vmax.f32 %v5119, 0.0
        %v5702 = vmax.f32 %v5576, 0.0
        %v5703 = vmax.f32 %v5578, 0.0
        %v5704 = vmax.f32 %v4662, 0.0
        %v5705 = vmax.f32 %v4664, 0.0
        %v5706 = vmax.f32 %v5121, 0.0
        %v5707 = vmax.f32 %v5123, 0.0
        %v5708 = vmax.f32 %v5580, 0.0
        %v5709 = vmax.f32 %v5582, 0.0
        %v5710 = vmax.f32 %v4668, 0.0
        %v5711 = vmax.f32 %v4670, 0.0
        %v5712 = vmax.f32 %v5127, 0.0
        %v5713 = vmax.f32 %v5129, 0.0
        %v5714 = vmax.f32 %v5586, 0.0
        %v5715 = vmax.f32 %v5588, 0.0
        %v5716 = vmax.f32 %v4672, 0.0
        %v5717 = vmax.f32 %v4674, 0.0
        %v5718 = vmax.f32 %v5131, 0.0
        %v5719 = vmax.f32 %v5133, 0.0
        %v5720 = vmax.f32 %v5590, 0.0
        %v5721 = vmax.f32 %v5592, 0.0
        %v5722 = vmax.f32 %v4678, 0.0
        %v5723 = vmax.f32 %v4680, 0.0
        %v5724 = vmax.f32 %v5137, 0.0
        %v5725 = vmax.f32 %v5139, 0.0
        %v5726 = vmax.f32 %v5596, 0.0
        %v5727 = vmax.f32 %v5598, 0.0
        %v5728 = vmax.f32 %v4682, 0.0
        %v5729 = vmax.f32 %v4684, 0.0
        %v5730 = vmax.f32 %v5141, 0.0
        %v5731 = vmax.f32 %v5143, 0.0
        %v5732 = vmax.f32 %v5600, 0.0
        %v5733 = vmax.f32 %v5602, 0.0
        %v5734 = vmax.f32 %v4688, 0.0
        %v5735 = vmax.f32 %v4690, 0.0
        %v5736 = vmax.f32 %v5147, 0.0
        %v5737 = vmax.f32 %v5149, 0.0
        %v5738 = vmax.f32 %v5606, 0.0
        %v5739 = vmax.f32 %v5608, 0.0
        %v5740 = vmax.f32 %v4692, 0.0
        %v5741 = vmax.f32 %v4694, 0.0
        %v5742 = vmax.f32 %v5151, 0.0
        %v5743 = vmax.f32 %v5153, 0.0
        %v5744 = vmax.f32 %v5610, 0.0
        %v5745 = vmax.f32 %v5612, 0.0
        %v5746 = vmax.f32 %v4698, 0.0
        %v5747 = vmax.f32 %v4700, 0.0
        %v5748 = vmax.f32 %v5157, 0.0
        %v5749 = vmax.f32 %v5159, 0.0
        %v5750 = vmax.f32 %v5616, 0.0
        %v5751 = vmax.f32 %v5618, 0.0
        %v5752 = vmax.f32 %v4702, 0.0
        %v5753 = vmax.f32 %v4704, 0.0
        %v5754 = vmax.f32 %v5161, 0.0
        %v5755 = vmax.f32 %v5163, 0.0
        %v5756 = vmax.f32 %v5620, 0.0
        %v5757 = vmax.f32 %v5622, 0.0
        %v5758 = vmax.f32 %v4708, 0.0
        %v5759 = vmax.f32 %v4710, 0.0
        %v5760 = vmax.f32 %v5167, 0.0
        %v5761 = vmax.f32 %v5169, 0.0
        %v5762 = vmax.f32 %v5626, 0.0
        %v5763 = vmax.f32 %v5628, 0.0
        %v5764 = vmax.f32 %v4712, 0.0
        %v5765 = vmax.f32 %v4714, 0.0
        %v5766 = vmax.f32 %v5171, 0.0
        %v5767 = vmax.f32 %v5173, 0.0
        %v5768 = vmax.f32 %v5630, 0.0
        %v5769 = vmax.f32 %v5632, 0.0
        %v5770 = vmax.f32 %v4718, 0.0
        %v5771 = vmax.f32 %v4720, 0.0
        %v5772 = vmax.f32 %v5177, 0.0
        %v5773 = vmax.f32 %v5179, 0.0
        %v5774 = vmax.f32 %v5636, 0.0
        %v5775 = vmax.f32 %v5638, 0.0
        %v5776 = vmax.f32 %v4722, 0.0
        %v5777 = vmax.f32 %v4724, 0.0
        %v5778 = vmax.f32 %v5181, 0.0
        %v5779 = vmax.f32 %v5183, 0.0
        %v5780 = vmax.f32 %v5640, 0.0
        %v5781 = vmax.f32 %v5642, 0.0
        %v5782 = vmax.f32 %v4728, 0.0
        %v5783 = vmax.f32 %v4730, 0.0
        %v5784 = vmax.f32 %v5187, 0.0
        %v5785 = vmax.f32 %v5189, 0.0
        %v5786 = vmax.f32 %v5646, 0.0
        %v5787 = vmax.f32 %v5648, 0.0
        %v5788 = vmax.f32 %v4732, 0.0
        %v5789 = vmax.f32 %v4734, 0.0
        %v5790 = vmax.f32 %v5191, 0.0
        %v5791 = vmax.f32 %v5193, 0.0
        %v5792 = vmax.f32 %v5650, 0.0
        %v5793 = vmax.f32 %v5652, 0.0
        %v5794 = vmax.f32 %v4738, 0.0
        %v5795 = vmax.f32 %v4740, 0.0
        %v5796 = vmax.f32 %v5197, 0.0
        %v5797 = vmax.f32 %v5199, 0.0
        %v5798 = vmax.f32 %v5656, 0.0
        %v5799 = vmax.f32 %v5658, 0.0
        %v5800 = vmax.f32 %v4742, 0.0
        %v5801 = vmax.f32 %v4744, 0.0
        %v5802 = vmax.f32 %v5201, 0.0
        %v5803 = vmax.f32 %v5203, 0.0
        %v5804 = vmax.f32 %v5660, 0.0
        %v5805 = vmax.f32 %v5662, 0.0
        %v5806 = vmax.f32 %v4748, 0.0
        %v5807 = vmax.f32 %v4750, 0.0
        %v5808 = vmax.f32 %v5207, 0.0
        %v5809 = vmax.f32 %v5209, 0.0
        %v5810 = vmax.f32 %v5666, 0.0
        %v5811 = vmax.f32 %v5668, 0.0
        %v5812 = vmax.f32 %v4752, 0.0
        %v5813 = vmax.f32 %v4754, 0.0
        %v5814 = vmax.f32 %v5211, 0.0
        %v5815 = vmax.f32 %v5213, 0.0
        %v5816 = vmax.f32 %v5670, 0.0
        %v5817 = vmax.f32 %v5672, 0.0
        %v5818 = vpack.c.bf16 %v5680, %v5674
        %v5819 = vpack.c.bf16 %v5681, %v5675
        %v5820 = vpack.c.bf16 %v5682, %v5676
        %v5821 = vpack.c.bf16 %v5683, %v5677
        %v5822 = vpack.c.bf16 %v5684, %v5678
        %v5823 = vpack.c.bf16 %v5685, %v5679
        %v5824 = vpack.c.bf16 %v5692, %v5686
        %v5825 = vpack.c.bf16 %v5693, %v5687
        %v5826 = vpack.c.bf16 %v5694, %v5688
        %v5827 = vpack.c.bf16 %v5695, %v5689
        %v5828 = vpack.c.bf16 %v5696, %v5690
        %v5829 = vpack.c.bf16 %v5697, %v5691
        %v5830 = vpack.c.bf16 %v5704, %v5698
        %v5831 = vpack.c.bf16 %v5705, %v5699
        %v5832 = vpack.c.bf16 %v5706, %v5700
        %v5833 = vpack.c.bf16 %v5707, %v5701
        %v5834 = vpack.c.bf16 %v5708, %v5702
        %v5835 = vpack.c.bf16 %v5709, %v5703
        %v5836 = vpack.c.bf16 %v5716, %v5710
        %v5837 = vpack.c.bf16 %v5717, %v5711
        %v5838 = vpack.c.bf16 %v5718, %v5712
        %v5839 = vpack.c.bf16 %v5719, %v5713
        %v5840 = vpack.c.bf16 %v5720, %v5714
        %v5841 = vpack.c.bf16 %v5721, %v5715
        %v5842 = vpack.c.bf16 %v5728, %v5722
        %v5843 = vpack.c.bf16 %v5729, %v5723
        %v5844 = vpack.c.bf16 %v5730, %v5724
        %v5845 = vpack.c.bf16 %v5731, %v5725
        %v5846 = vpack.c.bf16 %v5732, %v5726
        %v5847 = vpack.c.bf16 %v5733, %v5727
        %v5848 = vpack.c.bf16 %v5740, %v5734
        %v5849 = vpack.c.bf16 %v5741, %v5735
        %v5850 = vpack.c.bf16 %v5742, %v5736
        %v5851 = vpack.c.bf16 %v5743, %v5737
        %v5852 = vpack.c.bf16 %v5744, %v5738
        %v5853 = vpack.c.bf16 %v5745, %v5739
        %v5854 = vpack.c.bf16 %v5752, %v5746
        %v5855 = vpack.c.bf16 %v5753, %v5747
        %v5856 = vpack.c.bf16 %v5754, %v5748
        %v5857 = vpack.c.bf16 %v5755, %v5749
        %v5858 = vpack.c.bf16 %v5756, %v5750
        %v5859 = vpack.c.bf16 %v5757, %v5751
        %v5860 = vpack.c.bf16 %v5764, %v5758
        %v5861 = vpack.c.bf16 %v5765, %v5759
        %v5862 = vpack.c.bf16 %v5766, %v5760
        %v5863 = vpack.c.bf16 %v5767, %v5761
        %v5864 = vpack.c.bf16 %v5768, %v5762
        %v5865 = vpack.c.bf16 %v5769, %v5763
        %v5866 = vpack.c.bf16 %v5776, %v5770
        %v5867 = vpack.c.bf16 %v5777, %v5771
        %v5868 = vpack.c.bf16 %v5778, %v5772
        %v5869 = vpack.c.bf16 %v5779, %v5773
        %v5870 = vpack.c.bf16 %v5780, %v5774
        %v5871 = vpack.c.bf16 %v5781, %v5775
        %v5872 = vpack.c.bf16 %v5788, %v5782
        %v5873 = vpack.c.bf16 %v5789, %v5783
        %v5874 = vpack.c.bf16 %v5790, %v5784
        %v5875 = vpack.c.bf16 %v5791, %v5785
        %v5876 = vpack.c.bf16 %v5792, %v5786
        %v5877 = vpack.c.bf16 %v5793, %v5787
        %v5878 = vpack.c.bf16 %v5800, %v5794
        %v5879 = vpack.c.bf16 %v5801, %v5795
        %v5880 = vpack.c.bf16 %v5802, %v5796
        %v5881 = vpack.c.bf16 %v5803, %v5797
        %v5882 = vpack.c.bf16 %v5804, %v5798
        %v5883 = vpack.c.bf16 %v5805, %v5799
        %v5884 = vpack.c.bf16 %v5812, %v5806
        %v5885 = vpack.c.bf16 %v5813, %v5807
        %v5886 = vpack.c.bf16 %v5814, %v5808
        %v5887 = vpack.c.bf16 %v5815, %v5809
        %v5888 = vpack.c.bf16 %v5816, %v5810
        %v5889 = vpack.c.bf16 %v5817, %v5811
        %s5890 = scalar_lea.vmem [#allocation2], 576
        %5891 = vst [vmem:[%s5890] sm:$0xff] %v5818
        %5892 = vst [vmem:[%s5890 + $0x8] sm:$0xff] %v5819
        %5893 = vst [vmem:[%s5890 + $0x10] sm:$0xff] %v5820
        %5894 = vst [vmem:[%s5890 + $0x18] sm:$0xff] %v5821
        %5895 = vst [vmem:[%s5890 + $0x20] sm:$0xff] %v5822
        %5896 = vst [vmem:[%s5890 + $0x28] sm:$0xff] %v5823
        %5897 = vst [vmem:[%s5890 + $0x30] sm:$0xff] %v5824
        %5898 = vst [vmem:[%s5890 + $0x38] sm:$0xff] %v5825
        %5899 = vst [vmem:[%s5890 + $0x40] sm:$0xff] %v5826
        %5900 = vst [vmem:[%s5890 + $0x48] sm:$0xff] %v5827
        %5901 = vst [vmem:[%s5890 + $0x50] sm:$0xff] %v5828
        %5902 = vst [vmem:[%s5890 + $0x58] sm:$0xff] %v5829
        %5903 = vst [vmem:[%s5890 + $0x60] sm:$0xff] %v5830
        %5904 = vst [vmem:[%s5890 + $0x68] sm:$0xff] %v5831
        %5905 = vst [vmem:[%s5890 + $0x70] sm:$0xff] %v5832
        %5906 = vst [vmem:[%s5890 + $0x78] sm:$0xff] %v5833
        %5907 = vst [vmem:[%s5890 + $0x80] sm:$0xff] %v5834
        %5908 = vst [vmem:[%s5890 + $0x88] sm:$0xff] %v5835
        %5909 = vst [vmem:[%s5890 + $0x90] sm:$0xff] %v5836
        %5910 = vst [vmem:[%s5890 + $0x98] sm:$0xff] %v5837
        %5911 = vst [vmem:[%s5890 + $0xa0] sm:$0xff] %v5838
        %5912 = vst [vmem:[%s5890 + $0xa8] sm:$0xff] %v5839
        %5913 = vst [vmem:[%s5890 + $0xb0] sm:$0xff] %v5840
        %5914 = vst [vmem:[%s5890 + $0xb8] sm:$0xff] %v5841
        %5915 = vst [vmem:[%s5890 + $0xc0] sm:$0xff] %v5842
        %5916 = vst [vmem:[%s5890 + $0xc8] sm:$0xff] %v5843
        %5917 = vst [vmem:[%s5890 + $0xd0] sm:$0xff] %v5844
        %5918 = vst [vmem:[%s5890 + $0xd8] sm:$0xff] %v5845
        %5919 = vst [vmem:[%s5890 + $0xe0] sm:$0xff] %v5846
        %5920 = vst [vmem:[%s5890 + $0xe8] sm:$0xff] %v5847
        %5921 = vst [vmem:[%s5890 + $0xf0] sm:$0xff] %v5848
        %5922 = vst [vmem:[%s5890 + $0xf8] sm:$0xff] %v5849
        %5923 = vst [vmem:[%s5890 + $0x100] sm:$0xff] %v5850
        %5924 = vst [vmem:[%s5890 + $0x108] sm:$0xff] %v5851
        %5925 = vst [vmem:[%s5890 + $0x110] sm:$0xff] %v5852
        %5926 = vst [vmem:[%s5890 + $0x118] sm:$0xff] %v5853
        %5927 = vst [vmem:[%s5890 + $0x120] sm:$0xff] %v5854
        %5928 = vst [vmem:[%s5890 + $0x128] sm:$0xff] %v5855
        %5929 = vst [vmem:[%s5890 + $0x130] sm:$0xff] %v5856
        %5930 = vst [vmem:[%s5890 + $0x138] sm:$0xff] %v5857
        %5931 = vst [vmem:[%s5890 + $0x140] sm:$0xff] %v5858
        %5932 = vst [vmem:[%s5890 + $0x148] sm:$0xff] %v5859
        %5933 = vst [vmem:[%s5890 + $0x150] sm:$0xff] %v5860
        %5934 = vst [vmem:[%s5890 + $0x158] sm:$0xff] %v5861
        %5935 = vst [vmem:[%s5890 + $0x160] sm:$0xff] %v5862
        %5936 = vst [vmem:[%s5890 + $0x168] sm:$0xff] %v5863
        %5937 = vst [vmem:[%s5890 + $0x170] sm:$0xff] %v5864
        %5938 = vst [vmem:[%s5890 + $0x178] sm:$0xff] %v5865
        %5939 = vst [vmem:[%s5890 + $0x180] sm:$0xff] %v5866
        %5940 = vst [vmem:[%s5890 + $0x188] sm:$0xff] %v5867
        %5941 = vst [vmem:[%s5890 + $0x190] sm:$0xff] %v5868
        %5942 = vst [vmem:[%s5890 + $0x198] sm:$0xff] %v5869
        %5943 = vst [vmem:[%s5890 + $0x1a0] sm:$0xff] %v5870
        %5944 = vst [vmem:[%s5890 + $0x1a8] sm:$0xff] %v5871
        %5945 = vst [vmem:[%s5890 + $0x1b0] sm:$0xff] %v5872
        %5946 = vst [vmem:[%s5890 + $0x1b8] sm:$0xff] %v5873
        %5947 = vst [vmem:[%s5890 + $0x1c0] sm:$0xff] %v5874
        %5948 = vst [vmem:[%s5890 + $0x1c8] sm:$0xff] %v5875
        %5949 = vst [vmem:[%s5890 + $0x1d0] sm:$0xff] %v5876
        %5950 = vst [vmem:[%s5890 + $0x1d8] sm:$0xff] %v5877
        %5951 = vst [vmem:[%s5890 + $0x1e0] sm:$0xff] %v5878
        %5952 = vst [vmem:[%s5890 + $0x1e8] sm:$0xff] %v5879
        %5953 = vst [vmem:[%s5890 + $0x1f0] sm:$0xff] %v5880
        %5954 = vst [vmem:[%s5890 + $0x1f8] sm:$0xff] %v5881
        %5955 = vst [vmem:[%s5890 + $0x200] sm:$0xff] %v5882
        %5956 = vst [vmem:[%s5890 + $0x208] sm:$0xff] %v5883
        %5957 = vst [vmem:[%s5890 + $0x210] sm:$0xff] %v5884
        %5958 = vst [vmem:[%s5890 + $0x218] sm:$0xff] %v5885
        %5959 = vst [vmem:[%s5890 + $0x220] sm:$0xff] %v5886
        %5960 = vst [vmem:[%s5890 + $0x228] sm:$0xff] %v5887
        %5961 = vst [vmem:[%s5890 + $0x230] sm:$0xff] %v5888
        %5962 = vst [vmem:[%s5890 + $0x238] sm:$0xff] %v5889
        loop: start=0, step=1, limit=6
        $region68: #{image_classifier_forward.1} parent=54 // loop_pre_header
          _
        $region69: #{image_classifier_forward.1} parent=54 // loop_header
          %s5964 = sphi 0, %s5968
          %p5965 = scmp.ge.s32.totalorder %s5964, 6
          %v5969 = vphi 0.0, %v6166
          %v5970 = vphi 0.0, %v6167
          %v5971 = vphi 0.0, %v6168
          %v5972 = vphi 0.0, %v6169
          %v5973 = vphi 0.0, %v6170
          %v5974 = vphi 0.0, %v6171
          %v5975 = vphi 0.0, %v6277
          %v5976 = vphi 0.0, %v6278
          %v5977 = vphi 0.0, %v6279
          %v5978 = vphi 0.0, %v6280
          %v5979 = vphi 0.0, %v6281
          %v5980 = vphi 0.0, %v6282
        $region70: #{image_classifier_forward.1} parent=54 // loop_header_branch
          %5967 = sbr.rel (%p5965) target = $region74
        $region71: #{image_classifier_forward.1} parent=54 // loop_body
          %s5981 = smul.u32 %s5964, 32
          %s5982 = sshra.s32 %s5981, 3
          %s5983 = sand.u32 %s5981, 7
          %s5984 = smul.u32 %s5982, 6
          %s5985 = smul.addr %s5984, 4
          %s5986 = scalar_lea.vmem %s753, %s5985 [#allocation5]
          %v5987 = vld [vmem:[%s5986] sm:$0xff]
          %v5988 = vld [vmem:[%s5986 + $0x8] sm:$0xff]
          %v5989 = vld [vmem:[%s5986 + $0x10] sm:$0xff]
          %v5990 = vld [vmem:[%s5986 + $0x18] sm:$0xff]
          %v5991 = vld [vmem:[%s5986 + $0x20] sm:$0xff]
          %v5992 = vld [vmem:[%s5986 + $0x28] sm:$0xff]
          %v5993 = vld [vmem:[%s5986 + $0x30] sm:$0xff]
          %v5994 = vld [vmem:[%s5986 + $0x38] sm:$0xff]
          %v5995 = vld [vmem:[%s5986 + $0x40] sm:$0xff]
          %v5996 = vld [vmem:[%s5986 + $0x48] sm:$0xff]
          %v5997 = vld [vmem:[%s5986 + $0x50] sm:$0xff]
          %v5998 = vld [vmem:[%s5986 + $0x58] sm:$0xff]
          %s5999 = sshra.s32 %s5981, 4
          %s6000 = sand.u32 %s5981, 15
          %s6001 = smul.u32 %s5999, 6
          %s6002 = smul.addr %s6001, 8
          %s6003 = scalar_lea.vmem [#allocation2], %s6002
          %v6004 = vld [vmem:[%s6003] sm:$0xff]
          %v6005 = vld [vmem:[%s6003 + $0x8] sm:$0xff]
          %v6006 = vld [vmem:[%s6003 + $0x10] sm:$0xff]
          %v6007 = vld [vmem:[%s6003 + $0x18] sm:$0xff]
          %v6008 = vld [vmem:[%s6003 + $0x20] sm:$0xff]
          %v6009 = vld [vmem:[%s6003 + $0x28] sm:$0xff]
          %v6010 = vld [vmem:[%s6003 + $0x30] sm:$0xff]
          %v6011 = vld [vmem:[%s6003 + $0x38] sm:$0xff]
          %v6012 = vld [vmem:[%s6003 + $0x40] sm:$0xff]
          %v6013 = vld [vmem:[%s6003 + $0x48] sm:$0xff]
          %v6014 = vld [vmem:[%s6003 + $0x50] sm:$0xff]
          %v6015 = vld [vmem:[%s6003 + $0x58] sm:$0xff]
          %v6028 = vunpack.c.l.b16 %v5987
          %v6029 = vunpack.c.h.b16 %v5987
          %v6030 = vunpack.c.l.b16 %v5988
          %v6031 = vunpack.c.h.b16 %v5988
          %v6032 = vunpack.c.l.b16 %v5989
          %v6033 = vunpack.c.h.b16 %v5989
          %v6034 = vunpack.c.l.b16 %v5990
          %v6035 = vunpack.c.h.b16 %v5990
          %v6036 = vunpack.c.l.b16 %v5991
          %v6037 = vunpack.c.h.b16 %v5991
          %v6038 = vunpack.c.l.b16 %v5992
          %v6039 = vunpack.c.h.b16 %v5992
          %v6040 = vunpack.c.l.b16 %v5993
          %v6041 = vunpack.c.h.b16 %v5993
          %v6042 = vunpack.c.l.b16 %v5994
          %v6043 = vunpack.c.h.b16 %v5994
          %v6044 = vunpack.c.l.b16 %v5995
          %v6045 = vunpack.c.h.b16 %v5995
          %v6046 = vunpack.c.l.b16 %v5996
          %v6047 = vunpack.c.h.b16 %v5996
          %v6048 = vunpack.c.l.b16 %v5997
          %v6049 = vunpack.c.h.b16 %v5997
          %v6050 = vunpack.c.l.b16 %v5998
          %v6051 = vunpack.c.h.b16 %v5998
          %v6052 = vpack.c.b16 %v6034, %v6028
          %v6053 = vpack.c.b16 %v6035, %v6029
          %v6054 = vpack.c.b16 %v6036, %v6030
          %v6055 = vpack.c.b16 %v6037, %v6031
          %v6056 = vpack.c.b16 %v6038, %v6032
          %v6057 = vpack.c.b16 %v6039, %v6033
          %v6058 = vpack.c.b16 %v6046, %v6040
          %v6059 = vpack.c.b16 %v6047, %v6041
          %v6060 = vpack.c.b16 %v6048, %v6042
          %v6061 = vpack.c.b16 %v6049, %v6043
          %v6062 = vpack.c.b16 %v6050, %v6044
          %v6063 = vpack.c.b16 %v6051, %v6045
          %v6076 = vmul.bf16 %v6004, %v6052
          %v6077 = vmul.bf16 %v6005, %v6053
          %v6078 = vmul.bf16 %v6006, %v6054
          %v6079 = vmul.bf16 %v6007, %v6055
          %v6080 = vmul.bf16 %v6008, %v6056
          %v6081 = vmul.bf16 %v6009, %v6057
          %v6082 = vmul.bf16 %v6010, %v6058
          %v6083 = vmul.bf16 %v6011, %v6059
          %v6084 = vmul.bf16 %v6012, %v6060
          %v6085 = vmul.bf16 %v6013, %v6061
          %v6086 = vmul.bf16 %v6014, %v6062
          %v6087 = vmul.bf16 %v6015, %v6063
          %v6088 = vunpack.c.l.bf16 %v6076
          %v6089 = vunpack.c.l.bf16 %v6077
          %v6090 = vunpack.c.l.bf16 %v6078
          %v6091 = vunpack.c.l.bf16 %v6079
          %v6092 = vunpack.c.l.bf16 %v6080
          %v6093 = vunpack.c.l.bf16 %v6081
          %v6094 = vunpack.c.h.bf16 %v6076
          %v6095 = vunpack.c.h.bf16 %v6077
          %v6096 = vunpack.c.h.bf16 %v6078
          %v6097 = vunpack.c.h.bf16 %v6079
          %v6098 = vunpack.c.h.bf16 %v6080
          %v6099 = vunpack.c.h.bf16 %v6081
          %v6100 = vunpack.c.l.bf16 %v6082
          %v6101 = vunpack.c.l.bf16 %v6083
          %v6102 = vunpack.c.l.bf16 %v6084
          %v6103 = vunpack.c.l.bf16 %v6085
          %v6104 = vunpack.c.l.bf16 %v6086
          %v6105 = vunpack.c.l.bf16 %v6087
          %v6106 = vunpack.c.h.bf16 %v6082
          %v6107 = vunpack.c.h.bf16 %v6083
          %v6108 = vunpack.c.h.bf16 %v6084
          %v6109 = vunpack.c.h.bf16 %v6085
          %v6110 = vunpack.c.h.bf16 %v6086
          %v6111 = vunpack.c.h.bf16 %v6087
          %v6112 = vadd.f32 %v6088, %v6094
          %v6113 = vadd.f32 %v6112, %v6100
          %v6114 = vadd.f32 %v6113, %v6106
          %v6115 = vrot.slane %v6114, 4
          %v6116 = vadd.f32 %v6114, %v6115
          %v6117 = vrot.slane %v6116, 2
          %v6118 = vadd.f32 %v6116, %v6117
          %v6119 = vrot.slane %v6118, 1
          %v6120 = vadd.f32 %v6118, %v6119
          %v6121 = vadd.f32 %v6089, %v6095
          %v6122 = vadd.f32 %v6121, %v6101
          %v6123 = vadd.f32 %v6122, %v6107
          %v6124 = vrot.slane %v6123, 4
          %v6125 = vadd.f32 %v6123, %v6124
          %v6126 = vrot.slane %v6125, 2
          %v6127 = vadd.f32 %v6125, %v6126
          %v6128 = vrot.slane %v6127, 1
          %v6129 = vadd.f32 %v6127, %v6128
          %v6130 = vadd.f32 %v6090, %v6096
          %v6131 = vadd.f32 %v6130, %v6102
          %v6132 = vadd.f32 %v6131, %v6108
          %v6133 = vrot.slane %v6132, 4
          %v6134 = vadd.f32 %v6132, %v6133
          %v6135 = vrot.slane %v6134, 2
          %v6136 = vadd.f32 %v6134, %v6135
          %v6137 = vrot.slane %v6136, 1
          %v6138 = vadd.f32 %v6136, %v6137
          %v6139 = vadd.f32 %v6091, %v6097
          %v6140 = vadd.f32 %v6139, %v6103
          %v6141 = vadd.f32 %v6140, %v6109
          %v6142 = vrot.slane %v6141, 4
          %v6143 = vadd.f32 %v6141, %v6142
          %v6144 = vrot.slane %v6143, 2
          %v6145 = vadd.f32 %v6143, %v6144
          %v6146 = vrot.slane %v6145, 1
          %v6147 = vadd.f32 %v6145, %v6146
          %v6148 = vadd.f32 %v6092, %v6098
          %v6149 = vadd.f32 %v6148, %v6104
          %v6150 = vadd.f32 %v6149, %v6110
          %v6151 = vrot.slane %v6150, 4
          %v6152 = vadd.f32 %v6150, %v6151
          %v6153 = vrot.slane %v6152, 2
          %v6154 = vadd.f32 %v6152, %v6153
          %v6155 = vrot.slane %v6154, 1
          %v6156 = vadd.f32 %v6154, %v6155
          %v6157 = vadd.f32 %v6093, %v6099
          %v6158 = vadd.f32 %v6157, %v6105
          %v6159 = vadd.f32 %v6158, %v6111
          %v6160 = vrot.slane %v6159, 4
          %v6161 = vadd.f32 %v6159, %v6160
          %v6162 = vrot.slane %v6161, 2
          %v6163 = vadd.f32 %v6161, %v6162
          %v6164 = vrot.slane %v6163, 1
          %v6165 = vadd.f32 %v6163, %v6164
          %v6166 = vadd.f32 %v5969, %v6120
          %v6167 = vadd.f32 %v5970, %v6129
          %v6168 = vadd.f32 %v5971, %v6138
          %v6169 = vadd.f32 %v5972, %v6147
          %v6170 = vadd.f32 %v5973, %v6156
          %v6171 = vadd.f32 %v5974, %v6165
          %s6172 = sadd.s32 %s6001, 72
          %s6173 = smul.addr %s6172, 8
          %s6174 = scalar_lea.vmem [#allocation2], %s6173
          %v6175 = vld [vmem:[%s6174] sm:$0xff]
          %v6176 = vld [vmem:[%s6174 + $0x8] sm:$0xff]
          %v6177 = vld [vmem:[%s6174 + $0x10] sm:$0xff]
          %v6178 = vld [vmem:[%s6174 + $0x18] sm:$0xff]
          %v6179 = vld [vmem:[%s6174 + $0x20] sm:$0xff]
          %v6180 = vld [vmem:[%s6174 + $0x28] sm:$0xff]
          %v6181 = vld [vmem:[%s6174 + $0x30] sm:$0xff]
          %v6182 = vld [vmem:[%s6174 + $0x38] sm:$0xff]
          %v6183 = vld [vmem:[%s6174 + $0x40] sm:$0xff]
          %v6184 = vld [vmem:[%s6174 + $0x48] sm:$0xff]
          %v6185 = vld [vmem:[%s6174 + $0x50] sm:$0xff]
          %v6186 = vld [vmem:[%s6174 + $0x58] sm:$0xff]
          %v6187 = vmul.bf16 %v6175, %v6052
          %v6188 = vmul.bf16 %v6176, %v6053
          %v6189 = vmul.bf16 %v6177, %v6054
          %v6190 = vmul.bf16 %v6178, %v6055
          %v6191 = vmul.bf16 %v6179, %v6056
          %v6192 = vmul.bf16 %v6180, %v6057
          %v6193 = vmul.bf16 %v6181, %v6058
          %v6194 = vmul.bf16 %v6182, %v6059
          %v6195 = vmul.bf16 %v6183, %v6060
          %v6196 = vmul.bf16 %v6184, %v6061
          %v6197 = vmul.bf16 %v6185, %v6062
          %v6198 = vmul.bf16 %v6186, %v6063
          %v6199 = vunpack.c.l.bf16 %v6187
          %v6200 = vunpack.c.l.bf16 %v6188
          %v6201 = vunpack.c.l.bf16 %v6189
          %v6202 = vunpack.c.l.bf16 %v6190
          %v6203 = vunpack.c.l.bf16 %v6191
          %v6204 = vunpack.c.l.bf16 %v6192
          %v6205 = vunpack.c.h.bf16 %v6187
          %v6206 = vunpack.c.h.bf16 %v6188
          %v6207 = vunpack.c.h.bf16 %v6189
          %v6208 = vunpack.c.h.bf16 %v6190
          %v6209 = vunpack.c.h.bf16 %v6191
          %v6210 = vunpack.c.h.bf16 %v6192
          %v6211 = vunpack.c.l.bf16 %v6193
          %v6212 = vunpack.c.l.bf16 %v6194
          %v6213 = vunpack.c.l.bf16 %v6195
          %v6214 = vunpack.c.l.bf16 %v6196
          %v6215 = vunpack.c.l.bf16 %v6197
          %v6216 = vunpack.c.l.bf16 %v6198
          %v6217 = vunpack.c.h.bf16 %v6193
          %v6218 = vunpack.c.h.bf16 %v6194
          %v6219 = vunpack.c.h.bf16 %v6195
          %v6220 = vunpack.c.h.bf16 %v6196
          %v6221 = vunpack.c.h.bf16 %v6197
          %v6222 = vunpack.c.h.bf16 %v6198
          %v6223 = vadd.f32 %v6199, %v6205
          %v6224 = vadd.f32 %v6223, %v6211
          %v6225 = vadd.f32 %v6224, %v6217
          %v6226 = vrot.slane %v6225, 4
          %v6227 = vadd.f32 %v6225, %v6226
          %v6228 = vrot.slane %v6227, 2
          %v6229 = vadd.f32 %v6227, %v6228
          %v6230 = vrot.slane %v6229, 1
          %v6231 = vadd.f32 %v6229, %v6230
          %v6232 = vadd.f32 %v6200, %v6206
          %v6233 = vadd.f32 %v6232, %v6212
          %v6234 = vadd.f32 %v6233, %v6218
          %v6235 = vrot.slane %v6234, 4
          %v6236 = vadd.f32 %v6234, %v6235
          %v6237 = vrot.slane %v6236, 2
          %v6238 = vadd.f32 %v6236, %v6237
          %v6239 = vrot.slane %v6238, 1
          %v6240 = vadd.f32 %v6238, %v6239
          %v6241 = vadd.f32 %v6201, %v6207
          %v6242 = vadd.f32 %v6241, %v6213
          %v6243 = vadd.f32 %v6242, %v6219
          %v6244 = vrot.slane %v6243, 4
          %v6245 = vadd.f32 %v6243, %v6244
          %v6246 = vrot.slane %v6245, 2
          %v6247 = vadd.f32 %v6245, %v6246
          %v6248 = vrot.slane %v6247, 1
          %v6249 = vadd.f32 %v6247, %v6248
          %v6250 = vadd.f32 %v6202, %v6208
          %v6251 = vadd.f32 %v6250, %v6214
          %v6252 = vadd.f32 %v6251, %v6220
          %v6253 = vrot.slane %v6252, 4
          %v6254 = vadd.f32 %v6252, %v6253
          %v6255 = vrot.slane %v6254, 2
          %v6256 = vadd.f32 %v6254, %v6255
          %v6257 = vrot.slane %v6256, 1
          %v6258 = vadd.f32 %v6256, %v6257
          %v6259 = vadd.f32 %v6203, %v6209
          %v6260 = vadd.f32 %v6259, %v6215
          %v6261 = vadd.f32 %v6260, %v6221
          %v6262 = vrot.slane %v6261, 4
          %v6263 = vadd.f32 %v6261, %v6262
          %v6264 = vrot.slane %v6263, 2
          %v6265 = vadd.f32 %v6263, %v6264
          %v6266 = vrot.slane %v6265, 1
          %v6267 = vadd.f32 %v6265, %v6266
          %v6268 = vadd.f32 %v6204, %v6210
          %v6269 = vadd.f32 %v6268, %v6216
          %v6270 = vadd.f32 %v6269, %v6222
          %v6271 = vrot.slane %v6270, 4
          %v6272 = vadd.f32 %v6270, %v6271
          %v6273 = vrot.slane %v6272, 2
          %v6274 = vadd.f32 %v6272, %v6273
          %v6275 = vrot.slane %v6274, 1
          %v6276 = vadd.f32 %v6274, %v6275
          %v6277 = vadd.f32 %v5975, %v6231
          %v6278 = vadd.f32 %v5976, %v6240
          %v6279 = vadd.f32 %v5977, %v6249
          %v6280 = vadd.f32 %v5978, %v6258
          %v6281 = vadd.f32 %v5979, %v6267
          %v6282 = vadd.f32 %v5980, %v6276
        $region72: #{image_classifier_forward.1} parent=54 // loop_footer
          %s5968 = sadd.s32 1, %s5964
        $region73: #{image_classifier_forward.1} parent=54 // loop_footer_branch
          %5963 = sbr.rel target = $region69
        $region74: #{image_classifier_forward.1} parent=54 // loop_exit
          _
        %v6283 = vld [vmem:[#allocation3] sm:$0xff]
        %v6284 = vld [vmem:[#allocation3 + $0x8] sm:$0xf]
        %vm6285 = vcmask 1040384
        %v6286 = vsel %vm6285, %v5969, %v5975
        %v6287 = vsel %vm6285, %v5970, %v5976
        %v6288 = vsel %vm6285, %v5971, %v5977
        %v6289 = vsel %vm6285, %v5972, %v5978
        %v6290 = vsel %vm6285, %v5973, %v5979
        %v6291 = vsel %vm6285, %v5974, %v5980
        %v6298 = vcombine.low %v6286, %v6287
        %v6299 = vcombine.low %v6288, %v6289
        %v6301 = vunpack.c.l.s4 1983009808
        %v6302 = vunpack.c.0.s8 %v6301
        %v6303 = vlaneseq
        %v6304 = vshrl.u32 %v6303, 7
        %v6305 = vsub.s32 %v6302, %v6304
        %v6306 = vrot.slane %v6298, %v6305
        %v6308 = vunpack.c.l.s4 1983009808
        %v6309 = vunpack.c.0.s8 %v6308
        %v6310 = vlaneseq
        %v6311 = vshrl.u32 %v6310, 7
        %v6312 = vsub.s32 %v6309, %v6311
        %v6313 = vrot.slane %v6299, %v6312
        %v6314 = vcombine.low %v6306, %v6313
        %v6315 = vcombine.low %v6290, %v6291
        %v6317 = vunpack.c.l.s4 1983009808
        %v6318 = vunpack.c.0.s8 %v6317
        %v6319 = vlaneseq
        %v6320 = vshrl.u32 %v6319, 7
        %v6321 = vsub.s32 %v6318, %v6320
        %v6322 = vrot.slane %v6315, %v6321
        %v6325 = vadd.f32 %v6283, %v6314
        %v6326 = vadd.f32 %v6284, %v6322
        %6327 = vst [vmem:[#allocation3] sm:$0xff] %v6325
        %6328 = vst [vmem:[#allocation3 + $0x8] sm:$0xf] %v6326
        loop: start=0, step=1, limit=6
        $region75: #{image_classifier_forward.1} parent=54 // loop_pre_header
          _
        $region76: #{image_classifier_forward.1} parent=54 // loop_header
          %s6330 = sphi 0, %s6334
          %p6331 = scmp.ge.s32.totalorder %s6330, 6
          %v6335 = vphi 0.0, %v6533
          %v6336 = vphi 0.0, %v6534
          %v6337 = vphi 0.0, %v6535
          %v6338 = vphi 0.0, %v6536
          %v6339 = vphi 0.0, %v6537
          %v6340 = vphi 0.0, %v6538
          %v6341 = vphi 0.0, %v6644
          %v6342 = vphi 0.0, %v6645
          %v6343 = vphi 0.0, %v6646
          %v6344 = vphi 0.0, %v6647
          %v6345 = vphi 0.0, %v6648
          %v6346 = vphi 0.0, %v6649
        $region77: #{image_classifier_forward.1} parent=54 // loop_header_branch
          %6333 = sbr.rel (%p6331) target = $region81
        $region78: #{image_classifier_forward.1} parent=54 // loop_body
          %s6347 = smul.u32 %s6330, 32
          %s6348 = sshra.s32 %s6347, 3
          %s6349 = sand.u32 %s6347, 7
          %s6350 = smul.u32 %s6348, 6
          %s6351 = sadd.s32 %s6350, 144
          %s6352 = smul.addr %s6351, 4
          %s6353 = scalar_lea.vmem %s753, %s6352 [#allocation5]
          %v6354 = vld [vmem:[%s6353] sm:$0xff]
          %v6355 = vld [vmem:[%s6353 + $0x8] sm:$0xff]
          %v6356 = vld [vmem:[%s6353 + $0x10] sm:$0xff]
          %v6357 = vld [vmem:[%s6353 + $0x18] sm:$0xff]
          %v6358 = vld [vmem:[%s6353 + $0x20] sm:$0xff]
          %v6359 = vld [vmem:[%s6353 + $0x28] sm:$0xff]
          %v6360 = vld [vmem:[%s6353 + $0x30] sm:$0xff]
          %v6361 = vld [vmem:[%s6353 + $0x38] sm:$0xff]
          %v6362 = vld [vmem:[%s6353 + $0x40] sm:$0xff]
          %v6363 = vld [vmem:[%s6353 + $0x48] sm:$0xff]
          %v6364 = vld [vmem:[%s6353 + $0x50] sm:$0xff]
          %v6365 = vld [vmem:[%s6353 + $0x58] sm:$0xff]
          %s6366 = sshra.s32 %s6347, 4
          %s6367 = sand.u32 %s6347, 15
          %s6368 = smul.u32 %s6366, 6
          %s6369 = smul.addr %s6368, 8
          %s6370 = scalar_lea.vmem [#allocation2], %s6369
          %v6371 = vld [vmem:[%s6370] sm:$0xff]
          %v6372 = vld [vmem:[%s6370 + $0x8] sm:$0xff]
          %v6373 = vld [vmem:[%s6370 + $0x10] sm:$0xff]
          %v6374 = vld [vmem:[%s6370 + $0x18] sm:$0xff]
          %v6375 = vld [vmem:[%s6370 + $0x20] sm:$0xff]
          %v6376 = vld [vmem:[%s6370 + $0x28] sm:$0xff]
          %v6377 = vld [vmem:[%s6370 + $0x30] sm:$0xff]
          %v6378 = vld [vmem:[%s6370 + $0x38] sm:$0xff]
          %v6379 = vld [vmem:[%s6370 + $0x40] sm:$0xff]
          %v6380 = vld [vmem:[%s6370 + $0x48] sm:$0xff]
          %v6381 = vld [vmem:[%s6370 + $0x50] sm:$0xff]
          %v6382 = vld [vmem:[%s6370 + $0x58] sm:$0xff]
          %v6395 = vunpack.c.l.b16 %v6354
          %v6396 = vunpack.c.h.b16 %v6354
          %v6397 = vunpack.c.l.b16 %v6355
          %v6398 = vunpack.c.h.b16 %v6355
          %v6399 = vunpack.c.l.b16 %v6356
          %v6400 = vunpack.c.h.b16 %v6356
          %v6401 = vunpack.c.l.b16 %v6357
          %v6402 = vunpack.c.h.b16 %v6357
          %v6403 = vunpack.c.l.b16 %v6358
          %v6404 = vunpack.c.h.b16 %v6358
          %v6405 = vunpack.c.l.b16 %v6359
          %v6406 = vunpack.c.h.b16 %v6359
          %v6407 = vunpack.c.l.b16 %v6360
          %v6408 = vunpack.c.h.b16 %v6360
          %v6409 = vunpack.c.l.b16 %v6361
          %v6410 = vunpack.c.h.b16 %v6361
          %v6411 = vunpack.c.l.b16 %v6362
          %v6412 = vunpack.c.h.b16 %v6362
          %v6413 = vunpack.c.l.b16 %v6363
          %v6414 = vunpack.c.h.b16 %v6363
          %v6415 = vunpack.c.l.b16 %v6364
          %v6416 = vunpack.c.h.b16 %v6364
          %v6417 = vunpack.c.l.b16 %v6365
          %v6418 = vunpack.c.h.b16 %v6365
          %v6419 = vpack.c.b16 %v6401, %v6395
          %v6420 = vpack.c.b16 %v6402, %v6396
          %v6421 = vpack.c.b16 %v6403, %v6397
          %v6422 = vpack.c.b16 %v6404, %v6398
          %v6423 = vpack.c.b16 %v6405, %v6399
          %v6424 = vpack.c.b16 %v6406, %v6400
          %v6425 = vpack.c.b16 %v6413, %v6407
          %v6426 = vpack.c.b16 %v6414, %v6408
          %v6427 = vpack.c.b16 %v6415, %v6409
          %v6428 = vpack.c.b16 %v6416, %v6410
          %v6429 = vpack.c.b16 %v6417, %v6411
          %v6430 = vpack.c.b16 %v6418, %v6412
          %v6443 = vmul.bf16 %v6371, %v6419
          %v6444 = vmul.bf16 %v6372, %v6420
          %v6445 = vmul.bf16 %v6373, %v6421
          %v6446 = vmul.bf16 %v6374, %v6422
          %v6447 = vmul.bf16 %v6375, %v6423
          %v6448 = vmul.bf16 %v6376, %v6424
          %v6449 = vmul.bf16 %v6377, %v6425
          %v6450 = vmul.bf16 %v6378, %v6426
          %v6451 = vmul.bf16 %v6379, %v6427
          %v6452 = vmul.bf16 %v6380, %v6428
          %v6453 = vmul.bf16 %v6381, %v6429
          %v6454 = vmul.bf16 %v6382, %v6430
          %v6455 = vunpack.c.l.bf16 %v6443
          %v6456 = vunpack.c.l.bf16 %v6444
          %v6457 = vunpack.c.l.bf16 %v6445
          %v6458 = vunpack.c.l.bf16 %v6446
          %v6459 = vunpack.c.l.bf16 %v6447
          %v6460 = vunpack.c.l.bf16 %v6448
          %v6461 = vunpack.c.h.bf16 %v6443
          %v6462 = vunpack.c.h.bf16 %v6444
          %v6463 = vunpack.c.h.bf16 %v6445
          %v6464 = vunpack.c.h.bf16 %v6446
          %v6465 = vunpack.c.h.bf16 %v6447
          %v6466 = vunpack.c.h.bf16 %v6448
          %v6467 = vunpack.c.l.bf16 %v6449
          %v6468 = vunpack.c.l.bf16 %v6450
          %v6469 = vunpack.c.l.bf16 %v6451
          %v6470 = vunpack.c.l.bf16 %v6452
          %v6471 = vunpack.c.l.bf16 %v6453
          %v6472 = vunpack.c.l.bf16 %v6454
          %v6473 = vunpack.c.h.bf16 %v6449
          %v6474 = vunpack.c.h.bf16 %v6450
          %v6475 = vunpack.c.h.bf16 %v6451
          %v6476 = vunpack.c.h.bf16 %v6452
          %v6477 = vunpack.c.h.bf16 %v6453
          %v6478 = vunpack.c.h.bf16 %v6454
          %v6479 = vadd.f32 %v6455, %v6461
          %v6480 = vadd.f32 %v6479, %v6467
          %v6481 = vadd.f32 %v6480, %v6473
          %v6482 = vrot.slane %v6481, 4
          %v6483 = vadd.f32 %v6481, %v6482
          %v6484 = vrot.slane %v6483, 2
          %v6485 = vadd.f32 %v6483, %v6484
          %v6486 = vrot.slane %v6485, 1
          %v6487 = vadd.f32 %v6485, %v6486
          %v6488 = vadd.f32 %v6456, %v6462
          %v6489 = vadd.f32 %v6488, %v6468
          %v6490 = vadd.f32 %v6489, %v6474
          %v6491 = vrot.slane %v6490, 4
          %v6492 = vadd.f32 %v6490, %v6491
          %v6493 = vrot.slane %v6492, 2
          %v6494 = vadd.f32 %v6492, %v6493
          %v6495 = vrot.slane %v6494, 1
          %v6496 = vadd.f32 %v6494, %v6495
          %v6497 = vadd.f32 %v6457, %v6463
          %v6498 = vadd.f32 %v6497, %v6469
          %v6499 = vadd.f32 %v6498, %v6475
          %v6500 = vrot.slane %v6499, 4
          %v6501 = vadd.f32 %v6499, %v6500
          %v6502 = vrot.slane %v6501, 2
          %v6503 = vadd.f32 %v6501, %v6502
          %v6504 = vrot.slane %v6503, 1
          %v6505 = vadd.f32 %v6503, %v6504
          %v6506 = vadd.f32 %v6458, %v6464
          %v6507 = vadd.f32 %v6506, %v6470
          %v6508 = vadd.f32 %v6507, %v6476
          %v6509 = vrot.slane %v6508, 4
          %v6510 = vadd.f32 %v6508, %v6509
          %v6511 = vrot.slane %v6510, 2
          %v6512 = vadd.f32 %v6510, %v6511
          %v6513 = vrot.slane %v6512, 1
          %v6514 = vadd.f32 %v6512, %v6513
          %v6515 = vadd.f32 %v6459, %v6465
          %v6516 = vadd.f32 %v6515, %v6471
          %v6517 = vadd.f32 %v6516, %v6477
          %v6518 = vrot.slane %v6517, 4
          %v6519 = vadd.f32 %v6517, %v6518
          %v6520 = vrot.slane %v6519, 2
          %v6521 = vadd.f32 %v6519, %v6520
          %v6522 = vrot.slane %v6521, 1
          %v6523 = vadd.f32 %v6521, %v6522
          %v6524 = vadd.f32 %v6460, %v6466
          %v6525 = vadd.f32 %v6524, %v6472
          %v6526 = vadd.f32 %v6525, %v6478
          %v6527 = vrot.slane %v6526, 4
          %v6528 = vadd.f32 %v6526, %v6527
          %v6529 = vrot.slane %v6528, 2
          %v6530 = vadd.f32 %v6528, %v6529
          %v6531 = vrot.slane %v6530, 1
          %v6532 = vadd.f32 %v6530, %v6531
          %v6533 = vadd.f32 %v6335, %v6487
          %v6534 = vadd.f32 %v6336, %v6496
          %v6535 = vadd.f32 %v6337, %v6505
          %v6536 = vadd.f32 %v6338, %v6514
          %v6537 = vadd.f32 %v6339, %v6523
          %v6538 = vadd.f32 %v6340, %v6532
          %s6539 = sadd.s32 %s6368, 72
          %s6540 = smul.addr %s6539, 8
          %s6541 = scalar_lea.vmem [#allocation2], %s6540
          %v6542 = vld [vmem:[%s6541] sm:$0xff]
          %v6543 = vld [vmem:[%s6541 + $0x8] sm:$0xff]
          %v6544 = vld [vmem:[%s6541 + $0x10] sm:$0xff]
          %v6545 = vld [vmem:[%s6541 + $0x18] sm:$0xff]
          %v6546 = vld [vmem:[%s6541 + $0x20] sm:$0xff]
          %v6547 = vld [vmem:[%s6541 + $0x28] sm:$0xff]
          %v6548 = vld [vmem:[%s6541 + $0x30] sm:$0xff]
          %v6549 = vld [vmem:[%s6541 + $0x38] sm:$0xff]
          %v6550 = vld [vmem:[%s6541 + $0x40] sm:$0xff]
          %v6551 = vld [vmem:[%s6541 + $0x48] sm:$0xff]
          %v6552 = vld [vmem:[%s6541 + $0x50] sm:$0xff]
          %v6553 = vld [vmem:[%s6541 + $0x58] sm:$0xff]
          %v6554 = vmul.bf16 %v6542, %v6419
          %v6555 = vmul.bf16 %v6543, %v6420
          %v6556 = vmul.bf16 %v6544, %v6421
          %v6557 = vmul.bf16 %v6545, %v6422
          %v6558 = vmul.bf16 %v6546, %v6423
          %v6559 = vmul.bf16 %v6547, %v6424
          %v6560 = vmul.bf16 %v6548, %v6425
          %v6561 = vmul.bf16 %v6549, %v6426
          %v6562 = vmul.bf16 %v6550, %v6427
          %v6563 = vmul.bf16 %v6551, %v6428
          %v6564 = vmul.bf16 %v6552, %v6429
          %v6565 = vmul.bf16 %v6553, %v6430
          %v6566 = vunpack.c.l.bf16 %v6554
          %v6567 = vunpack.c.l.bf16 %v6555
          %v6568 = vunpack.c.l.bf16 %v6556
          %v6569 = vunpack.c.l.bf16 %v6557
          %v6570 = vunpack.c.l.bf16 %v6558
          %v6571 = vunpack.c.l.bf16 %v6559
          %v6572 = vunpack.c.h.bf16 %v6554
          %v6573 = vunpack.c.h.bf16 %v6555
          %v6574 = vunpack.c.h.bf16 %v6556
          %v6575 = vunpack.c.h.bf16 %v6557
          %v6576 = vunpack.c.h.bf16 %v6558
          %v6577 = vunpack.c.h.bf16 %v6559
          %v6578 = vunpack.c.l.bf16 %v6560
          %v6579 = vunpack.c.l.bf16 %v6561
          %v6580 = vunpack.c.l.bf16 %v6562
          %v6581 = vunpack.c.l.bf16 %v6563
          %v6582 = vunpack.c.l.bf16 %v6564
          %v6583 = vunpack.c.l.bf16 %v6565
          %v6584 = vunpack.c.h.bf16 %v6560
          %v6585 = vunpack.c.h.bf16 %v6561
          %v6586 = vunpack.c.h.bf16 %v6562
          %v6587 = vunpack.c.h.bf16 %v6563
          %v6588 = vunpack.c.h.bf16 %v6564
          %v6589 = vunpack.c.h.bf16 %v6565
          %v6590 = vadd.f32 %v6566, %v6572
          %v6591 = vadd.f32 %v6590, %v6578
          %v6592 = vadd.f32 %v6591, %v6584
          %v6593 = vrot.slane %v6592, 4
          %v6594 = vadd.f32 %v6592, %v6593
          %v6595 = vrot.slane %v6594, 2
          %v6596 = vadd.f32 %v6594, %v6595
          %v6597 = vrot.slane %v6596, 1
          %v6598 = vadd.f32 %v6596, %v6597
          %v6599 = vadd.f32 %v6567, %v6573
          %v6600 = vadd.f32 %v6599, %v6579
          %v6601 = vadd.f32 %v6600, %v6585
          %v6602 = vrot.slane %v6601, 4
          %v6603 = vadd.f32 %v6601, %v6602
          %v6604 = vrot.slane %v6603, 2
          %v6605 = vadd.f32 %v6603, %v6604
          %v6606 = vrot.slane %v6605, 1
          %v6607 = vadd.f32 %v6605, %v6606
          %v6608 = vadd.f32 %v6568, %v6574
          %v6609 = vadd.f32 %v6608, %v6580
          %v6610 = vadd.f32 %v6609, %v6586
          %v6611 = vrot.slane %v6610, 4
          %v6612 = vadd.f32 %v6610, %v6611
          %v6613 = vrot.slane %v6612, 2
          %v6614 = vadd.f32 %v6612, %v6613
          %v6615 = vrot.slane %v6614, 1
          %v6616 = vadd.f32 %v6614, %v6615
          %v6617 = vadd.f32 %v6569, %v6575
          %v6618 = vadd.f32 %v6617, %v6581
          %v6619 = vadd.f32 %v6618, %v6587
          %v6620 = vrot.slane %v6619, 4
          %v6621 = vadd.f32 %v6619, %v6620
          %v6622 = vrot.slane %v6621, 2
          %v6623 = vadd.f32 %v6621, %v6622
          %v6624 = vrot.slane %v6623, 1
          %v6625 = vadd.f32 %v6623, %v6624
          %v6626 = vadd.f32 %v6570, %v6576
          %v6627 = vadd.f32 %v6626, %v6582
          %v6628 = vadd.f32 %v6627, %v6588
          %v6629 = vrot.slane %v6628, 4
          %v6630 = vadd.f32 %v6628, %v6629
          %v6631 = vrot.slane %v6630, 2
          %v6632 = vadd.f32 %v6630, %v6631
          %v6633 = vrot.slane %v6632, 1
          %v6634 = vadd.f32 %v6632, %v6633
          %v6635 = vadd.f32 %v6571, %v6577
          %v6636 = vadd.f32 %v6635, %v6583
          %v6637 = vadd.f32 %v6636, %v6589
          %v6638 = vrot.slane %v6637, 4
          %v6639 = vadd.f32 %v6637, %v6638
          %v6640 = vrot.slane %v6639, 2
          %v6641 = vadd.f32 %v6639, %v6640
          %v6642 = vrot.slane %v6641, 1
          %v6643 = vadd.f32 %v6641, %v6642
          %v6644 = vadd.f32 %v6341, %v6598
          %v6645 = vadd.f32 %v6342, %v6607
          %v6646 = vadd.f32 %v6343, %v6616
          %v6647 = vadd.f32 %v6344, %v6625
          %v6648 = vadd.f32 %v6345, %v6634
          %v6649 = vadd.f32 %v6346, %v6643
        $region79: #{image_classifier_forward.1} parent=54 // loop_footer
          %s6334 = sadd.s32 1, %s6330
        $region80: #{image_classifier_forward.1} parent=54 // loop_footer_branch
          %6329 = sbr.rel target = $region76
        $region81: #{image_classifier_forward.1} parent=54 // loop_exit
          _
        %s6650 = scalar_lea.vmem [#allocation3], 12
        %v6651 = vld [vmem:[%s6650] sm:$0xff]
        %v6652 = vld [vmem:[%s6650 + $0x8] sm:$0xf]
        %v6653 = vsel %vm6285, %v6335, %v6341
        %v6654 = vsel %vm6285, %v6336, %v6342
        %v6655 = vsel %vm6285, %v6337, %v6343
        %v6656 = vsel %vm6285, %v6338, %v6344
        %v6657 = vsel %vm6285, %v6339, %v6345
        %v6658 = vsel %vm6285, %v6340, %v6346
        %v6665 = vcombine.low %v6653, %v6654
        %v6666 = vcombine.low %v6655, %v6656
        %v6668 = vunpack.c.l.s4 1983009808
        %v6669 = vunpack.c.0.s8 %v6668
        %v6670 = vlaneseq
        %v6671 = vshrl.u32 %v6670, 7
        %v6672 = vsub.s32 %v6669, %v6671
        %v6673 = vrot.slane %v6665, %v6672
        %v6675 = vunpack.c.l.s4 1983009808
        %v6676 = vunpack.c.0.s8 %v6675
        %v6677 = vlaneseq
        %v6678 = vshrl.u32 %v6677, 7
        %v6679 = vsub.s32 %v6676, %v6678
        %v6680 = vrot.slane %v6666, %v6679
        %v6681 = vcombine.low %v6673, %v6680
        %v6682 = vcombine.low %v6657, %v6658
        %v6684 = vunpack.c.l.s4 1983009808
        %v6685 = vunpack.c.0.s8 %v6684
        %v6686 = vlaneseq
        %v6687 = vshrl.u32 %v6686, 7
        %v6688 = vsub.s32 %v6685, %v6687
        %v6689 = vrot.slane %v6682, %v6688
        %v6692 = vadd.f32 %v6651, %v6681
        %v6693 = vadd.f32 %v6652, %v6689
        %6694 = vst [vmem:[%s6650] sm:$0xff] %v6692
        %6695 = vst [vmem:[%s6650 + $0x8] sm:$0xf] %v6693
        loop: start=0, step=1, limit=6
        $region82: #{image_classifier_forward.1} parent=54 // loop_pre_header
          _
        $region83: #{image_classifier_forward.1} parent=54 // loop_header
          %s6697 = sphi 0, %s6701
          %p6698 = scmp.ge.s32.totalorder %s6697, 6
          %v6702 = vphi 0.0, %v6900
          %v6703 = vphi 0.0, %v6901
          %v6704 = vphi 0.0, %v6902
          %v6705 = vphi 0.0, %v6903
          %v6706 = vphi 0.0, %v6904
          %v6707 = vphi 0.0, %v6905
          %v6708 = vphi 0.0, %v7011
          %v6709 = vphi 0.0, %v7012
          %v6710 = vphi 0.0, %v7013
          %v6711 = vphi 0.0, %v7014
          %v6712 = vphi 0.0, %v7015
          %v6713 = vphi 0.0, %v7016
        $region84: #{image_classifier_forward.1} parent=54 // loop_header_branch
          %6700 = sbr.rel (%p6698) target = $region88
        $region85: #{image_classifier_forward.1} parent=54 // loop_body
          %s6714 = smul.u32 %s6697, 32
          %s6715 = sshra.s32 %s6714, 3
          %s6716 = sand.u32 %s6714, 7
          %s6717 = smul.u32 %s6715, 6
          %s6718 = sadd.s32 %s6717, 288
          %s6719 = smul.addr %s6718, 4
          %s6720 = scalar_lea.vmem %s753, %s6719 [#allocation5]
          %v6721 = vld [vmem:[%s6720] sm:$0xff]
          %v6722 = vld [vmem:[%s6720 + $0x8] sm:$0xff]
          %v6723 = vld [vmem:[%s6720 + $0x10] sm:$0xff]
          %v6724 = vld [vmem:[%s6720 + $0x18] sm:$0xff]
          %v6725 = vld [vmem:[%s6720 + $0x20] sm:$0xff]
          %v6726 = vld [vmem:[%s6720 + $0x28] sm:$0xff]
          %v6727 = vld [vmem:[%s6720 + $0x30] sm:$0xff]
          %v6728 = vld [vmem:[%s6720 + $0x38] sm:$0xff]
          %v6729 = vld [vmem:[%s6720 + $0x40] sm:$0xff]
          %v6730 = vld [vmem:[%s6720 + $0x48] sm:$0xff]
          %v6731 = vld [vmem:[%s6720 + $0x50] sm:$0xff]
          %v6732 = vld [vmem:[%s6720 + $0x58] sm:$0xff]
          %s6733 = sshra.s32 %s6714, 4
          %s6734 = sand.u32 %s6714, 15
          %s6735 = smul.u32 %s6733, 6
          %s6736 = smul.addr %s6735, 8
          %s6737 = scalar_lea.vmem [#allocation2], %s6736
          %v6738 = vld [vmem:[%s6737] sm:$0xff]
          %v6739 = vld [vmem:[%s6737 + $0x8] sm:$0xff]
          %v6740 = vld [vmem:[%s6737 + $0x10] sm:$0xff]
          %v6741 = vld [vmem:[%s6737 + $0x18] sm:$0xff]
          %v6742 = vld [vmem:[%s6737 + $0x20] sm:$0xff]
          %v6743 = vld [vmem:[%s6737 + $0x28] sm:$0xff]
          %v6744 = vld [vmem:[%s6737 + $0x30] sm:$0xff]
          %v6745 = vld [vmem:[%s6737 + $0x38] sm:$0xff]
          %v6746 = vld [vmem:[%s6737 + $0x40] sm:$0xff]
          %v6747 = vld [vmem:[%s6737 + $0x48] sm:$0xff]
          %v6748 = vld [vmem:[%s6737 + $0x50] sm:$0xff]
          %v6749 = vld [vmem:[%s6737 + $0x58] sm:$0xff]
          %v6762 = vunpack.c.l.b16 %v6721
          %v6763 = vunpack.c.h.b16 %v6721
          %v6764 = vunpack.c.l.b16 %v6722
          %v6765 = vunpack.c.h.b16 %v6722
          %v6766 = vunpack.c.l.b16 %v6723
          %v6767 = vunpack.c.h.b16 %v6723
          %v6768 = vunpack.c.l.b16 %v6724
          %v6769 = vunpack.c.h.b16 %v6724
          %v6770 = vunpack.c.l.b16 %v6725
          %v6771 = vunpack.c.h.b16 %v6725
          %v6772 = vunpack.c.l.b16 %v6726
          %v6773 = vunpack.c.h.b16 %v6726
          %v6774 = vunpack.c.l.b16 %v6727
          %v6775 = vunpack.c.h.b16 %v6727
          %v6776 = vunpack.c.l.b16 %v6728
          %v6777 = vunpack.c.h.b16 %v6728
          %v6778 = vunpack.c.l.b16 %v6729
          %v6779 = vunpack.c.h.b16 %v6729
          %v6780 = vunpack.c.l.b16 %v6730
          %v6781 = vunpack.c.h.b16 %v6730
          %v6782 = vunpack.c.l.b16 %v6731
          %v6783 = vunpack.c.h.b16 %v6731
          %v6784 = vunpack.c.l.b16 %v6732
          %v6785 = vunpack.c.h.b16 %v6732
          %v6786 = vpack.c.b16 %v6768, %v6762
          %v6787 = vpack.c.b16 %v6769, %v6763
          %v6788 = vpack.c.b16 %v6770, %v6764
          %v6789 = vpack.c.b16 %v6771, %v6765
          %v6790 = vpack.c.b16 %v6772, %v6766
          %v6791 = vpack.c.b16 %v6773, %v6767
          %v6792 = vpack.c.b16 %v6780, %v6774
          %v6793 = vpack.c.b16 %v6781, %v6775
          %v6794 = vpack.c.b16 %v6782, %v6776
          %v6795 = vpack.c.b16 %v6783, %v6777
          %v6796 = vpack.c.b16 %v6784, %v6778
          %v6797 = vpack.c.b16 %v6785, %v6779
          %v6810 = vmul.bf16 %v6738, %v6786
          %v6811 = vmul.bf16 %v6739, %v6787
          %v6812 = vmul.bf16 %v6740, %v6788
          %v6813 = vmul.bf16 %v6741, %v6789
          %v6814 = vmul.bf16 %v6742, %v6790
          %v6815 = vmul.bf16 %v6743, %v6791
          %v6816 = vmul.bf16 %v6744, %v6792
          %v6817 = vmul.bf16 %v6745, %v6793
          %v6818 = vmul.bf16 %v6746, %v6794
          %v6819 = vmul.bf16 %v6747, %v6795
          %v6820 = vmul.bf16 %v6748, %v6796
          %v6821 = vmul.bf16 %v6749, %v6797
          %v6822 = vunpack.c.l.bf16 %v6810
          %v6823 = vunpack.c.l.bf16 %v6811
          %v6824 = vunpack.c.l.bf16 %v6812
          %v6825 = vunpack.c.l.bf16 %v6813
          %v6826 = vunpack.c.l.bf16 %v6814
          %v6827 = vunpack.c.l.bf16 %v6815
          %v6828 = vunpack.c.h.bf16 %v6810
          %v6829 = vunpack.c.h.bf16 %v6811
          %v6830 = vunpack.c.h.bf16 %v6812
          %v6831 = vunpack.c.h.bf16 %v6813
          %v6832 = vunpack.c.h.bf16 %v6814
          %v6833 = vunpack.c.h.bf16 %v6815
          %v6834 = vunpack.c.l.bf16 %v6816
          %v6835 = vunpack.c.l.bf16 %v6817
          %v6836 = vunpack.c.l.bf16 %v6818
          %v6837 = vunpack.c.l.bf16 %v6819
          %v6838 = vunpack.c.l.bf16 %v6820
          %v6839 = vunpack.c.l.bf16 %v6821
          %v6840 = vunpack.c.h.bf16 %v6816
          %v6841 = vunpack.c.h.bf16 %v6817
          %v6842 = vunpack.c.h.bf16 %v6818
          %v6843 = vunpack.c.h.bf16 %v6819
          %v6844 = vunpack.c.h.bf16 %v6820
          %v6845 = vunpack.c.h.bf16 %v6821
          %v6846 = vadd.f32 %v6822, %v6828
          %v6847 = vadd.f32 %v6846, %v6834
          %v6848 = vadd.f32 %v6847, %v6840
          %v6849 = vrot.slane %v6848, 4
          %v6850 = vadd.f32 %v6848, %v6849
          %v6851 = vrot.slane %v6850, 2
          %v6852 = vadd.f32 %v6850, %v6851
          %v6853 = vrot.slane %v6852, 1
          %v6854 = vadd.f32 %v6852, %v6853
          %v6855 = vadd.f32 %v6823, %v6829
          %v6856 = vadd.f32 %v6855, %v6835
          %v6857 = vadd.f32 %v6856, %v6841
          %v6858 = vrot.slane %v6857, 4
          %v6859 = vadd.f32 %v6857, %v6858
          %v6860 = vrot.slane %v6859, 2
          %v6861 = vadd.f32 %v6859, %v6860
          %v6862 = vrot.slane %v6861, 1
          %v6863 = vadd.f32 %v6861, %v6862
          %v6864 = vadd.f32 %v6824, %v6830
          %v6865 = vadd.f32 %v6864, %v6836
          %v6866 = vadd.f32 %v6865, %v6842
          %v6867 = vrot.slane %v6866, 4
          %v6868 = vadd.f32 %v6866, %v6867
          %v6869 = vrot.slane %v6868, 2
          %v6870 = vadd.f32 %v6868, %v6869
          %v6871 = vrot.slane %v6870, 1
          %v6872 = vadd.f32 %v6870, %v6871
          %v6873 = vadd.f32 %v6825, %v6831
          %v6874 = vadd.f32 %v6873, %v6837
          %v6875 = vadd.f32 %v6874, %v6843
          %v6876 = vrot.slane %v6875, 4
          %v6877 = vadd.f32 %v6875, %v6876
          %v6878 = vrot.slane %v6877, 2
          %v6879 = vadd.f32 %v6877, %v6878
          %v6880 = vrot.slane %v6879, 1
          %v6881 = vadd.f32 %v6879, %v6880
          %v6882 = vadd.f32 %v6826, %v6832
          %v6883 = vadd.f32 %v6882, %v6838
          %v6884 = vadd.f32 %v6883, %v6844
          %v6885 = vrot.slane %v6884, 4
          %v6886 = vadd.f32 %v6884, %v6885
          %v6887 = vrot.slane %v6886, 2
          %v6888 = vadd.f32 %v6886, %v6887
          %v6889 = vrot.slane %v6888, 1
          %v6890 = vadd.f32 %v6888, %v6889
          %v6891 = vadd.f32 %v6827, %v6833
          %v6892 = vadd.f32 %v6891, %v6839
          %v6893 = vadd.f32 %v6892, %v6845
          %v6894 = vrot.slane %v6893, 4
          %v6895 = vadd.f32 %v6893, %v6894
          %v6896 = vrot.slane %v6895, 2
          %v6897 = vadd.f32 %v6895, %v6896
          %v6898 = vrot.slane %v6897, 1
          %v6899 = vadd.f32 %v6897, %v6898
          %v6900 = vadd.f32 %v6702, %v6854
          %v6901 = vadd.f32 %v6703, %v6863
          %v6902 = vadd.f32 %v6704, %v6872
          %v6903 = vadd.f32 %v6705, %v6881
          %v6904 = vadd.f32 %v6706, %v6890
          %v6905 = vadd.f32 %v6707, %v6899
          %s6906 = sadd.s32 %s6735, 72
          %s6907 = smul.addr %s6906, 8
          %s6908 = scalar_lea.vmem [#allocation2], %s6907
          %v6909 = vld [vmem:[%s6908] sm:$0xff]
          %v6910 = vld [vmem:[%s6908 + $0x8] sm:$0xff]
          %v6911 = vld [vmem:[%s6908 + $0x10] sm:$0xff]
          %v6912 = vld [vmem:[%s6908 + $0x18] sm:$0xff]
          %v6913 = vld [vmem:[%s6908 + $0x20] sm:$0xff]
          %v6914 = vld [vmem:[%s6908 + $0x28] sm:$0xff]
          %v6915 = vld [vmem:[%s6908 + $0x30] sm:$0xff]
          %v6916 = vld [vmem:[%s6908 + $0x38] sm:$0xff]
          %v6917 = vld [vmem:[%s6908 + $0x40] sm:$0xff]
          %v6918 = vld [vmem:[%s6908 + $0x48] sm:$0xff]
          %v6919 = vld [vmem:[%s6908 + $0x50] sm:$0xff]
          %v6920 = vld [vmem:[%s6908 + $0x58] sm:$0xff]
          %v6921 = vmul.bf16 %v6909, %v6786
          %v6922 = vmul.bf16 %v6910, %v6787
          %v6923 = vmul.bf16 %v6911, %v6788
          %v6924 = vmul.bf16 %v6912, %v6789
          %v6925 = vmul.bf16 %v6913, %v6790
          %v6926 = vmul.bf16 %v6914, %v6791
          %v6927 = vmul.bf16 %v6915, %v6792
          %v6928 = vmul.bf16 %v6916, %v6793
          %v6929 = vmul.bf16 %v6917, %v6794
          %v6930 = vmul.bf16 %v6918, %v6795
          %v6931 = vmul.bf16 %v6919, %v6796
          %v6932 = vmul.bf16 %v6920, %v6797
          %v6933 = vunpack.c.l.bf16 %v6921
          %v6934 = vunpack.c.l.bf16 %v6922
          %v6935 = vunpack.c.l.bf16 %v6923
          %v6936 = vunpack.c.l.bf16 %v6924
          %v6937 = vunpack.c.l.bf16 %v6925
          %v6938 = vunpack.c.l.bf16 %v6926
          %v6939 = vunpack.c.h.bf16 %v6921
          %v6940 = vunpack.c.h.bf16 %v6922
          %v6941 = vunpack.c.h.bf16 %v6923
          %v6942 = vunpack.c.h.bf16 %v6924
          %v6943 = vunpack.c.h.bf16 %v6925
          %v6944 = vunpack.c.h.bf16 %v6926
          %v6945 = vunpack.c.l.bf16 %v6927
          %v6946 = vunpack.c.l.bf16 %v6928
          %v6947 = vunpack.c.l.bf16 %v6929
          %v6948 = vunpack.c.l.bf16 %v6930
          %v6949 = vunpack.c.l.bf16 %v6931
          %v6950 = vunpack.c.l.bf16 %v6932
          %v6951 = vunpack.c.h.bf16 %v6927
          %v6952 = vunpack.c.h.bf16 %v6928
          %v6953 = vunpack.c.h.bf16 %v6929
          %v6954 = vunpack.c.h.bf16 %v6930
          %v6955 = vunpack.c.h.bf16 %v6931
          %v6956 = vunpack.c.h.bf16 %v6932
          %v6957 = vadd.f32 %v6933, %v6939
          %v6958 = vadd.f32 %v6957, %v6945
          %v6959 = vadd.f32 %v6958, %v6951
          %v6960 = vrot.slane %v6959, 4
          %v6961 = vadd.f32 %v6959, %v6960
          %v6962 = vrot.slane %v6961, 2
          %v6963 = vadd.f32 %v6961, %v6962
          %v6964 = vrot.slane %v6963, 1
          %v6965 = vadd.f32 %v6963, %v6964
          %v6966 = vadd.f32 %v6934, %v6940
          %v6967 = vadd.f32 %v6966, %v6946
          %v6968 = vadd.f32 %v6967, %v6952
          %v6969 = vrot.slane %v6968, 4
          %v6970 = vadd.f32 %v6968, %v6969
          %v6971 = vrot.slane %v6970, 2
          %v6972 = vadd.f32 %v6970, %v6971
          %v6973 = vrot.slane %v6972, 1
          %v6974 = vadd.f32 %v6972, %v6973
          %v6975 = vadd.f32 %v6935, %v6941
          %v6976 = vadd.f32 %v6975, %v6947
          %v6977 = vadd.f32 %v6976, %v6953
          %v6978 = vrot.slane %v6977, 4
          %v6979 = vadd.f32 %v6977, %v6978
          %v6980 = vrot.slane %v6979, 2
          %v6981 = vadd.f32 %v6979, %v6980
          %v6982 = vrot.slane %v6981, 1
          %v6983 = vadd.f32 %v6981, %v6982
          %v6984 = vadd.f32 %v6936, %v6942
          %v6985 = vadd.f32 %v6984, %v6948
          %v6986 = vadd.f32 %v6985, %v6954
          %v6987 = vrot.slane %v6986, 4
          %v6988 = vadd.f32 %v6986, %v6987
          %v6989 = vrot.slane %v6988, 2
          %v6990 = vadd.f32 %v6988, %v6989
          %v6991 = vrot.slane %v6990, 1
          %v6992 = vadd.f32 %v6990, %v6991
          %v6993 = vadd.f32 %v6937, %v6943
          %v6994 = vadd.f32 %v6993, %v6949
          %v6995 = vadd.f32 %v6994, %v6955
          %v6996 = vrot.slane %v6995, 4
          %v6997 = vadd.f32 %v6995, %v6996
          %v6998 = vrot.slane %v6997, 2
          %v6999 = vadd.f32 %v6997, %v6998
          %v7000 = vrot.slane %v6999, 1
          %v7001 = vadd.f32 %v6999, %v7000
          %v7002 = vadd.f32 %v6938, %v6944
          %v7003 = vadd.f32 %v7002, %v6950
          %v7004 = vadd.f32 %v7003, %v6956
          %v7005 = vrot.slane %v7004, 4
          %v7006 = vadd.f32 %v7004, %v7005
          %v7007 = vrot.slane %v7006, 2
          %v7008 = vadd.f32 %v7006, %v7007
          %v7009 = vrot.slane %v7008, 1
          %v7010 = vadd.f32 %v7008, %v7009
          %v7011 = vadd.f32 %v6708, %v6965
          %v7012 = vadd.f32 %v6709, %v6974
          %v7013 = vadd.f32 %v6710, %v6983
          %v7014 = vadd.f32 %v6711, %v6992
          %v7015 = vadd.f32 %v6712, %v7001
          %v7016 = vadd.f32 %v6713, %v7010
        $region86: #{image_classifier_forward.1} parent=54 // loop_footer
          %s6701 = sadd.s32 1, %s6697
        $region87: #{image_classifier_forward.1} parent=54 // loop_footer_branch
          %6696 = sbr.rel target = $region83
        $region88: #{image_classifier_forward.1} parent=54 // loop_exit
          _
        %s7017 = scalar_lea.vmem [#allocation3], 24
        %v7018 = vld [vmem:[%s7017] sm:$0xff]
        %v7019 = vld [vmem:[%s7017 + $0x8] sm:$0xf]
        %v7020 = vsel %vm6285, %v6702, %v6708
        %v7021 = vsel %vm6285, %v6703, %v6709
        %v7022 = vsel %vm6285, %v6704, %v6710
        %v7023 = vsel %vm6285, %v6705, %v6711
        %v7024 = vsel %vm6285, %v6706, %v6712
        %v7025 = vsel %vm6285, %v6707, %v6713
        %v7032 = vcombine.low %v7020, %v7021
        %v7033 = vcombine.low %v7022, %v7023
        %v7035 = vunpack.c.l.s4 1983009808
        %v7036 = vunpack.c.0.s8 %v7035
        %v7037 = vlaneseq
        %v7038 = vshrl.u32 %v7037, 7
        %v7039 = vsub.s32 %v7036, %v7038
        %v7040 = vrot.slane %v7032, %v7039
        %v7042 = vunpack.c.l.s4 1983009808
        %v7043 = vunpack.c.0.s8 %v7042
        %v7044 = vlaneseq
        %v7045 = vshrl.u32 %v7044, 7
        %v7046 = vsub.s32 %v7043, %v7045
        %v7047 = vrot.slane %v7033, %v7046
        %v7048 = vcombine.low %v7040, %v7047
        %v7049 = vcombine.low %v7024, %v7025
        %v7051 = vunpack.c.l.s4 1983009808
        %v7052 = vunpack.c.0.s8 %v7051
        %v7053 = vlaneseq
        %v7054 = vshrl.u32 %v7053, 7
        %v7055 = vsub.s32 %v7052, %v7054
        %v7056 = vrot.slane %v7049, %v7055
        %v7059 = vadd.f32 %v7018, %v7048
        %v7060 = vadd.f32 %v7019, %v7056
        %7061 = vst [vmem:[%s7017] sm:$0xff] %v7059
        %7062 = vst [vmem:[%s7017 + $0x8] sm:$0xf] %v7060
        loop: start=0, step=1, limit=6
        $region89: #{image_classifier_forward.1} parent=54 // loop_pre_header
          _
        $region90: #{image_classifier_forward.1} parent=54 // loop_header
          %s7064 = sphi 0, %s7068
          %p7065 = scmp.ge.s32.totalorder %s7064, 6
          %v7069 = vphi 0.0, %v7267
          %v7070 = vphi 0.0, %v7268
          %v7071 = vphi 0.0, %v7269
          %v7072 = vphi 0.0, %v7270
          %v7073 = vphi 0.0, %v7271
          %v7074 = vphi 0.0, %v7272
          %v7075 = vphi 0.0, %v7378
          %v7076 = vphi 0.0, %v7379
          %v7077 = vphi 0.0, %v7380
          %v7078 = vphi 0.0, %v7381
          %v7079 = vphi 0.0, %v7382
          %v7080 = vphi 0.0, %v7383
        $region91: #{image_classifier_forward.1} parent=54 // loop_header_branch
          %7067 = sbr.rel (%p7065) target = $region95
        $region92: #{image_classifier_forward.1} parent=54 // loop_body
          %s7081 = smul.u32 %s7064, 32
          %s7082 = sshra.s32 %s7081, 3
          %s7083 = sand.u32 %s7081, 7
          %s7084 = smul.u32 %s7082, 6
          %s7085 = sadd.s32 %s7084, 432
          %s7086 = smul.addr %s7085, 4
          %s7087 = scalar_lea.vmem %s753, %s7086 [#allocation5]
          %v7088 = vld [vmem:[%s7087] sm:$0xff]
          %v7089 = vld [vmem:[%s7087 + $0x8] sm:$0xff]
          %v7090 = vld [vmem:[%s7087 + $0x10] sm:$0xff]
          %v7091 = vld [vmem:[%s7087 + $0x18] sm:$0xff]
          %v7092 = vld [vmem:[%s7087 + $0x20] sm:$0xff]
          %v7093 = vld [vmem:[%s7087 + $0x28] sm:$0xff]
          %v7094 = vld [vmem:[%s7087 + $0x30] sm:$0xff]
          %v7095 = vld [vmem:[%s7087 + $0x38] sm:$0xff]
          %v7096 = vld [vmem:[%s7087 + $0x40] sm:$0xff]
          %v7097 = vld [vmem:[%s7087 + $0x48] sm:$0xff]
          %v7098 = vld [vmem:[%s7087 + $0x50] sm:$0xff]
          %v7099 = vld [vmem:[%s7087 + $0x58] sm:$0xff]
          %s7100 = sshra.s32 %s7081, 4
          %s7101 = sand.u32 %s7081, 15
          %s7102 = smul.u32 %s7100, 6
          %s7103 = smul.addr %s7102, 8
          %s7104 = scalar_lea.vmem [#allocation2], %s7103
          %v7105 = vld [vmem:[%s7104] sm:$0xff]
          %v7106 = vld [vmem:[%s7104 + $0x8] sm:$0xff]
          %v7107 = vld [vmem:[%s7104 + $0x10] sm:$0xff]
          %v7108 = vld [vmem:[%s7104 + $0x18] sm:$0xff]
          %v7109 = vld [vmem:[%s7104 + $0x20] sm:$0xff]
          %v7110 = vld [vmem:[%s7104 + $0x28] sm:$0xff]
          %v7111 = vld [vmem:[%s7104 + $0x30] sm:$0xff]
          %v7112 = vld [vmem:[%s7104 + $0x38] sm:$0xff]
          %v7113 = vld [vmem:[%s7104 + $0x40] sm:$0xff]
          %v7114 = vld [vmem:[%s7104 + $0x48] sm:$0xff]
          %v7115 = vld [vmem:[%s7104 + $0x50] sm:$0xff]
          %v7116 = vld [vmem:[%s7104 + $0x58] sm:$0xff]
          %v7129 = vunpack.c.l.b16 %v7088
          %v7130 = vunpack.c.h.b16 %v7088
          %v7131 = vunpack.c.l.b16 %v7089
          %v7132 = vunpack.c.h.b16 %v7089
          %v7133 = vunpack.c.l.b16 %v7090
          %v7134 = vunpack.c.h.b16 %v7090
          %v7135 = vunpack.c.l.b16 %v7091
          %v7136 = vunpack.c.h.b16 %v7091
          %v7137 = vunpack.c.l.b16 %v7092
          %v7138 = vunpack.c.h.b16 %v7092
          %v7139 = vunpack.c.l.b16 %v7093
          %v7140 = vunpack.c.h.b16 %v7093
          %v7141 = vunpack.c.l.b16 %v7094
          %v7142 = vunpack.c.h.b16 %v7094
          %v7143 = vunpack.c.l.b16 %v7095
          %v7144 = vunpack.c.h.b16 %v7095
          %v7145 = vunpack.c.l.b16 %v7096
          %v7146 = vunpack.c.h.b16 %v7096
          %v7147 = vunpack.c.l.b16 %v7097
          %v7148 = vunpack.c.h.b16 %v7097
          %v7149 = vunpack.c.l.b16 %v7098
          %v7150 = vunpack.c.h.b16 %v7098
          %v7151 = vunpack.c.l.b16 %v7099
          %v7152 = vunpack.c.h.b16 %v7099
          %v7153 = vpack.c.b16 %v7135, %v7129
          %v7154 = vpack.c.b16 %v7136, %v7130
          %v7155 = vpack.c.b16 %v7137, %v7131
          %v7156 = vpack.c.b16 %v7138, %v7132
          %v7157 = vpack.c.b16 %v7139, %v7133
          %v7158 = vpack.c.b16 %v7140, %v7134
          %v7159 = vpack.c.b16 %v7147, %v7141
          %v7160 = vpack.c.b16 %v7148, %v7142
          %v7161 = vpack.c.b16 %v7149, %v7143
          %v7162 = vpack.c.b16 %v7150, %v7144
          %v7163 = vpack.c.b16 %v7151, %v7145
          %v7164 = vpack.c.b16 %v7152, %v7146
          %v7177 = vmul.bf16 %v7105, %v7153
          %v7178 = vmul.bf16 %v7106, %v7154
          %v7179 = vmul.bf16 %v7107, %v7155
          %v7180 = vmul.bf16 %v7108, %v7156
          %v7181 = vmul.bf16 %v7109, %v7157
          %v7182 = vmul.bf16 %v7110, %v7158
          %v7183 = vmul.bf16 %v7111, %v7159
          %v7184 = vmul.bf16 %v7112, %v7160
          %v7185 = vmul.bf16 %v7113, %v7161
          %v7186 = vmul.bf16 %v7114, %v7162
          %v7187 = vmul.bf16 %v7115, %v7163
          %v7188 = vmul.bf16 %v7116, %v7164
          %v7189 = vunpack.c.l.bf16 %v7177
          %v7190 = vunpack.c.l.bf16 %v7178
          %v7191 = vunpack.c.l.bf16 %v7179
          %v7192 = vunpack.c.l.bf16 %v7180
          %v7193 = vunpack.c.l.bf16 %v7181
          %v7194 = vunpack.c.l.bf16 %v7182
          %v7195 = vunpack.c.h.bf16 %v7177
          %v7196 = vunpack.c.h.bf16 %v7178
          %v7197 = vunpack.c.h.bf16 %v7179
          %v7198 = vunpack.c.h.bf16 %v7180
          %v7199 = vunpack.c.h.bf16 %v7181
          %v7200 = vunpack.c.h.bf16 %v7182
          %v7201 = vunpack.c.l.bf16 %v7183
          %v7202 = vunpack.c.l.bf16 %v7184
          %v7203 = vunpack.c.l.bf16 %v7185
          %v7204 = vunpack.c.l.bf16 %v7186
          %v7205 = vunpack.c.l.bf16 %v7187
          %v7206 = vunpack.c.l.bf16 %v7188
          %v7207 = vunpack.c.h.bf16 %v7183
          %v7208 = vunpack.c.h.bf16 %v7184
          %v7209 = vunpack.c.h.bf16 %v7185
          %v7210 = vunpack.c.h.bf16 %v7186
          %v7211 = vunpack.c.h.bf16 %v7187
          %v7212 = vunpack.c.h.bf16 %v7188
          %v7213 = vadd.f32 %v7189, %v7195
          %v7214 = vadd.f32 %v7213, %v7201
          %v7215 = vadd.f32 %v7214, %v7207
          %v7216 = vrot.slane %v7215, 4
          %v7217 = vadd.f32 %v7215, %v7216
          %v7218 = vrot.slane %v7217, 2
          %v7219 = vadd.f32 %v7217, %v7218
          %v7220 = vrot.slane %v7219, 1
          %v7221 = vadd.f32 %v7219, %v7220
          %v7222 = vadd.f32 %v7190, %v7196
          %v7223 = vadd.f32 %v7222, %v7202
          %v7224 = vadd.f32 %v7223, %v7208
          %v7225 = vrot.slane %v7224, 4
          %v7226 = vadd.f32 %v7224, %v7225
          %v7227 = vrot.slane %v7226, 2
          %v7228 = vadd.f32 %v7226, %v7227
          %v7229 = vrot.slane %v7228, 1
          %v7230 = vadd.f32 %v7228, %v7229
          %v7231 = vadd.f32 %v7191, %v7197
          %v7232 = vadd.f32 %v7231, %v7203
          %v7233 = vadd.f32 %v7232, %v7209
          %v7234 = vrot.slane %v7233, 4
          %v7235 = vadd.f32 %v7233, %v7234
          %v7236 = vrot.slane %v7235, 2
          %v7237 = vadd.f32 %v7235, %v7236
          %v7238 = vrot.slane %v7237, 1
          %v7239 = vadd.f32 %v7237, %v7238
          %v7240 = vadd.f32 %v7192, %v7198
          %v7241 = vadd.f32 %v7240, %v7204
          %v7242 = vadd.f32 %v7241, %v7210
          %v7243 = vrot.slane %v7242, 4
          %v7244 = vadd.f32 %v7242, %v7243
          %v7245 = vrot.slane %v7244, 2
          %v7246 = vadd.f32 %v7244, %v7245
          %v7247 = vrot.slane %v7246, 1
          %v7248 = vadd.f32 %v7246, %v7247
          %v7249 = vadd.f32 %v7193, %v7199
          %v7250 = vadd.f32 %v7249, %v7205
          %v7251 = vadd.f32 %v7250, %v7211
          %v7252 = vrot.slane %v7251, 4
          %v7253 = vadd.f32 %v7251, %v7252
          %v7254 = vrot.slane %v7253, 2
          %v7255 = vadd.f32 %v7253, %v7254
          %v7256 = vrot.slane %v7255, 1
          %v7257 = vadd.f32 %v7255, %v7256
          %v7258 = vadd.f32 %v7194, %v7200
          %v7259 = vadd.f32 %v7258, %v7206
          %v7260 = vadd.f32 %v7259, %v7212
          %v7261 = vrot.slane %v7260, 4
          %v7262 = vadd.f32 %v7260, %v7261
          %v7263 = vrot.slane %v7262, 2
          %v7264 = vadd.f32 %v7262, %v7263
          %v7265 = vrot.slane %v7264, 1
          %v7266 = vadd.f32 %v7264, %v7265
          %v7267 = vadd.f32 %v7069, %v7221
          %v7268 = vadd.f32 %v7070, %v7230
          %v7269 = vadd.f32 %v7071, %v7239
          %v7270 = vadd.f32 %v7072, %v7248
          %v7271 = vadd.f32 %v7073, %v7257
          %v7272 = vadd.f32 %v7074, %v7266
          %s7273 = sadd.s32 %s7102, 72
          %s7274 = smul.addr %s7273, 8
          %s7275 = scalar_lea.vmem [#allocation2], %s7274
          %v7276 = vld [vmem:[%s7275] sm:$0xff]
          %v7277 = vld [vmem:[%s7275 + $0x8] sm:$0xff]
          %v7278 = vld [vmem:[%s7275 + $0x10] sm:$0xff]
          %v7279 = vld [vmem:[%s7275 + $0x18] sm:$0xff]
          %v7280 = vld [vmem:[%s7275 + $0x20] sm:$0xff]
          %v7281 = vld [vmem:[%s7275 + $0x28] sm:$0xff]
          %v7282 = vld [vmem:[%s7275 + $0x30] sm:$0xff]
          %v7283 = vld [vmem:[%s7275 + $0x38] sm:$0xff]
          %v7284 = vld [vmem:[%s7275 + $0x40] sm:$0xff]
          %v7285 = vld [vmem:[%s7275 + $0x48] sm:$0xff]
          %v7286 = vld [vmem:[%s7275 + $0x50] sm:$0xff]
          %v7287 = vld [vmem:[%s7275 + $0x58] sm:$0xff]
          %v7288 = vmul.bf16 %v7276, %v7153
          %v7289 = vmul.bf16 %v7277, %v7154
          %v7290 = vmul.bf16 %v7278, %v7155
          %v7291 = vmul.bf16 %v7279, %v7156
          %v7292 = vmul.bf16 %v7280, %v7157
          %v7293 = vmul.bf16 %v7281, %v7158
          %v7294 = vmul.bf16 %v7282, %v7159
          %v7295 = vmul.bf16 %v7283, %v7160
          %v7296 = vmul.bf16 %v7284, %v7161
          %v7297 = vmul.bf16 %v7285, %v7162
          %v7298 = vmul.bf16 %v7286, %v7163
          %v7299 = vmul.bf16 %v7287, %v7164
          %v7300 = vunpack.c.l.bf16 %v7288
          %v7301 = vunpack.c.l.bf16 %v7289
          %v7302 = vunpack.c.l.bf16 %v7290
          %v7303 = vunpack.c.l.bf16 %v7291
          %v7304 = vunpack.c.l.bf16 %v7292
          %v7305 = vunpack.c.l.bf16 %v7293
          %v7306 = vunpack.c.h.bf16 %v7288
          %v7307 = vunpack.c.h.bf16 %v7289
          %v7308 = vunpack.c.h.bf16 %v7290
          %v7309 = vunpack.c.h.bf16 %v7291
          %v7310 = vunpack.c.h.bf16 %v7292
          %v7311 = vunpack.c.h.bf16 %v7293
          %v7312 = vunpack.c.l.bf16 %v7294
          %v7313 = vunpack.c.l.bf16 %v7295
          %v7314 = vunpack.c.l.bf16 %v7296
          %v7315 = vunpack.c.l.bf16 %v7297
          %v7316 = vunpack.c.l.bf16 %v7298
          %v7317 = vunpack.c.l.bf16 %v7299
          %v7318 = vunpack.c.h.bf16 %v7294
          %v7319 = vunpack.c.h.bf16 %v7295
          %v7320 = vunpack.c.h.bf16 %v7296
          %v7321 = vunpack.c.h.bf16 %v7297
          %v7322 = vunpack.c.h.bf16 %v7298
          %v7323 = vunpack.c.h.bf16 %v7299
          %v7324 = vadd.f32 %v7300, %v7306
          %v7325 = vadd.f32 %v7324, %v7312
          %v7326 = vadd.f32 %v7325, %v7318
          %v7327 = vrot.slane %v7326, 4
          %v7328 = vadd.f32 %v7326, %v7327
          %v7329 = vrot.slane %v7328, 2
          %v7330 = vadd.f32 %v7328, %v7329
          %v7331 = vrot.slane %v7330, 1
          %v7332 = vadd.f32 %v7330, %v7331
          %v7333 = vadd.f32 %v7301, %v7307
          %v7334 = vadd.f32 %v7333, %v7313
          %v7335 = vadd.f32 %v7334, %v7319
          %v7336 = vrot.slane %v7335, 4
          %v7337 = vadd.f32 %v7335, %v7336
          %v7338 = vrot.slane %v7337, 2
          %v7339 = vadd.f32 %v7337, %v7338
          %v7340 = vrot.slane %v7339, 1
          %v7341 = vadd.f32 %v7339, %v7340
          %v7342 = vadd.f32 %v7302, %v7308
          %v7343 = vadd.f32 %v7342, %v7314
          %v7344 = vadd.f32 %v7343, %v7320
          %v7345 = vrot.slane %v7344, 4
          %v7346 = vadd.f32 %v7344, %v7345
          %v7347 = vrot.slane %v7346, 2
          %v7348 = vadd.f32 %v7346, %v7347
          %v7349 = vrot.slane %v7348, 1
          %v7350 = vadd.f32 %v7348, %v7349
          %v7351 = vadd.f32 %v7303, %v7309
          %v7352 = vadd.f32 %v7351, %v7315
          %v7353 = vadd.f32 %v7352, %v7321
          %v7354 = vrot.slane %v7353, 4
          %v7355 = vadd.f32 %v7353, %v7354
          %v7356 = vrot.slane %v7355, 2
          %v7357 = vadd.f32 %v7355, %v7356
          %v7358 = vrot.slane %v7357, 1
          %v7359 = vadd.f32 %v7357, %v7358
          %v7360 = vadd.f32 %v7304, %v7310
          %v7361 = vadd.f32 %v7360, %v7316
          %v7362 = vadd.f32 %v7361, %v7322
          %v7363 = vrot.slane %v7362, 4
          %v7364 = vadd.f32 %v7362, %v7363
          %v7365 = vrot.slane %v7364, 2
          %v7366 = vadd.f32 %v7364, %v7365
          %v7367 = vrot.slane %v7366, 1
          %v7368 = vadd.f32 %v7366, %v7367
          %v7369 = vadd.f32 %v7305, %v7311
          %v7370 = vadd.f32 %v7369, %v7317
          %v7371 = vadd.f32 %v7370, %v7323
          %v7372 = vrot.slane %v7371, 4
          %v7373 = vadd.f32 %v7371, %v7372
          %v7374 = vrot.slane %v7373, 2
          %v7375 = vadd.f32 %v7373, %v7374
          %v7376 = vrot.slane %v7375, 1
          %v7377 = vadd.f32 %v7375, %v7376
          %v7378 = vadd.f32 %v7075, %v7332
          %v7379 = vadd.f32 %v7076, %v7341
          %v7380 = vadd.f32 %v7077, %v7350
          %v7381 = vadd.f32 %v7078, %v7359
          %v7382 = vadd.f32 %v7079, %v7368
          %v7383 = vadd.f32 %v7080, %v7377
        $region93: #{image_classifier_forward.1} parent=54 // loop_footer
          %s7068 = sadd.s32 1, %s7064
        $region94: #{image_classifier_forward.1} parent=54 // loop_footer_branch
          %7063 = sbr.rel target = $region90
        $region95: #{image_classifier_forward.1} parent=54 // loop_exit
          _
        %s7384 = scalar_lea.vmem [#allocation3], 36
        %v7385 = vld [vmem:[%s7384] sm:$0xff]
        %v7386 = vld [vmem:[%s7384 + $0x8] sm:$0xf]
        %v7387 = vsel %vm6285, %v7069, %v7075
        %v7388 = vsel %vm6285, %v7070, %v7076
        %v7389 = vsel %vm6285, %v7071, %v7077
        %v7390 = vsel %vm6285, %v7072, %v7078
        %v7391 = vsel %vm6285, %v7073, %v7079
        %v7392 = vsel %vm6285, %v7074, %v7080
        %v7399 = vcombine.low %v7387, %v7388
        %v7400 = vcombine.low %v7389, %v7390
        %v7402 = vunpack.c.l.s4 1983009808
        %v7403 = vunpack.c.0.s8 %v7402
        %v7404 = vlaneseq
        %v7405 = vshrl.u32 %v7404, 7
        %v7406 = vsub.s32 %v7403, %v7405
        %v7407 = vrot.slane %v7399, %v7406
        %v7409 = vunpack.c.l.s4 1983009808
        %v7410 = vunpack.c.0.s8 %v7409
        %v7411 = vlaneseq
        %v7412 = vshrl.u32 %v7411, 7
        %v7413 = vsub.s32 %v7410, %v7412
        %v7414 = vrot.slane %v7400, %v7413
        %v7415 = vcombine.low %v7407, %v7414
        %v7416 = vcombine.low %v7391, %v7392
        %v7418 = vunpack.c.l.s4 1983009808
        %v7419 = vunpack.c.0.s8 %v7418
        %v7420 = vlaneseq
        %v7421 = vshrl.u32 %v7420, 7
        %v7422 = vsub.s32 %v7419, %v7421
        %v7423 = vrot.slane %v7416, %v7422
        %v7426 = vadd.f32 %v7385, %v7415
        %v7427 = vadd.f32 %v7386, %v7423
        %7428 = vst [vmem:[%s7384] sm:$0xff] %v7426
        %7429 = vst [vmem:[%s7384 + $0x8] sm:$0xf] %v7427
        loop: start=0, step=1, limit=6
        $region96: #{image_classifier_forward.1} parent=54 // loop_pre_header
          _
        $region97: #{image_classifier_forward.1} parent=54 // loop_header
          %s7431 = sphi 0, %s7435
          %p7432 = scmp.ge.s32.totalorder %s7431, 6
          %v7436 = vphi 0.0, %v7634
          %v7437 = vphi 0.0, %v7635
          %v7438 = vphi 0.0, %v7636
          %v7439 = vphi 0.0, %v7637
          %v7440 = vphi 0.0, %v7638
          %v7441 = vphi 0.0, %v7639
          %v7442 = vphi 0.0, %v7745
          %v7443 = vphi 0.0, %v7746
          %v7444 = vphi 0.0, %v7747
          %v7445 = vphi 0.0, %v7748
          %v7446 = vphi 0.0, %v7749
          %v7447 = vphi 0.0, %v7750
        $region98: #{image_classifier_forward.1} parent=54 // loop_header_branch
          %7434 = sbr.rel (%p7432) target = $region102
        $region99: #{image_classifier_forward.1} parent=54 // loop_body
          %s7448 = smul.u32 %s7431, 32
          %s7449 = sshra.s32 %s7448, 3
          %s7450 = sand.u32 %s7448, 7
          %s7451 = smul.u32 %s7449, 6
          %s7452 = sadd.s32 %s7451, 576
          %s7453 = smul.addr %s7452, 4
          %s7454 = scalar_lea.vmem %s753, %s7453 [#allocation5]
          %v7455 = vld [vmem:[%s7454] sm:$0xff]
          %v7456 = vld [vmem:[%s7454 + $0x8] sm:$0xff]
          %v7457 = vld [vmem:[%s7454 + $0x10] sm:$0xff]
          %v7458 = vld [vmem:[%s7454 + $0x18] sm:$0xff]
          %v7459 = vld [vmem:[%s7454 + $0x20] sm:$0xff]
          %v7460 = vld [vmem:[%s7454 + $0x28] sm:$0xff]
          %v7461 = vld [vmem:[%s7454 + $0x30] sm:$0xff]
          %v7462 = vld [vmem:[%s7454 + $0x38] sm:$0xff]
          %v7463 = vld [vmem:[%s7454 + $0x40] sm:$0xff]
          %v7464 = vld [vmem:[%s7454 + $0x48] sm:$0xff]
          %v7465 = vld [vmem:[%s7454 + $0x50] sm:$0xff]
          %v7466 = vld [vmem:[%s7454 + $0x58] sm:$0xff]
          %s7467 = sshra.s32 %s7448, 4
          %s7468 = sand.u32 %s7448, 15
          %s7469 = smul.u32 %s7467, 6
          %s7470 = smul.addr %s7469, 8
          %s7471 = scalar_lea.vmem [#allocation2], %s7470
          %v7472 = vld [vmem:[%s7471] sm:$0xff]
          %v7473 = vld [vmem:[%s7471 + $0x8] sm:$0xff]
          %v7474 = vld [vmem:[%s7471 + $0x10] sm:$0xff]
          %v7475 = vld [vmem:[%s7471 + $0x18] sm:$0xff]
          %v7476 = vld [vmem:[%s7471 + $0x20] sm:$0xff]
          %v7477 = vld [vmem:[%s7471 + $0x28] sm:$0xff]
          %v7478 = vld [vmem:[%s7471 + $0x30] sm:$0xff]
          %v7479 = vld [vmem:[%s7471 + $0x38] sm:$0xff]
          %v7480 = vld [vmem:[%s7471 + $0x40] sm:$0xff]
          %v7481 = vld [vmem:[%s7471 + $0x48] sm:$0xff]
          %v7482 = vld [vmem:[%s7471 + $0x50] sm:$0xff]
          %v7483 = vld [vmem:[%s7471 + $0x58] sm:$0xff]
          %v7496 = vunpack.c.l.b16 %v7455
          %v7497 = vunpack.c.h.b16 %v7455
          %v7498 = vunpack.c.l.b16 %v7456
          %v7499 = vunpack.c.h.b16 %v7456
          %v7500 = vunpack.c.l.b16 %v7457
          %v7501 = vunpack.c.h.b16 %v7457
          %v7502 = vunpack.c.l.b16 %v7458
          %v7503 = vunpack.c.h.b16 %v7458
          %v7504 = vunpack.c.l.b16 %v7459
          %v7505 = vunpack.c.h.b16 %v7459
          %v7506 = vunpack.c.l.b16 %v7460
          %v7507 = vunpack.c.h.b16 %v7460
          %v7508 = vunpack.c.l.b16 %v7461
          %v7509 = vunpack.c.h.b16 %v7461
          %v7510 = vunpack.c.l.b16 %v7462
          %v7511 = vunpack.c.h.b16 %v7462
          %v7512 = vunpack.c.l.b16 %v7463
          %v7513 = vunpack.c.h.b16 %v7463
          %v7514 = vunpack.c.l.b16 %v7464
          %v7515 = vunpack.c.h.b16 %v7464
          %v7516 = vunpack.c.l.b16 %v7465
          %v7517 = vunpack.c.h.b16 %v7465
          %v7518 = vunpack.c.l.b16 %v7466
          %v7519 = vunpack.c.h.b16 %v7466
          %v7520 = vpack.c.b16 %v7502, %v7496
          %v7521 = vpack.c.b16 %v7503, %v7497
          %v7522 = vpack.c.b16 %v7504, %v7498
          %v7523 = vpack.c.b16 %v7505, %v7499
          %v7524 = vpack.c.b16 %v7506, %v7500
          %v7525 = vpack.c.b16 %v7507, %v7501
          %v7526 = vpack.c.b16 %v7514, %v7508
          %v7527 = vpack.c.b16 %v7515, %v7509
          %v7528 = vpack.c.b16 %v7516, %v7510
          %v7529 = vpack.c.b16 %v7517, %v7511
          %v7530 = vpack.c.b16 %v7518, %v7512
          %v7531 = vpack.c.b16 %v7519, %v7513
          %v7544 = vmul.bf16 %v7472, %v7520
          %v7545 = vmul.bf16 %v7473, %v7521
          %v7546 = vmul.bf16 %v7474, %v7522
          %v7547 = vmul.bf16 %v7475, %v7523
          %v7548 = vmul.bf16 %v7476, %v7524
          %v7549 = vmul.bf16 %v7477, %v7525
          %v7550 = vmul.bf16 %v7478, %v7526
          %v7551 = vmul.bf16 %v7479, %v7527
          %v7552 = vmul.bf16 %v7480, %v7528
          %v7553 = vmul.bf16 %v7481, %v7529
          %v7554 = vmul.bf16 %v7482, %v7530
          %v7555 = vmul.bf16 %v7483, %v7531
          %v7556 = vunpack.c.l.bf16 %v7544
          %v7557 = vunpack.c.l.bf16 %v7545
          %v7558 = vunpack.c.l.bf16 %v7546
          %v7559 = vunpack.c.l.bf16 %v7547
          %v7560 = vunpack.c.l.bf16 %v7548
          %v7561 = vunpack.c.l.bf16 %v7549
          %v7562 = vunpack.c.h.bf16 %v7544
          %v7563 = vunpack.c.h.bf16 %v7545
          %v7564 = vunpack.c.h.bf16 %v7546
          %v7565 = vunpack.c.h.bf16 %v7547
          %v7566 = vunpack.c.h.bf16 %v7548
          %v7567 = vunpack.c.h.bf16 %v7549
          %v7568 = vunpack.c.l.bf16 %v7550
          %v7569 = vunpack.c.l.bf16 %v7551
          %v7570 = vunpack.c.l.bf16 %v7552
          %v7571 = vunpack.c.l.bf16 %v7553
          %v7572 = vunpack.c.l.bf16 %v7554
          %v7573 = vunpack.c.l.bf16 %v7555
          %v7574 = vunpack.c.h.bf16 %v7550
          %v7575 = vunpack.c.h.bf16 %v7551
          %v7576 = vunpack.c.h.bf16 %v7552
          %v7577 = vunpack.c.h.bf16 %v7553
          %v7578 = vunpack.c.h.bf16 %v7554
          %v7579 = vunpack.c.h.bf16 %v7555
          %v7580 = vadd.f32 %v7556, %v7562
          %v7581 = vadd.f32 %v7580, %v7568
          %v7582 = vadd.f32 %v7581, %v7574
          %v7583 = vrot.slane %v7582, 4
          %v7584 = vadd.f32 %v7582, %v7583
          %v7585 = vrot.slane %v7584, 2
          %v7586 = vadd.f32 %v7584, %v7585
          %v7587 = vrot.slane %v7586, 1
          %v7588 = vadd.f32 %v7586, %v7587
          %v7589 = vadd.f32 %v7557, %v7563
          %v7590 = vadd.f32 %v7589, %v7569
          %v7591 = vadd.f32 %v7590, %v7575
          %v7592 = vrot.slane %v7591, 4
          %v7593 = vadd.f32 %v7591, %v7592
          %v7594 = vrot.slane %v7593, 2
          %v7595 = vadd.f32 %v7593, %v7594
          %v7596 = vrot.slane %v7595, 1
          %v7597 = vadd.f32 %v7595, %v7596
          %v7598 = vadd.f32 %v7558, %v7564
          %v7599 = vadd.f32 %v7598, %v7570
          %v7600 = vadd.f32 %v7599, %v7576
          %v7601 = vrot.slane %v7600, 4
          %v7602 = vadd.f32 %v7600, %v7601
          %v7603 = vrot.slane %v7602, 2
          %v7604 = vadd.f32 %v7602, %v7603
          %v7605 = vrot.slane %v7604, 1
          %v7606 = vadd.f32 %v7604, %v7605
          %v7607 = vadd.f32 %v7559, %v7565
          %v7608 = vadd.f32 %v7607, %v7571
          %v7609 = vadd.f32 %v7608, %v7577
          %v7610 = vrot.slane %v7609, 4
          %v7611 = vadd.f32 %v7609, %v7610
          %v7612 = vrot.slane %v7611, 2
          %v7613 = vadd.f32 %v7611, %v7612
          %v7614 = vrot.slane %v7613, 1
          %v7615 = vadd.f32 %v7613, %v7614
          %v7616 = vadd.f32 %v7560, %v7566
          %v7617 = vadd.f32 %v7616, %v7572
          %v7618 = vadd.f32 %v7617, %v7578
          %v7619 = vrot.slane %v7618, 4
          %v7620 = vadd.f32 %v7618, %v7619
          %v7621 = vrot.slane %v7620, 2
          %v7622 = vadd.f32 %v7620, %v7621
          %v7623 = vrot.slane %v7622, 1
          %v7624 = vadd.f32 %v7622, %v7623
          %v7625 = vadd.f32 %v7561, %v7567
          %v7626 = vadd.f32 %v7625, %v7573
          %v7627 = vadd.f32 %v7626, %v7579
          %v7628 = vrot.slane %v7627, 4
          %v7629 = vadd.f32 %v7627, %v7628
          %v7630 = vrot.slane %v7629, 2
          %v7631 = vadd.f32 %v7629, %v7630
          %v7632 = vrot.slane %v7631, 1
          %v7633 = vadd.f32 %v7631, %v7632
          %v7634 = vadd.f32 %v7436, %v7588
          %v7635 = vadd.f32 %v7437, %v7597
          %v7636 = vadd.f32 %v7438, %v7606
          %v7637 = vadd.f32 %v7439, %v7615
          %v7638 = vadd.f32 %v7440, %v7624
          %v7639 = vadd.f32 %v7441, %v7633
          %s7640 = sadd.s32 %s7469, 72
          %s7641 = smul.addr %s7640, 8
          %s7642 = scalar_lea.vmem [#allocation2], %s7641
          %v7643 = vld [vmem:[%s7642] sm:$0xff]
          %v7644 = vld [vmem:[%s7642 + $0x8] sm:$0xff]
          %v7645 = vld [vmem:[%s7642 + $0x10] sm:$0xff]
          %v7646 = vld [vmem:[%s7642 + $0x18] sm:$0xff]
          %v7647 = vld [vmem:[%s7642 + $0x20] sm:$0xff]
          %v7648 = vld [vmem:[%s7642 + $0x28] sm:$0xff]
          %v7649 = vld [vmem:[%s7642 + $0x30] sm:$0xff]
          %v7650 = vld [vmem:[%s7642 + $0x38] sm:$0xff]
          %v7651 = vld [vmem:[%s7642 + $0x40] sm:$0xff]
          %v7652 = vld [vmem:[%s7642 + $0x48] sm:$0xff]
          %v7653 = vld [vmem:[%s7642 + $0x50] sm:$0xff]
          %v7654 = vld [vmem:[%s7642 + $0x58] sm:$0xff]
          %v7655 = vmul.bf16 %v7643, %v7520
          %v7656 = vmul.bf16 %v7644, %v7521
          %v7657 = vmul.bf16 %v7645, %v7522
          %v7658 = vmul.bf16 %v7646, %v7523
          %v7659 = vmul.bf16 %v7647, %v7524
          %v7660 = vmul.bf16 %v7648, %v7525
          %v7661 = vmul.bf16 %v7649, %v7526
          %v7662 = vmul.bf16 %v7650, %v7527
          %v7663 = vmul.bf16 %v7651, %v7528
          %v7664 = vmul.bf16 %v7652, %v7529
          %v7665 = vmul.bf16 %v7653, %v7530
          %v7666 = vmul.bf16 %v7654, %v7531
          %v7667 = vunpack.c.l.bf16 %v7655
          %v7668 = vunpack.c.l.bf16 %v7656
          %v7669 = vunpack.c.l.bf16 %v7657
          %v7670 = vunpack.c.l.bf16 %v7658
          %v7671 = vunpack.c.l.bf16 %v7659
          %v7672 = vunpack.c.l.bf16 %v7660
          %v7673 = vunpack.c.h.bf16 %v7655
          %v7674 = vunpack.c.h.bf16 %v7656
          %v7675 = vunpack.c.h.bf16 %v7657
          %v7676 = vunpack.c.h.bf16 %v7658
          %v7677 = vunpack.c.h.bf16 %v7659
          %v7678 = vunpack.c.h.bf16 %v7660
          %v7679 = vunpack.c.l.bf16 %v7661
          %v7680 = vunpack.c.l.bf16 %v7662
          %v7681 = vunpack.c.l.bf16 %v7663
          %v7682 = vunpack.c.l.bf16 %v7664
          %v7683 = vunpack.c.l.bf16 %v7665
          %v7684 = vunpack.c.l.bf16 %v7666
          %v7685 = vunpack.c.h.bf16 %v7661
          %v7686 = vunpack.c.h.bf16 %v7662
          %v7687 = vunpack.c.h.bf16 %v7663
          %v7688 = vunpack.c.h.bf16 %v7664
          %v7689 = vunpack.c.h.bf16 %v7665
          %v7690 = vunpack.c.h.bf16 %v7666
          %v7691 = vadd.f32 %v7667, %v7673
          %v7692 = vadd.f32 %v7691, %v7679
          %v7693 = vadd.f32 %v7692, %v7685
          %v7694 = vrot.slane %v7693, 4
          %v7695 = vadd.f32 %v7693, %v7694
          %v7696 = vrot.slane %v7695, 2
          %v7697 = vadd.f32 %v7695, %v7696
          %v7698 = vrot.slane %v7697, 1
          %v7699 = vadd.f32 %v7697, %v7698
          %v7700 = vadd.f32 %v7668, %v7674
          %v7701 = vadd.f32 %v7700, %v7680
          %v7702 = vadd.f32 %v7701, %v7686
          %v7703 = vrot.slane %v7702, 4
          %v7704 = vadd.f32 %v7702, %v7703
          %v7705 = vrot.slane %v7704, 2
          %v7706 = vadd.f32 %v7704, %v7705
          %v7707 = vrot.slane %v7706, 1
          %v7708 = vadd.f32 %v7706, %v7707
          %v7709 = vadd.f32 %v7669, %v7675
          %v7710 = vadd.f32 %v7709, %v7681
          %v7711 = vadd.f32 %v7710, %v7687
          %v7712 = vrot.slane %v7711, 4
          %v7713 = vadd.f32 %v7711, %v7712
          %v7714 = vrot.slane %v7713, 2
          %v7715 = vadd.f32 %v7713, %v7714
          %v7716 = vrot.slane %v7715, 1
          %v7717 = vadd.f32 %v7715, %v7716
          %v7718 = vadd.f32 %v7670, %v7676
          %v7719 = vadd.f32 %v7718, %v7682
          %v7720 = vadd.f32 %v7719, %v7688
          %v7721 = vrot.slane %v7720, 4
          %v7722 = vadd.f32 %v7720, %v7721
          %v7723 = vrot.slane %v7722, 2
          %v7724 = vadd.f32 %v7722, %v7723
          %v7725 = vrot.slane %v7724, 1
          %v7726 = vadd.f32 %v7724, %v7725
          %v7727 = vadd.f32 %v7671, %v7677
          %v7728 = vadd.f32 %v7727, %v7683
          %v7729 = vadd.f32 %v7728, %v7689
          %v7730 = vrot.slane %v7729, 4
          %v7731 = vadd.f32 %v7729, %v7730
          %v7732 = vrot.slane %v7731, 2
          %v7733 = vadd.f32 %v7731, %v7732
          %v7734 = vrot.slane %v7733, 1
          %v7735 = vadd.f32 %v7733, %v7734
          %v7736 = vadd.f32 %v7672, %v7678
          %v7737 = vadd.f32 %v7736, %v7684
          %v7738 = vadd.f32 %v7737, %v7690
          %v7739 = vrot.slane %v7738, 4
          %v7740 = vadd.f32 %v7738, %v7739
          %v7741 = vrot.slane %v7740, 2
          %v7742 = vadd.f32 %v7740, %v7741
          %v7743 = vrot.slane %v7742, 1
          %v7744 = vadd.f32 %v7742, %v7743
          %v7745 = vadd.f32 %v7442, %v7699
          %v7746 = vadd.f32 %v7443, %v7708
          %v7747 = vadd.f32 %v7444, %v7717
          %v7748 = vadd.f32 %v7445, %v7726
          %v7749 = vadd.f32 %v7446, %v7735
          %v7750 = vadd.f32 %v7447, %v7744
        $region100: #{image_classifier_forward.1} parent=54 // loop_footer
          %s7435 = sadd.s32 1, %s7431
        $region101: #{image_classifier_forward.1} parent=54 // loop_footer_branch
          %7430 = sbr.rel target = $region97
        $region102: #{image_classifier_forward.1} parent=54 // loop_exit
          _
        %s7751 = scalar_lea.vmem [#allocation3], 48
        %v7752 = vld [vmem:[%s7751] sm:$0xff]
        %v7753 = vld [vmem:[%s7751 + $0x8] sm:$0xf]
        %v7754 = vsel %vm6285, %v7436, %v7442
        %v7755 = vsel %vm6285, %v7437, %v7443
        %v7756 = vsel %vm6285, %v7438, %v7444
        %v7757 = vsel %vm6285, %v7439, %v7445
        %v7758 = vsel %vm6285, %v7440, %v7446
        %v7759 = vsel %vm6285, %v7441, %v7447
        %v7766 = vcombine.low %v7754, %v7755
        %v7767 = vcombine.low %v7756, %v7757
        %v7769 = vunpack.c.l.s4 1983009808
        %v7770 = vunpack.c.0.s8 %v7769
        %v7771 = vlaneseq
        %v7772 = vshrl.u32 %v7771, 7
        %v7773 = vsub.s32 %v7770, %v7772
        %v7774 = vrot.slane %v7766, %v7773
        %v7776 = vunpack.c.l.s4 1983009808
        %v7777 = vunpack.c.0.s8 %v7776
        %v7778 = vlaneseq
        %v7779 = vshrl.u32 %v7778, 7
        %v7780 = vsub.s32 %v7777, %v7779
        %v7781 = vrot.slane %v7767, %v7780
        %v7782 = vcombine.low %v7774, %v7781
        %v7783 = vcombine.low %v7758, %v7759
        %v7785 = vunpack.c.l.s4 1983009808
        %v7786 = vunpack.c.0.s8 %v7785
        %v7787 = vlaneseq
        %v7788 = vshrl.u32 %v7787, 7
        %v7789 = vsub.s32 %v7786, %v7788
        %v7790 = vrot.slane %v7783, %v7789
        %v7793 = vadd.f32 %v7752, %v7782
        %v7794 = vadd.f32 %v7753, %v7790
        %7795 = vst [vmem:[%s7751] sm:$0xff] %v7793
        %7796 = vst [vmem:[%s7751 + $0x8] sm:$0xf] %v7794
        loop: start=0, step=1, limit=6
        $region103: #{image_classifier_forward.1} parent=54 // loop_pre_header
          _
        $region104: #{image_classifier_forward.1} parent=54 // loop_header
          %s7798 = sphi 0, %s7802
          %p7799 = scmp.ge.s32.totalorder %s7798, 6
          %v7803 = vphi 0.0, %v8001
          %v7804 = vphi 0.0, %v8002
          %v7805 = vphi 0.0, %v8003
          %v7806 = vphi 0.0, %v8004
          %v7807 = vphi 0.0, %v8005
          %v7808 = vphi 0.0, %v8006
          %v7809 = vphi 0.0, %v8112
          %v7810 = vphi 0.0, %v8113
          %v7811 = vphi 0.0, %v8114
          %v7812 = vphi 0.0, %v8115
          %v7813 = vphi 0.0, %v8116
          %v7814 = vphi 0.0, %v8117
        $region105: #{image_classifier_forward.1} parent=54 // loop_header_branch
          %7801 = sbr.rel (%p7799) target = $region109
        $region106: #{image_classifier_forward.1} parent=54 // loop_body
          %s7815 = smul.u32 %s7798, 32
          %s7816 = sshra.s32 %s7815, 3
          %s7817 = sand.u32 %s7815, 7
          %s7818 = smul.u32 %s7816, 6
          %s7819 = sadd.s32 %s7818, 720
          %s7820 = smul.addr %s7819, 4
          %s7821 = scalar_lea.vmem %s753, %s7820 [#allocation5]
          %v7822 = vld [vmem:[%s7821] sm:$0xff]
          %v7823 = vld [vmem:[%s7821 + $0x8] sm:$0xff]
          %v7824 = vld [vmem:[%s7821 + $0x10] sm:$0xff]
          %v7825 = vld [vmem:[%s7821 + $0x18] sm:$0xff]
          %v7826 = vld [vmem:[%s7821 + $0x20] sm:$0xff]
          %v7827 = vld [vmem:[%s7821 + $0x28] sm:$0xff]
          %v7828 = vld [vmem:[%s7821 + $0x30] sm:$0xff]
          %v7829 = vld [vmem:[%s7821 + $0x38] sm:$0xff]
          %v7830 = vld [vmem:[%s7821 + $0x40] sm:$0xff]
          %v7831 = vld [vmem:[%s7821 + $0x48] sm:$0xff]
          %v7832 = vld [vmem:[%s7821 + $0x50] sm:$0xff]
          %v7833 = vld [vmem:[%s7821 + $0x58] sm:$0xff]
          %s7834 = sshra.s32 %s7815, 4
          %s7835 = sand.u32 %s7815, 15
          %s7836 = smul.u32 %s7834, 6
          %s7837 = smul.addr %s7836, 8
          %s7838 = scalar_lea.vmem [#allocation2], %s7837
          %v7839 = vld [vmem:[%s7838] sm:$0xff]
          %v7840 = vld [vmem:[%s7838 + $0x8] sm:$0xff]
          %v7841 = vld [vmem:[%s7838 + $0x10] sm:$0xff]
          %v7842 = vld [vmem:[%s7838 + $0x18] sm:$0xff]
          %v7843 = vld [vmem:[%s7838 + $0x20] sm:$0xff]
          %v7844 = vld [vmem:[%s7838 + $0x28] sm:$0xff]
          %v7845 = vld [vmem:[%s7838 + $0x30] sm:$0xff]
          %v7846 = vld [vmem:[%s7838 + $0x38] sm:$0xff]
          %v7847 = vld [vmem:[%s7838 + $0x40] sm:$0xff]
          %v7848 = vld [vmem:[%s7838 + $0x48] sm:$0xff]
          %v7849 = vld [vmem:[%s7838 + $0x50] sm:$0xff]
          %v7850 = vld [vmem:[%s7838 + $0x58] sm:$0xff]
          %v7863 = vunpack.c.l.b16 %v7822
          %v7864 = vunpack.c.h.b16 %v7822
          %v7865 = vunpack.c.l.b16 %v7823
          %v7866 = vunpack.c.h.b16 %v7823
          %v7867 = vunpack.c.l.b16 %v7824
          %v7868 = vunpack.c.h.b16 %v7824
          %v7869 = vunpack.c.l.b16 %v7825
          %v7870 = vunpack.c.h.b16 %v7825
          %v7871 = vunpack.c.l.b16 %v7826
          %v7872 = vunpack.c.h.b16 %v7826
          %v7873 = vunpack.c.l.b16 %v7827
          %v7874 = vunpack.c.h.b16 %v7827
          %v7875 = vunpack.c.l.b16 %v7828
          %v7876 = vunpack.c.h.b16 %v7828
          %v7877 = vunpack.c.l.b16 %v7829
          %v7878 = vunpack.c.h.b16 %v7829
          %v7879 = vunpack.c.l.b16 %v7830
          %v7880 = vunpack.c.h.b16 %v7830
          %v7881 = vunpack.c.l.b16 %v7831
          %v7882 = vunpack.c.h.b16 %v7831
          %v7883 = vunpack.c.l.b16 %v7832
          %v7884 = vunpack.c.h.b16 %v7832
          %v7885 = vunpack.c.l.b16 %v7833
          %v7886 = vunpack.c.h.b16 %v7833
          %v7887 = vpack.c.b16 %v7869, %v7863
          %v7888 = vpack.c.b16 %v7870, %v7864
          %v7889 = vpack.c.b16 %v7871, %v7865
          %v7890 = vpack.c.b16 %v7872, %v7866
          %v7891 = vpack.c.b16 %v7873, %v7867
          %v7892 = vpack.c.b16 %v7874, %v7868
          %v7893 = vpack.c.b16 %v7881, %v7875
          %v7894 = vpack.c.b16 %v7882, %v7876
          %v7895 = vpack.c.b16 %v7883, %v7877
          %v7896 = vpack.c.b16 %v7884, %v7878
          %v7897 = vpack.c.b16 %v7885, %v7879
          %v7898 = vpack.c.b16 %v7886, %v7880
          %v7911 = vmul.bf16 %v7839, %v7887
          %v7912 = vmul.bf16 %v7840, %v7888
          %v7913 = vmul.bf16 %v7841, %v7889
          %v7914 = vmul.bf16 %v7842, %v7890
          %v7915 = vmul.bf16 %v7843, %v7891
          %v7916 = vmul.bf16 %v7844, %v7892
          %v7917 = vmul.bf16 %v7845, %v7893
          %v7918 = vmul.bf16 %v7846, %v7894
          %v7919 = vmul.bf16 %v7847, %v7895
          %v7920 = vmul.bf16 %v7848, %v7896
          %v7921 = vmul.bf16 %v7849, %v7897
          %v7922 = vmul.bf16 %v7850, %v7898
          %v7923 = vunpack.c.l.bf16 %v7911
          %v7924 = vunpack.c.l.bf16 %v7912
          %v7925 = vunpack.c.l.bf16 %v7913
          %v7926 = vunpack.c.l.bf16 %v7914
          %v7927 = vunpack.c.l.bf16 %v7915
          %v7928 = vunpack.c.l.bf16 %v7916
          %v7929 = vunpack.c.h.bf16 %v7911
          %v7930 = vunpack.c.h.bf16 %v7912
          %v7931 = vunpack.c.h.bf16 %v7913
          %v7932 = vunpack.c.h.bf16 %v7914
          %v7933 = vunpack.c.h.bf16 %v7915
          %v7934 = vunpack.c.h.bf16 %v7916
          %v7935 = vunpack.c.l.bf16 %v7917
          %v7936 = vunpack.c.l.bf16 %v7918
          %v7937 = vunpack.c.l.bf16 %v7919
          %v7938 = vunpack.c.l.bf16 %v7920
          %v7939 = vunpack.c.l.bf16 %v7921
          %v7940 = vunpack.c.l.bf16 %v7922
          %v7941 = vunpack.c.h.bf16 %v7917
          %v7942 = vunpack.c.h.bf16 %v7918
          %v7943 = vunpack.c.h.bf16 %v7919
          %v7944 = vunpack.c.h.bf16 %v7920
          %v7945 = vunpack.c.h.bf16 %v7921
          %v7946 = vunpack.c.h.bf16 %v7922
          %v7947 = vadd.f32 %v7923, %v7929
          %v7948 = vadd.f32 %v7947, %v7935
          %v7949 = vadd.f32 %v7948, %v7941
          %v7950 = vrot.slane %v7949, 4
          %v7951 = vadd.f32 %v7949, %v7950
          %v7952 = vrot.slane %v7951, 2
          %v7953 = vadd.f32 %v7951, %v7952
          %v7954 = vrot.slane %v7953, 1
          %v7955 = vadd.f32 %v7953, %v7954
          %v7956 = vadd.f32 %v7924, %v7930
          %v7957 = vadd.f32 %v7956, %v7936
          %v7958 = vadd.f32 %v7957, %v7942
          %v7959 = vrot.slane %v7958, 4
          %v7960 = vadd.f32 %v7958, %v7959
          %v7961 = vrot.slane %v7960, 2
          %v7962 = vadd.f32 %v7960, %v7961
          %v7963 = vrot.slane %v7962, 1
          %v7964 = vadd.f32 %v7962, %v7963
          %v7965 = vadd.f32 %v7925, %v7931
          %v7966 = vadd.f32 %v7965, %v7937
          %v7967 = vadd.f32 %v7966, %v7943
          %v7968 = vrot.slane %v7967, 4
          %v7969 = vadd.f32 %v7967, %v7968
          %v7970 = vrot.slane %v7969, 2
          %v7971 = vadd.f32 %v7969, %v7970
          %v7972 = vrot.slane %v7971, 1
          %v7973 = vadd.f32 %v7971, %v7972
          %v7974 = vadd.f32 %v7926, %v7932
          %v7975 = vadd.f32 %v7974, %v7938
          %v7976 = vadd.f32 %v7975, %v7944
          %v7977 = vrot.slane %v7976, 4
          %v7978 = vadd.f32 %v7976, %v7977
          %v7979 = vrot.slane %v7978, 2
          %v7980 = vadd.f32 %v7978, %v7979
          %v7981 = vrot.slane %v7980, 1
          %v7982 = vadd.f32 %v7980, %v7981
          %v7983 = vadd.f32 %v7927, %v7933
          %v7984 = vadd.f32 %v7983, %v7939
          %v7985 = vadd.f32 %v7984, %v7945
          %v7986 = vrot.slane %v7985, 4
          %v7987 = vadd.f32 %v7985, %v7986
          %v7988 = vrot.slane %v7987, 2
          %v7989 = vadd.f32 %v7987, %v7988
          %v7990 = vrot.slane %v7989, 1
          %v7991 = vadd.f32 %v7989, %v7990
          %v7992 = vadd.f32 %v7928, %v7934
          %v7993 = vadd.f32 %v7992, %v7940
          %v7994 = vadd.f32 %v7993, %v7946
          %v7995 = vrot.slane %v7994, 4
          %v7996 = vadd.f32 %v7994, %v7995
          %v7997 = vrot.slane %v7996, 2
          %v7998 = vadd.f32 %v7996, %v7997
          %v7999 = vrot.slane %v7998, 1
          %v8000 = vadd.f32 %v7998, %v7999
          %v8001 = vadd.f32 %v7803, %v7955
          %v8002 = vadd.f32 %v7804, %v7964
          %v8003 = vadd.f32 %v7805, %v7973
          %v8004 = vadd.f32 %v7806, %v7982
          %v8005 = vadd.f32 %v7807, %v7991
          %v8006 = vadd.f32 %v7808, %v8000
          %s8007 = sadd.s32 %s7836, 72
          %s8008 = smul.addr %s8007, 8
          %s8009 = scalar_lea.vmem [#allocation2], %s8008
          %v8010 = vld [vmem:[%s8009] sm:$0xff]
          %v8011 = vld [vmem:[%s8009 + $0x8] sm:$0xff]
          %v8012 = vld [vmem:[%s8009 + $0x10] sm:$0xff]
          %v8013 = vld [vmem:[%s8009 + $0x18] sm:$0xff]
          %v8014 = vld [vmem:[%s8009 + $0x20] sm:$0xff]
          %v8015 = vld [vmem:[%s8009 + $0x28] sm:$0xff]
          %v8016 = vld [vmem:[%s8009 + $0x30] sm:$0xff]
          %v8017 = vld [vmem:[%s8009 + $0x38] sm:$0xff]
          %v8018 = vld [vmem:[%s8009 + $0x40] sm:$0xff]
          %v8019 = vld [vmem:[%s8009 + $0x48] sm:$0xff]
          %v8020 = vld [vmem:[%s8009 + $0x50] sm:$0xff]
          %v8021 = vld [vmem:[%s8009 + $0x58] sm:$0xff]
          %v8022 = vmul.bf16 %v8010, %v7887
          %v8023 = vmul.bf16 %v8011, %v7888
          %v8024 = vmul.bf16 %v8012, %v7889
          %v8025 = vmul.bf16 %v8013, %v7890
          %v8026 = vmul.bf16 %v8014, %v7891
          %v8027 = vmul.bf16 %v8015, %v7892
          %v8028 = vmul.bf16 %v8016, %v7893
          %v8029 = vmul.bf16 %v8017, %v7894
          %v8030 = vmul.bf16 %v8018, %v7895
          %v8031 = vmul.bf16 %v8019, %v7896
          %v8032 = vmul.bf16 %v8020, %v7897
          %v8033 = vmul.bf16 %v8021, %v7898
          %v8034 = vunpack.c.l.bf16 %v8022
          %v8035 = vunpack.c.l.bf16 %v8023
          %v8036 = vunpack.c.l.bf16 %v8024
          %v8037 = vunpack.c.l.bf16 %v8025
          %v8038 = vunpack.c.l.bf16 %v8026
          %v8039 = vunpack.c.l.bf16 %v8027
          %v8040 = vunpack.c.h.bf16 %v8022
          %v8041 = vunpack.c.h.bf16 %v8023
          %v8042 = vunpack.c.h.bf16 %v8024
          %v8043 = vunpack.c.h.bf16 %v8025
          %v8044 = vunpack.c.h.bf16 %v8026
          %v8045 = vunpack.c.h.bf16 %v8027
          %v8046 = vunpack.c.l.bf16 %v8028
          %v8047 = vunpack.c.l.bf16 %v8029
          %v8048 = vunpack.c.l.bf16 %v8030
          %v8049 = vunpack.c.l.bf16 %v8031
          %v8050 = vunpack.c.l.bf16 %v8032
          %v8051 = vunpack.c.l.bf16 %v8033
          %v8052 = vunpack.c.h.bf16 %v8028
          %v8053 = vunpack.c.h.bf16 %v8029
          %v8054 = vunpack.c.h.bf16 %v8030
          %v8055 = vunpack.c.h.bf16 %v8031
          %v8056 = vunpack.c.h.bf16 %v8032
          %v8057 = vunpack.c.h.bf16 %v8033
          %v8058 = vadd.f32 %v8034, %v8040
          %v8059 = vadd.f32 %v8058, %v8046
          %v8060 = vadd.f32 %v8059, %v8052
          %v8061 = vrot.slane %v8060, 4
          %v8062 = vadd.f32 %v8060, %v8061
          %v8063 = vrot.slane %v8062, 2
          %v8064 = vadd.f32 %v8062, %v8063
          %v8065 = vrot.slane %v8064, 1
          %v8066 = vadd.f32 %v8064, %v8065
          %v8067 = vadd.f32 %v8035, %v8041
          %v8068 = vadd.f32 %v8067, %v8047
          %v8069 = vadd.f32 %v8068, %v8053
          %v8070 = vrot.slane %v8069, 4
          %v8071 = vadd.f32 %v8069, %v8070
          %v8072 = vrot.slane %v8071, 2
          %v8073 = vadd.f32 %v8071, %v8072
          %v8074 = vrot.slane %v8073, 1
          %v8075 = vadd.f32 %v8073, %v8074
          %v8076 = vadd.f32 %v8036, %v8042
          %v8077 = vadd.f32 %v8076, %v8048
          %v8078 = vadd.f32 %v8077, %v8054
          %v8079 = vrot.slane %v8078, 4
          %v8080 = vadd.f32 %v8078, %v8079
          %v8081 = vrot.slane %v8080, 2
          %v8082 = vadd.f32 %v8080, %v8081
          %v8083 = vrot.slane %v8082, 1
          %v8084 = vadd.f32 %v8082, %v8083
          %v8085 = vadd.f32 %v8037, %v8043
          %v8086 = vadd.f32 %v8085, %v8049
          %v8087 = vadd.f32 %v8086, %v8055
          %v8088 = vrot.slane %v8087, 4
          %v8089 = vadd.f32 %v8087, %v8088
          %v8090 = vrot.slane %v8089, 2
          %v8091 = vadd.f32 %v8089, %v8090
          %v8092 = vrot.slane %v8091, 1
          %v8093 = vadd.f32 %v8091, %v8092
          %v8094 = vadd.f32 %v8038, %v8044
          %v8095 = vadd.f32 %v8094, %v8050
          %v8096 = vadd.f32 %v8095, %v8056
          %v8097 = vrot.slane %v8096, 4
          %v8098 = vadd.f32 %v8096, %v8097
          %v8099 = vrot.slane %v8098, 2
          %v8100 = vadd.f32 %v8098, %v8099
          %v8101 = vrot.slane %v8100, 1
          %v8102 = vadd.f32 %v8100, %v8101
          %v8103 = vadd.f32 %v8039, %v8045
          %v8104 = vadd.f32 %v8103, %v8051
          %v8105 = vadd.f32 %v8104, %v8057
          %v8106 = vrot.slane %v8105, 4
          %v8107 = vadd.f32 %v8105, %v8106
          %v8108 = vrot.slane %v8107, 2
          %v8109 = vadd.f32 %v8107, %v8108
          %v8110 = vrot.slane %v8109, 1
          %v8111 = vadd.f32 %v8109, %v8110
          %v8112 = vadd.f32 %v7809, %v8066
          %v8113 = vadd.f32 %v7810, %v8075
          %v8114 = vadd.f32 %v7811, %v8084
          %v8115 = vadd.f32 %v7812, %v8093
          %v8116 = vadd.f32 %v7813, %v8102
          %v8117 = vadd.f32 %v7814, %v8111
        $region107: #{image_classifier_forward.1} parent=54 // loop_footer
          %s7802 = sadd.s32 1, %s7798
        $region108: #{image_classifier_forward.1} parent=54 // loop_footer_branch
          %7797 = sbr.rel target = $region104
        $region109: #{image_classifier_forward.1} parent=54 // loop_exit
          _
        %s8118 = scalar_lea.vmem [#allocation3], 60
        %v8119 = vld [vmem:[%s8118] sm:$0xff]
        %v8120 = vld [vmem:[%s8118 + $0x8] sm:$0xf]
        %v8121 = vsel %vm6285, %v7803, %v7809
        %v8122 = vsel %vm6285, %v7804, %v7810
        %v8123 = vsel %vm6285, %v7805, %v7811
        %v8124 = vsel %vm6285, %v7806, %v7812
        %v8125 = vsel %vm6285, %v7807, %v7813
        %v8126 = vsel %vm6285, %v7808, %v7814
        %v8133 = vcombine.low %v8121, %v8122
        %v8134 = vcombine.low %v8123, %v8124
        %v8136 = vunpack.c.l.s4 1983009808
        %v8137 = vunpack.c.0.s8 %v8136
        %v8138 = vlaneseq
        %v8139 = vshrl.u32 %v8138, 7
        %v8140 = vsub.s32 %v8137, %v8139
        %v8141 = vrot.slane %v8133, %v8140
        %v8143 = vunpack.c.l.s4 1983009808
        %v8144 = vunpack.c.0.s8 %v8143
        %v8145 = vlaneseq
        %v8146 = vshrl.u32 %v8145, 7
        %v8147 = vsub.s32 %v8144, %v8146
        %v8148 = vrot.slane %v8134, %v8147
        %v8149 = vcombine.low %v8141, %v8148
        %v8150 = vcombine.low %v8125, %v8126
        %v8152 = vunpack.c.l.s4 1983009808
        %v8153 = vunpack.c.0.s8 %v8152
        %v8154 = vlaneseq
        %v8155 = vshrl.u32 %v8154, 7
        %v8156 = vsub.s32 %v8153, %v8155
        %v8157 = vrot.slane %v8150, %v8156
        %v8160 = vadd.f32 %v8119, %v8149
        %v8161 = vadd.f32 %v8120, %v8157
        %8162 = vst [vmem:[%s8118] sm:$0xff] %v8160
        %8163 = vst [vmem:[%s8118 + $0x8] sm:$0xf] %v8161
        loop: start=0, step=1, limit=6
        $region110: #{image_classifier_forward.1} parent=54 // loop_pre_header
          _
        $region111: #{image_classifier_forward.1} parent=54 // loop_header
          %s8165 = sphi 0, %s8169
          %p8166 = scmp.ge.s32.totalorder %s8165, 6
          %v8170 = vphi 0.0, %v8368
          %v8171 = vphi 0.0, %v8369
          %v8172 = vphi 0.0, %v8370
          %v8173 = vphi 0.0, %v8371
          %v8174 = vphi 0.0, %v8372
          %v8175 = vphi 0.0, %v8373
          %v8176 = vphi 0.0, %v8479
          %v8177 = vphi 0.0, %v8480
          %v8178 = vphi 0.0, %v8481
          %v8179 = vphi 0.0, %v8482
          %v8180 = vphi 0.0, %v8483
          %v8181 = vphi 0.0, %v8484
        $region112: #{image_classifier_forward.1} parent=54 // loop_header_branch
          %8168 = sbr.rel (%p8166) target = $region116
        $region113: #{image_classifier_forward.1} parent=54 // loop_body
          %s8182 = smul.u32 %s8165, 32
          %s8183 = sshra.s32 %s8182, 3
          %s8184 = sand.u32 %s8182, 7
          %s8185 = smul.u32 %s8183, 6
          %s8186 = sadd.s32 %s8185, 864
          %s8187 = smul.addr %s8186, 4
          %s8188 = scalar_lea.vmem %s753, %s8187 [#allocation5]
          %v8189 = vld [vmem:[%s8188] sm:$0xff]
          %v8190 = vld [vmem:[%s8188 + $0x8] sm:$0xff]
          %v8191 = vld [vmem:[%s8188 + $0x10] sm:$0xff]
          %v8192 = vld [vmem:[%s8188 + $0x18] sm:$0xff]
          %v8193 = vld [vmem:[%s8188 + $0x20] sm:$0xff]
          %v8194 = vld [vmem:[%s8188 + $0x28] sm:$0xff]
          %v8195 = vld [vmem:[%s8188 + $0x30] sm:$0xff]
          %v8196 = vld [vmem:[%s8188 + $0x38] sm:$0xff]
          %v8197 = vld [vmem:[%s8188 + $0x40] sm:$0xff]
          %v8198 = vld [vmem:[%s8188 + $0x48] sm:$0xff]
          %v8199 = vld [vmem:[%s8188 + $0x50] sm:$0xff]
          %v8200 = vld [vmem:[%s8188 + $0x58] sm:$0xff]
          %s8201 = sshra.s32 %s8182, 4
          %s8202 = sand.u32 %s8182, 15
          %s8203 = smul.u32 %s8201, 6
          %s8204 = smul.addr %s8203, 8
          %s8205 = scalar_lea.vmem [#allocation2], %s8204
          %v8206 = vld [vmem:[%s8205] sm:$0xff]
          %v8207 = vld [vmem:[%s8205 + $0x8] sm:$0xff]
          %v8208 = vld [vmem:[%s8205 + $0x10] sm:$0xff]
          %v8209 = vld [vmem:[%s8205 + $0x18] sm:$0xff]
          %v8210 = vld [vmem:[%s8205 + $0x20] sm:$0xff]
          %v8211 = vld [vmem:[%s8205 + $0x28] sm:$0xff]
          %v8212 = vld [vmem:[%s8205 + $0x30] sm:$0xff]
          %v8213 = vld [vmem:[%s8205 + $0x38] sm:$0xff]
          %v8214 = vld [vmem:[%s8205 + $0x40] sm:$0xff]
          %v8215 = vld [vmem:[%s8205 + $0x48] sm:$0xff]
          %v8216 = vld [vmem:[%s8205 + $0x50] sm:$0xff]
          %v8217 = vld [vmem:[%s8205 + $0x58] sm:$0xff]
          %v8230 = vunpack.c.l.b16 %v8189
          %v8231 = vunpack.c.h.b16 %v8189
          %v8232 = vunpack.c.l.b16 %v8190
          %v8233 = vunpack.c.h.b16 %v8190
          %v8234 = vunpack.c.l.b16 %v8191
          %v8235 = vunpack.c.h.b16 %v8191
          %v8236 = vunpack.c.l.b16 %v8192
          %v8237 = vunpack.c.h.b16 %v8192
          %v8238 = vunpack.c.l.b16 %v8193
          %v8239 = vunpack.c.h.b16 %v8193
          %v8240 = vunpack.c.l.b16 %v8194
          %v8241 = vunpack.c.h.b16 %v8194
          %v8242 = vunpack.c.l.b16 %v8195
          %v8243 = vunpack.c.h.b16 %v8195
          %v8244 = vunpack.c.l.b16 %v8196
          %v8245 = vunpack.c.h.b16 %v8196
          %v8246 = vunpack.c.l.b16 %v8197
          %v8247 = vunpack.c.h.b16 %v8197
          %v8248 = vunpack.c.l.b16 %v8198
          %v8249 = vunpack.c.h.b16 %v8198
          %v8250 = vunpack.c.l.b16 %v8199
          %v8251 = vunpack.c.h.b16 %v8199
          %v8252 = vunpack.c.l.b16 %v8200
          %v8253 = vunpack.c.h.b16 %v8200
          %v8254 = vpack.c.b16 %v8236, %v8230
          %v8255 = vpack.c.b16 %v8237, %v8231
          %v8256 = vpack.c.b16 %v8238, %v8232
          %v8257 = vpack.c.b16 %v8239, %v8233
          %v8258 = vpack.c.b16 %v8240, %v8234
          %v8259 = vpack.c.b16 %v8241, %v8235
          %v8260 = vpack.c.b16 %v8248, %v8242
          %v8261 = vpack.c.b16 %v8249, %v8243
          %v8262 = vpack.c.b16 %v8250, %v8244
          %v8263 = vpack.c.b16 %v8251, %v8245
          %v8264 = vpack.c.b16 %v8252, %v8246
          %v8265 = vpack.c.b16 %v8253, %v8247
          %v8278 = vmul.bf16 %v8206, %v8254
          %v8279 = vmul.bf16 %v8207, %v8255
          %v8280 = vmul.bf16 %v8208, %v8256
          %v8281 = vmul.bf16 %v8209, %v8257
          %v8282 = vmul.bf16 %v8210, %v8258
          %v8283 = vmul.bf16 %v8211, %v8259
          %v8284 = vmul.bf16 %v8212, %v8260
          %v8285 = vmul.bf16 %v8213, %v8261
          %v8286 = vmul.bf16 %v8214, %v8262
          %v8287 = vmul.bf16 %v8215, %v8263
          %v8288 = vmul.bf16 %v8216, %v8264
          %v8289 = vmul.bf16 %v8217, %v8265
          %v8290 = vunpack.c.l.bf16 %v8278
          %v8291 = vunpack.c.l.bf16 %v8279
          %v8292 = vunpack.c.l.bf16 %v8280
          %v8293 = vunpack.c.l.bf16 %v8281
          %v8294 = vunpack.c.l.bf16 %v8282
          %v8295 = vunpack.c.l.bf16 %v8283
          %v8296 = vunpack.c.h.bf16 %v8278
          %v8297 = vunpack.c.h.bf16 %v8279
          %v8298 = vunpack.c.h.bf16 %v8280
          %v8299 = vunpack.c.h.bf16 %v8281
          %v8300 = vunpack.c.h.bf16 %v8282
          %v8301 = vunpack.c.h.bf16 %v8283
          %v8302 = vunpack.c.l.bf16 %v8284
          %v8303 = vunpack.c.l.bf16 %v8285
          %v8304 = vunpack.c.l.bf16 %v8286
          %v8305 = vunpack.c.l.bf16 %v8287
          %v8306 = vunpack.c.l.bf16 %v8288
          %v8307 = vunpack.c.l.bf16 %v8289
          %v8308 = vunpack.c.h.bf16 %v8284
          %v8309 = vunpack.c.h.bf16 %v8285
          %v8310 = vunpack.c.h.bf16 %v8286
          %v8311 = vunpack.c.h.bf16 %v8287
          %v8312 = vunpack.c.h.bf16 %v8288
          %v8313 = vunpack.c.h.bf16 %v8289
          %v8314 = vadd.f32 %v8290, %v8296
          %v8315 = vadd.f32 %v8314, %v8302
          %v8316 = vadd.f32 %v8315, %v8308
          %v8317 = vrot.slane %v8316, 4
          %v8318 = vadd.f32 %v8316, %v8317
          %v8319 = vrot.slane %v8318, 2
          %v8320 = vadd.f32 %v8318, %v8319
          %v8321 = vrot.slane %v8320, 1
          %v8322 = vadd.f32 %v8320, %v8321
          %v8323 = vadd.f32 %v8291, %v8297
          %v8324 = vadd.f32 %v8323, %v8303
          %v8325 = vadd.f32 %v8324, %v8309
          %v8326 = vrot.slane %v8325, 4
          %v8327 = vadd.f32 %v8325, %v8326
          %v8328 = vrot.slane %v8327, 2
          %v8329 = vadd.f32 %v8327, %v8328
          %v8330 = vrot.slane %v8329, 1
          %v8331 = vadd.f32 %v8329, %v8330
          %v8332 = vadd.f32 %v8292, %v8298
          %v8333 = vadd.f32 %v8332, %v8304
          %v8334 = vadd.f32 %v8333, %v8310
          %v8335 = vrot.slane %v8334, 4
          %v8336 = vadd.f32 %v8334, %v8335
          %v8337 = vrot.slane %v8336, 2
          %v8338 = vadd.f32 %v8336, %v8337
          %v8339 = vrot.slane %v8338, 1
          %v8340 = vadd.f32 %v8338, %v8339
          %v8341 = vadd.f32 %v8293, %v8299
          %v8342 = vadd.f32 %v8341, %v8305
          %v8343 = vadd.f32 %v8342, %v8311
          %v8344 = vrot.slane %v8343, 4
          %v8345 = vadd.f32 %v8343, %v8344
          %v8346 = vrot.slane %v8345, 2
          %v8347 = vadd.f32 %v8345, %v8346
          %v8348 = vrot.slane %v8347, 1
          %v8349 = vadd.f32 %v8347, %v8348
          %v8350 = vadd.f32 %v8294, %v8300
          %v8351 = vadd.f32 %v8350, %v8306
          %v8352 = vadd.f32 %v8351, %v8312
          %v8353 = vrot.slane %v8352, 4
          %v8354 = vadd.f32 %v8352, %v8353
          %v8355 = vrot.slane %v8354, 2
          %v8356 = vadd.f32 %v8354, %v8355
          %v8357 = vrot.slane %v8356, 1
          %v8358 = vadd.f32 %v8356, %v8357
          %v8359 = vadd.f32 %v8295, %v8301
          %v8360 = vadd.f32 %v8359, %v8307
          %v8361 = vadd.f32 %v8360, %v8313
          %v8362 = vrot.slane %v8361, 4
          %v8363 = vadd.f32 %v8361, %v8362
          %v8364 = vrot.slane %v8363, 2
          %v8365 = vadd.f32 %v8363, %v8364
          %v8366 = vrot.slane %v8365, 1
          %v8367 = vadd.f32 %v8365, %v8366
          %v8368 = vadd.f32 %v8170, %v8322
          %v8369 = vadd.f32 %v8171, %v8331
          %v8370 = vadd.f32 %v8172, %v8340
          %v8371 = vadd.f32 %v8173, %v8349
          %v8372 = vadd.f32 %v8174, %v8358
          %v8373 = vadd.f32 %v8175, %v8367
          %s8374 = sadd.s32 %s8203, 72
          %s8375 = smul.addr %s8374, 8
          %s8376 = scalar_lea.vmem [#allocation2], %s8375
          %v8377 = vld [vmem:[%s8376] sm:$0xff]
          %v8378 = vld [vmem:[%s8376 + $0x8] sm:$0xff]
          %v8379 = vld [vmem:[%s8376 + $0x10] sm:$0xff]
          %v8380 = vld [vmem:[%s8376 + $0x18] sm:$0xff]
          %v8381 = vld [vmem:[%s8376 + $0x20] sm:$0xff]
          %v8382 = vld [vmem:[%s8376 + $0x28] sm:$0xff]
          %v8383 = vld [vmem:[%s8376 + $0x30] sm:$0xff]
          %v8384 = vld [vmem:[%s8376 + $0x38] sm:$0xff]
          %v8385 = vld [vmem:[%s8376 + $0x40] sm:$0xff]
          %v8386 = vld [vmem:[%s8376 + $0x48] sm:$0xff]
          %v8387 = vld [vmem:[%s8376 + $0x50] sm:$0xff]
          %v8388 = vld [vmem:[%s8376 + $0x58] sm:$0xff]
          %v8389 = vmul.bf16 %v8377, %v8254
          %v8390 = vmul.bf16 %v8378, %v8255
          %v8391 = vmul.bf16 %v8379, %v8256
          %v8392 = vmul.bf16 %v8380, %v8257
          %v8393 = vmul.bf16 %v8381, %v8258
          %v8394 = vmul.bf16 %v8382, %v8259
          %v8395 = vmul.bf16 %v8383, %v8260
          %v8396 = vmul.bf16 %v8384, %v8261
          %v8397 = vmul.bf16 %v8385, %v8262
          %v8398 = vmul.bf16 %v8386, %v8263
          %v8399 = vmul.bf16 %v8387, %v8264
          %v8400 = vmul.bf16 %v8388, %v8265
          %v8401 = vunpack.c.l.bf16 %v8389
          %v8402 = vunpack.c.l.bf16 %v8390
          %v8403 = vunpack.c.l.bf16 %v8391
          %v8404 = vunpack.c.l.bf16 %v8392
          %v8405 = vunpack.c.l.bf16 %v8393
          %v8406 = vunpack.c.l.bf16 %v8394
          %v8407 = vunpack.c.h.bf16 %v8389
          %v8408 = vunpack.c.h.bf16 %v8390
          %v8409 = vunpack.c.h.bf16 %v8391
          %v8410 = vunpack.c.h.bf16 %v8392
          %v8411 = vunpack.c.h.bf16 %v8393
          %v8412 = vunpack.c.h.bf16 %v8394
          %v8413 = vunpack.c.l.bf16 %v8395
          %v8414 = vunpack.c.l.bf16 %v8396
          %v8415 = vunpack.c.l.bf16 %v8397
          %v8416 = vunpack.c.l.bf16 %v8398
          %v8417 = vunpack.c.l.bf16 %v8399
          %v8418 = vunpack.c.l.bf16 %v8400
          %v8419 = vunpack.c.h.bf16 %v8395
          %v8420 = vunpack.c.h.bf16 %v8396
          %v8421 = vunpack.c.h.bf16 %v8397
          %v8422 = vunpack.c.h.bf16 %v8398
          %v8423 = vunpack.c.h.bf16 %v8399
          %v8424 = vunpack.c.h.bf16 %v8400
          %v8425 = vadd.f32 %v8401, %v8407
          %v8426 = vadd.f32 %v8425, %v8413
          %v8427 = vadd.f32 %v8426, %v8419
          %v8428 = vrot.slane %v8427, 4
          %v8429 = vadd.f32 %v8427, %v8428
          %v8430 = vrot.slane %v8429, 2
          %v8431 = vadd.f32 %v8429, %v8430
          %v8432 = vrot.slane %v8431, 1
          %v8433 = vadd.f32 %v8431, %v8432
          %v8434 = vadd.f32 %v8402, %v8408
          %v8435 = vadd.f32 %v8434, %v8414
          %v8436 = vadd.f32 %v8435, %v8420
          %v8437 = vrot.slane %v8436, 4
          %v8438 = vadd.f32 %v8436, %v8437
          %v8439 = vrot.slane %v8438, 2
          %v8440 = vadd.f32 %v8438, %v8439
          %v8441 = vrot.slane %v8440, 1
          %v8442 = vadd.f32 %v8440, %v8441
          %v8443 = vadd.f32 %v8403, %v8409
          %v8444 = vadd.f32 %v8443, %v8415
          %v8445 = vadd.f32 %v8444, %v8421
          %v8446 = vrot.slane %v8445, 4
          %v8447 = vadd.f32 %v8445, %v8446
          %v8448 = vrot.slane %v8447, 2
          %v8449 = vadd.f32 %v8447, %v8448
          %v8450 = vrot.slane %v8449, 1
          %v8451 = vadd.f32 %v8449, %v8450
          %v8452 = vadd.f32 %v8404, %v8410
          %v8453 = vadd.f32 %v8452, %v8416
          %v8454 = vadd.f32 %v8453, %v8422
          %v8455 = vrot.slane %v8454, 4
          %v8456 = vadd.f32 %v8454, %v8455
          %v8457 = vrot.slane %v8456, 2
          %v8458 = vadd.f32 %v8456, %v8457
          %v8459 = vrot.slane %v8458, 1
          %v8460 = vadd.f32 %v8458, %v8459
          %v8461 = vadd.f32 %v8405, %v8411
          %v8462 = vadd.f32 %v8461, %v8417
          %v8463 = vadd.f32 %v8462, %v8423
          %v8464 = vrot.slane %v8463, 4
          %v8465 = vadd.f32 %v8463, %v8464
          %v8466 = vrot.slane %v8465, 2
          %v8467 = vadd.f32 %v8465, %v8466
          %v8468 = vrot.slane %v8467, 1
          %v8469 = vadd.f32 %v8467, %v8468
          %v8470 = vadd.f32 %v8406, %v8412
          %v8471 = vadd.f32 %v8470, %v8418
          %v8472 = vadd.f32 %v8471, %v8424
          %v8473 = vrot.slane %v8472, 4
          %v8474 = vadd.f32 %v8472, %v8473
          %v8475 = vrot.slane %v8474, 2
          %v8476 = vadd.f32 %v8474, %v8475
          %v8477 = vrot.slane %v8476, 1
          %v8478 = vadd.f32 %v8476, %v8477
          %v8479 = vadd.f32 %v8176, %v8433
          %v8480 = vadd.f32 %v8177, %v8442
          %v8481 = vadd.f32 %v8178, %v8451
          %v8482 = vadd.f32 %v8179, %v8460
          %v8483 = vadd.f32 %v8180, %v8469
          %v8484 = vadd.f32 %v8181, %v8478
        $region114: #{image_classifier_forward.1} parent=54 // loop_footer
          %s8169 = sadd.s32 1, %s8165
        $region115: #{image_classifier_forward.1} parent=54 // loop_footer_branch
          %8164 = sbr.rel target = $region111
        $region116: #{image_classifier_forward.1} parent=54 // loop_exit
          _
        %s8485 = scalar_lea.vmem [#allocation3], 72
        %v8486 = vld [vmem:[%s8485] sm:$0xff]
        %v8487 = vld [vmem:[%s8485 + $0x8] sm:$0xf]
        %v8488 = vsel %vm6285, %v8170, %v8176
        %v8489 = vsel %vm6285, %v8171, %v8177
        %v8490 = vsel %vm6285, %v8172, %v8178
        %v8491 = vsel %vm6285, %v8173, %v8179
        %v8492 = vsel %vm6285, %v8174, %v8180
        %v8493 = vsel %vm6285, %v8175, %v8181
        %v8500 = vcombine.low %v8488, %v8489
        %v8501 = vcombine.low %v8490, %v8491
        %v8503 = vunpack.c.l.s4 1983009808
        %v8504 = vunpack.c.0.s8 %v8503
        %v8505 = vlaneseq
        %v8506 = vshrl.u32 %v8505, 7
        %v8507 = vsub.s32 %v8504, %v8506
        %v8508 = vrot.slane %v8500, %v8507
        %v8510 = vunpack.c.l.s4 1983009808
        %v8511 = vunpack.c.0.s8 %v8510
        %v8512 = vlaneseq
        %v8513 = vshrl.u32 %v8512, 7
        %v8514 = vsub.s32 %v8511, %v8513
        %v8515 = vrot.slane %v8501, %v8514
        %v8516 = vcombine.low %v8508, %v8515
        %v8517 = vcombine.low %v8492, %v8493
        %v8519 = vunpack.c.l.s4 1983009808
        %v8520 = vunpack.c.0.s8 %v8519
        %v8521 = vlaneseq
        %v8522 = vshrl.u32 %v8521, 7
        %v8523 = vsub.s32 %v8520, %v8522
        %v8524 = vrot.slane %v8517, %v8523
        %v8527 = vadd.f32 %v8486, %v8516
        %v8528 = vadd.f32 %v8487, %v8524
        %8529 = vst [vmem:[%s8485] sm:$0xff] %v8527
        %8530 = vst [vmem:[%s8485 + $0x8] sm:$0xf] %v8528
        loop: start=0, step=1, limit=6
        $region117: #{image_classifier_forward.1} parent=54 // loop_pre_header
          _
        $region118: #{image_classifier_forward.1} parent=54 // loop_header
          %s8532 = sphi 0, %s8536
          %p8533 = scmp.ge.s32.totalorder %s8532, 6
          %v8537 = vphi 0.0, %v8735
          %v8538 = vphi 0.0, %v8736
          %v8539 = vphi 0.0, %v8737
          %v8540 = vphi 0.0, %v8738
          %v8541 = vphi 0.0, %v8739
          %v8542 = vphi 0.0, %v8740
          %v8543 = vphi 0.0, %v8846
          %v8544 = vphi 0.0, %v8847
          %v8545 = vphi 0.0, %v8848
          %v8546 = vphi 0.0, %v8849
          %v8547 = vphi 0.0, %v8850
          %v8548 = vphi 0.0, %v8851
        $region119: #{image_classifier_forward.1} parent=54 // loop_header_branch
          %8535 = sbr.rel (%p8533) target = $region123
        $region120: #{image_classifier_forward.1} parent=54 // loop_body
          %s8549 = smul.u32 %s8532, 32
          %s8550 = sshra.s32 %s8549, 3
          %s8551 = sand.u32 %s8549, 7
          %s8552 = smul.u32 %s8550, 6
          %s8553 = sadd.s32 %s8552, 1008
          %s8554 = smul.addr %s8553, 4
          %s8555 = scalar_lea.vmem %s753, %s8554 [#allocation5]
          %v8556 = vld [vmem:[%s8555] sm:$0xff]
          %v8557 = vld [vmem:[%s8555 + $0x8] sm:$0xff]
          %v8558 = vld [vmem:[%s8555 + $0x10] sm:$0xff]
          %v8559 = vld [vmem:[%s8555 + $0x18] sm:$0xff]
          %v8560 = vld [vmem:[%s8555 + $0x20] sm:$0xff]
          %v8561 = vld [vmem:[%s8555 + $0x28] sm:$0xff]
          %v8562 = vld [vmem:[%s8555 + $0x30] sm:$0xff]
          %v8563 = vld [vmem:[%s8555 + $0x38] sm:$0xff]
          %v8564 = vld [vmem:[%s8555 + $0x40] sm:$0xff]
          %v8565 = vld [vmem:[%s8555 + $0x48] sm:$0xff]
          %v8566 = vld [vmem:[%s8555 + $0x50] sm:$0xff]
          %v8567 = vld [vmem:[%s8555 + $0x58] sm:$0xff]
          %s8568 = sshra.s32 %s8549, 4
          %s8569 = sand.u32 %s8549, 15
          %s8570 = smul.u32 %s8568, 6
          %s8571 = smul.addr %s8570, 8
          %s8572 = scalar_lea.vmem [#allocation2], %s8571
          %v8573 = vld [vmem:[%s8572] sm:$0xff]
          %v8574 = vld [vmem:[%s8572 + $0x8] sm:$0xff]
          %v8575 = vld [vmem:[%s8572 + $0x10] sm:$0xff]
          %v8576 = vld [vmem:[%s8572 + $0x18] sm:$0xff]
          %v8577 = vld [vmem:[%s8572 + $0x20] sm:$0xff]
          %v8578 = vld [vmem:[%s8572 + $0x28] sm:$0xff]
          %v8579 = vld [vmem:[%s8572 + $0x30] sm:$0xff]
          %v8580 = vld [vmem:[%s8572 + $0x38] sm:$0xff]
          %v8581 = vld [vmem:[%s8572 + $0x40] sm:$0xff]
          %v8582 = vld [vmem:[%s8572 + $0x48] sm:$0xff]
          %v8583 = vld [vmem:[%s8572 + $0x50] sm:$0xff]
          %v8584 = vld [vmem:[%s8572 + $0x58] sm:$0xff]
          %v8597 = vunpack.c.l.b16 %v8556
          %v8598 = vunpack.c.h.b16 %v8556
          %v8599 = vunpack.c.l.b16 %v8557
          %v8600 = vunpack.c.h.b16 %v8557
          %v8601 = vunpack.c.l.b16 %v8558
          %v8602 = vunpack.c.h.b16 %v8558
          %v8603 = vunpack.c.l.b16 %v8559
          %v8604 = vunpack.c.h.b16 %v8559
          %v8605 = vunpack.c.l.b16 %v8560
          %v8606 = vunpack.c.h.b16 %v8560
          %v8607 = vunpack.c.l.b16 %v8561
          %v8608 = vunpack.c.h.b16 %v8561
          %v8609 = vunpack.c.l.b16 %v8562
          %v8610 = vunpack.c.h.b16 %v8562
          %v8611 = vunpack.c.l.b16 %v8563
          %v8612 = vunpack.c.h.b16 %v8563
          %v8613 = vunpack.c.l.b16 %v8564
          %v8614 = vunpack.c.h.b16 %v8564
          %v8615 = vunpack.c.l.b16 %v8565
          %v8616 = vunpack.c.h.b16 %v8565
          %v8617 = vunpack.c.l.b16 %v8566
          %v8618 = vunpack.c.h.b16 %v8566
          %v8619 = vunpack.c.l.b16 %v8567
          %v8620 = vunpack.c.h.b16 %v8567
          %v8621 = vpack.c.b16 %v8603, %v8597
          %v8622 = vpack.c.b16 %v8604, %v8598
          %v8623 = vpack.c.b16 %v8605, %v8599
          %v8624 = vpack.c.b16 %v8606, %v8600
          %v8625 = vpack.c.b16 %v8607, %v8601
          %v8626 = vpack.c.b16 %v8608, %v8602
          %v8627 = vpack.c.b16 %v8615, %v8609
          %v8628 = vpack.c.b16 %v8616, %v8610
          %v8629 = vpack.c.b16 %v8617, %v8611
          %v8630 = vpack.c.b16 %v8618, %v8612
          %v8631 = vpack.c.b16 %v8619, %v8613
          %v8632 = vpack.c.b16 %v8620, %v8614
          %v8645 = vmul.bf16 %v8573, %v8621
          %v8646 = vmul.bf16 %v8574, %v8622
          %v8647 = vmul.bf16 %v8575, %v8623
          %v8648 = vmul.bf16 %v8576, %v8624
          %v8649 = vmul.bf16 %v8577, %v8625
          %v8650 = vmul.bf16 %v8578, %v8626
          %v8651 = vmul.bf16 %v8579, %v8627
          %v8652 = vmul.bf16 %v8580, %v8628
          %v8653 = vmul.bf16 %v8581, %v8629
          %v8654 = vmul.bf16 %v8582, %v8630
          %v8655 = vmul.bf16 %v8583, %v8631
          %v8656 = vmul.bf16 %v8584, %v8632
          %v8657 = vunpack.c.l.bf16 %v8645
          %v8658 = vunpack.c.l.bf16 %v8646
          %v8659 = vunpack.c.l.bf16 %v8647
          %v8660 = vunpack.c.l.bf16 %v8648
          %v8661 = vunpack.c.l.bf16 %v8649
          %v8662 = vunpack.c.l.bf16 %v8650
          %v8663 = vunpack.c.h.bf16 %v8645
          %v8664 = vunpack.c.h.bf16 %v8646
          %v8665 = vunpack.c.h.bf16 %v8647
          %v8666 = vunpack.c.h.bf16 %v8648
          %v8667 = vunpack.c.h.bf16 %v8649
          %v8668 = vunpack.c.h.bf16 %v8650
          %v8669 = vunpack.c.l.bf16 %v8651
          %v8670 = vunpack.c.l.bf16 %v8652
          %v8671 = vunpack.c.l.bf16 %v8653
          %v8672 = vunpack.c.l.bf16 %v8654
          %v8673 = vunpack.c.l.bf16 %v8655
          %v8674 = vunpack.c.l.bf16 %v8656
          %v8675 = vunpack.c.h.bf16 %v8651
          %v8676 = vunpack.c.h.bf16 %v8652
          %v8677 = vunpack.c.h.bf16 %v8653
          %v8678 = vunpack.c.h.bf16 %v8654
          %v8679 = vunpack.c.h.bf16 %v8655
          %v8680 = vunpack.c.h.bf16 %v8656
          %v8681 = vadd.f32 %v8657, %v8663
          %v8682 = vadd.f32 %v8681, %v8669
          %v8683 = vadd.f32 %v8682, %v8675
          %v8684 = vrot.slane %v8683, 4
          %v8685 = vadd.f32 %v8683, %v8684
          %v8686 = vrot.slane %v8685, 2
          %v8687 = vadd.f32 %v8685, %v8686
          %v8688 = vrot.slane %v8687, 1
          %v8689 = vadd.f32 %v8687, %v8688
          %v8690 = vadd.f32 %v8658, %v8664
          %v8691 = vadd.f32 %v8690, %v8670
          %v8692 = vadd.f32 %v8691, %v8676
          %v8693 = vrot.slane %v8692, 4
          %v8694 = vadd.f32 %v8692, %v8693
          %v8695 = vrot.slane %v8694, 2
          %v8696 = vadd.f32 %v8694, %v8695
          %v8697 = vrot.slane %v8696, 1
          %v8698 = vadd.f32 %v8696, %v8697
          %v8699 = vadd.f32 %v8659, %v8665
          %v8700 = vadd.f32 %v8699, %v8671
          %v8701 = vadd.f32 %v8700, %v8677
          %v8702 = vrot.slane %v8701, 4
          %v8703 = vadd.f32 %v8701, %v8702
          %v8704 = vrot.slane %v8703, 2
          %v8705 = vadd.f32 %v8703, %v8704
          %v8706 = vrot.slane %v8705, 1
          %v8707 = vadd.f32 %v8705, %v8706
          %v8708 = vadd.f32 %v8660, %v8666
          %v8709 = vadd.f32 %v8708, %v8672
          %v8710 = vadd.f32 %v8709, %v8678
          %v8711 = vrot.slane %v8710, 4
          %v8712 = vadd.f32 %v8710, %v8711
          %v8713 = vrot.slane %v8712, 2
          %v8714 = vadd.f32 %v8712, %v8713
          %v8715 = vrot.slane %v8714, 1
          %v8716 = vadd.f32 %v8714, %v8715
          %v8717 = vadd.f32 %v8661, %v8667
          %v8718 = vadd.f32 %v8717, %v8673
          %v8719 = vadd.f32 %v8718, %v8679
          %v8720 = vrot.slane %v8719, 4
          %v8721 = vadd.f32 %v8719, %v8720
          %v8722 = vrot.slane %v8721, 2
          %v8723 = vadd.f32 %v8721, %v8722
          %v8724 = vrot.slane %v8723, 1
          %v8725 = vadd.f32 %v8723, %v8724
          %v8726 = vadd.f32 %v8662, %v8668
          %v8727 = vadd.f32 %v8726, %v8674
          %v8728 = vadd.f32 %v8727, %v8680
          %v8729 = vrot.slane %v8728, 4
          %v8730 = vadd.f32 %v8728, %v8729
          %v8731 = vrot.slane %v8730, 2
          %v8732 = vadd.f32 %v8730, %v8731
          %v8733 = vrot.slane %v8732, 1
          %v8734 = vadd.f32 %v8732, %v8733
          %v8735 = vadd.f32 %v8537, %v8689
          %v8736 = vadd.f32 %v8538, %v8698
          %v8737 = vadd.f32 %v8539, %v8707
          %v8738 = vadd.f32 %v8540, %v8716
          %v8739 = vadd.f32 %v8541, %v8725
          %v8740 = vadd.f32 %v8542, %v8734
          %s8741 = sadd.s32 %s8570, 72
          %s8742 = smul.addr %s8741, 8
          %s8743 = scalar_lea.vmem [#allocation2], %s8742
          %v8744 = vld [vmem:[%s8743] sm:$0xff]
          %v8745 = vld [vmem:[%s8743 + $0x8] sm:$0xff]
          %v8746 = vld [vmem:[%s8743 + $0x10] sm:$0xff]
          %v8747 = vld [vmem:[%s8743 + $0x18] sm:$0xff]
          %v8748 = vld [vmem:[%s8743 + $0x20] sm:$0xff]
          %v8749 = vld [vmem:[%s8743 + $0x28] sm:$0xff]
          %v8750 = vld [vmem:[%s8743 + $0x30] sm:$0xff]
          %v8751 = vld [vmem:[%s8743 + $0x38] sm:$0xff]
          %v8752 = vld [vmem:[%s8743 + $0x40] sm:$0xff]
          %v8753 = vld [vmem:[%s8743 + $0x48] sm:$0xff]
          %v8754 = vld [vmem:[%s8743 + $0x50] sm:$0xff]
          %v8755 = vld [vmem:[%s8743 + $0x58] sm:$0xff]
          %v8756 = vmul.bf16 %v8744, %v8621
          %v8757 = vmul.bf16 %v8745, %v8622
          %v8758 = vmul.bf16 %v8746, %v8623
          %v8759 = vmul.bf16 %v8747, %v8624
          %v8760 = vmul.bf16 %v8748, %v8625
          %v8761 = vmul.bf16 %v8749, %v8626
          %v8762 = vmul.bf16 %v8750, %v8627
          %v8763 = vmul.bf16 %v8751, %v8628
          %v8764 = vmul.bf16 %v8752, %v8629
          %v8765 = vmul.bf16 %v8753, %v8630
          %v8766 = vmul.bf16 %v8754, %v8631
          %v8767 = vmul.bf16 %v8755, %v8632
          %v8768 = vunpack.c.l.bf16 %v8756
          %v8769 = vunpack.c.l.bf16 %v8757
          %v8770 = vunpack.c.l.bf16 %v8758
          %v8771 = vunpack.c.l.bf16 %v8759
          %v8772 = vunpack.c.l.bf16 %v8760
          %v8773 = vunpack.c.l.bf16 %v8761
          %v8774 = vunpack.c.h.bf16 %v8756
          %v8775 = vunpack.c.h.bf16 %v8757
          %v8776 = vunpack.c.h.bf16 %v8758
          %v8777 = vunpack.c.h.bf16 %v8759
          %v8778 = vunpack.c.h.bf16 %v8760
          %v8779 = vunpack.c.h.bf16 %v8761
          %v8780 = vunpack.c.l.bf16 %v8762
          %v8781 = vunpack.c.l.bf16 %v8763
          %v8782 = vunpack.c.l.bf16 %v8764
          %v8783 = vunpack.c.l.bf16 %v8765
          %v8784 = vunpack.c.l.bf16 %v8766
          %v8785 = vunpack.c.l.bf16 %v8767
          %v8786 = vunpack.c.h.bf16 %v8762
          %v8787 = vunpack.c.h.bf16 %v8763
          %v8788 = vunpack.c.h.bf16 %v8764
          %v8789 = vunpack.c.h.bf16 %v8765
          %v8790 = vunpack.c.h.bf16 %v8766
          %v8791 = vunpack.c.h.bf16 %v8767
          %v8792 = vadd.f32 %v8768, %v8774
          %v8793 = vadd.f32 %v8792, %v8780
          %v8794 = vadd.f32 %v8793, %v8786
          %v8795 = vrot.slane %v8794, 4
          %v8796 = vadd.f32 %v8794, %v8795
          %v8797 = vrot.slane %v8796, 2
          %v8798 = vadd.f32 %v8796, %v8797
          %v8799 = vrot.slane %v8798, 1
          %v8800 = vadd.f32 %v8798, %v8799
          %v8801 = vadd.f32 %v8769, %v8775
          %v8802 = vadd.f32 %v8801, %v8781
          %v8803 = vadd.f32 %v8802, %v8787
          %v8804 = vrot.slane %v8803, 4
          %v8805 = vadd.f32 %v8803, %v8804
          %v8806 = vrot.slane %v8805, 2
          %v8807 = vadd.f32 %v8805, %v8806
          %v8808 = vrot.slane %v8807, 1
          %v8809 = vadd.f32 %v8807, %v8808
          %v8810 = vadd.f32 %v8770, %v8776
          %v8811 = vadd.f32 %v8810, %v8782
          %v8812 = vadd.f32 %v8811, %v8788
          %v8813 = vrot.slane %v8812, 4
          %v8814 = vadd.f32 %v8812, %v8813
          %v8815 = vrot.slane %v8814, 2
          %v8816 = vadd.f32 %v8814, %v8815
          %v8817 = vrot.slane %v8816, 1
          %v8818 = vadd.f32 %v8816, %v8817
          %v8819 = vadd.f32 %v8771, %v8777
          %v8820 = vadd.f32 %v8819, %v8783
          %v8821 = vadd.f32 %v8820, %v8789
          %v8822 = vrot.slane %v8821, 4
          %v8823 = vadd.f32 %v8821, %v8822
          %v8824 = vrot.slane %v8823, 2
          %v8825 = vadd.f32 %v8823, %v8824
          %v8826 = vrot.slane %v8825, 1
          %v8827 = vadd.f32 %v8825, %v8826
          %v8828 = vadd.f32 %v8772, %v8778
          %v8829 = vadd.f32 %v8828, %v8784
          %v8830 = vadd.f32 %v8829, %v8790
          %v8831 = vrot.slane %v8830, 4
          %v8832 = vadd.f32 %v8830, %v8831
          %v8833 = vrot.slane %v8832, 2
          %v8834 = vadd.f32 %v8832, %v8833
          %v8835 = vrot.slane %v8834, 1
          %v8836 = vadd.f32 %v8834, %v8835
          %v8837 = vadd.f32 %v8773, %v8779
          %v8838 = vadd.f32 %v8837, %v8785
          %v8839 = vadd.f32 %v8838, %v8791
          %v8840 = vrot.slane %v8839, 4
          %v8841 = vadd.f32 %v8839, %v8840
          %v8842 = vrot.slane %v8841, 2
          %v8843 = vadd.f32 %v8841, %v8842
          %v8844 = vrot.slane %v8843, 1
          %v8845 = vadd.f32 %v8843, %v8844
          %v8846 = vadd.f32 %v8543, %v8800
          %v8847 = vadd.f32 %v8544, %v8809
          %v8848 = vadd.f32 %v8545, %v8818
          %v8849 = vadd.f32 %v8546, %v8827
          %v8850 = vadd.f32 %v8547, %v8836
          %v8851 = vadd.f32 %v8548, %v8845
        $region121: #{image_classifier_forward.1} parent=54 // loop_footer
          %s8536 = sadd.s32 1, %s8532
        $region122: #{image_classifier_forward.1} parent=54 // loop_footer_branch
          %8531 = sbr.rel target = $region118
        $region123: #{image_classifier_forward.1} parent=54 // loop_exit
          _
        %s8852 = scalar_lea.vmem [#allocation3], 84
        %v8853 = vld [vmem:[%s8852] sm:$0xff]
        %v8854 = vld [vmem:[%s8852 + $0x8] sm:$0xf]
        %v8855 = vsel %vm6285, %v8537, %v8543
        %v8856 = vsel %vm6285, %v8538, %v8544
        %v8857 = vsel %vm6285, %v8539, %v8545
        %v8858 = vsel %vm6285, %v8540, %v8546
        %v8859 = vsel %vm6285, %v8541, %v8547
        %v8860 = vsel %vm6285, %v8542, %v8548
        %v8867 = vcombine.low %v8855, %v8856
        %v8868 = vcombine.low %v8857, %v8858
        %v8870 = vunpack.c.l.s4 1983009808
        %v8871 = vunpack.c.0.s8 %v8870
        %v8872 = vlaneseq
        %v8873 = vshrl.u32 %v8872, 7
        %v8874 = vsub.s32 %v8871, %v8873
        %v8875 = vrot.slane %v8867, %v8874
        %v8877 = vunpack.c.l.s4 1983009808
        %v8878 = vunpack.c.0.s8 %v8877
        %v8879 = vlaneseq
        %v8880 = vshrl.u32 %v8879, 7
        %v8881 = vsub.s32 %v8878, %v8880
        %v8882 = vrot.slane %v8868, %v8881
        %v8883 = vcombine.low %v8875, %v8882
        %v8884 = vcombine.low %v8859, %v8860
        %v8886 = vunpack.c.l.s4 1983009808
        %v8887 = vunpack.c.0.s8 %v8886
        %v8888 = vlaneseq
        %v8889 = vshrl.u32 %v8888, 7
        %v8890 = vsub.s32 %v8887, %v8889
        %v8891 = vrot.slane %v8884, %v8890
        %v8894 = vadd.f32 %v8853, %v8883
        %v8895 = vadd.f32 %v8854, %v8891
        %8896 = vst [vmem:[%s8852] sm:$0xff] %v8894
        %8897 = vst [vmem:[%s8852 + $0x8] sm:$0xf] %v8895
        loop: start=0, step=1, limit=6
        $region124: #{image_classifier_forward.1} parent=54 // loop_pre_header
          _
        $region125: #{image_classifier_forward.1} parent=54 // loop_header
          %s8899 = sphi 0, %s8903
          %p8900 = scmp.ge.s32.totalorder %s8899, 6
          %v8904 = vphi 0.0, %v9102
          %v8905 = vphi 0.0, %v9103
          %v8906 = vphi 0.0, %v9104
          %v8907 = vphi 0.0, %v9105
          %v8908 = vphi 0.0, %v9106
          %v8909 = vphi 0.0, %v9107
          %v8910 = vphi 0.0, %v9213
          %v8911 = vphi 0.0, %v9214
          %v8912 = vphi 0.0, %v9215
          %v8913 = vphi 0.0, %v9216
          %v8914 = vphi 0.0, %v9217
          %v8915 = vphi 0.0, %v9218
        $region126: #{image_classifier_forward.1} parent=54 // loop_header_branch
          %8902 = sbr.rel (%p8900) target = $region130
        $region127: #{image_classifier_forward.1} parent=54 // loop_body
          %s8916 = smul.u32 %s8899, 32
          %s8917 = sshra.s32 %s8916, 3
          %s8918 = sand.u32 %s8916, 7
          %s8919 = smul.u32 %s8917, 6
          %s8920 = sadd.s32 %s8919, 1152
          %s8921 = smul.addr %s8920, 4
          %s8922 = scalar_lea.vmem %s753, %s8921 [#allocation5]
          %v8923 = vld [vmem:[%s8922] sm:$0xff]
          %v8924 = vld [vmem:[%s8922 + $0x8] sm:$0xff]
          %v8925 = vld [vmem:[%s8922 + $0x10] sm:$0xff]
          %v8926 = vld [vmem:[%s8922 + $0x18] sm:$0xff]
          %v8927 = vld [vmem:[%s8922 + $0x20] sm:$0xff]
          %v8928 = vld [vmem:[%s8922 + $0x28] sm:$0xff]
          %v8929 = vld [vmem:[%s8922 + $0x30] sm:$0xff]
          %v8930 = vld [vmem:[%s8922 + $0x38] sm:$0xff]
          %v8931 = vld [vmem:[%s8922 + $0x40] sm:$0xff]
          %v8932 = vld [vmem:[%s8922 + $0x48] sm:$0xff]
          %v8933 = vld [vmem:[%s8922 + $0x50] sm:$0xff]
          %v8934 = vld [vmem:[%s8922 + $0x58] sm:$0xff]
          %s8935 = sshra.s32 %s8916, 4
          %s8936 = sand.u32 %s8916, 15
          %s8937 = smul.u32 %s8935, 6
          %s8938 = smul.addr %s8937, 8
          %s8939 = scalar_lea.vmem [#allocation2], %s8938
          %v8940 = vld [vmem:[%s8939] sm:$0xff]
          %v8941 = vld [vmem:[%s8939 + $0x8] sm:$0xff]
          %v8942 = vld [vmem:[%s8939 + $0x10] sm:$0xff]
          %v8943 = vld [vmem:[%s8939 + $0x18] sm:$0xff]
          %v8944 = vld [vmem:[%s8939 + $0x20] sm:$0xff]
          %v8945 = vld [vmem:[%s8939 + $0x28] sm:$0xff]
          %v8946 = vld [vmem:[%s8939 + $0x30] sm:$0xff]
          %v8947 = vld [vmem:[%s8939 + $0x38] sm:$0xff]
          %v8948 = vld [vmem:[%s8939 + $0x40] sm:$0xff]
          %v8949 = vld [vmem:[%s8939 + $0x48] sm:$0xff]
          %v8950 = vld [vmem:[%s8939 + $0x50] sm:$0xff]
          %v8951 = vld [vmem:[%s8939 + $0x58] sm:$0xff]
          %v8964 = vunpack.c.l.b16 %v8923
          %v8965 = vunpack.c.h.b16 %v8923
          %v8966 = vunpack.c.l.b16 %v8924
          %v8967 = vunpack.c.h.b16 %v8924
          %v8968 = vunpack.c.l.b16 %v8925
          %v8969 = vunpack.c.h.b16 %v8925
          %v8970 = vunpack.c.l.b16 %v8926
          %v8971 = vunpack.c.h.b16 %v8926
          %v8972 = vunpack.c.l.b16 %v8927
          %v8973 = vunpack.c.h.b16 %v8927
          %v8974 = vunpack.c.l.b16 %v8928
          %v8975 = vunpack.c.h.b16 %v8928
          %v8976 = vunpack.c.l.b16 %v8929
          %v8977 = vunpack.c.h.b16 %v8929
          %v8978 = vunpack.c.l.b16 %v8930
          %v8979 = vunpack.c.h.b16 %v8930
          %v8980 = vunpack.c.l.b16 %v8931
          %v8981 = vunpack.c.h.b16 %v8931
          %v8982 = vunpack.c.l.b16 %v8932
          %v8983 = vunpack.c.h.b16 %v8932
          %v8984 = vunpack.c.l.b16 %v8933
          %v8985 = vunpack.c.h.b16 %v8933
          %v8986 = vunpack.c.l.b16 %v8934
          %v8987 = vunpack.c.h.b16 %v8934
          %v8988 = vpack.c.b16 %v8970, %v8964
          %v8989 = vpack.c.b16 %v8971, %v8965
          %v8990 = vpack.c.b16 %v8972, %v8966
          %v8991 = vpack.c.b16 %v8973, %v8967
          %v8992 = vpack.c.b16 %v8974, %v8968
          %v8993 = vpack.c.b16 %v8975, %v8969
          %v8994 = vpack.c.b16 %v8982, %v8976
          %v8995 = vpack.c.b16 %v8983, %v8977
          %v8996 = vpack.c.b16 %v8984, %v8978
          %v8997 = vpack.c.b16 %v8985, %v8979
          %v8998 = vpack.c.b16 %v8986, %v8980
          %v8999 = vpack.c.b16 %v8987, %v8981
          %v9012 = vmul.bf16 %v8940, %v8988
          %v9013 = vmul.bf16 %v8941, %v8989
          %v9014 = vmul.bf16 %v8942, %v8990
          %v9015 = vmul.bf16 %v8943, %v8991
          %v9016 = vmul.bf16 %v8944, %v8992
          %v9017 = vmul.bf16 %v8945, %v8993
          %v9018 = vmul.bf16 %v8946, %v8994
          %v9019 = vmul.bf16 %v8947, %v8995
          %v9020 = vmul.bf16 %v8948, %v8996
          %v9021 = vmul.bf16 %v8949, %v8997
          %v9022 = vmul.bf16 %v8950, %v8998
          %v9023 = vmul.bf16 %v8951, %v8999
          %v9024 = vunpack.c.l.bf16 %v9012
          %v9025 = vunpack.c.l.bf16 %v9013
          %v9026 = vunpack.c.l.bf16 %v9014
          %v9027 = vunpack.c.l.bf16 %v9015
          %v9028 = vunpack.c.l.bf16 %v9016
          %v9029 = vunpack.c.l.bf16 %v9017
          %v9030 = vunpack.c.h.bf16 %v9012
          %v9031 = vunpack.c.h.bf16 %v9013
          %v9032 = vunpack.c.h.bf16 %v9014
          %v9033 = vunpack.c.h.bf16 %v9015
          %v9034 = vunpack.c.h.bf16 %v9016
          %v9035 = vunpack.c.h.bf16 %v9017
          %v9036 = vunpack.c.l.bf16 %v9018
          %v9037 = vunpack.c.l.bf16 %v9019
          %v9038 = vunpack.c.l.bf16 %v9020
          %v9039 = vunpack.c.l.bf16 %v9021
          %v9040 = vunpack.c.l.bf16 %v9022
          %v9041 = vunpack.c.l.bf16 %v9023
          %v9042 = vunpack.c.h.bf16 %v9018
          %v9043 = vunpack.c.h.bf16 %v9019
          %v9044 = vunpack.c.h.bf16 %v9020
          %v9045 = vunpack.c.h.bf16 %v9021
          %v9046 = vunpack.c.h.bf16 %v9022
          %v9047 = vunpack.c.h.bf16 %v9023
          %v9048 = vadd.f32 %v9024, %v9030
          %v9049 = vadd.f32 %v9048, %v9036
          %v9050 = vadd.f32 %v9049, %v9042
          %v9051 = vrot.slane %v9050, 4
          %v9052 = vadd.f32 %v9050, %v9051
          %v9053 = vrot.slane %v9052, 2
          %v9054 = vadd.f32 %v9052, %v9053
          %v9055 = vrot.slane %v9054, 1
          %v9056 = vadd.f32 %v9054, %v9055
          %v9057 = vadd.f32 %v9025, %v9031
          %v9058 = vadd.f32 %v9057, %v9037
          %v9059 = vadd.f32 %v9058, %v9043
          %v9060 = vrot.slane %v9059, 4
          %v9061 = vadd.f32 %v9059, %v9060
          %v9062 = vrot.slane %v9061, 2
          %v9063 = vadd.f32 %v9061, %v9062
          %v9064 = vrot.slane %v9063, 1
          %v9065 = vadd.f32 %v9063, %v9064
          %v9066 = vadd.f32 %v9026, %v9032
          %v9067 = vadd.f32 %v9066, %v9038
          %v9068 = vadd.f32 %v9067, %v9044
          %v9069 = vrot.slane %v9068, 4
          %v9070 = vadd.f32 %v9068, %v9069
          %v9071 = vrot.slane %v9070, 2
          %v9072 = vadd.f32 %v9070, %v9071
          %v9073 = vrot.slane %v9072, 1
          %v9074 = vadd.f32 %v9072, %v9073
          %v9075 = vadd.f32 %v9027, %v9033
          %v9076 = vadd.f32 %v9075, %v9039
          %v9077 = vadd.f32 %v9076, %v9045
          %v9078 = vrot.slane %v9077, 4
          %v9079 = vadd.f32 %v9077, %v9078
          %v9080 = vrot.slane %v9079, 2
          %v9081 = vadd.f32 %v9079, %v9080
          %v9082 = vrot.slane %v9081, 1
          %v9083 = vadd.f32 %v9081, %v9082
          %v9084 = vadd.f32 %v9028, %v9034
          %v9085 = vadd.f32 %v9084, %v9040
          %v9086 = vadd.f32 %v9085, %v9046
          %v9087 = vrot.slane %v9086, 4
          %v9088 = vadd.f32 %v9086, %v9087
          %v9089 = vrot.slane %v9088, 2
          %v9090 = vadd.f32 %v9088, %v9089
          %v9091 = vrot.slane %v9090, 1
          %v9092 = vadd.f32 %v9090, %v9091
          %v9093 = vadd.f32 %v9029, %v9035
          %v9094 = vadd.f32 %v9093, %v9041
          %v9095 = vadd.f32 %v9094, %v9047
          %v9096 = vrot.slane %v9095, 4
          %v9097 = vadd.f32 %v9095, %v9096
          %v9098 = vrot.slane %v9097, 2
          %v9099 = vadd.f32 %v9097, %v9098
          %v9100 = vrot.slane %v9099, 1
          %v9101 = vadd.f32 %v9099, %v9100
          %v9102 = vadd.f32 %v8904, %v9056
          %v9103 = vadd.f32 %v8905, %v9065
          %v9104 = vadd.f32 %v8906, %v9074
          %v9105 = vadd.f32 %v8907, %v9083
          %v9106 = vadd.f32 %v8908, %v9092
          %v9107 = vadd.f32 %v8909, %v9101
          %s9108 = sadd.s32 %s8937, 72
          %s9109 = smul.addr %s9108, 8
          %s9110 = scalar_lea.vmem [#allocation2], %s9109
          %v9111 = vld [vmem:[%s9110] sm:$0xff]
          %v9112 = vld [vmem:[%s9110 + $0x8] sm:$0xff]
          %v9113 = vld [vmem:[%s9110 + $0x10] sm:$0xff]
          %v9114 = vld [vmem:[%s9110 + $0x18] sm:$0xff]
          %v9115 = vld [vmem:[%s9110 + $0x20] sm:$0xff]
          %v9116 = vld [vmem:[%s9110 + $0x28] sm:$0xff]
          %v9117 = vld [vmem:[%s9110 + $0x30] sm:$0xff]
          %v9118 = vld [vmem:[%s9110 + $0x38] sm:$0xff]
          %v9119 = vld [vmem:[%s9110 + $0x40] sm:$0xff]
          %v9120 = vld [vmem:[%s9110 + $0x48] sm:$0xff]
          %v9121 = vld [vmem:[%s9110 + $0x50] sm:$0xff]
          %v9122 = vld [vmem:[%s9110 + $0x58] sm:$0xff]
          %v9123 = vmul.bf16 %v9111, %v8988
          %v9124 = vmul.bf16 %v9112, %v8989
          %v9125 = vmul.bf16 %v9113, %v8990
          %v9126 = vmul.bf16 %v9114, %v8991
          %v9127 = vmul.bf16 %v9115, %v8992
          %v9128 = vmul.bf16 %v9116, %v8993
          %v9129 = vmul.bf16 %v9117, %v8994
          %v9130 = vmul.bf16 %v9118, %v8995
          %v9131 = vmul.bf16 %v9119, %v8996
          %v9132 = vmul.bf16 %v9120, %v8997
          %v9133 = vmul.bf16 %v9121, %v8998
          %v9134 = vmul.bf16 %v9122, %v8999
          %v9135 = vunpack.c.l.bf16 %v9123
          %v9136 = vunpack.c.l.bf16 %v9124
          %v9137 = vunpack.c.l.bf16 %v9125
          %v9138 = vunpack.c.l.bf16 %v9126
          %v9139 = vunpack.c.l.bf16 %v9127
          %v9140 = vunpack.c.l.bf16 %v9128
          %v9141 = vunpack.c.h.bf16 %v9123
          %v9142 = vunpack.c.h.bf16 %v9124
          %v9143 = vunpack.c.h.bf16 %v9125
          %v9144 = vunpack.c.h.bf16 %v9126
          %v9145 = vunpack.c.h.bf16 %v9127
          %v9146 = vunpack.c.h.bf16 %v9128
          %v9147 = vunpack.c.l.bf16 %v9129
          %v9148 = vunpack.c.l.bf16 %v9130
          %v9149 = vunpack.c.l.bf16 %v9131
          %v9150 = vunpack.c.l.bf16 %v9132
          %v9151 = vunpack.c.l.bf16 %v9133
          %v9152 = vunpack.c.l.bf16 %v9134
          %v9153 = vunpack.c.h.bf16 %v9129
          %v9154 = vunpack.c.h.bf16 %v9130
          %v9155 = vunpack.c.h.bf16 %v9131
          %v9156 = vunpack.c.h.bf16 %v9132
          %v9157 = vunpack.c.h.bf16 %v9133
          %v9158 = vunpack.c.h.bf16 %v9134
          %v9159 = vadd.f32 %v9135, %v9141
          %v9160 = vadd.f32 %v9159, %v9147
          %v9161 = vadd.f32 %v9160, %v9153
          %v9162 = vrot.slane %v9161, 4
          %v9163 = vadd.f32 %v9161, %v9162
          %v9164 = vrot.slane %v9163, 2
          %v9165 = vadd.f32 %v9163, %v9164
          %v9166 = vrot.slane %v9165, 1
          %v9167 = vadd.f32 %v9165, %v9166
          %v9168 = vadd.f32 %v9136, %v9142
          %v9169 = vadd.f32 %v9168, %v9148
          %v9170 = vadd.f32 %v9169, %v9154
          %v9171 = vrot.slane %v9170, 4
          %v9172 = vadd.f32 %v9170, %v9171
          %v9173 = vrot.slane %v9172, 2
          %v9174 = vadd.f32 %v9172, %v9173
          %v9175 = vrot.slane %v9174, 1
          %v9176 = vadd.f32 %v9174, %v9175
          %v9177 = vadd.f32 %v9137, %v9143
          %v9178 = vadd.f32 %v9177, %v9149
          %v9179 = vadd.f32 %v9178, %v9155
          %v9180 = vrot.slane %v9179, 4
          %v9181 = vadd.f32 %v9179, %v9180
          %v9182 = vrot.slane %v9181, 2
          %v9183 = vadd.f32 %v9181, %v9182
          %v9184 = vrot.slane %v9183, 1
          %v9185 = vadd.f32 %v9183, %v9184
          %v9186 = vadd.f32 %v9138, %v9144
          %v9187 = vadd.f32 %v9186, %v9150
          %v9188 = vadd.f32 %v9187, %v9156
          %v9189 = vrot.slane %v9188, 4
          %v9190 = vadd.f32 %v9188, %v9189
          %v9191 = vrot.slane %v9190, 2
          %v9192 = vadd.f32 %v9190, %v9191
          %v9193 = vrot.slane %v9192, 1
          %v9194 = vadd.f32 %v9192, %v9193
          %v9195 = vadd.f32 %v9139, %v9145
          %v9196 = vadd.f32 %v9195, %v9151
          %v9197 = vadd.f32 %v9196, %v9157
          %v9198 = vrot.slane %v9197, 4
          %v9199 = vadd.f32 %v9197, %v9198
          %v9200 = vrot.slane %v9199, 2
          %v9201 = vadd.f32 %v9199, %v9200
          %v9202 = vrot.slane %v9201, 1
          %v9203 = vadd.f32 %v9201, %v9202
          %v9204 = vadd.f32 %v9140, %v9146
          %v9205 = vadd.f32 %v9204, %v9152
          %v9206 = vadd.f32 %v9205, %v9158
          %v9207 = vrot.slane %v9206, 4
          %v9208 = vadd.f32 %v9206, %v9207
          %v9209 = vrot.slane %v9208, 2
          %v9210 = vadd.f32 %v9208, %v9209
          %v9211 = vrot.slane %v9210, 1
          %v9212 = vadd.f32 %v9210, %v9211
          %v9213 = vadd.f32 %v8910, %v9167
          %v9214 = vadd.f32 %v8911, %v9176
          %v9215 = vadd.f32 %v8912, %v9185
          %v9216 = vadd.f32 %v8913, %v9194
          %v9217 = vadd.f32 %v8914, %v9203
          %v9218 = vadd.f32 %v8915, %v9212
        $region128: #{image_classifier_forward.1} parent=54 // loop_footer
          %s8903 = sadd.s32 1, %s8899
        $region129: #{image_classifier_forward.1} parent=54 // loop_footer_branch
          %8898 = sbr.rel target = $region125
        $region130: #{image_classifier_forward.1} parent=54 // loop_exit
          _
        %s9219 = scalar_lea.vmem [#allocation3], 96
        %v9220 = vld [vmem:[%s9219] sm:$0xff]
        %v9221 = vld [vmem:[%s9219 + $0x8] sm:$0xf]
        %v9222 = vsel %vm6285, %v8904, %v8910
        %v9223 = vsel %vm6285, %v8905, %v8911
        %v9224 = vsel %vm6285, %v8906, %v8912
        %v9225 = vsel %vm6285, %v8907, %v8913
        %v9226 = vsel %vm6285, %v8908, %v8914
        %v9227 = vsel %vm6285, %v8909, %v8915
        %v9234 = vcombine.low %v9222, %v9223
        %v9235 = vcombine.low %v9224, %v9225
        %v9237 = vunpack.c.l.s4 1983009808
        %v9238 = vunpack.c.0.s8 %v9237
        %v9239 = vlaneseq
        %v9240 = vshrl.u32 %v9239, 7
        %v9241 = vsub.s32 %v9238, %v9240
        %v9242 = vrot.slane %v9234, %v9241
        %v9244 = vunpack.c.l.s4 1983009808
        %v9245 = vunpack.c.0.s8 %v9244
        %v9246 = vlaneseq
        %v9247 = vshrl.u32 %v9246, 7
        %v9248 = vsub.s32 %v9245, %v9247
        %v9249 = vrot.slane %v9235, %v9248
        %v9250 = vcombine.low %v9242, %v9249
        %v9251 = vcombine.low %v9226, %v9227
        %v9253 = vunpack.c.l.s4 1983009808
        %v9254 = vunpack.c.0.s8 %v9253
        %v9255 = vlaneseq
        %v9256 = vshrl.u32 %v9255, 7
        %v9257 = vsub.s32 %v9254, %v9256
        %v9258 = vrot.slane %v9251, %v9257
        %v9261 = vadd.f32 %v9220, %v9250
        %v9262 = vadd.f32 %v9221, %v9258
        %9263 = vst [vmem:[%s9219] sm:$0xff] %v9261
        %9264 = vst [vmem:[%s9219 + $0x8] sm:$0xf] %v9262
        loop: start=0, step=1, limit=6
        $region131: #{image_classifier_forward.1} parent=54 // loop_pre_header
          _
        $region132: #{image_classifier_forward.1} parent=54 // loop_header
          %s9266 = sphi 0, %s9270
          %p9267 = scmp.ge.s32.totalorder %s9266, 6
          %v9271 = vphi 0.0, %v9469
          %v9272 = vphi 0.0, %v9470
          %v9273 = vphi 0.0, %v9471
          %v9274 = vphi 0.0, %v9472
          %v9275 = vphi 0.0, %v9473
          %v9276 = vphi 0.0, %v9474
          %v9277 = vphi 0.0, %v9580
          %v9278 = vphi 0.0, %v9581
          %v9279 = vphi 0.0, %v9582
          %v9280 = vphi 0.0, %v9583
          %v9281 = vphi 0.0, %v9584
          %v9282 = vphi 0.0, %v9585
        $region133: #{image_classifier_forward.1} parent=54 // loop_header_branch
          %9269 = sbr.rel (%p9267) target = $region137
        $region134: #{image_classifier_forward.1} parent=54 // loop_body
          %s9283 = smul.u32 %s9266, 32
          %s9284 = sshra.s32 %s9283, 3
          %s9285 = sand.u32 %s9283, 7
          %s9286 = smul.u32 %s9284, 6
          %s9287 = sadd.s32 %s9286, 1296
          %s9288 = smul.addr %s9287, 4
          %s9289 = scalar_lea.vmem %s753, %s9288 [#allocation5]
          %v9290 = vld [vmem:[%s9289] sm:$0xff]
          %v9291 = vld [vmem:[%s9289 + $0x8] sm:$0xff]
          %v9292 = vld [vmem:[%s9289 + $0x10] sm:$0xff]
          %v9293 = vld [vmem:[%s9289 + $0x18] sm:$0xff]
          %v9294 = vld [vmem:[%s9289 + $0x20] sm:$0xff]
          %v9295 = vld [vmem:[%s9289 + $0x28] sm:$0xff]
          %v9296 = vld [vmem:[%s9289 + $0x30] sm:$0xff]
          %v9297 = vld [vmem:[%s9289 + $0x38] sm:$0xff]
          %v9298 = vld [vmem:[%s9289 + $0x40] sm:$0xff]
          %v9299 = vld [vmem:[%s9289 + $0x48] sm:$0xff]
          %v9300 = vld [vmem:[%s9289 + $0x50] sm:$0xff]
          %v9301 = vld [vmem:[%s9289 + $0x58] sm:$0xff]
          %s9302 = sshra.s32 %s9283, 4
          %s9303 = sand.u32 %s9283, 15
          %s9304 = smul.u32 %s9302, 6
          %s9305 = smul.addr %s9304, 8
          %s9306 = scalar_lea.vmem [#allocation2], %s9305
          %v9307 = vld [vmem:[%s9306] sm:$0xff]
          %v9308 = vld [vmem:[%s9306 + $0x8] sm:$0xff]
          %v9309 = vld [vmem:[%s9306 + $0x10] sm:$0xff]
          %v9310 = vld [vmem:[%s9306 + $0x18] sm:$0xff]
          %v9311 = vld [vmem:[%s9306 + $0x20] sm:$0xff]
          %v9312 = vld [vmem:[%s9306 + $0x28] sm:$0xff]
          %v9313 = vld [vmem:[%s9306 + $0x30] sm:$0xff]
          %v9314 = vld [vmem:[%s9306 + $0x38] sm:$0xff]
          %v9315 = vld [vmem:[%s9306 + $0x40] sm:$0xff]
          %v9316 = vld [vmem:[%s9306 + $0x48] sm:$0xff]
          %v9317 = vld [vmem:[%s9306 + $0x50] sm:$0xff]
          %v9318 = vld [vmem:[%s9306 + $0x58] sm:$0xff]
          %v9331 = vunpack.c.l.b16 %v9290
          %v9332 = vunpack.c.h.b16 %v9290
          %v9333 = vunpack.c.l.b16 %v9291
          %v9334 = vunpack.c.h.b16 %v9291
          %v9335 = vunpack.c.l.b16 %v9292
          %v9336 = vunpack.c.h.b16 %v9292
          %v9337 = vunpack.c.l.b16 %v9293
          %v9338 = vunpack.c.h.b16 %v9293
          %v9339 = vunpack.c.l.b16 %v9294
          %v9340 = vunpack.c.h.b16 %v9294
          %v9341 = vunpack.c.l.b16 %v9295
          %v9342 = vunpack.c.h.b16 %v9295
          %v9343 = vunpack.c.l.b16 %v9296
          %v9344 = vunpack.c.h.b16 %v9296
          %v9345 = vunpack.c.l.b16 %v9297
          %v9346 = vunpack.c.h.b16 %v9297
          %v9347 = vunpack.c.l.b16 %v9298
          %v9348 = vunpack.c.h.b16 %v9298
          %v9349 = vunpack.c.l.b16 %v9299
          %v9350 = vunpack.c.h.b16 %v9299
          %v9351 = vunpack.c.l.b16 %v9300
          %v9352 = vunpack.c.h.b16 %v9300
          %v9353 = vunpack.c.l.b16 %v9301
          %v9354 = vunpack.c.h.b16 %v9301
          %v9355 = vpack.c.b16 %v9337, %v9331
          %v9356 = vpack.c.b16 %v9338, %v9332
          %v9357 = vpack.c.b16 %v9339, %v9333
          %v9358 = vpack.c.b16 %v9340, %v9334
          %v9359 = vpack.c.b16 %v9341, %v9335
          %v9360 = vpack.c.b16 %v9342, %v9336
          %v9361 = vpack.c.b16 %v9349, %v9343
          %v9362 = vpack.c.b16 %v9350, %v9344
          %v9363 = vpack.c.b16 %v9351, %v9345
          %v9364 = vpack.c.b16 %v9352, %v9346
          %v9365 = vpack.c.b16 %v9353, %v9347
          %v9366 = vpack.c.b16 %v9354, %v9348
          %v9379 = vmul.bf16 %v9307, %v9355
          %v9380 = vmul.bf16 %v9308, %v9356
          %v9381 = vmul.bf16 %v9309, %v9357
          %v9382 = vmul.bf16 %v9310, %v9358
          %v9383 = vmul.bf16 %v9311, %v9359
          %v9384 = vmul.bf16 %v9312, %v9360
          %v9385 = vmul.bf16 %v9313, %v9361
          %v9386 = vmul.bf16 %v9314, %v9362
          %v9387 = vmul.bf16 %v9315, %v9363
          %v9388 = vmul.bf16 %v9316, %v9364
          %v9389 = vmul.bf16 %v9317, %v9365
          %v9390 = vmul.bf16 %v9318, %v9366
          %v9391 = vunpack.c.l.bf16 %v9379
          %v9392 = vunpack.c.l.bf16 %v9380
          %v9393 = vunpack.c.l.bf16 %v9381
          %v9394 = vunpack.c.l.bf16 %v9382
          %v9395 = vunpack.c.l.bf16 %v9383
          %v9396 = vunpack.c.l.bf16 %v9384
          %v9397 = vunpack.c.h.bf16 %v9379
          %v9398 = vunpack.c.h.bf16 %v9380
          %v9399 = vunpack.c.h.bf16 %v9381
          %v9400 = vunpack.c.h.bf16 %v9382
          %v9401 = vunpack.c.h.bf16 %v9383
          %v9402 = vunpack.c.h.bf16 %v9384
          %v9403 = vunpack.c.l.bf16 %v9385
          %v9404 = vunpack.c.l.bf16 %v9386
          %v9405 = vunpack.c.l.bf16 %v9387
          %v9406 = vunpack.c.l.bf16 %v9388
          %v9407 = vunpack.c.l.bf16 %v9389
          %v9408 = vunpack.c.l.bf16 %v9390
          %v9409 = vunpack.c.h.bf16 %v9385
          %v9410 = vunpack.c.h.bf16 %v9386
          %v9411 = vunpack.c.h.bf16 %v9387
          %v9412 = vunpack.c.h.bf16 %v9388
          %v9413 = vunpack.c.h.bf16 %v9389
          %v9414 = vunpack.c.h.bf16 %v9390
          %v9415 = vadd.f32 %v9391, %v9397
          %v9416 = vadd.f32 %v9415, %v9403
          %v9417 = vadd.f32 %v9416, %v9409
          %v9418 = vrot.slane %v9417, 4
          %v9419 = vadd.f32 %v9417, %v9418
          %v9420 = vrot.slane %v9419, 2
          %v9421 = vadd.f32 %v9419, %v9420
          %v9422 = vrot.slane %v9421, 1
          %v9423 = vadd.f32 %v9421, %v9422
          %v9424 = vadd.f32 %v9392, %v9398
          %v9425 = vadd.f32 %v9424, %v9404
          %v9426 = vadd.f32 %v9425, %v9410
          %v9427 = vrot.slane %v9426, 4
          %v9428 = vadd.f32 %v9426, %v9427
          %v9429 = vrot.slane %v9428, 2
          %v9430 = vadd.f32 %v9428, %v9429
          %v9431 = vrot.slane %v9430, 1
          %v9432 = vadd.f32 %v9430, %v9431
          %v9433 = vadd.f32 %v9393, %v9399
          %v9434 = vadd.f32 %v9433, %v9405
          %v9435 = vadd.f32 %v9434, %v9411
          %v9436 = vrot.slane %v9435, 4
          %v9437 = vadd.f32 %v9435, %v9436
          %v9438 = vrot.slane %v9437, 2
          %v9439 = vadd.f32 %v9437, %v9438
          %v9440 = vrot.slane %v9439, 1
          %v9441 = vadd.f32 %v9439, %v9440
          %v9442 = vadd.f32 %v9394, %v9400
          %v9443 = vadd.f32 %v9442, %v9406
          %v9444 = vadd.f32 %v9443, %v9412
          %v9445 = vrot.slane %v9444, 4
          %v9446 = vadd.f32 %v9444, %v9445
          %v9447 = vrot.slane %v9446, 2
          %v9448 = vadd.f32 %v9446, %v9447
          %v9449 = vrot.slane %v9448, 1
          %v9450 = vadd.f32 %v9448, %v9449
          %v9451 = vadd.f32 %v9395, %v9401
          %v9452 = vadd.f32 %v9451, %v9407
          %v9453 = vadd.f32 %v9452, %v9413
          %v9454 = vrot.slane %v9453, 4
          %v9455 = vadd.f32 %v9453, %v9454
          %v9456 = vrot.slane %v9455, 2
          %v9457 = vadd.f32 %v9455, %v9456
          %v9458 = vrot.slane %v9457, 1
          %v9459 = vadd.f32 %v9457, %v9458
          %v9460 = vadd.f32 %v9396, %v9402
          %v9461 = vadd.f32 %v9460, %v9408
          %v9462 = vadd.f32 %v9461, %v9414
          %v9463 = vrot.slane %v9462, 4
          %v9464 = vadd.f32 %v9462, %v9463
          %v9465 = vrot.slane %v9464, 2
          %v9466 = vadd.f32 %v9464, %v9465
          %v9467 = vrot.slane %v9466, 1
          %v9468 = vadd.f32 %v9466, %v9467
          %v9469 = vadd.f32 %v9271, %v9423
          %v9470 = vadd.f32 %v9272, %v9432
          %v9471 = vadd.f32 %v9273, %v9441
          %v9472 = vadd.f32 %v9274, %v9450
          %v9473 = vadd.f32 %v9275, %v9459
          %v9474 = vadd.f32 %v9276, %v9468
          %s9475 = sadd.s32 %s9304, 72
          %s9476 = smul.addr %s9475, 8
          %s9477 = scalar_lea.vmem [#allocation2], %s9476
          %v9478 = vld [vmem:[%s9477] sm:$0xff]
          %v9479 = vld [vmem:[%s9477 + $0x8] sm:$0xff]
          %v9480 = vld [vmem:[%s9477 + $0x10] sm:$0xff]
          %v9481 = vld [vmem:[%s9477 + $0x18] sm:$0xff]
          %v9482 = vld [vmem:[%s9477 + $0x20] sm:$0xff]
          %v9483 = vld [vmem:[%s9477 + $0x28] sm:$0xff]
          %v9484 = vld [vmem:[%s9477 + $0x30] sm:$0xff]
          %v9485 = vld [vmem:[%s9477 + $0x38] sm:$0xff]
          %v9486 = vld [vmem:[%s9477 + $0x40] sm:$0xff]
          %v9487 = vld [vmem:[%s9477 + $0x48] sm:$0xff]
          %v9488 = vld [vmem:[%s9477 + $0x50] sm:$0xff]
          %v9489 = vld [vmem:[%s9477 + $0x58] sm:$0xff]
          %v9490 = vmul.bf16 %v9478, %v9355
          %v9491 = vmul.bf16 %v9479, %v9356
          %v9492 = vmul.bf16 %v9480, %v9357
          %v9493 = vmul.bf16 %v9481, %v9358
          %v9494 = vmul.bf16 %v9482, %v9359
          %v9495 = vmul.bf16 %v9483, %v9360
          %v9496 = vmul.bf16 %v9484, %v9361
          %v9497 = vmul.bf16 %v9485, %v9362
          %v9498 = vmul.bf16 %v9486, %v9363
          %v9499 = vmul.bf16 %v9487, %v9364
          %v9500 = vmul.bf16 %v9488, %v9365
          %v9501 = vmul.bf16 %v9489, %v9366
          %v9502 = vunpack.c.l.bf16 %v9490
          %v9503 = vunpack.c.l.bf16 %v9491
          %v9504 = vunpack.c.l.bf16 %v9492
          %v9505 = vunpack.c.l.bf16 %v9493
          %v9506 = vunpack.c.l.bf16 %v9494
          %v9507 = vunpack.c.l.bf16 %v9495
          %v9508 = vunpack.c.h.bf16 %v9490
          %v9509 = vunpack.c.h.bf16 %v9491
          %v9510 = vunpack.c.h.bf16 %v9492
          %v9511 = vunpack.c.h.bf16 %v9493
          %v9512 = vunpack.c.h.bf16 %v9494
          %v9513 = vunpack.c.h.bf16 %v9495
          %v9514 = vunpack.c.l.bf16 %v9496
          %v9515 = vunpack.c.l.bf16 %v9497
          %v9516 = vunpack.c.l.bf16 %v9498
          %v9517 = vunpack.c.l.bf16 %v9499
          %v9518 = vunpack.c.l.bf16 %v9500
          %v9519 = vunpack.c.l.bf16 %v9501
          %v9520 = vunpack.c.h.bf16 %v9496
          %v9521 = vunpack.c.h.bf16 %v9497
          %v9522 = vunpack.c.h.bf16 %v9498
          %v9523 = vunpack.c.h.bf16 %v9499
          %v9524 = vunpack.c.h.bf16 %v9500
          %v9525 = vunpack.c.h.bf16 %v9501
          %v9526 = vadd.f32 %v9502, %v9508
          %v9527 = vadd.f32 %v9526, %v9514
          %v9528 = vadd.f32 %v9527, %v9520
          %v9529 = vrot.slane %v9528, 4
          %v9530 = vadd.f32 %v9528, %v9529
          %v9531 = vrot.slane %v9530, 2
          %v9532 = vadd.f32 %v9530, %v9531
          %v9533 = vrot.slane %v9532, 1
          %v9534 = vadd.f32 %v9532, %v9533
          %v9535 = vadd.f32 %v9503, %v9509
          %v9536 = vadd.f32 %v9535, %v9515
          %v9537 = vadd.f32 %v9536, %v9521
          %v9538 = vrot.slane %v9537, 4
          %v9539 = vadd.f32 %v9537, %v9538
          %v9540 = vrot.slane %v9539, 2
          %v9541 = vadd.f32 %v9539, %v9540
          %v9542 = vrot.slane %v9541, 1
          %v9543 = vadd.f32 %v9541, %v9542
          %v9544 = vadd.f32 %v9504, %v9510
          %v9545 = vadd.f32 %v9544, %v9516
          %v9546 = vadd.f32 %v9545, %v9522
          %v9547 = vrot.slane %v9546, 4
          %v9548 = vadd.f32 %v9546, %v9547
          %v9549 = vrot.slane %v9548, 2
          %v9550 = vadd.f32 %v9548, %v9549
          %v9551 = vrot.slane %v9550, 1
          %v9552 = vadd.f32 %v9550, %v9551
          %v9553 = vadd.f32 %v9505, %v9511
          %v9554 = vadd.f32 %v9553, %v9517
          %v9555 = vadd.f32 %v9554, %v9523
          %v9556 = vrot.slane %v9555, 4
          %v9557 = vadd.f32 %v9555, %v9556
          %v9558 = vrot.slane %v9557, 2
          %v9559 = vadd.f32 %v9557, %v9558
          %v9560 = vrot.slane %v9559, 1
          %v9561 = vadd.f32 %v9559, %v9560
          %v9562 = vadd.f32 %v9506, %v9512
          %v9563 = vadd.f32 %v9562, %v9518
          %v9564 = vadd.f32 %v9563, %v9524
          %v9565 = vrot.slane %v9564, 4
          %v9566 = vadd.f32 %v9564, %v9565
          %v9567 = vrot.slane %v9566, 2
          %v9568 = vadd.f32 %v9566, %v9567
          %v9569 = vrot.slane %v9568, 1
          %v9570 = vadd.f32 %v9568, %v9569
          %v9571 = vadd.f32 %v9507, %v9513
          %v9572 = vadd.f32 %v9571, %v9519
          %v9573 = vadd.f32 %v9572, %v9525
          %v9574 = vrot.slane %v9573, 4
          %v9575 = vadd.f32 %v9573, %v9574
          %v9576 = vrot.slane %v9575, 2
          %v9577 = vadd.f32 %v9575, %v9576
          %v9578 = vrot.slane %v9577, 1
          %v9579 = vadd.f32 %v9577, %v9578
          %v9580 = vadd.f32 %v9277, %v9534
          %v9581 = vadd.f32 %v9278, %v9543
          %v9582 = vadd.f32 %v9279, %v9552
          %v9583 = vadd.f32 %v9280, %v9561
          %v9584 = vadd.f32 %v9281, %v9570
          %v9585 = vadd.f32 %v9282, %v9579
        $region135: #{image_classifier_forward.1} parent=54 // loop_footer
          %s9270 = sadd.s32 1, %s9266
        $region136: #{image_classifier_forward.1} parent=54 // loop_footer_branch
          %9265 = sbr.rel target = $region132
        $region137: #{image_classifier_forward.1} parent=54 // loop_exit
          _
        %s9586 = scalar_lea.vmem [#allocation3], 108
        %v9587 = vld [vmem:[%s9586] sm:$0xff]
        %v9588 = vld [vmem:[%s9586 + $0x8] sm:$0xf]
        %v9589 = vsel %vm6285, %v9271, %v9277
        %v9590 = vsel %vm6285, %v9272, %v9278
        %v9591 = vsel %vm6285, %v9273, %v9279
        %v9592 = vsel %vm6285, %v9274, %v9280
        %v9593 = vsel %vm6285, %v9275, %v9281
        %v9594 = vsel %vm6285, %v9276, %v9282
        %v9601 = vcombine.low %v9589, %v9590
        %v9602 = vcombine.low %v9591, %v9592
        %v9604 = vunpack.c.l.s4 1983009808
        %v9605 = vunpack.c.0.s8 %v9604
        %v9606 = vlaneseq
        %v9607 = vshrl.u32 %v9606, 7
        %v9608 = vsub.s32 %v9605, %v9607
        %v9609 = vrot.slane %v9601, %v9608
        %v9611 = vunpack.c.l.s4 1983009808
        %v9612 = vunpack.c.0.s8 %v9611
        %v9613 = vlaneseq
        %v9614 = vshrl.u32 %v9613, 7
        %v9615 = vsub.s32 %v9612, %v9614
        %v9616 = vrot.slane %v9602, %v9615
        %v9617 = vcombine.low %v9609, %v9616
        %v9618 = vcombine.low %v9593, %v9594
        %v9620 = vunpack.c.l.s4 1983009808
        %v9621 = vunpack.c.0.s8 %v9620
        %v9622 = vlaneseq
        %v9623 = vshrl.u32 %v9622, 7
        %v9624 = vsub.s32 %v9621, %v9623
        %v9625 = vrot.slane %v9618, %v9624
        %v9628 = vadd.f32 %v9587, %v9617
        %v9629 = vadd.f32 %v9588, %v9625
        %9630 = vst [vmem:[%s9586] sm:$0xff] %v9628
        %9631 = vst [vmem:[%s9586 + $0x8] sm:$0xf] %v9629
        %p9632 = scmp.eq.s32.totalorder %s23, 1
        // Predicated region
        $region138: #{image_classifier_forward.1} parent=54 // pred_check
          %p9633 = pneg %p9632
        $region139: #{image_classifier_forward.1} parent=54 // pred_check_branch
          %9635 = sbr.rel (%p9633) target = $region141
        $region140: #{image_classifier_forward.1} parent=54 // pred_region
          %v9636 = vld [vmem:[#allocation3] sm:$0xff]
          %v9637 = vld [vmem:[#allocation3 + $0x8] sm:$0xf]
          %v9638 = vld [vmem:[#allocation3 + $0xc] sm:$0xff]
          %v9639 = vld [vmem:[#allocation3 + $0x14] sm:$0xf]
          %v9640 = vld [vmem:[#allocation3 + $0x18] sm:$0xff]
          %v9641 = vld [vmem:[#allocation3 + $0x20] sm:$0xf]
          %v9642 = vld [vmem:[#allocation3 + $0x24] sm:$0xff]
          %v9643 = vld [vmem:[#allocation3 + $0x2c] sm:$0xf]
          %v9644 = vld [vmem:[#allocation3 + $0x30] sm:$0xff]
          %v9645 = vld [vmem:[#allocation3 + $0x38] sm:$0xf]
          %v9646 = vld [vmem:[#allocation3 + $0x3c] sm:$0xff]
          %v9647 = vld [vmem:[#allocation3 + $0x44] sm:$0xf]
          %v9648 = vld [vmem:[#allocation3 + $0x48] sm:$0xff]
          %v9649 = vld [vmem:[#allocation3 + $0x50] sm:$0xf]
          %v9650 = vld [vmem:[#allocation3 + $0x54] sm:$0xff]
          %v9651 = vld [vmem:[#allocation3 + $0x5c] sm:$0xf]
          %v9652 = vld [vmem:[#allocation3 + $0x60] sm:$0xff]
          %v9653 = vld [vmem:[#allocation3 + $0x68] sm:$0xf]
          %v9654 = vld [vmem:[#allocation3 + $0x6c] sm:$0xff]
          %v9655 = vld [vmem:[#allocation3 + $0x74] sm:$0xf]
          %9656 = vst [vmem:[%s792] sm:$0xff] %v9636
          %9657 = vst [vmem:[%s792 + $0x8] sm:$0xf] %v9637
          %9658 = vst [vmem:[%s792 + $0xc] sm:$0xff] %v9638
          %9659 = vst [vmem:[%s792 + $0x14] sm:$0xf] %v9639
          %9660 = vst [vmem:[%s792 + $0x18] sm:$0xff] %v9640
          %9661 = vst [vmem:[%s792 + $0x20] sm:$0xf] %v9641
          %9662 = vst [vmem:[%s792 + $0x24] sm:$0xff] %v9642
          %9663 = vst [vmem:[%s792 + $0x2c] sm:$0xf] %v9643
          %9664 = vst [vmem:[%s792 + $0x30] sm:$0xff] %v9644
          %9665 = vst [vmem:[%s792 + $0x38] sm:$0xf] %v9645
          %9666 = vst [vmem:[%s792 + $0x3c] sm:$0xff] %v9646
          %9667 = vst [vmem:[%s792 + $0x44] sm:$0xf] %v9647
          %9668 = vst [vmem:[%s792 + $0x48] sm:$0xff] %v9648
          %9669 = vst [vmem:[%s792 + $0x50] sm:$0xf] %v9649
          %9670 = vst [vmem:[%s792 + $0x54] sm:$0xff] %v9650
          %9671 = vst [vmem:[%s792 + $0x5c] sm:$0xf] %v9651
          %9672 = vst [vmem:[%s792 + $0x60] sm:$0xff] %v9652
          %9673 = vst [vmem:[%s792 + $0x68] sm:$0xf] %v9653
          %9674 = vst [vmem:[%s792 + $0x6c] sm:$0xff] %v9654
          %9675 = vst [vmem:[%s792 + $0x74] sm:$0xf] %v9655
        $region141: #{image_classifier_forward.1} parent=54 // pred_fallthru
          _
        %p9676 = scmp.lt.s32.totalorder %s22, 1
        %s9677 = scalar_select %p9676, %s22, 1
        %s9678 = smul.addr %s9677, 60
        %s9679 = smul.addr %s9678, 2
        %s9680 = scalar_lea.vmem %s4, %s9679
        // Predicated region
        $region142: #{image_classifier_forward.1} parent=54 // pred_check
          %p9681 = pneg %p150
        $region143: #{image_classifier_forward.1} parent=54 // pred_check_branch
          %9683 = sbr.rel (%p9681) target = $region145
        $region144: #{image_classifier_forward.1} parent=54 // pred_region
          _
        $region145: #{image_classifier_forward.1} parent=54 // pred_fallthru
          _
      $region55: #{image_classifier_forward.1} parent=5 // pred_fallthru
        _
      %p9684 = scmp.le.s32.totalorder 2, %s13
      // Predicated region
      $region146: #{image_classifier_forward.1} parent=5 // pred_check
        %p9685 = pneg %p9684
      $region147: #{image_classifier_forward.1} parent=5 // pred_check_branch
        %9687 = sbr.rel (%p9685) target = $region149
      $region148: #{image_classifier_forward.1} parent=5 // pred_region
        %s9688 = ssub.s32 %s13, 2
        // Predicated region
        $region150: #{image_classifier_forward.1} parent=148 // pred_check
          %p9689 = pneg %p156
        $region151: #{image_classifier_forward.1} parent=148 // pred_check_branch
          %9691 = sbr.rel (%p9689) target = $region153
        $region152: #{image_classifier_forward.1} parent=148 // pred_region
          %p9692 = scmp.lt.s32.totalorder %s24, 1
          %s9693 = scalar_select %p9692, %s24, 1
          %s9694 = smul.addr %s9693, 60
          %s9695 = smul.addr %s9694, 2
          %s9696 = scalar_lea.vmem %s4, %s9695
        $region153: #{image_classifier_forward.1} parent=148 // pred_fallthru
          _
      $region149: #{image_classifier_forward.1} parent=5 // pred_fallthru
        _
    $region6: #{image_classifier_forward.1} parent=1 // loop_footer
      %s17 = sadd.s32 1, %s13
    $region7: #{image_classifier_forward.1} parent=1 // loop_footer_branch
      %12 = sbr.rel target = $region3
    $region8: #{image_classifier_forward.1} parent=1 // loop_exit
      _
    %9697 = vsyncpa [#allocation6], 1
    %s9698 = scalar_lea.sflag [#allocation6], 1
    %9699 = vsyncpa %s9698, 1

</llo_original>
